<compile_context>
chip_gen: v7x
topology: tpu7x:2x2x1
jax: 0.10.0
libtpu: 0.0.40
codegen_flags: <defaults>
</compile_context>

<pallas_src>
import functools

import jax
import jax.numpy as jnp
from jax import lax
from jax.experimental import pallas as pl
from jax.experimental.pallas import tpu as pltpu

LANE = 128


def _rup(x, m):
    return ((x + m - 1) // m) * m


def _mean_pool_matrix(nb, hw):
    """Block-diagonal (nb, nb*hw) mean-pool matrix built from 2-D iota.

    pres = pool @ a implements per-sample global average pooling, and
    pool^T @ dpres implements its backward broadcast -- both as tiny MXU
    matmuls, keeping every tensor 2-D and lane-dense (no 3-D reshapes).
    """
    row = lax.broadcasted_iota(jnp.int32, (nb, nb * hw), 0)
    col = lax.broadcasted_iota(jnp.int32, (nb, nb * hw), 1)
    lo = row * hw
    in_blk = (col >= lo) & (col < lo + hw)
    return jnp.where(in_blk, 1.0 / hw, 0.0).astype(jnp.float32)


# ----------------------------------------------------------------------------
# Kernel 1: fused inner training loop.
#   One grid-less pallas_call performs all 2*window SGD steps:
#     conv fwd (im2col matmul, bf16 MXU, f32 acc) + bias + ReLU + avg-pool
#     -> masked-softmax CE gradient -> dW_fc/db_fc/dpres
#     -> conv backward (reusing resident z) -> dW_conv/db_conv
#     -> SGD momentum + weight-decay update, in place in VMEM.
# ----------------------------------------------------------------------------
def _train_loop_kernel(patches_ref, onehot_ref, wc0, bc0, wf0, bf0,
                       wc, bc, wf, bf,
                       m_wc, m_bc, m_wf, m_bf,
                       *, n_steps, batch, hw, num_classes, lr, momentum, wd):
    # Working parameters live in the VMEM-resident output refs; momentum
    # buffers live in VMEM scratch.  Nothing round-trips HBM between steps.
    wc[...] = wc0[...]
    bc[...] = bc0[...]
    wf[...] = wf0[...]
    bf[...] = bf0[...]
    m_wc[...] = jnp.zeros_like(m_wc)
    m_bc[...] = jnp.zeros_like(m_bc)
    m_wf[...] = jnp.zeros_like(m_wf)
    m_bf[...] = jnp.zeros_like(m_bf)

    inv_batch = 1.0 / batch
    pool = _mean_pool_matrix(batch, hw)                       # (B, B*HW) f32
    cls_col = lax.broadcasted_iota(jnp.int32, (batch, wf.shape[1]), 1)
    cls_mask = cls_col < num_classes                          # mask padded classes

    @pl.loop(0, n_steps)
    def _(step):
        p_bf = patches_ref[step]                              # (B*HW, KP) bf16
        oh = onehot_ref[step]                                 # (B, CP)   f32
        w_conv = wc[...]
        w_fc = wf[...]

        # ---- forward: conv (flattened-M im2col matmul) + bias + ReLU + pool
        z = jnp.dot(p_bf, w_conv.astype(jnp.bfloat16),
                    preferred_element_type=jnp.float32) + bc[...]   # (B*HW, FP)
        a = jnp.maximum(z, 0.0)
        pres = jnp.dot(pool, a, preferred_element_type=jnp.float32)  # (B, FP)

        # ---- head forward + masked-softmax cross-entropy gradient
        logits = jnp.dot(pres, w_fc,
                         preferred_element_type=jnp.float32) + bf[...]
        lm = jnp.where(cls_mask, logits, -1e30)
        mx = jnp.max(lm, axis=-1, keepdims=True)
        e = jnp.where(cls_mask, jnp.exp(lm - mx), 0.0)
        prob = e / jnp.sum(e, axis=-1, keepdims=True)
        dlogits = (prob - oh) * inv_batch                     # (B, CP) mean CE

        # ---- head backward (transposed contractions, no materialized .T)
        d_wf = lax.dot_general(pres, dlogits, (((0,), (0,)), ((), ())),
                               preferred_element_type=jnp.float32)   # (FP, CP)
        d_bf = jnp.sum(dlogits, axis=0, keepdims=True)                # (1, CP)
        dpres = lax.dot_general(dlogits, w_fc, (((1,), (1,)), ((), ())),
                                preferred_element_type=jnp.float32)  # (B, FP)

        # ---- conv backward: pool^T broadcast + ReLU mask (z kept resident)
        dz = lax.dot_general(pool, dpres, (((0,), (0,)), ((), ())),
                             preferred_element_type=jnp.float32)     # (B*HW, FP)
        dz = jnp.where(z > 0.0, dz, 0.0)
        d_wc = lax.dot_general(p_bf.astype(jnp.float32), dz,
                               (((0,), (0,)), ((), ())),
                               preferred_element_type=jnp.float32)   # (KP, FP)
        d_bc = jnp.sum(dz, axis=0, keepdims=True)                     # (1, FP)

        # ---- fused SGD (momentum=0.9, weight_decay=5e-4), in place in VMEM
        def sgd(w_ref, m_ref, g):
            w = w_ref[...]
            buf = momentum * m_ref[...] + (g + wd * w)
            m_ref[...] = buf
            w_ref[...] = w - lr * buf

        sgd(wc, m_wc, d_wc)
        sgd(bc, m_bc, d_bc)
        sgd(wf, m_wf, d_wf)
        sgd(bf, m_bf, d_bf)


def train_loop(step_patches, step_onehot, params, *, num_classes, lr,
               momentum, wd):
    n_steps, bhw, kp = step_patches.shape
    _, batch, cp = step_onehot.shape
    hw = bhw // batch
    w_conv, b_conv, w_fc, b_fc = params
    fp = w_conv.shape[1]
    return pl.pallas_call(
        functools.partial(_train_loop_kernel, n_steps=n_steps, batch=batch,
                          hw=hw, num_classes=num_classes, lr=lr,
                          momentum=momentum, wd=wd),
        out_shape=(jax.ShapeDtypeStruct((kp, fp), jnp.float32),
                   jax.ShapeDtypeStruct((1, fp), jnp.float32),
                   jax.ShapeDtypeStruct((fp, cp), jnp.float32),
                   jax.ShapeDtypeStruct((1, cp), jnp.float32)),
        scratch_shapes=[pltpu.VMEM((kp, fp), jnp.float32),
                        pltpu.VMEM((1, fp), jnp.float32),
                        pltpu.VMEM((fp, cp), jnp.float32),
                        pltpu.VMEM((1, cp), jnp.float32)],
    )(step_patches, step_onehot, w_conv, b_conv, w_fc, b_fc)


# ----------------------------------------------------------------------------
# Kernel 2: fused eval forward: conv + bias + ReLU + pool + logits.
# ----------------------------------------------------------------------------
def _eval_fwd_kernel(p_ref, wc_ref, bc_ref, wf_ref, bf_ref,
                     logits_ref, pres_ref, *, batch, hw):
    pool = _mean_pool_matrix(batch, hw)
    z = jnp.dot(p_ref[...], wc_ref[...].astype(jnp.bfloat16),
                preferred_element_type=jnp.float32) + bc_ref[...]
    a = jnp.maximum(z, 0.0)
    pres = jnp.dot(pool, a, preferred_element_type=jnp.float32)
    pres_ref[...] = pres
    logits_ref[...] = (jnp.dot(pres, wf_ref[...],
                               preferred_element_type=jnp.float32) + bf_ref[...])


def eval_forward(patches_flat, params, *, batch, hw):
    w_conv, b_conv, w_fc, b_fc = params
    kp, fp = w_conv.shape
    cp = w_fc.shape[1]
    return pl.pallas_call(
        functools.partial(_eval_fwd_kernel, batch=batch, hw=hw),
        out_shape=(jax.ShapeDtypeStruct((batch, cp), jnp.float32),
                   jax.ShapeDtypeStruct((batch, fp), jnp.float32)),
    )(patches_flat, w_conv, b_conv, w_fc, b_fc)


# ----------------------------------------------------------------------------
# Glue (plain JAX, all under jit): im2col, param init, sampling
# ----------------------------------------------------------------------------
def im2col_3x3_padded(imgs_nchw, kp):
    """NCHW -> 'same' 3x3 im2col patches [B, H*W, kp] in bf16 (K padded)."""
    B, C, H, W = imgs_nchw.shape
    x = jnp.transpose(imgs_nchw, (0, 2, 3, 1)).astype(jnp.float32)  # NHWC
    xp = jnp.pad(x, ((0, 0), (1, 1), (1, 1), (0, 0)))
    cols = []
    for dh in range(3):
        for dw in range(3):
            cols.append(xp[:, dh:dh + H, dw:dw + W, :])
    p = jnp.stack(cols, axis=3)                      # [B, H, W, 9, C]
    p = p.reshape(B, H * W, 9 * C)
    p = jnp.pad(p, ((0, 0), (0, 0), (0, kp - 9 * C)))
    return p.astype(jnp.bfloat16)


def init_params(key, channel, hidden, num_classes, kp, fp, cp):
    """Padded parameter layout, created once (padding hoisted out of the loop)."""
    k1, k2 = jax.random.split(key)
    w_conv = jnp.zeros((kp, fp), jnp.float32).at[:9 * channel, :hidden].set(
        0.1 * jax.random.normal(k1, (9 * channel, hidden), jnp.float32))
    b_conv = jnp.zeros((1, fp), jnp.float32)
    w_fc = jnp.zeros((fp, cp), jnp.float32).at[:hidden, :num_classes].set(
        0.1 * jax.random.normal(k2, (hidden, num_classes), jnp.float32))
    b_fc = jnp.zeros((1, cp), jnp.float32)
    return (w_conv, b_conv, w_fc, b_fc)


def make_poster_patches(poster, total_patch_num, im_size):
    """Deterministic overlapping crops from the poster (stand-in for get_crops)."""
    C, Hp, Wp = poster.shape
    ph, pw = im_size
    g = int(round(total_patch_num ** 0.5))
    ys = [round(i * (Hp - ph) / max(g - 1, 1)) for i in range(g)]
    xs = [round(i * (Wp - pw) / max(g - 1, 1)) for i in range(g)]
    crops = []
    for y in ys:
        for x in xs:
            crops.append(poster[:, y:y + ph, x:x + pw])
    return jnp.stack(crops, axis=0)                  # [N, C, ph, pw]


# ----------------------------------------------------------------------------
# PoDD forward: curriculum SGD phase + unrolled inner loop (ONE Pallas kernel)
# followed by eval on x (ONE Pallas kernel).
# ----------------------------------------------------------------------------
def podd_forward(x, poster, y_init, key, *, window, lr, total_patch_num,
                 distill_batch_size, num_classes, hidden, im_size, channel):
    kp = _rup(9 * channel, LANE)
    fp = _rup(hidden, LANE)
    cp = _rup(num_classes, LANE)
    hw = im_size[0] * im_size[1]

    # Fresh net init every forward (matches `self.net = get_arch(...)`).
    k_net, k_samp = jax.random.split(key)
    params = init_params(k_net, channel, hidden, num_classes, kp, fp, cp)

    # im2col over ALL poster crops, ONCE (hoisted out of the training loop).
    all_crops = make_poster_patches(poster, total_patch_num, im_size)
    all_patches = im2col_3x3_padded(all_crops, kp)          # [N, HW, KP] bf16

    # Pre-gather the per-step batches (curriculum phase + higher phase).
    # TODO(synk): syn_intervention is external; identity used.
    n_steps = 2 * window
    step_p, step_oh = [], []
    for i in range(n_steps):
        k = jax.random.fold_in(k_samp, i)
        perm = jax.random.permutation(k, total_patch_num)
        sel = jnp.sort(perm[:distill_batch_size])
        step_p.append(all_patches[sel].reshape(distill_batch_size * hw, kp))
        step_oh.append(jax.nn.one_hot(y_init[sel], cp, dtype=jnp.float32))
    step_patches = jnp.stack(step_p, axis=0)                # [S, B*HW, KP] bf16
    step_onehot = jnp.stack(step_oh, axis=0)                # [S, B, CP]   f32

    # Phase 1 (curriculum SGD) + Phase 2 (higher.innerloop_ctx, values only)
    # fused into a single Pallas kernel; params/momentum stay in VMEM.
    # TODO(synk): no gradients w.r.t. poster / y_init are propagated here.
    params = train_loop(step_patches, step_onehot, params,
                        num_classes=num_classes, lr=lr, momentum=0.9,
                        wd=0.0005)

    # Eval on the real batch x (fused conv + pool + head).
    # TODO(synk): real_intervention is external; identity used.
    x_patches = im2col_3x3_padded(x, kp).reshape(x.shape[0] * hw, kp)
    logits, pres = eval_forward(x_patches, params, batch=x.shape[0], hw=hw)
    return logits[:, :num_classes], pres[:, :hidden]


# ----------------------------------------------------------------------------
# main
# ----------------------------------------------------------------------------
if __name__ == "__main__":
    key = jax.random.PRNGKey(0)
    k_poster, k_x, k_fwd = jax.random.split(key, 3)

    channel = 3
    im_size = (16, 16)
    hidden = 32
    num_classes = 2
    total_patch_num = 16            # 4x4 grid of overlapping crops
    distill_batch_size = 8
    window = 3
    lr = 0.01

    # Distilled "poster" and its labels (synthetic, deterministic).
    poster = jax.random.normal(k_poster, (channel, 22, 22), jnp.float32)
    y_init = (jnp.arange(total_patch_num) % num_classes).astype(jnp.int32)

    # Real evaluation batch, NCHW like PyTorch.
    x = jax.random.normal(k_x, (2, channel, im_size[0], im_size[1]),
                          jnp.float32)

    fwd = jax.jit(functools.partial(
        podd_forward, window=window, lr=lr, total_patch_num=total_patch_num,
        distill_batch_size=distill_batch_size, num_classes=num_classes,
        hidden=hidden, im_size=im_size, channel=channel))

    out, pres = fwd(x, poster, y_init, k_fwd)
    jax.block_until_ready((out, pres))
    assert out.shape == (2, num_classes) and pres.shape == (2, hidden)
    assert bool(jnp.all(jnp.isfinite(out))) and bool(jnp.all(jnp.isfinite(pres)))
    print("KERNEL_OK")
</pallas_src>

<mosaic_0001>
module attributes {stable_mosaic.version = 11 : i64} {
  func.func @_train_loop_kernel(%arg0: memref<6x2048x128xbf16, #tpu.memory_space<vmem>>, %arg1: memref<6x8x128xf32, #tpu.memory_space<vmem>>, %arg2: memref<128x128xf32, #tpu.memory_space<vmem>>, %arg3: memref<1x128xf32, #tpu.memory_space<vmem>>, %arg4: memref<128x128xf32, #tpu.memory_space<vmem>>, %arg5: memref<1x128xf32, #tpu.memory_space<vmem>>, %arg6: memref<128x128xf32, #tpu.memory_space<vmem>>, %arg7: memref<1x128xf32, #tpu.memory_space<vmem>>, %arg8: memref<128x128xf32, #tpu.memory_space<vmem>>, %arg9: memref<1x128xf32, #tpu.memory_space<vmem>>, %arg10: memref<128x128xf32, #tpu.memory_space<vmem>>, %arg11: memref<1x128xf32, #tpu.memory_space<vmem>>, %arg12: memref<128x128xf32, #tpu.memory_space<vmem>>, %arg13: memref<1x128xf32, #tpu.memory_space<vmem>>) attributes {dimension_semantics = [], scalar_prefetch = 0 : i64, scratch_operands = 4 : i64, tpu.core_type = #tpu.core_type<tc>} {
    %c0 = arith.constant 0 : index
    %c0_0 = arith.constant 0 : index
    %0 = vector.load %arg2[%c0, %c0_0] : memref<128x128xf32, #tpu.memory_space<vmem>>, vector<128x128xf32>
    %c0_1 = arith.constant 0 : index
    %c0_2 = arith.constant 0 : index
    %1 = vector.load %arg6[%c0_1, %c0_2] : memref<128x128xf32, #tpu.memory_space<vmem>>, vector<128x128xf32>
    tpu.vector_store %arg6[%c0_1, %c0_2], %0 {strides = array<i32>} : memref<128x128xf32, #tpu.memory_space<vmem>>, vector<128x128xf32>,
    %c0_3 = arith.constant 0 : index
    %c0_4 = arith.constant 0 : index
    %2 = vector.load %arg3[%c0_3, %c0_4] : memref<1x128xf32, #tpu.memory_space<vmem>>, vector<1x128xf32>
    %c0_5 = arith.constant 0 : index
    %c0_6 = arith.constant 0 : index
    %3 = vector.load %arg7[%c0_5, %c0_6] : memref<1x128xf32, #tpu.memory_space<vmem>>, vector<1x128xf32>
    tpu.vector_store %arg7[%c0_5, %c0_6], %2 {strides = array<i32>} : memref<1x128xf32, #tpu.memory_space<vmem>>, vector<1x128xf32>,
    %c0_7 = arith.constant 0 : index
    %c0_8 = arith.constant 0 : index
    %4 = vector.load %arg4[%c0_7, %c0_8] : memref<128x128xf32, #tpu.memory_space<vmem>>, vector<128x128xf32>
    %c0_9 = arith.constant 0 : index
    %c0_10 = arith.constant 0 : index
    %5 = vector.load %arg8[%c0_9, %c0_10] : memref<128x128xf32, #tpu.memory_space<vmem>>, vector<128x128xf32>
    tpu.vector_store %arg8[%c0_9, %c0_10], %4 {strides = array<i32>} : memref<128x128xf32, #tpu.memory_space<vmem>>, vector<128x128xf32>,
    %c0_11 = arith.constant 0 : index
    %c0_12 = arith.constant 0 : index
    %6 = vector.load %arg5[%c0_11, %c0_12] : memref<1x128xf32, #tpu.memory_space<vmem>>, vector<1x128xf32>
    %c0_13 = arith.constant 0 : index
    %c0_14 = arith.constant 0 : index
    %7 = vector.load %arg9[%c0_13, %c0_14] : memref<1x128xf32, #tpu.memory_space<vmem>>, vector<1x128xf32>
    tpu.vector_store %arg9[%c0_13, %c0_14], %6 {strides = array<i32>} : memref<1x128xf32, #tpu.memory_space<vmem>>, vector<1x128xf32>,
    %cst = arith.constant 0.000000e+00 : f32
    %8 = vector.broadcast %cst : f32 to vector<128x128xf32>
    %c0_15 = arith.constant 0 : index
    %c0_16 = arith.constant 0 : index
    %9 = vector.load %arg10[%c0_15, %c0_16] : memref<128x128xf32, #tpu.memory_space<vmem>>, vector<128x128xf32>
    tpu.vector_store %arg10[%c0_15, %c0_16], %8 {strides = array<i32>} : memref<128x128xf32, #tpu.memory_space<vmem>>, vector<128x128xf32>,
    %cst_17 = arith.constant 0.000000e+00 : f32
    %10 = vector.broadcast %cst_17 : f32 to vector<1x128xf32>
    %c0_18 = arith.constant 0 : index
    %c0_19 = arith.constant 0 : index
    %11 = vector.load %arg11[%c0_18, %c0_19] : memref<1x128xf32, #tpu.memory_space<vmem>>, vector<1x128xf32>
    tpu.vector_store %arg11[%c0_18, %c0_19], %10 {strides = array<i32>} : memref<1x128xf32, #tpu.memory_space<vmem>>, vector<1x128xf32>,
    %cst_20 = arith.constant 0.000000e+00 : f32
    %12 = vector.broadcast %cst_20 : f32 to vector<128x128xf32>
    %c0_21 = arith.constant 0 : index
    %c0_22 = arith.constant 0 : index
    %13 = vector.load %arg12[%c0_21, %c0_22] : memref<128x128xf32, #tpu.memory_space<vmem>>, vector<128x128xf32>
    tpu.vector_store %arg12[%c0_21, %c0_22], %12 {strides = array<i32>} : memref<128x128xf32, #tpu.memory_space<vmem>>, vector<128x128xf32>,
    %cst_23 = arith.constant 0.000000e+00 : f32
    %14 = vector.broadcast %cst_23 : f32 to vector<1x128xf32>
    %c0_24 = arith.constant 0 : index
    %c0_25 = arith.constant 0 : index
    %15 = vector.load %arg13[%c0_24, %c0_25] : memref<1x128xf32, #tpu.memory_space<vmem>>, vector<1x128xf32>
    tpu.vector_store %arg13[%c0_24, %c0_25], %14 {strides = array<i32>} : memref<1x128xf32, #tpu.memory_space<vmem>>, vector<1x128xf32>,
    %16 = tpu.iota {dimensions = array<i32: 0>} : vector<8x2048xi32>
    %17 = tpu.iota {dimensions = array<i32: 1>} : vector<8x2048xi32>
    %c256_i32 = arith.constant 256 : i32
    %18 = vector.broadcast %c256_i32 : i32 to vector<8x2048xi32>
    %19 = arith.muli %16, %18 : vector<8x2048xi32>
    %20 = arith.cmpi sge, %17, %19 : vector<8x2048xi32>
    %c256_i32_26 = arith.constant 256 : i32
    %21 = vector.broadcast %c256_i32_26 : i32 to vector<8x2048xi32>
    %22 = arith.addi %19, %21 : vector<8x2048xi32>
    %23 = arith.cmpi slt, %17, %22 : vector<8x2048xi32>
    %24 = arith.andi %20, %23 : vector<8x2048xi1>
    %cst_27 = arith.constant 3.906250e-03 : f32
    %cst_28 = arith.constant 0.000000e+00 : f32
    %25 = vector.broadcast %cst_27 : f32 to vector<8x2048xf32>
    %26 = vector.broadcast %cst_28 : f32 to vector<8x2048xf32>
    %27 = arith.select %24, %25, %26 : vector<8x2048xi1>, vector<8x2048xf32>
    %28 = tpu.iota {dimensions = array<i32: 1>} : vector<8x128xi32>
    %c2_i32 = arith.constant 2 : i32
    %29 = vector.broadcast %c2_i32 : i32 to vector<8x128xi32>
    %30 = arith.cmpi slt, %28, %29 : vector<8x128xi32>
    %c0_i32 = arith.constant 0 : i32
    %c6_i32 = arith.constant 6 : i32
    %31 = arith.addi %c0_i32, %c6_i32 : i32
    %c1_i32 = arith.constant 1 : i32
    scf.for %arg14 = %c0_i32 to %31 step %c1_i32  : i32 {
      %c1_i32_30 = arith.constant 1 : i32
      %32 = arith.muli %arg14, %c1_i32_30 : i32
      %c0_i32_31 = arith.constant 0 : i32
      %33 = arith.addi %c0_i32_31, %32 : i32
      %34 = arith.index_cast %33 : i32 to index
      %c0_32 = arith.constant 0 : index
      %c0_33 = arith.constant 0 : index
      %35 = vector.load %arg0[%34, %c0_32, %c0_33] : memref<6x2048x128xbf16, #tpu.memory_space<vmem>>, vector<1x2048x128xbf16>
      %36 = vector.shape_cast %35 : vector<1x2048x128xbf16> to vector<2048x128xbf16>
      %37 = arith.index_cast %33 : i32 to index
      %c0_34 = arith.constant 0 : index
      %c0_35 = arith.constant 0 : index
      %38 = vector.load %arg1[%37, %c0_34, %c0_35] : memref<6x8x128xf32, #tpu.memory_space<vmem>>, vector<1x8x128xf32>
      %39 = vector.shape_cast %38 : vector<1x8x128xf32> to vector<8x128xf32>
      %c0_36 = arith.constant 0 : index
      %c0_37 = arith.constant 0 : index
      %40 = vector.load %arg6[%c0_36, %c0_37] : memref<128x128xf32, #tpu.memory_space<vmem>>, vector<128x128xf32>
      %c0_38 = arith.constant 0 : index
      %c0_39 = arith.constant 0 : index
      %41 = vector.load %arg8[%c0_38, %c0_39] : memref<128x128xf32, #tpu.memory_space<vmem>>, vector<128x128xf32>
      %42 = arith.truncf %40 : vector<128x128xf32> to vector<128x128xbf16>
      %cst_40 = arith.constant dense<0.000000e+00> : vector<2048x128xf32>
      %43 = tpu.matmul %36, %42, %cst_40 {dimension_numbers = #tpu.dot_dimension_numbers<[1], [0], [0], [1], [0, 0, 1, 1], [], []>} : vector<2048x128xbf16>, vector<128x128xbf16>, vector<2048x128xf32> -> vector<2048x128xf32>
      %c0_41 = arith.constant 0 : index
      %c0_42 = arith.constant 0 : index
      %44 = vector.load %arg7[%c0_41, %c0_42] : memref<1x128xf32, #tpu.memory_space<vmem>>, vector<1x128xf32>
      %45 = vector.broadcast %44 : vector<1x128xf32> to vector<2048x128xf32>
      %46 = arith.addf %43, %45 : vector<2048x128xf32>
      %cst_43 = arith.constant 0.000000e+00 : f32
      %47 = vector.broadcast %cst_43 : f32 to vector<2048x128xf32>
      %48 = arith.maximumf %46, %47 : vector<2048x128xf32>
      %cst_44 = arith.constant dense<0.000000e+00> : vector<8x128xf32>
      %49 = tpu.matmul %27, %48, %cst_44 {dimension_numbers = #tpu.dot_dimension_numbers<[1], [0], [0], [1], [0, 0, 1, 1], [], []>} : vector<8x2048xf32>, vector<2048x128xf32>, vector<8x128xf32> -> vector<8x128xf32>
      %cst_45 = arith.constant dense<0.000000e+00> : vector<8x128xf32>
      %50 = tpu.matmul %49, %41, %cst_45 {dimension_numbers = #tpu.dot_dimension_numbers<[1], [0], [0], [1], [0, 0, 1, 1], [], []>} : vector<8x128xf32>, vector<128x128xf32>, vector<8x128xf32> -> vector<8x128xf32>
      %c0_46 = arith.constant 0 : index
      %c0_47 = arith.constant 0 : index
      %51 = vector.load %arg9[%c0_46, %c0_47] : memref<1x128xf32, #tpu.memory_space<vmem>>, vector<1x128xf32>
      %52 = vector.broadcast %51 : vector<1x128xf32> to vector<8x128xf32>
      %53 = arith.addf %50, %52 : vector<8x128xf32>
      %cst_48 = arith.constant -1.000000e+30 : f32
      %54 = vector.broadcast %cst_48 : f32 to vector<8x128xf32>
      %55 = arith.select %30, %53, %54 : vector<8x128xi1>, vector<8x128xf32>
      %cst_49 = arith.constant dense<0xFF800000> : vector<8xf32>
      %56 = vector.multi_reduction <maximumf>, %55, %cst_49 [1] : vector<8x128xf32> to vector<8xf32>
      %57 = vector.shape_cast %56 : vector<8xf32> to vector<8x1xf32>
      %58 = vector.broadcast %57 : vector<8x1xf32> to vector<8x128xf32>
      %59 = arith.subf %55, %58 : vector<8x128xf32>
      %60 = math.exp %59 : vector<8x128xf32>
      %cst_50 = arith.constant 0.000000e+00 : f32
      %61 = vector.broadcast %cst_50 : f32 to vector<8x128xf32>
      %62 = arith.select %30, %60, %61 : vector<8x128xi1>, vector<8x128xf32>
      %cst_51 = arith.constant dense<0.000000e+00> : vector<8xf32>
      %63 = vector.multi_reduction <add>, %62, %cst_51 [1] : vector<8x128xf32> to vector<8xf32>
      %64 = vector.shape_cast %63 : vector<8xf32> to vector<8x1xf32>
      %65 = vector.broadcast %64 : vector<8x1xf32> to vector<8x128xf32>
      %66 = arith.divf %62, %65 : vector<8x128xf32>
      %67 = arith.subf %66, %39 : vector<8x128xf32>
      %cst_52 = arith.constant 1.250000e-01 : f32
      %68 = vector.broadcast %cst_52 : f32 to vector<8x128xf32>
      %69 = arith.mulf %67, %68 : vector<8x128xf32>
      %cst_53 = arith.constant dense<0.000000e+00> : vector<128x128xf32>
      %70 = tpu.matmul %49, %69, %cst_53 {dimension_numbers = #tpu.dot_dimension_numbers<[0], [0], [1], [1], [0, 1, 1, 1], [], []>} : vector<8x128xf32>, vector<8x128xf32>, vector<128x128xf32> -> vector<128x128xf32>
      %cst_54 = arith.constant dense<0.000000e+00> : vector<128xf32>
      %71 = vector.multi_reduction <add>, %69, %cst_54 [0] : vector<8x128xf32> to vector<128xf32>
      %72 = vector.shape_cast %71 : vector<128xf32> to vector<1x128xf32>
      %cst_55 = arith.constant dense<0.000000e+00> : vector<8x128xf32>
      %73 = tpu.matmul %69, %41, %cst_55 {dimension_numbers = #tpu.dot_dimension_numbers<[1], [1], [0], [0], [0, 0, 1, 0], [], []>} : vector<8x128xf32>, vector<128x128xf32>, vector<8x128xf32> -> vector<8x128xf32>
      %cst_56 = arith.constant dense<0.000000e+00> : vector<2048x128xf32>
      %74 = tpu.matmul %27, %73, %cst_56 {dimension_numbers = #tpu.dot_dimension_numbers<[0], [0], [1], [1], [0, 1, 1, 1], [], []>} : vector<8x2048xf32>, vector<8x128xf32>, vector<2048x128xf32> -> vector<2048x128xf32>
      %cst_57 = arith.constant 0.000000e+00 : f32
      %75 = vector.broadcast %cst_57 : f32 to vector<2048x128xf32>
      %76 = arith.cmpf ogt, %46, %75 : vector<2048x128xf32>
      %cst_58 = arith.constant 0.000000e+00 : f32
      %77 = vector.broadcast %cst_58 : f32 to vector<2048x128xf32>
      %78 = arith.select %76, %74, %77 : vector<2048x128xi1>, vector<2048x128xf32>
      %79 = arith.extf %36 : vector<2048x128xbf16> to vector<2048x128xf32>
      %cst_59 = arith.constant dense<0.000000e+00> : vector<128x128xf32>
      %80 = tpu.matmul %79, %78, %cst_59 {dimension_numbers = #tpu.dot_dimension_numbers<[0], [0], [1], [1], [0, 1, 1, 1], [], []>} : vector<2048x128xf32>, vector<2048x128xf32>, vector<128x128xf32> -> vector<128x128xf32>
      %cst_60 = arith.constant dense<0.000000e+00> : vector<128xf32>
      %81 = vector.multi_reduction <add>, %78, %cst_60 [0] : vector<2048x128xf32> to vector<128xf32>
      %82 = vector.shape_cast %81 : vector<128xf32> to vector<1x128xf32>
      %c0_61 = arith.constant 0 : index
      %c0_62 = arith.constant 0 : index
      %83 = vector.load %arg6[%c0_61, %c0_62] : memref<128x128xf32, #tpu.memory_space<vmem>>, vector<128x128xf32>
      %c0_63 = arith.constant 0 : index
      %c0_64 = arith.constant 0 : index
      %84 = vector.load %arg10[%c0_63, %c0_64] : memref<128x128xf32, #tpu.memory_space<vmem>>, vector<128x128xf32>
      %cst_65 = arith.constant 0.899999976 : f32
      %85 = vector.broadcast %cst_65 : f32 to vector<128x128xf32>
      %86 = arith.mulf %85, %84 : vector<128x128xf32>
      %cst_66 = arith.constant 5.000000e-04 : f32
      %87 = vector.broadcast %cst_66 : f32 to vector<128x128xf32>
      %88 = arith.mulf %87, %83 : vector<128x128xf32>
      %89 = arith.addf %80, %88 : vector<128x128xf32>
      %90 = arith.addf %86, %89 : vector<128x128xf32>
      %c0_67 = arith.constant 0 : index
      %c0_68 = arith.constant 0 : index
      %91 = vector.load %arg10[%c0_67, %c0_68] : memref<128x128xf32, #tpu.memory_space<vmem>>, vector<128x128xf32>
      tpu.vector_store %arg10[%c0_67, %c0_68], %90 {strides = array<i32>} : memref<128x128xf32, #tpu.memory_space<vmem>>, vector<128x128xf32>,
      %cst_69 = arith.constant 0.00999999977 : f32
      %92 = vector.broadcast %cst_69 : f32 to vector<128x128xf32>
      %93 = arith.mulf %92, %90 : vector<128x128xf32>
      %94 = arith.subf %83, %93 : vector<128x128xf32>
      %c0_70 = arith.constant 0 : index
      %c0_71 = arith.constant 0 : index
      %95 = vector.load %arg6[%c0_70, %c0_71] : memref<128x128xf32, #tpu.memory_space<vmem>>, vector<128x128xf32>
      tpu.vector_store %arg6[%c0_70, %c0_71], %94 {strides = array<i32>} : memref<128x128xf32, #tpu.memory_space<vmem>>, vector<128x128xf32>,
      %c0_72 = arith.constant 0 : index
      %c0_73 = arith.constant 0 : index
      %96 = vector.load %arg7[%c0_72, %c0_73] : memref<1x128xf32, #tpu.memory_space<vmem>>, vector<1x128xf32>
      %c0_74 = arith.constant 0 : index
      %c0_75 = arith.constant 0 : index
      %97 = vector.load %arg11[%c0_74, %c0_75] : memref<1x128xf32, #tpu.memory_space<vmem>>, vector<1x128xf32>
      %cst_76 = arith.constant 0.899999976 : f32
      %98 = vector.broadcast %cst_76 : f32 to vector<1x128xf32>
      %99 = arith.mulf %98, %97 : vector<1x128xf32>
      %cst_77 = arith.constant 5.000000e-04 : f32
      %100 = vector.broadcast %cst_77 : f32 to vector<1x128xf32>
      %101 = arith.mulf %100, %96 : vector<1x128xf32>
      %102 = arith.addf %82, %101 : vector<1x128xf32>
      %103 = arith.addf %99, %102 : vector<1x128xf32>
      %c0_78 = arith.constant 0 : index
      %c0_79 = arith.constant 0 : index
      %104 = vector.load %arg11[%c0_78, %c0_79] : memref<1x128xf32, #tpu.memory_space<vmem>>, vector<1x128xf32>
      tpu.vector_store %arg11[%c0_78, %c0_79], %103 {strides = array<i32>} : memref<1x128xf32, #tpu.memory_space<vmem>>, vector<1x128xf32>,
      %cst_80 = arith.constant 0.00999999977 : f32
      %105 = vector.broadcast %cst_80 : f32 to vector<1x128xf32>
      %106 = arith.mulf %105, %103 : vector<1x128xf32>
      %107 = arith.subf %96, %106 : vector<1x128xf32>
      %c0_81 = arith.constant 0 : index
      %c0_82 = arith.constant 0 : index
      %108 = vector.load %arg7[%c0_81, %c0_82] : memref<1x128xf32, #tpu.memory_space<vmem>>, vector<1x128xf32>
      tpu.vector_store %arg7[%c0_81, %c0_82], %107 {strides = array<i32>} : memref<1x128xf32, #tpu.memory_space<vmem>>, vector<1x128xf32>,
      %c0_83 = arith.constant 0 : index
      %c0_84 = arith.constant 0 : index
      %109 = vector.load %arg8[%c0_83, %c0_84] : memref<128x128xf32, #tpu.memory_space<vmem>>, vector<128x128xf32>
      %c0_85 = arith.constant 0 : index
      %c0_86 = arith.constant 0 : index
      %110 = vector.load %arg12[%c0_85, %c0_86] : memref<128x128xf32, #tpu.memory_space<vmem>>, vector<128x128xf32>
      %cst_87 = arith.constant 0.899999976 : f32
      %111 = vector.broadcast %cst_87 : f32 to vector<128x128xf32>
      %112 = arith.mulf %111, %110 : vector<128x128xf32>
      %cst_88 = arith.constant 5.000000e-04 : f32
      %113 = vector.broadcast %cst_88 : f32 to vector<128x128xf32>
      %114 = arith.mulf %113, %109 : vector<128x128xf32>
      %115 = arith.addf %70, %114 : vector<128x128xf32>
      %116 = arith.addf %112, %115 : vector<128x128xf32>
      %c0_89 = arith.constant 0 : index
      %c0_90 = arith.constant 0 : index
      %117 = vector.load %arg12[%c0_89, %c0_90] : memref<128x128xf32, #tpu.memory_space<vmem>>, vector<128x128xf32>
      tpu.vector_store %arg12[%c0_89, %c0_90], %116 {strides = array<i32>} : memref<128x128xf32, #tpu.memory_space<vmem>>, vector<128x128xf32>,
      %cst_91 = arith.constant 0.00999999977 : f32
      %118 = vector.broadcast %cst_91 : f32 to vector<128x128xf32>
      %119 = arith.mulf %118, %116 : vector<128x128xf32>
      %120 = arith.subf %109, %119 : vector<128x128xf32>
      %c0_92 = arith.constant 0 : index
      %c0_93 = arith.constant 0 : index
      %121 = vector.load %arg8[%c0_92, %c0_93] : memref<128x128xf32, #tpu.memory_space<vmem>>, vector<128x128xf32>
      tpu.vector_store %arg8[%c0_92, %c0_93], %120 {strides = array<i32>} : memref<128x128xf32, #tpu.memory_space<vmem>>, vector<128x128xf32>,
      %c0_94 = arith.constant 0 : index
      %c0_95 = arith.constant 0 : index
      %122 = vector.load %arg9[%c0_94, %c0_95] : memref<1x128xf32, #tpu.memory_space<vmem>>, vector<1x128xf32>
      %c0_96 = arith.constant 0 : index
      %c0_97 = arith.constant 0 : index
      %123 = vector.load %arg13[%c0_96, %c0_97] : memref<1x128xf32, #tpu.memory_space<vmem>>, vector<1x128xf32>
      %cst_98 = arith.constant 0.899999976 : f32
      %124 = vector.broadcast %cst_98 : f32 to vector<1x128xf32>
      %125 = arith.mulf %124, %123 : vector<1x128xf32>
      %cst_99 = arith.constant 5.000000e-04 : f32
      %126 = vector.broadcast %cst_99 : f32 to vector<1x128xf32>
      %127 = arith.mulf %126, %122 : vector<1x128xf32>
      %128 = arith.addf %72, %127 : vector<1x128xf32>
      %129 = arith.addf %125, %128 : vector<1x128xf32>
      %c0_100 = arith.constant 0 : index
      %c0_101 = arith.constant 0 : index
      %130 = vector.load %arg13[%c0_100, %c0_101] : memref<1x128xf32, #tpu.memory_space<vmem>>, vector<1x128xf32>
      tpu.vector_store %arg13[%c0_100, %c0_101], %129 {strides = array<i32>} : memref<1x128xf32, #tpu.memory_space<vmem>>, vector<1x128xf32>,
      %cst_102 = arith.constant 0.00999999977 : f32
      %131 = vector.broadcast %cst_102 : f32 to vector<1x128xf32>
      %132 = arith.mulf %131, %129 : vector<1x128xf32>
      %133 = arith.subf %122, %132 : vector<1x128xf32>
      %c0_103 = arith.constant 0 : index
      %c0_104 = arith.constant 0 : index
      %134 = vector.load %arg9[%c0_103, %c0_104] : memref<1x128xf32, #tpu.memory_space<vmem>>, vector<1x128xf32>
      tpu.vector_store %arg9[%c0_103, %c0_104], %133 {strides = array<i32>} : memref<1x128xf32, #tpu.memory_space<vmem>>, vector<1x128xf32>,
    }
    %c6_i32_29 = arith.constant 6 : i32
    return
  }
}

module attributes {stable_mosaic.version = 11 : i64} {
  func.func @_eval_fwd_kernel(%arg0: memref<512x128xbf16, #tpu.memory_space<vmem>>, %arg1: memref<128x128xf32, #tpu.memory_space<vmem>>, %arg2: memref<1x128xf32, #tpu.memory_space<vmem>>, %arg3: memref<128x128xf32, #tpu.memory_space<vmem>>, %arg4: memref<1x128xf32, #tpu.memory_space<vmem>>, %arg5: memref<2x128xf32, #tpu.memory_space<vmem>>, %arg6: memref<2x128xf32, #tpu.memory_space<vmem>>) attributes {dimension_semantics = [], scalar_prefetch = 0 : i64, scratch_operands = 0 : i64, tpu.core_type = #tpu.core_type<tc>} {
    %0 = tpu.iota {dimensions = array<i32: 0>} : vector<2x512xi32>
    %1 = tpu.iota {dimensions = array<i32: 1>} : vector<2x512xi32>
    %c256_i32 = arith.constant 256 : i32
    %2 = vector.broadcast %c256_i32 : i32 to vector<2x512xi32>
    %3 = arith.muli %0, %2 : vector<2x512xi32>
    %4 = arith.cmpi sge, %1, %3 : vector<2x512xi32>
    %c256_i32_0 = arith.constant 256 : i32
    %5 = vector.broadcast %c256_i32_0 : i32 to vector<2x512xi32>
    %6 = arith.addi %3, %5 : vector<2x512xi32>
    %7 = arith.cmpi slt, %1, %6 : vector<2x512xi32>
    %8 = arith.andi %4, %7 : vector<2x512xi1>
    %cst = arith.constant 3.906250e-03 : f32
    %cst_1 = arith.constant 0.000000e+00 : f32
    %9 = vector.broadcast %cst : f32 to vector<2x512xf32>
    %10 = vector.broadcast %cst_1 : f32 to vector<2x512xf32>
    %11 = arith.select %8, %9, %10 : vector<2x512xi1>, vector<2x512xf32>
    %c0 = arith.constant 0 : index
    %c0_2 = arith.constant 0 : index
    %12 = vector.load %arg0[%c0, %c0_2] : memref<512x128xbf16, #tpu.memory_space<vmem>>, vector<512x128xbf16>
    %c0_3 = arith.constant 0 : index
    %c0_4 = arith.constant 0 : index
    %13 = vector.load %arg1[%c0_3, %c0_4] : memref<128x128xf32, #tpu.memory_space<vmem>>, vector<128x128xf32>
    %14 = arith.truncf %13 : vector<128x128xf32> to vector<128x128xbf16>
    %cst_5 = arith.constant dense<0.000000e+00> : vector<512x128xf32>
    %15 = tpu.matmul %12, %14, %cst_5 {dimension_numbers = #tpu.dot_dimension_numbers<[1], [0], [0], [1], [0, 0, 1, 1], [], []>} : vector<512x128xbf16>, vector<128x128xbf16>, vector<512x128xf32> -> vector<512x128xf32>
    %c0_6 = arith.constant 0 : index
    %c0_7 = arith.constant 0 : index
    %16 = vector.load %arg2[%c0_6, %c0_7] : memref<1x128xf32, #tpu.memory_space<vmem>>, vector<1x128xf32>
    %17 = vector.broadcast %16 : vector<1x128xf32> to vector<512x128xf32>
    %18 = arith.addf %15, %17 : vector<512x128xf32>
    %cst_8 = arith.constant 0.000000e+00 : f32
    %19 = vector.broadcast %cst_8 : f32 to vector<512x128xf32>
    %20 = arith.maximumf %18, %19 : vector<512x128xf32>
    %cst_9 = arith.constant dense<0.000000e+00> : vector<2x128xf32>
    %21 = tpu.matmul %11, %20, %cst_9 {dimension_numbers = #tpu.dot_dimension_numbers<[1], [0], [0], [1], [0, 0, 1, 1], [], []>} : vector<2x512xf32>, vector<512x128xf32>, vector<2x128xf32> -> vector<2x128xf32>
    %c0_10 = arith.constant 0 : index
    %c0_11 = arith.constant 0 : index
    %22 = vector.load %arg6[%c0_10, %c0_11] : memref<2x128xf32, #tpu.memory_space<vmem>>, vector<2x128xf32>
    tpu.vector_store %arg6[%c0_10, %c0_11], %21 {strides = array<i32>} : memref<2x128xf32, #tpu.memory_space<vmem>>, vector<2x128xf32>,
    %c0_12 = arith.constant 0 : index
    %c0_13 = arith.constant 0 : index
    %23 = vector.load %arg3[%c0_12, %c0_13] : memref<128x128xf32, #tpu.memory_space<vmem>>, vector<128x128xf32>
    %cst_14 = arith.constant dense<0.000000e+00> : vector<2x128xf32>
    %24 = tpu.matmul %21, %23, %cst_14 {dimension_numbers = #tpu.dot_dimension_numbers<[1], [0], [0], [1], [0, 0, 1, 1], [], []>} : vector<2x128xf32>, vector<128x128xf32>, vector<2x128xf32> -> vector<2x128xf32>
    %c0_15 = arith.constant 0 : index
    %c0_16 = arith.constant 0 : index
    %25 = vector.load %arg4[%c0_15, %c0_16] : memref<1x128xf32, #tpu.memory_space<vmem>>, vector<1x128xf32>
    %26 = vector.broadcast %25 : vector<1x128xf32> to vector<2x128xf32>
    %27 = arith.addf %24, %26 : vector<2x128xf32>
    %c0_17 = arith.constant 0 : index
    %c0_18 = arith.constant 0 : index
    %28 = vector.load %arg5[%c0_17, %c0_18] : memref<2x128xf32, #tpu.memory_space<vmem>>, vector<2x128xf32>
    tpu.vector_store %arg5[%c0_17, %c0_18], %27 {strides = array<i32>} : memref<2x128xf32, #tpu.memory_space<vmem>>, vector<2x128xf32>,
    return
  }
}

</mosaic_0001>

<llo_original>
// kernel: podd_forward.3
$region0: #{podd_forward.3}
  #allocation0 [shape = 'u32[]', space=smem, size = 0x4, offset = 0x4, fixed_abs, tag = 'smem constant byte address 0x4 - core index']
  #allocation1 [shape = 'u32[144,128]{1,0:T(1,128)}', space=vmem, size = 0x12000, scoped, tag = 'internal scratch']
  %s0 = inlined_call_operand.vmem [shape: bf16[512,128], index: 0, kind: input, shape index: {}]
  %s1 = inlined_call_operand.vmem [shape: f32[128,128], index: 1, kind: input, shape index: {}]
  %s2 = inlined_call_operand.vmem [shape: f32[1,128], index: 2, kind: input, shape index: {}]
  %s3 = inlined_call_operand.vmem [shape: f32[128,128], index: 3, kind: input, shape index: {}]
  %s4 = inlined_call_operand.vmem [shape: f32[1,128], index: 4, kind: input, shape index: {}]
  %s5 = inlined_call_operand.hbm [shape: f32[2,128], index: 5, kind: output, shape index: {0}]
  %s6 = inlined_call_operand.hbm [shape: f32[2,128], index: 6, kind: output, shape index: {1}]
  %7 = xla_tuple %s5, %s6
  %s8 = sld [smem:[#allocation0]]
  $region38: #{podd_forward.3} parent=0
    _
  %s10 = ssub.s32 1, %s8
  %s11 = scalar_select 0, %s10, %s8
  $region1: #{podd_forward.3} parent=0
    #allocation2 [shape = 'u8[1024]{0}', space=vmem, size = 0x400, scoped, tag = 'output window, operand 0, single buffered']
    #allocation3 [shape = 's32[1]{0}', space=sflag, size = 0x4, scoped, tag = 'scoped memory for podd_forward.3']
    #allocation4 [shape = 'u8[1024]{0}', space=vmem, size = 0x400, scoped, tag = 'output window, operand 1, single buffered']
    #allocation5 [shape = 's32[1]{0}', space=sflag, size = 0x4, scoped, tag = 'scoped memory for podd_forward.3']
    %12 = vsyncpa [#allocation3], 0
    %13 = vsyncpa [#allocation5], 0
    // Predicated region
    $region2: #{podd_forward.3} parent=1 // pred_check
      _
    $region3: #{podd_forward.3} parent=1 // pred_check_branch
      %15 = sbr.rel (0) target = $region5
    $region4: #{podd_forward.3} parent=1 // pred_region
      _
    $region5: #{podd_forward.3} parent=1 // pred_fallthru
      _
    // Predicated region
    $region6: #{podd_forward.3} parent=1 // pred_check
      _
    $region7: #{podd_forward.3} parent=1 // pred_check_branch
      %17 = sbr.rel (0) target = $region9
    $region8: #{podd_forward.3} parent=1 // pred_region
      _
    $region9: #{podd_forward.3} parent=1 // pred_fallthru
      _
    // Predicated region
    $region10: #{podd_forward.3} parent=1 // pred_check
      _
    $region11: #{podd_forward.3} parent=1 // pred_check_branch
      %19 = sbr.rel (0) target = $region13
    $region12: #{podd_forward.3} parent=1 // pred_region
      _
    $region13: #{podd_forward.3} parent=1 // pred_fallthru
      _
    // Predicated region
    $region14: #{podd_forward.3} parent=1 // pred_check
      _
    $region15: #{podd_forward.3} parent=1 // pred_check_branch
      %21 = sbr.rel (0) target = $region17
    $region16: #{podd_forward.3} parent=1 // pred_region
      _
    $region17: #{podd_forward.3} parent=1 // pred_fallthru
      _
    // Predicated region
    $region18: #{podd_forward.3} parent=1 // pred_check
      _
    $region19: #{podd_forward.3} parent=1 // pred_check_branch
      %23 = sbr.rel (0) target = $region21
    $region20: #{podd_forward.3} parent=1 // pred_region
      _
    $region21: #{podd_forward.3} parent=1 // pred_fallthru
      _
    %v25 = vlaneseq
    %v26 = vshrl.u32 %v25, 7
    %v27 = vlaneseq
    %v28 = vand.u32 %v27, 127
    %v29 = vadd.s32 %v28, 128
    %v30 = vadd.s32 %v28, 256
    %v31 = vadd.s32 %v28, 384
    %v32 = vmul.u32 %v26, 256
    %vm33 = vcmp.ge.s32.totalorder %v28, %v32
    %vm34 = vcmp.ge.s32.totalorder %v29, %v32
    %vm35 = vcmp.ge.s32.totalorder %v30, %v32
    %vm36 = vcmp.ge.s32.totalorder %v31, %v32
    %v37 = vadd.s32 %v32, 256
    %vm38 = vcmp.lt.s32.totalorder %v28, %v37
    %vm39 = vcmp.lt.s32.totalorder %v29, %v37
    %vm40 = vcmp.lt.s32.totalorder %v30, %v37
    %vm41 = vcmp.lt.s32.totalorder %v31, %v37
    %vm42 = vmand %vm33, %vm38
    %vm43 = vmand %vm34, %vm39
    %vm44 = vmand %vm35, %vm40
    %vm45 = vmand %vm36, %vm41
    %v46 = vsel %vm42, 0.00390625, 0.0
    %v47 = vsel %vm43, 0.00390625, 0.0
    %v48 = vsel %vm44, 0.00390625, 0.0
    %v49 = vsel %vm45, 0.00390625, 0.0
    %v50 = vld [vmem:[%s0] sm:$0xf]
    %v51 = vld [vmem:[%s0 + $0x4] sm:$0xf]
    %v52 = vld [vmem:[%s0 + $0x8] sm:$0xf]
    %v53 = vld [vmem:[%s0 + $0xc] sm:$0xf]
    %v54 = vld [vmem:[%s0 + $0x10] sm:$0xf]
    %v55 = vld [vmem:[%s0 + $0x14] sm:$0xf]
    %v56 = vld [vmem:[%s0 + $0x18] sm:$0xf]
    %v57 = vld [vmem:[%s0 + $0x1c] sm:$0xf]
    %v58 = vld [vmem:[%s0 + $0x20] sm:$0xf]
    %v59 = vld [vmem:[%s0 + $0x24] sm:$0xf]
    %v60 = vld [vmem:[%s0 + $0x28] sm:$0xf]
    %v61 = vld [vmem:[%s0 + $0x2c] sm:$0xf]
    %v62 = vld [vmem:[%s0 + $0x30] sm:$0xf]
    %v63 = vld [vmem:[%s0 + $0x34] sm:$0xf]
    %v64 = vld [vmem:[%s0 + $0x38] sm:$0xf]
    %v65 = vld [vmem:[%s0 + $0x3c] sm:$0xf]
    %v66 = vld [vmem:[%s0 + $0x40] sm:$0xf]
    %v67 = vld [vmem:[%s0 + $0x44] sm:$0xf]
    %v68 = vld [vmem:[%s0 + $0x48] sm:$0xf]
    %v69 = vld [vmem:[%s0 + $0x4c] sm:$0xf]
    %v70 = vld [vmem:[%s0 + $0x50] sm:$0xf]
    %v71 = vld [vmem:[%s0 + $0x54] sm:$0xf]
    %v72 = vld [vmem:[%s0 + $0x58] sm:$0xf]
    %v73 = vld [vmem:[%s0 + $0x5c] sm:$0xf]
    %v74 = vld [vmem:[%s0 + $0x60] sm:$0xf]
    %v75 = vld [vmem:[%s0 + $0x64] sm:$0xf]
    %v76 = vld [vmem:[%s0 + $0x68] sm:$0xf]
    %v77 = vld [vmem:[%s0 + $0x6c] sm:$0xf]
    %v78 = vld [vmem:[%s0 + $0x70] sm:$0xf]
    %v79 = vld [vmem:[%s0 + $0x74] sm:$0xf]
    %v80 = vld [vmem:[%s0 + $0x78] sm:$0xf]
    %v81 = vld [vmem:[%s0 + $0x7c] sm:$0xf]
    %v82 = vld [vmem:[%s0 + $0x80] sm:$0xf]
    %v83 = vld [vmem:[%s0 + $0x84] sm:$0xf]
    %v84 = vld [vmem:[%s0 + $0x88] sm:$0xf]
    %v85 = vld [vmem:[%s0 + $0x8c] sm:$0xf]
    %v86 = vld [vmem:[%s0 + $0x90] sm:$0xf]
    %v87 = vld [vmem:[%s0 + $0x94] sm:$0xf]
    %v88 = vld [vmem:[%s0 + $0x98] sm:$0xf]
    %v89 = vld [vmem:[%s0 + $0x9c] sm:$0xf]
    %v90 = vld [vmem:[%s0 + $0xa0] sm:$0xf]
    %v91 = vld [vmem:[%s0 + $0xa4] sm:$0xf]
    %v92 = vld [vmem:[%s0 + $0xa8] sm:$0xf]
    %v93 = vld [vmem:[%s0 + $0xac] sm:$0xf]
    %v94 = vld [vmem:[%s0 + $0xb0] sm:$0xf]
    %v95 = vld [vmem:[%s0 + $0xb4] sm:$0xf]
    %v96 = vld [vmem:[%s0 + $0xb8] sm:$0xf]
    %v97 = vld [vmem:[%s0 + $0xbc] sm:$0xf]
    %v98 = vld [vmem:[%s0 + $0xc0] sm:$0xf]
    %v99 = vld [vmem:[%s0 + $0xc4] sm:$0xf]
    %v100 = vld [vmem:[%s0 + $0xc8] sm:$0xf]
    %v101 = vld [vmem:[%s0 + $0xcc] sm:$0xf]
    %v102 = vld [vmem:[%s0 + $0xd0] sm:$0xf]
    %v103 = vld [vmem:[%s0 + $0xd4] sm:$0xf]
    %v104 = vld [vmem:[%s0 + $0xd8] sm:$0xf]
    %v105 = vld [vmem:[%s0 + $0xdc] sm:$0xf]
    %v106 = vld [vmem:[%s0 + $0xe0] sm:$0xf]
    %v107 = vld [vmem:[%s0 + $0xe4] sm:$0xf]
    %v108 = vld [vmem:[%s0 + $0xe8] sm:$0xf]
    %v109 = vld [vmem:[%s0 + $0xec] sm:$0xf]
    %v110 = vld [vmem:[%s0 + $0xf0] sm:$0xf]
    %v111 = vld [vmem:[%s0 + $0xf4] sm:$0xf]
    %v112 = vld [vmem:[%s0 + $0xf8] sm:$0xf]
    %v113 = vld [vmem:[%s0 + $0xfc] sm:$0xf]
    %v114 = vld [vmem:[%s1] sm:$0xff]
    %v115 = vld [vmem:[%s1 + $0x8] sm:$0xff]
    %v116 = vld [vmem:[%s1 + $0x10] sm:$0xff]
    %v117 = vld [vmem:[%s1 + $0x18] sm:$0xff]
    %v118 = vld [vmem:[%s1 + $0x20] sm:$0xff]
    %v119 = vld [vmem:[%s1 + $0x28] sm:$0xff]
    %v120 = vld [vmem:[%s1 + $0x30] sm:$0xff]
    %v121 = vld [vmem:[%s1 + $0x38] sm:$0xff]
    %v122 = vld [vmem:[%s1 + $0x40] sm:$0xff]
    %v123 = vld [vmem:[%s1 + $0x48] sm:$0xff]
    %v124 = vld [vmem:[%s1 + $0x50] sm:$0xff]
    %v125 = vld [vmem:[%s1 + $0x58] sm:$0xff]
    %v126 = vld [vmem:[%s1 + $0x60] sm:$0xff]
    %v127 = vld [vmem:[%s1 + $0x68] sm:$0xff]
    %v128 = vld [vmem:[%s1 + $0x70] sm:$0xff]
    %v129 = vld [vmem:[%s1 + $0x78] sm:$0xff]
    %v130 = vpack.c.bf16 %v115, %v114
    %v131 = vpack.c.bf16 %v117, %v116
    %v132 = vpack.c.bf16 %v119, %v118
    %v133 = vpack.c.bf16 %v121, %v120
    %v134 = vpack.c.bf16 %v123, %v122
    %v135 = vpack.c.bf16 %v125, %v124
    %v136 = vpack.c.bf16 %v127, %v126
    %v137 = vpack.c.bf16 %v129, %v128
    %v138 = vld [vmem:[%s2] sm:$0x1]
    %v140 = vlaneseq
    %v141 = vshrl.u32 %v140, 7
    %v142 = vsub.s32 0, %v141
    %v143 = vrot.slane %v138, %v142
    %v209 = vunpack.c.l.b16 %v50
    %v210 = vunpack.c.l.b16 %v51
    %v211 = vunpack.c.l.b16 %v52
    %v212 = vunpack.c.l.b16 %v53
    %v213 = vunpack.c.l.b16 %v54
    %v214 = vunpack.c.l.b16 %v55
    %v215 = vunpack.c.l.b16 %v56
    %v216 = vunpack.c.l.b16 %v57
    %v217 = vunpack.c.l.b16 %v58
    %v218 = vunpack.c.l.b16 %v59
    %v219 = vunpack.c.l.b16 %v60
    %v220 = vunpack.c.l.b16 %v61
    %v221 = vunpack.c.l.b16 %v62
    %v222 = vunpack.c.l.b16 %v63
    %v223 = vunpack.c.l.b16 %v64
    %v224 = vunpack.c.l.b16 %v65
    %v225 = vunpack.c.l.b16 %v66
    %v226 = vunpack.c.l.b16 %v67
    %v227 = vunpack.c.l.b16 %v68
    %v228 = vunpack.c.l.b16 %v69
    %v229 = vunpack.c.l.b16 %v70
    %v230 = vunpack.c.l.b16 %v71
    %v231 = vunpack.c.l.b16 %v72
    %v232 = vunpack.c.l.b16 %v73
    %v233 = vunpack.c.l.b16 %v74
    %v234 = vunpack.c.l.b16 %v75
    %v235 = vunpack.c.l.b16 %v76
    %v236 = vunpack.c.l.b16 %v77
    %v237 = vunpack.c.l.b16 %v78
    %v238 = vunpack.c.l.b16 %v79
    %v239 = vunpack.c.l.b16 %v80
    %v240 = vunpack.c.l.b16 %v81
    %v241 = vunpack.c.l.b16 %v82
    %v242 = vunpack.c.l.b16 %v83
    %v243 = vunpack.c.l.b16 %v84
    %v244 = vunpack.c.l.b16 %v85
    %v245 = vunpack.c.l.b16 %v86
    %v246 = vunpack.c.l.b16 %v87
    %v247 = vunpack.c.l.b16 %v88
    %v248 = vunpack.c.l.b16 %v89
    %v249 = vunpack.c.l.b16 %v90
    %v250 = vunpack.c.l.b16 %v91
    %v251 = vunpack.c.l.b16 %v92
    %v252 = vunpack.c.l.b16 %v93
    %v253 = vunpack.c.l.b16 %v94
    %v254 = vunpack.c.l.b16 %v95
    %v255 = vunpack.c.l.b16 %v96
    %v256 = vunpack.c.l.b16 %v97
    %v257 = vunpack.c.l.b16 %v98
    %v258 = vunpack.c.l.b16 %v99
    %v259 = vunpack.c.l.b16 %v100
    %v260 = vunpack.c.l.b16 %v101
    %v261 = vunpack.c.l.b16 %v102
    %v262 = vunpack.c.l.b16 %v103
    %v263 = vunpack.c.l.b16 %v104
    %v264 = vunpack.c.l.b16 %v105
    %v265 = vunpack.c.l.b16 %v106
    %v266 = vunpack.c.l.b16 %v107
    %v267 = vunpack.c.l.b16 %v108
    %v268 = vunpack.c.l.b16 %v109
    %v269 = vunpack.c.l.b16 %v110
    %v270 = vunpack.c.l.b16 %v111
    %v271 = vunpack.c.l.b16 %v112
    %v272 = vunpack.c.l.b16 %v113
    %v273 = vpack.c.b16 %v210, %v209
    %v274 = vpack.c.b16 %v212, %v211
    %v275 = vpack.c.b16 %v214, %v213
    %v276 = vpack.c.b16 %v216, %v215
    %v277 = vpack.c.b16 %v218, %v217
    %v278 = vpack.c.b16 %v220, %v219
    %v279 = vpack.c.b16 %v222, %v221
    %v280 = vpack.c.b16 %v224, %v223
    %v281 = vpack.c.b16 %v226, %v225
    %v282 = vpack.c.b16 %v228, %v227
    %v283 = vpack.c.b16 %v230, %v229
    %v284 = vpack.c.b16 %v232, %v231
    %v285 = vpack.c.b16 %v234, %v233
    %v286 = vpack.c.b16 %v236, %v235
    %v287 = vpack.c.b16 %v238, %v237
    %v288 = vpack.c.b16 %v240, %v239
    %v289 = vpack.c.b16 %v242, %v241
    %v290 = vpack.c.b16 %v244, %v243
    %v291 = vpack.c.b16 %v246, %v245
    %v292 = vpack.c.b16 %v248, %v247
    %v293 = vpack.c.b16 %v250, %v249
    %v294 = vpack.c.b16 %v252, %v251
    %v295 = vpack.c.b16 %v254, %v253
    %v296 = vpack.c.b16 %v256, %v255
    %v297 = vpack.c.b16 %v258, %v257
    %v298 = vpack.c.b16 %v260, %v259
    %v299 = vpack.c.b16 %v262, %v261
    %v300 = vpack.c.b16 %v264, %v263
    %v301 = vpack.c.b16 %v266, %v265
    %v302 = vpack.c.b16 %v268, %v267
    %v303 = vpack.c.b16 %v270, %v269
    %v304 = vpack.c.b16 %v272, %v271
    %337 = vmatprep.subr.bf16.mxu0 0
    %338 = vmatpush1.bf16.msra.mxu0 %v130
    %339 = vmatprep.subr.bf16.mxu0 0
    %340 = vmatpush1.bf16.msra.mxu0 %v131
    %341 = vmatprep.subr.bf16.mxu0 0
    %342 = vmatpush1.bf16.msra.mxu0 %v132
    %343 = vmatprep.subr.bf16.mxu0 0
    %344 = vmatpush1.bf16.msra.mxu0 %v133
    %345 = vmatprep.subr.bf16.mxu0 0
    %346 = vmatpush1.bf16.msra.mxu0 %v134
    %347 = vmatprep.subr.bf16.mxu0 0
    %348 = vmatpush1.bf16.msra.mxu0 %v135
    %349 = vmatprep.subr.bf16.mxu0 0
    %350 = vmatpush1.bf16.msra.mxu0 %v136
    %351 = vmatprep.subr.bf16.mxu0 0
    %352 = vmatpush1.bf16.msra.mxu0 %v137
    %353 = vmatprep.subr.bf16.mxu0 0
    %354 = vmatpush1.bf16.msra.mxu0 0
    %355 = vmatprep.subr.bf16.mxu0 0
    %356 = vmatpush1.bf16.msra.mxu0 0
    %357 = vmatprep.subr.bf16.mxu0 0
    %358 = vmatpush1.bf16.msra.mxu0 0
    %359 = vmatprep.subr.bf16.mxu0 0
    %360 = vmatpush1.bf16.msra.mxu0 0
    %361 = vmatprep.subr.bf16.mxu0 0
    %362 = vmatpush1.bf16.msra.mxu0 0
    %363 = vmatprep.subr.bf16.mxu0 0
    %364 = vmatpush1.bf16.msra.mxu0 0
    %365 = vmatprep.subr.bf16.mxu0 0
    %366 = vmatpush1.bf16.msra.mxu0 0
    %367 = vmatprep.subr.bf16.mxu0 0
    %368 = vmatpush1.bf16.msra.mxu0 0
    %369 = vmatprep.mubr.bf16.mxu0 0
    %370 = vmatmul.mubr.bf16.gmra.mrb[0].mxu0 %v273
    %v371 = vpop.f32.mrb[0].mxu0
    %v372 = vadd.f32 %v143, %v371
    %v373 = vpop.f32.mrb[0].mxu0
    %v374 = vpop.f32.mrb[0].mxu0
    %v375 = vadd.f32 %v143, %v374
    %v376 = vpop.f32.mrb[0].mxu0
    %377 = vmatprep.mubr.bf16.mxu0 0
    %378 = vmatmul.mubr.bf16.gmra.mrb[0].mxu0 %v274
    %v379 = vpop.f32.mrb[0].mxu0
    %v380 = vadd.f32 %v143, %v379
    %v381 = vpop.f32.mrb[0].mxu0
    %v382 = vpop.f32.mrb[0].mxu0
    %v383 = vadd.f32 %v143, %v382
    %v384 = vpop.f32.mrb[0].mxu0
    %385 = vmatprep.mubr.bf16.mxu0 0
    %386 = vmatmul.mubr.bf16.gmra.mrb[0].mxu0 %v275
    %v387 = vpop.f32.mrb[0].mxu0
    %v388 = vadd.f32 %v143, %v387
    %v389 = vpop.f32.mrb[0].mxu0
    %v390 = vpop.f32.mrb[0].mxu0
    %v391 = vadd.f32 %v143, %v390
    %v392 = vpop.f32.mrb[0].mxu0
    %393 = vmatprep.mubr.bf16.mxu0 0
    %394 = vmatmul.mubr.bf16.gmra.mrb[0].mxu0 %v276
    %v395 = vpop.f32.mrb[0].mxu0
    %v396 = vadd.f32 %v143, %v395
    %v397 = vpop.f32.mrb[0].mxu0
    %v398 = vpop.f32.mrb[0].mxu0
    %v399 = vadd.f32 %v143, %v398
    %v400 = vpop.f32.mrb[0].mxu0
    %401 = vmatprep.mubr.bf16.mxu0 0
    %402 = vmatmul.mubr.bf16.gmra.mrb[0].mxu0 %v277
    %v403 = vpop.f32.mrb[0].mxu0
    %v404 = vadd.f32 %v143, %v403
    %v405 = vpop.f32.mrb[0].mxu0
    %v406 = vpop.f32.mrb[0].mxu0
    %v407 = vadd.f32 %v143, %v406
    %v408 = vpop.f32.mrb[0].mxu0
    %409 = vmatprep.mubr.bf16.mxu0 0
    %410 = vmatmul.mubr.bf16.gmra.mrb[0].mxu0 %v278
    %v411 = vpop.f32.mrb[0].mxu0
    %v412 = vadd.f32 %v143, %v411
    %v413 = vpop.f32.mrb[0].mxu0
    %v414 = vpop.f32.mrb[0].mxu0
    %v415 = vadd.f32 %v143, %v414
    %v416 = vpop.f32.mrb[0].mxu0
    %417 = vmatprep.mubr.bf16.mxu0 0
    %418 = vmatmul.mubr.bf16.gmra.mrb[0].mxu0 %v279
    %v419 = vpop.f32.mrb[0].mxu0
    %v420 = vadd.f32 %v143, %v419
    %v421 = vpop.f32.mrb[0].mxu0
    %v422 = vpop.f32.mrb[0].mxu0
    %v423 = vadd.f32 %v143, %v422
    %v424 = vpop.f32.mrb[0].mxu0
    %425 = vmatprep.mubr.bf16.mxu0 0
    %426 = vmatmul.mubr.bf16.gmra.mrb[0].mxu0 %v280
    %v427 = vpop.f32.mrb[0].mxu0
    %v428 = vadd.f32 %v143, %v427
    %v429 = vpop.f32.mrb[0].mxu0
    %v430 = vpop.f32.mrb[0].mxu0
    %v431 = vadd.f32 %v143, %v430
    %v432 = vpop.f32.mrb[0].mxu0
    %433 = vmatprep.mubr.bf16.mxu0 0
    %434 = vmatmul.mubr.bf16.gmra.mrb[0].mxu0 %v281
    %v435 = vpop.f32.mrb[0].mxu0
    %v436 = vadd.f32 %v143, %v435
    %v437 = vpop.f32.mrb[0].mxu0
    %v438 = vpop.f32.mrb[0].mxu0
    %v439 = vadd.f32 %v143, %v438
    %v440 = vpop.f32.mrb[0].mxu0
    %441 = vmatprep.mubr.bf16.mxu0 0
    %442 = vmatmul.mubr.bf16.gmra.mrb[0].mxu0 %v282
    %v443 = vpop.f32.mrb[0].mxu0
    %v444 = vadd.f32 %v143, %v443
    %v445 = vpop.f32.mrb[0].mxu0
    %v446 = vpop.f32.mrb[0].mxu0
    %v447 = vadd.f32 %v143, %v446
    %v448 = vpop.f32.mrb[0].mxu0
    %449 = vmatprep.mubr.bf16.mxu0 0
    %450 = vmatmul.mubr.bf16.gmra.mrb[0].mxu0 %v283
    %v451 = vpop.f32.mrb[0].mxu0
    %v452 = vadd.f32 %v143, %v451
    %v453 = vpop.f32.mrb[0].mxu0
    %v454 = vpop.f32.mrb[0].mxu0
    %v455 = vadd.f32 %v143, %v454
    %v456 = vpop.f32.mrb[0].mxu0
    %457 = vmatprep.mubr.bf16.mxu0 0
    %458 = vmatmul.mubr.bf16.gmra.mrb[0].mxu0 %v284
    %v459 = vpop.f32.mrb[0].mxu0
    %v460 = vadd.f32 %v143, %v459
    %v461 = vpop.f32.mrb[0].mxu0
    %v462 = vpop.f32.mrb[0].mxu0
    %v463 = vadd.f32 %v143, %v462
    %v464 = vpop.f32.mrb[0].mxu0
    %465 = vmatprep.mubr.bf16.mxu0 0
    %466 = vmatmul.mubr.bf16.gmra.mrb[0].mxu0 %v285
    %v467 = vpop.f32.mrb[0].mxu0
    %v468 = vadd.f32 %v143, %v467
    %v469 = vpop.f32.mrb[0].mxu0
    %v470 = vpop.f32.mrb[0].mxu0
    %v471 = vadd.f32 %v143, %v470
    %v472 = vpop.f32.mrb[0].mxu0
    %473 = vmatprep.mubr.bf16.mxu0 0
    %474 = vmatmul.mubr.bf16.gmra.mrb[0].mxu0 %v286
    %v475 = vpop.f32.mrb[0].mxu0
    %v476 = vadd.f32 %v143, %v475
    %v477 = vpop.f32.mrb[0].mxu0
    %v478 = vpop.f32.mrb[0].mxu0
    %v479 = vadd.f32 %v143, %v478
    %v480 = vpop.f32.mrb[0].mxu0
    %481 = vmatprep.mubr.bf16.mxu0 0
    %482 = vmatmul.mubr.bf16.gmra.mrb[0].mxu0 %v287
    %v483 = vpop.f32.mrb[0].mxu0
    %v484 = vadd.f32 %v143, %v483
    %v485 = vpop.f32.mrb[0].mxu0
    %v486 = vpop.f32.mrb[0].mxu0
    %v487 = vadd.f32 %v143, %v486
    %v488 = vpop.f32.mrb[0].mxu0
    %489 = vmatprep.mubr.bf16.mxu0 0
    %490 = vmatmul.mubr.bf16.gmra.mrb[0].mxu0 %v288
    %v491 = vpop.f32.mrb[0].mxu0
    %v492 = vadd.f32 %v143, %v491
    %v493 = vpop.f32.mrb[0].mxu0
    %v494 = vpop.f32.mrb[0].mxu0
    %v495 = vadd.f32 %v143, %v494
    %v496 = vpop.f32.mrb[0].mxu0
    %497 = vmatprep.mubr.bf16.mxu0 0
    %498 = vmatmul.mubr.bf16.gmra.mrb[0].mxu0 %v289
    %v499 = vpop.f32.mrb[0].mxu0
    %v500 = vadd.f32 %v143, %v499
    %v501 = vpop.f32.mrb[0].mxu0
    %v502 = vpop.f32.mrb[0].mxu0
    %v503 = vadd.f32 %v143, %v502
    %v504 = vpop.f32.mrb[0].mxu0
    %505 = vmatprep.mubr.bf16.mxu0 0
    %506 = vmatmul.mubr.bf16.gmra.mrb[0].mxu0 %v290
    %v507 = vpop.f32.mrb[0].mxu0
    %v508 = vadd.f32 %v143, %v507
    %v509 = vpop.f32.mrb[0].mxu0
    %v510 = vpop.f32.mrb[0].mxu0
    %v511 = vadd.f32 %v143, %v510
    %v512 = vpop.f32.mrb[0].mxu0
    %513 = vmatprep.mubr.bf16.mxu0 0
    %514 = vmatmul.mubr.bf16.gmra.mrb[0].mxu0 %v291
    %v515 = vpop.f32.mrb[0].mxu0
    %v516 = vadd.f32 %v143, %v515
    %v517 = vpop.f32.mrb[0].mxu0
    %v518 = vpop.f32.mrb[0].mxu0
    %v519 = vadd.f32 %v143, %v518
    %v520 = vpop.f32.mrb[0].mxu0
    %521 = vmatprep.mubr.bf16.mxu0 0
    %522 = vmatmul.mubr.bf16.gmra.mrb[0].mxu0 %v292
    %v523 = vpop.f32.mrb[0].mxu0
    %v524 = vadd.f32 %v143, %v523
    %v525 = vpop.f32.mrb[0].mxu0
    %v526 = vpop.f32.mrb[0].mxu0
    %v527 = vadd.f32 %v143, %v526
    %v528 = vpop.f32.mrb[0].mxu0
    %529 = vmatprep.mubr.bf16.mxu0 0
    %530 = vmatmul.mubr.bf16.gmra.mrb[0].mxu0 %v293
    %v531 = vpop.f32.mrb[0].mxu0
    %v532 = vadd.f32 %v143, %v531
    %v533 = vpop.f32.mrb[0].mxu0
    %v534 = vpop.f32.mrb[0].mxu0
    %v535 = vadd.f32 %v143, %v534
    %v536 = vpop.f32.mrb[0].mxu0
    %537 = vmatprep.mubr.bf16.mxu0 0
    %538 = vmatmul.mubr.bf16.gmra.mrb[0].mxu0 %v294
    %v539 = vpop.f32.mrb[0].mxu0
    %v540 = vadd.f32 %v143, %v539
    %v541 = vpop.f32.mrb[0].mxu0
    %v542 = vpop.f32.mrb[0].mxu0
    %v543 = vadd.f32 %v143, %v542
    %v544 = vpop.f32.mrb[0].mxu0
    %545 = vmatprep.mubr.bf16.mxu0 0
    %546 = vmatmul.mubr.bf16.gmra.mrb[0].mxu0 %v295
    %v547 = vpop.f32.mrb[0].mxu0
    %v548 = vadd.f32 %v143, %v547
    %v549 = vpop.f32.mrb[0].mxu0
    %v550 = vpop.f32.mrb[0].mxu0
    %v551 = vadd.f32 %v143, %v550
    %v552 = vpop.f32.mrb[0].mxu0
    %553 = vmatprep.mubr.bf16.mxu0 0
    %554 = vmatmul.mubr.bf16.gmra.mrb[0].mxu0 %v296
    %v555 = vpop.f32.mrb[0].mxu0
    %v556 = vadd.f32 %v143, %v555
    %v557 = vpop.f32.mrb[0].mxu0
    %v558 = vpop.f32.mrb[0].mxu0
    %v559 = vadd.f32 %v143, %v558
    %v560 = vpop.f32.mrb[0].mxu0
    %561 = vmatprep.mubr.bf16.mxu0 0
    %562 = vmatmul.mubr.bf16.gmra.mrb[0].mxu0 %v297
    %v563 = vpop.f32.mrb[0].mxu0
    %v564 = vadd.f32 %v143, %v563
    %v565 = vpop.f32.mrb[0].mxu0
    %v566 = vpop.f32.mrb[0].mxu0
    %v567 = vadd.f32 %v143, %v566
    %v568 = vpop.f32.mrb[0].mxu0
    %569 = vmatprep.mubr.bf16.mxu0 0
    %570 = vmatmul.mubr.bf16.gmra.mrb[0].mxu0 %v298
    %v571 = vpop.f32.mrb[0].mxu0
    %v572 = vadd.f32 %v143, %v571
    %v573 = vpop.f32.mrb[0].mxu0
    %v574 = vpop.f32.mrb[0].mxu0
    %v575 = vadd.f32 %v143, %v574
    %v576 = vpop.f32.mrb[0].mxu0
    %577 = vmatprep.mubr.bf16.mxu0 0
    %578 = vmatmul.mubr.bf16.gmra.mrb[0].mxu0 %v299
    %v579 = vpop.f32.mrb[0].mxu0
    %v580 = vadd.f32 %v143, %v579
    %v581 = vpop.f32.mrb[0].mxu0
    %v582 = vpop.f32.mrb[0].mxu0
    %v583 = vadd.f32 %v143, %v582
    %v584 = vpop.f32.mrb[0].mxu0
    %585 = vmatprep.mubr.bf16.mxu0 0
    %586 = vmatmul.mubr.bf16.gmra.mrb[0].mxu0 %v300
    %v587 = vpop.f32.mrb[0].mxu0
    %v588 = vadd.f32 %v143, %v587
    %v589 = vpop.f32.mrb[0].mxu0
    %v590 = vpop.f32.mrb[0].mxu0
    %v591 = vadd.f32 %v143, %v590
    %v592 = vpop.f32.mrb[0].mxu0
    %593 = vmatprep.mubr.bf16.mxu0 0
    %594 = vmatmul.mubr.bf16.gmra.mrb[0].mxu0 %v301
    %v595 = vpop.f32.mrb[0].mxu0
    %v596 = vadd.f32 %v143, %v595
    %v597 = vpop.f32.mrb[0].mxu0
    %v598 = vpop.f32.mrb[0].mxu0
    %v599 = vadd.f32 %v143, %v598
    %v600 = vpop.f32.mrb[0].mxu0
    %601 = vmatprep.mubr.bf16.mxu0 0
    %602 = vmatmul.mubr.bf16.gmra.mrb[0].mxu0 %v302
    %v603 = vpop.f32.mrb[0].mxu0
    %v604 = vadd.f32 %v143, %v603
    %v605 = vpop.f32.mrb[0].mxu0
    %v606 = vpop.f32.mrb[0].mxu0
    %v607 = vadd.f32 %v143, %v606
    %v608 = vpop.f32.mrb[0].mxu0
    %609 = vmatprep.mubr.bf16.mxu0 0
    %610 = vmatmul.mubr.bf16.gmra.mrb[0].mxu0 %v303
    %v611 = vpop.f32.mrb[0].mxu0
    %v612 = vadd.f32 %v143, %v611
    %v613 = vpop.f32.mrb[0].mxu0
    %v614 = vpop.f32.mrb[0].mxu0
    %v615 = vadd.f32 %v143, %v614
    %v616 = vpop.f32.mrb[0].mxu0
    %617 = vmatprep.mubr.bf16.mxu0 0
    %618 = vmatmul.mubr.bf16.gmra.mrb[0].mxu0 %v304
    %v619 = vpop.f32.mrb[0].mxu0
    %v620 = vadd.f32 %v143, %v619
    %v621 = vpop.f32.mrb[0].mxu0
    %v622 = vpop.f32.mrb[0].mxu0
    %v623 = vadd.f32 %v143, %v622
    %v624 = vpop.f32.mrb[0].mxu0
    %625 = vdwg.mxu0
    %v626 = vmax.f32 %v372, 0.0
    %v627 = vmax.f32 %v375, 0.0
    %v628 = vmax.f32 %v380, 0.0
    %v629 = vmax.f32 %v383, 0.0
    %v630 = vmax.f32 %v388, 0.0
    %v631 = vmax.f32 %v391, 0.0
    %v632 = vmax.f32 %v396, 0.0
    %v633 = vmax.f32 %v399, 0.0
    %v634 = vmax.f32 %v404, 0.0
    %v635 = vmax.f32 %v407, 0.0
    %v636 = vmax.f32 %v412, 0.0
    %v637 = vmax.f32 %v415, 0.0
    %v638 = vmax.f32 %v420, 0.0
    %v639 = vmax.f32 %v423, 0.0
    %v640 = vmax.f32 %v428, 0.0
    %v641 = vmax.f32 %v431, 0.0
    %v642 = vmax.f32 %v436, 0.0
    %v643 = vmax.f32 %v439, 0.0
    %v644 = vmax.f32 %v444, 0.0
    %v645 = vmax.f32 %v447, 0.0
    %v646 = vmax.f32 %v452, 0.0
    %v647 = vmax.f32 %v455, 0.0
    %v648 = vmax.f32 %v460, 0.0
    %v649 = vmax.f32 %v463, 0.0
    %v650 = vmax.f32 %v468, 0.0
    %v651 = vmax.f32 %v471, 0.0
    %v652 = vmax.f32 %v476, 0.0
    %v653 = vmax.f32 %v479, 0.0
    %v654 = vmax.f32 %v484, 0.0
    %v655 = vmax.f32 %v487, 0.0
    %v656 = vmax.f32 %v492, 0.0
    %v657 = vmax.f32 %v495, 0.0
    %v658 = vmax.f32 %v500, 0.0
    %v659 = vmax.f32 %v503, 0.0
    %v660 = vmax.f32 %v508, 0.0
    %v661 = vmax.f32 %v511, 0.0
    %v662 = vmax.f32 %v516, 0.0
    %v663 = vmax.f32 %v519, 0.0
    %v664 = vmax.f32 %v524, 0.0
    %v665 = vmax.f32 %v527, 0.0
    %v666 = vmax.f32 %v532, 0.0
    %v667 = vmax.f32 %v535, 0.0
    %v668 = vmax.f32 %v540, 0.0
    %v669 = vmax.f32 %v543, 0.0
    %v670 = vmax.f32 %v548, 0.0
    %v671 = vmax.f32 %v551, 0.0
    %v672 = vmax.f32 %v556, 0.0
    %v673 = vmax.f32 %v559, 0.0
    %v674 = vmax.f32 %v564, 0.0
    %v675 = vmax.f32 %v567, 0.0
    %v676 = vmax.f32 %v572, 0.0
    %v677 = vmax.f32 %v575, 0.0
    %v678 = vmax.f32 %v580, 0.0
    %v679 = vmax.f32 %v583, 0.0
    %v680 = vmax.f32 %v588, 0.0
    %v681 = vmax.f32 %v591, 0.0
    %v682 = vmax.f32 %v596, 0.0
    %v683 = vmax.f32 %v599, 0.0
    %v684 = vmax.f32 %v604, 0.0
    %v685 = vmax.f32 %v607, 0.0
    %v686 = vmax.f32 %v612, 0.0
    %v687 = vmax.f32 %v615, 0.0
    %v688 = vmax.f32 %v620, 0.0
    %v689 = vmax.f32 %v623, 0.0
    %690 = vmatprep.subr.mxu0 0.0
    %691 = vmatpush1.msra.mxu0 %v626
    %692 = vmatprep.subr.mxu0 0.0
    %693 = vmatpush1.msra.mxu0 %v627
    %694 = vmatprep.subr.mxu0 0.0
    %695 = vmatpush1.msra.mxu0 %v628
    %696 = vmatprep.subr.mxu0 0.0
    %697 = vmatpush1.msra.mxu0 %v629
    %698 = vmatprep.subr.mxu0 0.0
    %699 = vmatpush1.msra.mxu0 %v630
    %700 = vmatprep.subr.mxu0 0.0
    %701 = vmatpush1.msra.mxu0 %v631
    %702 = vmatprep.subr.mxu0 0.0
    %703 = vmatpush1.msra.mxu0 %v632
    %704 = vmatprep.subr.mxu0 0.0
    %705 = vmatpush1.msra.mxu0 %v633
    %706 = vmatprep.subr.mxu0 0.0
    %707 = vmatpush1.msra.mxu0 %v634
    %708 = vmatprep.subr.mxu0 0.0
    %709 = vmatpush1.msra.mxu0 %v635
    %710 = vmatprep.subr.mxu0 0.0
    %711 = vmatpush1.msra.mxu0 %v636
    %712 = vmatprep.subr.mxu0 0.0
    %713 = vmatpush1.msra.mxu0 %v637
    %714 = vmatprep.subr.mxu0 0.0
    %715 = vmatpush1.msra.mxu0 %v638
    %716 = vmatprep.subr.mxu0 0.0
    %717 = vmatpush1.msra.mxu0 %v639
    %718 = vmatprep.subr.mxu0 0.0
    %719 = vmatpush1.msra.mxu0 %v640
    %720 = vmatprep.subr.mxu0 0.0
    %721 = vmatpush1.msra.mxu0 %v641
    %722 = vmatprep.subr.mxu0 0.0
    %723 = vmatpush1.msra.mxu0 %v642
    %724 = vmatprep.subr.mxu0 0.0
    %725 = vmatpush1.msra.mxu0 %v643
    %726 = vmatprep.subr.mxu0 0.0
    %727 = vmatpush1.msra.mxu0 %v644
    %728 = vmatprep.subr.mxu0 0.0
    %729 = vmatpush1.msra.mxu0 %v645
    %730 = vmatprep.subr.mxu0 0.0
    %731 = vmatpush1.msra.mxu0 %v646
    %732 = vmatprep.subr.mxu0 0.0
    %733 = vmatpush1.msra.mxu0 %v647
    %734 = vmatprep.subr.mxu0 0.0
    %735 = vmatpush1.msra.mxu0 %v648
    %736 = vmatprep.subr.mxu0 0.0
    %737 = vmatpush1.msra.mxu0 %v649
    %738 = vmatprep.subr.mxu0 0.0
    %739 = vmatpush1.msra.mxu0 %v650
    %740 = vmatprep.subr.mxu0 0.0
    %741 = vmatpush1.msra.mxu0 %v651
    %742 = vmatprep.subr.mxu0 0.0
    %743 = vmatpush1.msra.mxu0 %v652
    %744 = vmatprep.subr.mxu0 0.0
    %745 = vmatpush1.msra.mxu0 %v653
    %746 = vmatprep.subr.mxu0 0.0
    %747 = vmatpush1.msra.mxu0 %v654
    %748 = vmatprep.subr.mxu0 0.0
    %749 = vmatpush1.msra.mxu0 %v655
    %750 = vmatprep.subr.mxu0 0.0
    %751 = vmatpush1.msra.mxu0 %v656
    %752 = vmatprep.subr.mxu0 0.0
    %753 = vmatpush1.msra.mxu0 %v657
    %754 = vmatprep.mubr.f32.mxu0 %v47
    %755 = vmatmul.mubr.f32.gmra.mrb[0].mxu0 %v46
    %v756 = vpop.f32.mrb[0].mxu0
    %v757 = vadd.f32 0.0, %v756
    %v758 = vpop.f32.mrb[0].mxu0
    %759 = vdwg.mxu0
    %760 = vmatprep.subr.mxu0 0.0
    %761 = vmatpush1.msra.mxu0 %v658
    %762 = vmatprep.subr.mxu0 0.0
    %763 = vmatpush1.msra.mxu0 %v659
    %764 = vmatprep.subr.mxu0 0.0
    %765 = vmatpush1.msra.mxu0 %v660
    %766 = vmatprep.subr.mxu0 0.0
    %767 = vmatpush1.msra.mxu0 %v661
    %768 = vmatprep.subr.mxu0 0.0
    %769 = vmatpush1.msra.mxu0 %v662
    %770 = vmatprep.subr.mxu0 0.0
    %771 = vmatpush1.msra.mxu0 %v663
    %772 = vmatprep.subr.mxu0 0.0
    %773 = vmatpush1.msra.mxu0 %v664
    %774 = vmatprep.subr.mxu0 0.0
    %775 = vmatpush1.msra.mxu0 %v665
    %776 = vmatprep.subr.mxu0 0.0
    %777 = vmatpush1.msra.mxu0 %v666
    %778 = vmatprep.subr.mxu0 0.0
    %779 = vmatpush1.msra.mxu0 %v667
    %780 = vmatprep.subr.mxu0 0.0
    %781 = vmatpush1.msra.mxu0 %v668
    %782 = vmatprep.subr.mxu0 0.0
    %783 = vmatpush1.msra.mxu0 %v669
    %784 = vmatprep.subr.mxu0 0.0
    %785 = vmatpush1.msra.mxu0 %v670
    %786 = vmatprep.subr.mxu0 0.0
    %787 = vmatpush1.msra.mxu0 %v671
    %788 = vmatprep.subr.mxu0 0.0
    %789 = vmatpush1.msra.mxu0 %v672
    %790 = vmatprep.subr.mxu0 0.0
    %791 = vmatpush1.msra.mxu0 %v673
    %792 = vmatprep.subr.mxu0 0.0
    %793 = vmatpush1.msra.mxu0 %v674
    %794 = vmatprep.subr.mxu0 0.0
    %795 = vmatpush1.msra.mxu0 %v675
    %796 = vmatprep.subr.mxu0 0.0
    %797 = vmatpush1.msra.mxu0 %v676
    %798 = vmatprep.subr.mxu0 0.0
    %799 = vmatpush1.msra.mxu0 %v677
    %800 = vmatprep.subr.mxu0 0.0
    %801 = vmatpush1.msra.mxu0 %v678
    %802 = vmatprep.subr.mxu0 0.0
    %803 = vmatpush1.msra.mxu0 %v679
    %804 = vmatprep.subr.mxu0 0.0
    %805 = vmatpush1.msra.mxu0 %v680
    %806 = vmatprep.subr.mxu0 0.0
    %807 = vmatpush1.msra.mxu0 %v681
    %808 = vmatprep.subr.mxu0 0.0
    %809 = vmatpush1.msra.mxu0 %v682
    %810 = vmatprep.subr.mxu0 0.0
    %811 = vmatpush1.msra.mxu0 %v683
    %812 = vmatprep.subr.mxu0 0.0
    %813 = vmatpush1.msra.mxu0 %v684
    %814 = vmatprep.subr.mxu0 0.0
    %815 = vmatpush1.msra.mxu0 %v685
    %816 = vmatprep.subr.mxu0 0.0
    %817 = vmatpush1.msra.mxu0 %v686
    %818 = vmatprep.subr.mxu0 0.0
    %819 = vmatpush1.msra.mxu0 %v687
    %820 = vmatprep.subr.mxu0 0.0
    %821 = vmatpush1.msra.mxu0 %v688
    %822 = vmatprep.subr.mxu0 0.0
    %823 = vmatpush1.msra.mxu0 %v689
    %824 = vmatprep.mubr.f32.mxu0 %v49
    %825 = vmatmul.mubr.f32.gmra.mrb[0].mxu0 %v48
    %v826 = vpop.f32.mrb[0].mxu0
    %v827 = vadd.f32 %v757, %v826
    %v828 = vpop.f32.mrb[0].mxu0
    %829 = vdwg.mxu0
    %830 = vst [vmem:[#allocation4] sm:$0x3] %v827
    %v831 = vld [vmem:[%s3] sm:$0xff]
    %v832 = vld [vmem:[%s3 + $0x8] sm:$0xff]
    %v833 = vld [vmem:[%s3 + $0x10] sm:$0xff]
    %v834 = vld [vmem:[%s3 + $0x18] sm:$0xff]
    %v835 = vld [vmem:[%s3 + $0x20] sm:$0xff]
    %v836 = vld [vmem:[%s3 + $0x28] sm:$0xff]
    %v837 = vld [vmem:[%s3 + $0x30] sm:$0xff]
    %v838 = vld [vmem:[%s3 + $0x38] sm:$0xff]
    %v839 = vld [vmem:[%s3 + $0x40] sm:$0xff]
    %v840 = vld [vmem:[%s3 + $0x48] sm:$0xff]
    %v841 = vld [vmem:[%s3 + $0x50] sm:$0xff]
    %v842 = vld [vmem:[%s3 + $0x58] sm:$0xff]
    %v843 = vld [vmem:[%s3 + $0x60] sm:$0xff]
    %v844 = vld [vmem:[%s3 + $0x68] sm:$0xff]
    %v845 = vld [vmem:[%s3 + $0x70] sm:$0xff]
    %v846 = vld [vmem:[%s3 + $0x78] sm:$0xff]
    %v847 = vld [vmem:[%s4] sm:$0x1]
    %v849 = vlaneseq
    %v850 = vshrl.u32 %v849, 7
    %v851 = vsub.s32 0, %v850
    %v852 = vrot.slane %v847, %v851
    %854 = vmatprep.subr.mxu0 0.0
    %855 = vmatpush1.msra.mxu0 %v831
    %856 = vmatprep.subr.mxu0 0.0
    %857 = vmatpush1.msra.mxu0 %v832
    %858 = vmatprep.subr.mxu0 0.0
    %859 = vmatpush1.msra.mxu0 %v833
    %860 = vmatprep.subr.mxu0 0.0
    %861 = vmatpush1.msra.mxu0 %v834
    %862 = vmatprep.subr.mxu0 0.0
    %863 = vmatpush1.msra.mxu0 %v835
    %864 = vmatprep.subr.mxu0 0.0
    %865 = vmatpush1.msra.mxu0 %v836
    %866 = vmatprep.subr.mxu0 0.0
    %867 = vmatpush1.msra.mxu0 %v837
    %868 = vmatprep.subr.mxu0 0.0
    %869 = vmatpush1.msra.mxu0 %v838
    %870 = vmatprep.subr.mxu0 0.0
    %871 = vmatpush1.msra.mxu0 %v839
    %872 = vmatprep.subr.mxu0 0.0
    %873 = vmatpush1.msra.mxu0 %v840
    %874 = vmatprep.subr.mxu0 0.0
    %875 = vmatpush1.msra.mxu0 %v841
    %876 = vmatprep.subr.mxu0 0.0
    %877 = vmatpush1.msra.mxu0 %v842
    %878 = vmatprep.subr.mxu0 0.0
    %879 = vmatpush1.msra.mxu0 %v843
    %880 = vmatprep.subr.mxu0 0.0
    %881 = vmatpush1.msra.mxu0 %v844
    %882 = vmatprep.subr.mxu0 0.0
    %883 = vmatpush1.msra.mxu0 %v845
    %884 = vmatprep.subr.mxu0 0.0
    %885 = vmatpush1.msra.mxu0 %v846
    %886 = vmatprep.subr.mxu0 0.0
    %887 = vmatpush1.msra.mxu0 0.0
    %888 = vmatprep.subr.mxu0 0.0
    %889 = vmatpush1.msra.mxu0 0.0
    %890 = vmatprep.subr.mxu0 0.0
    %891 = vmatpush1.msra.mxu0 0.0
    %892 = vmatprep.subr.mxu0 0.0
    %893 = vmatpush1.msra.mxu0 0.0
    %894 = vmatprep.subr.mxu0 0.0
    %895 = vmatpush1.msra.mxu0 0.0
    %896 = vmatprep.subr.mxu0 0.0
    %897 = vmatpush1.msra.mxu0 0.0
    %898 = vmatprep.subr.mxu0 0.0
    %899 = vmatpush1.msra.mxu0 0.0
    %900 = vmatprep.subr.mxu0 0.0
    %901 = vmatpush1.msra.mxu0 0.0
    %902 = vmatprep.subr.mxu0 0.0
    %903 = vmatpush1.msra.mxu0 0.0
    %904 = vmatprep.subr.mxu0 0.0
    %905 = vmatpush1.msra.mxu0 0.0
    %906 = vmatprep.subr.mxu0 0.0
    %907 = vmatpush1.msra.mxu0 0.0
    %908 = vmatprep.subr.mxu0 0.0
    %909 = vmatpush1.msra.mxu0 0.0
    %910 = vmatprep.subr.mxu0 0.0
    %911 = vmatpush1.msra.mxu0 0.0
    %912 = vmatprep.subr.mxu0 0.0
    %913 = vmatpush1.msra.mxu0 0.0
    %914 = vmatprep.subr.mxu0 0.0
    %915 = vmatpush1.msra.mxu0 0.0
    %916 = vmatprep.subr.mxu0 0.0
    %917 = vmatpush1.msra.mxu0 0.0
    %918 = vmatprep.mubr.f32.mxu0 0.0
    %919 = vmatmul.mubr.f32.gmra.mrb[0].mxu0 %v827
    %v920 = vpop.f32.mrb[0].mxu0
    %v921 = vadd.f32 %v852, %v920
    %v922 = vpop.f32.mrb[0].mxu0
    %923 = vdwg.mxu0
    %924 = vst [vmem:[#allocation2] sm:$0x3] %v921
    // Predicated region
    $region22: #{podd_forward.3} parent=1 // pred_check
      _
    $region23: #{podd_forward.3} parent=1 // pred_check_branch
      %926 = sbr.rel (0) target = $region25
    $region24: #{podd_forward.3} parent=1 // pred_region
      %s928 = ssub.s32 32, 32
      %929 = vsyncadd [#allocation3], %s928
      %s931 = sshll.u32 [#allocation2], 4
      %s932 = int_to_ptr.vmem [resolvable:$true] %s931
      %934 = dma.vmem_to_hbm [thread:$0]  %s932, 32, %s5, [#allocation3]
    $region25: #{podd_forward.3} parent=1 // pred_fallthru
      _
    // Predicated region
    $region26: #{podd_forward.3} parent=1 // pred_check
      _
    $region27: #{podd_forward.3} parent=1 // pred_check_branch
      %936 = sbr.rel (0) target = $region29
    $region28: #{podd_forward.3} parent=1 // pred_region
      %s938 = ssub.s32 32, 32
      %939 = vsyncadd [#allocation5], %s938
      %s941 = sshll.u32 [#allocation4], 4
      %s942 = int_to_ptr.vmem [resolvable:$true] %s941
      %944 = dma.vmem_to_hbm [thread:$0]  %s942, 32, %s6, [#allocation5]
    $region29: #{podd_forward.3} parent=1 // pred_fallthru
      _
    // Predicated region
    $region30: #{podd_forward.3} parent=1 // pred_check
      _
    $region31: #{podd_forward.3} parent=1 // pred_check_branch
      %946 = sbr.rel (0) target = $region33
    $region32: #{podd_forward.3} parent=1 // pred_region
      %947 = dma.done [#allocation3], 32
    $region33: #{podd_forward.3} parent=1 // pred_fallthru
      _
    // Predicated region
    $region34: #{podd_forward.3} parent=1 // pred_check
      _
    $region35: #{podd_forward.3} parent=1 // pred_check_branch
      %949 = sbr.rel (0) target = $region37
    $region36: #{podd_forward.3} parent=1 // pred_region
      %950 = dma.done [#allocation5], 32
    $region37: #{podd_forward.3} parent=1 // pred_fallthru
      _
    %951 = vsyncpa [#allocation3], 1
    %952 = vsyncpa [#allocation5], 1

// kernel: podd_forward.2
$region0: #{podd_forward.2}
  #allocation0 [shape = 'u32[]', space=smem, size = 0x4, offset = 0x4, fixed_abs, tag = 'smem constant byte address 0x4 - core index']
  #allocation1 [shape = 'u32[144,128]{1,0:T(1,128)}', space=vmem, size = 0x12000, scoped, tag = 'internal scratch']
  #allocation2 [shape = 'f32[128,128]{1,0:T(8,128)}', space=vmem, size = 0x10000, scoped, tag = 'scratch operand']
  #allocation3 [shape = 'f32[1,128]{1,0:T(1,128)}', space=vmem, size = 0x200, scoped, tag = 'scratch operand']
  #allocation4 [shape = 'f32[128,128]{1,0:T(8,128)}', space=vmem, size = 0x10000, scoped, tag = 'scratch operand']
  #allocation5 [shape = 'f32[1,128]{1,0:T(1,128)}', space=vmem, size = 0x200, scoped, tag = 'scratch operand']
  %s0 = inlined_call_operand.vmem [shape: bf16[6,2048,128], index: 0, kind: input, shape index: {}]
  %s1 = inlined_call_operand.vmem [shape: f32[6,8,128], index: 1, kind: input, shape index: {}]
  %s2 = inlined_call_operand.vmem [shape: f32[128,128], index: 2, kind: input, shape index: {}]
  %s3 = inlined_call_operand.vmem [shape: f32[1,128], index: 3, kind: input, shape index: {}, may-alias: {3,5}]
  %s4 = inlined_call_operand.vmem [shape: f32[128,128], index: 4, kind: input, shape index: {}]
  %s5 = inlined_call_operand.vmem [shape: f32[1,128], index: 5, kind: input, shape index: {}, may-alias: {3,5}]
  %s6 = inlined_call_operand.vmem [shape: f32[128,128], index: 6, kind: output, shape index: {0}]
  %s7 = inlined_call_operand.vmem [shape: f32[1,128], index: 7, kind: output, shape index: {1}]
  %s8 = inlined_call_operand.vmem [shape: f32[128,128], index: 8, kind: output, shape index: {2}]
  %s9 = inlined_call_operand.vmem [shape: f32[1,128], index: 9, kind: output, shape index: {3}]
  %10 = xla_tuple %s6, %s7, %s8, %s9
  %s11 = sld [smem:[#allocation0]]
  $region65: #{podd_forward.2} parent=0
    _
  %s13 = ssub.s32 1, %s11
  %s14 = scalar_select 0, %s13, %s11
  // Predicated region
  $region2: #{podd_forward.2} parent=0 // pred_check
    _
  $region3: #{podd_forward.2} parent=0 // pred_check_branch
    %16 = sbr.rel (0) target = $region5
  $region4: #{podd_forward.2} parent=0 // pred_region
    _
  $region5: #{podd_forward.2} parent=0 // pred_fallthru
    _
  // Predicated region
  $region6: #{podd_forward.2} parent=0 // pred_check
    _
  $region7: #{podd_forward.2} parent=0 // pred_check_branch
    %18 = sbr.rel (0) target = $region9
  $region8: #{podd_forward.2} parent=0 // pred_region
    _
  $region9: #{podd_forward.2} parent=0 // pred_fallthru
    _
  // Predicated region
  $region10: #{podd_forward.2} parent=0 // pred_check
    _
  $region11: #{podd_forward.2} parent=0 // pred_check_branch
    %20 = sbr.rel (0) target = $region13
  $region12: #{podd_forward.2} parent=0 // pred_region
    _
  $region13: #{podd_forward.2} parent=0 // pred_fallthru
    _
  // Predicated region
  $region14: #{podd_forward.2} parent=0 // pred_check
    _
  $region15: #{podd_forward.2} parent=0 // pred_check_branch
    %22 = sbr.rel (0) target = $region17
  $region16: #{podd_forward.2} parent=0 // pred_region
    _
  $region17: #{podd_forward.2} parent=0 // pred_fallthru
    _
  // Predicated region
  $region18: #{podd_forward.2} parent=0 // pred_check
    _
  $region19: #{podd_forward.2} parent=0 // pred_check_branch
    %24 = sbr.rel (0) target = $region21
  $region20: #{podd_forward.2} parent=0 // pred_region
    _
  $region21: #{podd_forward.2} parent=0 // pred_fallthru
    _
  // Predicated region
  $region22: #{podd_forward.2} parent=0 // pred_check
    _
  $region23: #{podd_forward.2} parent=0 // pred_check_branch
    %26 = sbr.rel (0) target = $region25
  $region24: #{podd_forward.2} parent=0 // pred_region
    _
  $region25: #{podd_forward.2} parent=0 // pred_fallthru
    _
  %v28 = vld [vmem:[%s2] sm:$0xff]
  %v29 = vld [vmem:[%s2 + $0x8] sm:$0xff]
  %v30 = vld [vmem:[%s2 + $0x10] sm:$0xff]
  %v31 = vld [vmem:[%s2 + $0x18] sm:$0xff]
  %v32 = vld [vmem:[%s2 + $0x20] sm:$0xff]
  %v33 = vld [vmem:[%s2 + $0x28] sm:$0xff]
  %v34 = vld [vmem:[%s2 + $0x30] sm:$0xff]
  %v35 = vld [vmem:[%s2 + $0x38] sm:$0xff]
  %v36 = vld [vmem:[%s2 + $0x40] sm:$0xff]
  %v37 = vld [vmem:[%s2 + $0x48] sm:$0xff]
  %v38 = vld [vmem:[%s2 + $0x50] sm:$0xff]
  %v39 = vld [vmem:[%s2 + $0x58] sm:$0xff]
  %v40 = vld [vmem:[%s2 + $0x60] sm:$0xff]
  %v41 = vld [vmem:[%s2 + $0x68] sm:$0xff]
  %v42 = vld [vmem:[%s2 + $0x70] sm:$0xff]
  %v43 = vld [vmem:[%s2 + $0x78] sm:$0xff]
  %44 = vst [vmem:[%s6] sm:$0xff] %v28
  %45 = vst [vmem:[%s6 + $0x8] sm:$0xff] %v29
  %46 = vst [vmem:[%s6 + $0x10] sm:$0xff] %v30
  %47 = vst [vmem:[%s6 + $0x18] sm:$0xff] %v31
  %48 = vst [vmem:[%s6 + $0x20] sm:$0xff] %v32
  %49 = vst [vmem:[%s6 + $0x28] sm:$0xff] %v33
  %50 = vst [vmem:[%s6 + $0x30] sm:$0xff] %v34
  %51 = vst [vmem:[%s6 + $0x38] sm:$0xff] %v35
  %52 = vst [vmem:[%s6 + $0x40] sm:$0xff] %v36
  %53 = vst [vmem:[%s6 + $0x48] sm:$0xff] %v37
  %54 = vst [vmem:[%s6 + $0x50] sm:$0xff] %v38
  %55 = vst [vmem:[%s6 + $0x58] sm:$0xff] %v39
  %56 = vst [vmem:[%s6 + $0x60] sm:$0xff] %v40
  %57 = vst [vmem:[%s6 + $0x68] sm:$0xff] %v41
  %58 = vst [vmem:[%s6 + $0x70] sm:$0xff] %v42
  %59 = vst [vmem:[%s6 + $0x78] sm:$0xff] %v43
  %v60 = vld [vmem:[%s3] sm:$0x1]
  %61 = vst [vmem:[%s7] sm:$0x1] %v60
  %v62 = vld [vmem:[%s4] sm:$0xff]
  %v63 = vld [vmem:[%s4 + $0x8] sm:$0xff]
  %v64 = vld [vmem:[%s4 + $0x10] sm:$0xff]
  %v65 = vld [vmem:[%s4 + $0x18] sm:$0xff]
  %v66 = vld [vmem:[%s4 + $0x20] sm:$0xff]
  %v67 = vld [vmem:[%s4 + $0x28] sm:$0xff]
  %v68 = vld [vmem:[%s4 + $0x30] sm:$0xff]
  %v69 = vld [vmem:[%s4 + $0x38] sm:$0xff]
  %v70 = vld [vmem:[%s4 + $0x40] sm:$0xff]
  %v71 = vld [vmem:[%s4 + $0x48] sm:$0xff]
  %v72 = vld [vmem:[%s4 + $0x50] sm:$0xff]
  %v73 = vld [vmem:[%s4 + $0x58] sm:$0xff]
  %v74 = vld [vmem:[%s4 + $0x60] sm:$0xff]
  %v75 = vld [vmem:[%s4 + $0x68] sm:$0xff]
  %v76 = vld [vmem:[%s4 + $0x70] sm:$0xff]
  %v77 = vld [vmem:[%s4 + $0x78] sm:$0xff]
  %78 = vst [vmem:[%s8] sm:$0xff] %v62
  %79 = vst [vmem:[%s8 + $0x8] sm:$0xff] %v63
  %80 = vst [vmem:[%s8 + $0x10] sm:$0xff] %v64
  %81 = vst [vmem:[%s8 + $0x18] sm:$0xff] %v65
  %82 = vst [vmem:[%s8 + $0x20] sm:$0xff] %v66
  %83 = vst [vmem:[%s8 + $0x28] sm:$0xff] %v67
  %84 = vst [vmem:[%s8 + $0x30] sm:$0xff] %v68
  %85 = vst [vmem:[%s8 + $0x38] sm:$0xff] %v69
  %86 = vst [vmem:[%s8 + $0x40] sm:$0xff] %v70
  %87 = vst [vmem:[%s8 + $0x48] sm:$0xff] %v71
  %88 = vst [vmem:[%s8 + $0x50] sm:$0xff] %v72
  %89 = vst [vmem:[%s8 + $0x58] sm:$0xff] %v73
  %90 = vst [vmem:[%s8 + $0x60] sm:$0xff] %v74
  %91 = vst [vmem:[%s8 + $0x68] sm:$0xff] %v75
  %92 = vst [vmem:[%s8 + $0x70] sm:$0xff] %v76
  %93 = vst [vmem:[%s8 + $0x78] sm:$0xff] %v77
  %v94 = vld [vmem:[%s5] sm:$0x1]
  %95 = vst [vmem:[%s9] sm:$0x1] %v94
  %96 = vst [vmem:[#allocation2] sm:$0xff] 0.0
  %97 = vst [vmem:[#allocation2 + $0x8] sm:$0xff] 0.0
  %98 = vst [vmem:[#allocation2 + $0x10] sm:$0xff] 0.0
  %99 = vst [vmem:[#allocation2 + $0x18] sm:$0xff] 0.0
  %100 = vst [vmem:[#allocation2 + $0x20] sm:$0xff] 0.0
  %101 = vst [vmem:[#allocation2 + $0x28] sm:$0xff] 0.0
  %102 = vst [vmem:[#allocation2 + $0x30] sm:$0xff] 0.0
  %103 = vst [vmem:[#allocation2 + $0x38] sm:$0xff] 0.0
  %104 = vst [vmem:[#allocation2 + $0x40] sm:$0xff] 0.0
  %105 = vst [vmem:[#allocation2 + $0x48] sm:$0xff] 0.0
  %106 = vst [vmem:[#allocation2 + $0x50] sm:$0xff] 0.0
  %107 = vst [vmem:[#allocation2 + $0x58] sm:$0xff] 0.0
  %108 = vst [vmem:[#allocation2 + $0x60] sm:$0xff] 0.0
  %109 = vst [vmem:[#allocation2 + $0x68] sm:$0xff] 0.0
  %110 = vst [vmem:[#allocation2 + $0x70] sm:$0xff] 0.0
  %111 = vst [vmem:[#allocation2 + $0x78] sm:$0xff] 0.0
  %112 = vst [vmem:[#allocation3] sm:$0x1] 0.0
  %113 = vst [vmem:[#allocation4] sm:$0xff] 0.0
  %114 = vst [vmem:[#allocation4 + $0x8] sm:$0xff] 0.0
  %115 = vst [vmem:[#allocation4 + $0x10] sm:$0xff] 0.0
  %116 = vst [vmem:[#allocation4 + $0x18] sm:$0xff] 0.0
  %117 = vst [vmem:[#allocation4 + $0x20] sm:$0xff] 0.0
  %118 = vst [vmem:[#allocation4 + $0x28] sm:$0xff] 0.0
  %119 = vst [vmem:[#allocation4 + $0x30] sm:$0xff] 0.0
  %120 = vst [vmem:[#allocation4 + $0x38] sm:$0xff] 0.0
  %121 = vst [vmem:[#allocation4 + $0x40] sm:$0xff] 0.0
  %122 = vst [vmem:[#allocation4 + $0x48] sm:$0xff] 0.0
  %123 = vst [vmem:[#allocation4 + $0x50] sm:$0xff] 0.0
  %124 = vst [vmem:[#allocation4 + $0x58] sm:$0xff] 0.0
  %125 = vst [vmem:[#allocation4 + $0x60] sm:$0xff] 0.0
  %126 = vst [vmem:[#allocation4 + $0x68] sm:$0xff] 0.0
  %127 = vst [vmem:[#allocation4 + $0x70] sm:$0xff] 0.0
  %128 = vst [vmem:[#allocation4 + $0x78] sm:$0xff] 0.0
  %129 = vst [vmem:[#allocation5] sm:$0x1] 0.0
  %v130 = vlaneseq
  %v131 = vshrl.u32 %v130, 7
  %v132 = vlaneseq
  %v133 = vand.u32 %v132, 127
  %v134 = vadd.s32 %v133, 128
  %v135 = vadd.s32 %v133, 256
  %v136 = vadd.s32 %v133, 384
  %v137 = vadd.s32 %v133, 512
  %v138 = vadd.s32 %v133, 640
  %v139 = vadd.s32 %v133, 768
  %v140 = vadd.s32 %v133, 896
  %v141 = vadd.s32 %v133, 1024
  %v142 = vadd.s32 %v133, 1152
  %v143 = vadd.s32 %v133, 1280
  %v144 = vadd.s32 %v133, 1408
  %v145 = vadd.s32 %v133, 1536
  %v146 = vadd.s32 %v133, 1664
  %v147 = vadd.s32 %v133, 1792
  %v148 = vadd.s32 %v133, 1920
  %v149 = vmul.u32 %v131, 256
  %vm150 = vcmp.ge.s32.totalorder %v133, %v149
  %vm151 = vcmp.ge.s32.totalorder %v134, %v149
  %vm152 = vcmp.ge.s32.totalorder %v135, %v149
  %vm153 = vcmp.ge.s32.totalorder %v136, %v149
  %vm154 = vcmp.ge.s32.totalorder %v137, %v149
  %vm155 = vcmp.ge.s32.totalorder %v138, %v149
  %vm156 = vcmp.ge.s32.totalorder %v139, %v149
  %vm157 = vcmp.ge.s32.totalorder %v140, %v149
  %vm158 = vcmp.ge.s32.totalorder %v141, %v149
  %vm159 = vcmp.ge.s32.totalorder %v142, %v149
  %vm160 = vcmp.ge.s32.totalorder %v143, %v149
  %vm161 = vcmp.ge.s32.totalorder %v144, %v149
  %vm162 = vcmp.ge.s32.totalorder %v145, %v149
  %vm163 = vcmp.ge.s32.totalorder %v146, %v149
  %vm164 = vcmp.ge.s32.totalorder %v147, %v149
  %vm165 = vcmp.ge.s32.totalorder %v148, %v149
  %v166 = vadd.s32 %v149, 256
  %vm167 = vcmp.lt.s32.totalorder %v133, %v166
  %vm168 = vcmp.lt.s32.totalorder %v134, %v166
  %vm169 = vcmp.lt.s32.totalorder %v135, %v166
  %vm170 = vcmp.lt.s32.totalorder %v136, %v166
  %vm171 = vcmp.lt.s32.totalorder %v137, %v166
  %vm172 = vcmp.lt.s32.totalorder %v138, %v166
  %vm173 = vcmp.lt.s32.totalorder %v139, %v166
  %vm174 = vcmp.lt.s32.totalorder %v140, %v166
  %vm175 = vcmp.lt.s32.totalorder %v141, %v166
  %vm176 = vcmp.lt.s32.totalorder %v142, %v166
  %vm177 = vcmp.lt.s32.totalorder %v143, %v166
  %vm178 = vcmp.lt.s32.totalorder %v144, %v166
  %vm179 = vcmp.lt.s32.totalorder %v145, %v166
  %vm180 = vcmp.lt.s32.totalorder %v146, %v166
  %vm181 = vcmp.lt.s32.totalorder %v147, %v166
  %vm182 = vcmp.lt.s32.totalorder %v148, %v166
  %vm183 = vmand %vm150, %vm167
  %vm184 = vmand %vm151, %vm168
  %vm185 = vmand %vm152, %vm169
  %vm186 = vmand %vm153, %vm170
  %vm187 = vmand %vm154, %vm171
  %vm188 = vmand %vm155, %vm172
  %vm189 = vmand %vm156, %vm173
  %vm190 = vmand %vm157, %vm174
  %vm191 = vmand %vm158, %vm175
  %vm192 = vmand %vm159, %vm176
  %vm193 = vmand %vm160, %vm177
  %vm194 = vmand %vm161, %vm178
  %vm195 = vmand %vm162, %vm179
  %vm196 = vmand %vm163, %vm180
  %vm197 = vmand %vm164, %vm181
  %vm198 = vmand %vm165, %vm182
  %v199 = vsel %vm183, 0.00390625, 0.0
  %v200 = vsel %vm184, 0.00390625, 0.0
  %v201 = vsel %vm185, 0.00390625, 0.0
  %v202 = vsel %vm186, 0.00390625, 0.0
  %v203 = vsel %vm187, 0.00390625, 0.0
  %v204 = vsel %vm188, 0.00390625, 0.0
  %v205 = vsel %vm189, 0.00390625, 0.0
  %v206 = vsel %vm190, 0.00390625, 0.0
  %v207 = vsel %vm191, 0.00390625, 0.0
  %v208 = vsel %vm192, 0.00390625, 0.0
  %v209 = vsel %vm193, 0.00390625, 0.0
  %v210 = vsel %vm194, 0.00390625, 0.0
  %v211 = vsel %vm195, 0.00390625, 0.0
  %v212 = vsel %vm196, 0.00390625, 0.0
  %v213 = vsel %vm197, 0.00390625, 0.0
  %v214 = vsel %vm198, 0.00390625, 0.0
  %vm215 = vcmp.lt.s32.totalorder %v133, 2
  loop: start=0, step=1, limit=6
  $region26: #{podd_forward.2} parent=0 // loop_pre_header
    _
  $region27: #{podd_forward.2} parent=0 // loop_header
    %s217 = sphi 0, %s221
    %p218 = scmp.ge.s32.totalorder %s217, 6
  $region28: #{podd_forward.2} parent=0 // loop_header_branch
    %220 = sbr.rel (%p218) target = $region32
  $region29: #{podd_forward.2} parent=0 // loop_body
    %s222 = smul.u32 %s217, 256
    %s223 = smul.addr %s222, 4
    %s224 = scalar_lea.vmem %s0, %s223
    %v225 = vld [vmem:[%s224] sm:$0xf]
    %v226 = vld [vmem:[%s224 + $0x4] sm:$0xf]
    %v227 = vld [vmem:[%s224 + $0x8] sm:$0xf]
    %v228 = vld [vmem:[%s224 + $0xc] sm:$0xf]
    %v229 = vld [vmem:[%s224 + $0x10] sm:$0xf]
    %v230 = vld [vmem:[%s224 + $0x14] sm:$0xf]
    %v231 = vld [vmem:[%s224 + $0x18] sm:$0xf]
    %v232 = vld [vmem:[%s224 + $0x1c] sm:$0xf]
    %v233 = vld [vmem:[%s224 + $0x20] sm:$0xf]
    %v234 = vld [vmem:[%s224 + $0x24] sm:$0xf]
    %v235 = vld [vmem:[%s224 + $0x28] sm:$0xf]
    %v236 = vld [vmem:[%s224 + $0x2c] sm:$0xf]
    %v237 = vld [vmem:[%s224 + $0x30] sm:$0xf]
    %v238 = vld [vmem:[%s224 + $0x34] sm:$0xf]
    %v239 = vld [vmem:[%s224 + $0x38] sm:$0xf]
    %v240 = vld [vmem:[%s224 + $0x3c] sm:$0xf]
    %v241 = vld [vmem:[%s224 + $0x40] sm:$0xf]
    %v242 = vld [vmem:[%s224 + $0x44] sm:$0xf]
    %v243 = vld [vmem:[%s224 + $0x48] sm:$0xf]
    %v244 = vld [vmem:[%s224 + $0x4c] sm:$0xf]
    %v245 = vld [vmem:[%s224 + $0x50] sm:$0xf]
    %v246 = vld [vmem:[%s224 + $0x54] sm:$0xf]
    %v247 = vld [vmem:[%s224 + $0x58] sm:$0xf]
    %v248 = vld [vmem:[%s224 + $0x5c] sm:$0xf]
    %v249 = vld [vmem:[%s224 + $0x60] sm:$0xf]
    %v250 = vld [vmem:[%s224 + $0x64] sm:$0xf]
    %v251 = vld [vmem:[%s224 + $0x68] sm:$0xf]
    %v252 = vld [vmem:[%s224 + $0x6c] sm:$0xf]
    %v253 = vld [vmem:[%s224 + $0x70] sm:$0xf]
    %v254 = vld [vmem:[%s224 + $0x74] sm:$0xf]
    %v255 = vld [vmem:[%s224 + $0x78] sm:$0xf]
    %v256 = vld [vmem:[%s224 + $0x7c] sm:$0xf]
    %v257 = vld [vmem:[%s224 + $0x80] sm:$0xf]
    %v258 = vld [vmem:[%s224 + $0x84] sm:$0xf]
    %v259 = vld [vmem:[%s224 + $0x88] sm:$0xf]
    %v260 = vld [vmem:[%s224 + $0x8c] sm:$0xf]
    %v261 = vld [vmem:[%s224 + $0x90] sm:$0xf]
    %v262 = vld [vmem:[%s224 + $0x94] sm:$0xf]
    %v263 = vld [vmem:[%s224 + $0x98] sm:$0xf]
    %v264 = vld [vmem:[%s224 + $0x9c] sm:$0xf]
    %v265 = vld [vmem:[%s224 + $0xa0] sm:$0xf]
    %v266 = vld [vmem:[%s224 + $0xa4] sm:$0xf]
    %v267 = vld [vmem:[%s224 + $0xa8] sm:$0xf]
    %v268 = vld [vmem:[%s224 + $0xac] sm:$0xf]
    %v269 = vld [vmem:[%s224 + $0xb0] sm:$0xf]
    %v270 = vld [vmem:[%s224 + $0xb4] sm:$0xf]
    %v271 = vld [vmem:[%s224 + $0xb8] sm:$0xf]
    %v272 = vld [vmem:[%s224 + $0xbc] sm:$0xf]
    %v273 = vld [vmem:[%s224 + $0xc0] sm:$0xf]
    %v274 = vld [vmem:[%s224 + $0xc4] sm:$0xf]
    %v275 = vld [vmem:[%s224 + $0xc8] sm:$0xf]
    %v276 = vld [vmem:[%s224 + $0xcc] sm:$0xf]
    %v277 = vld [vmem:[%s224 + $0xd0] sm:$0xf]
    %v278 = vld [vmem:[%s224 + $0xd4] sm:$0xf]
    %v279 = vld [vmem:[%s224 + $0xd8] sm:$0xf]
    %v280 = vld [vmem:[%s224 + $0xdc] sm:$0xf]
    %v281 = vld [vmem:[%s224 + $0xe0] sm:$0xf]
    %v282 = vld [vmem:[%s224 + $0xe4] sm:$0xf]
    %v283 = vld [vmem:[%s224 + $0xe8] sm:$0xf]
    %v284 = vld [vmem:[%s224 + $0xec] sm:$0xf]
    %v285 = vld [vmem:[%s224 + $0xf0] sm:$0xf]
    %v286 = vld [vmem:[%s224 + $0xf4] sm:$0xf]
    %v287 = vld [vmem:[%s224 + $0xf8] sm:$0xf]
    %v288 = vld [vmem:[%s224 + $0xfc] sm:$0xf]
    %v289 = vld [vmem:[%s224 + $0x100] sm:$0xf]
    %v290 = vld [vmem:[%s224 + $0x104] sm:$0xf]
    %v291 = vld [vmem:[%s224 + $0x108] sm:$0xf]
    %v292 = vld [vmem:[%s224 + $0x10c] sm:$0xf]
    %v293 = vld [vmem:[%s224 + $0x110] sm:$0xf]
    %v294 = vld [vmem:[%s224 + $0x114] sm:$0xf]
    %v295 = vld [vmem:[%s224 + $0x118] sm:$0xf]
    %v296 = vld [vmem:[%s224 + $0x11c] sm:$0xf]
    %v297 = vld [vmem:[%s224 + $0x120] sm:$0xf]
    %v298 = vld [vmem:[%s224 + $0x124] sm:$0xf]
    %v299 = vld [vmem:[%s224 + $0x128] sm:$0xf]
    %v300 = vld [vmem:[%s224 + $0x12c] sm:$0xf]
    %v301 = vld [vmem:[%s224 + $0x130] sm:$0xf]
    %v302 = vld [vmem:[%s224 + $0x134] sm:$0xf]
    %v303 = vld [vmem:[%s224 + $0x138] sm:$0xf]
    %v304 = vld [vmem:[%s224 + $0x13c] sm:$0xf]
    %v305 = vld [vmem:[%s224 + $0x140] sm:$0xf]
    %v306 = vld [vmem:[%s224 + $0x144] sm:$0xf]
    %v307 = vld [vmem:[%s224 + $0x148] sm:$0xf]
    %v308 = vld [vmem:[%s224 + $0x14c] sm:$0xf]
    %v309 = vld [vmem:[%s224 + $0x150] sm:$0xf]
    %v310 = vld [vmem:[%s224 + $0x154] sm:$0xf]
    %v311 = vld [vmem:[%s224 + $0x158] sm:$0xf]
    %v312 = vld [vmem:[%s224 + $0x15c] sm:$0xf]
    %v313 = vld [vmem:[%s224 + $0x160] sm:$0xf]
    %v314 = vld [vmem:[%s224 + $0x164] sm:$0xf]
    %v315 = vld [vmem:[%s224 + $0x168] sm:$0xf]
    %v316 = vld [vmem:[%s224 + $0x16c] sm:$0xf]
    %v317 = vld [vmem:[%s224 + $0x170] sm:$0xf]
    %v318 = vld [vmem:[%s224 + $0x174] sm:$0xf]
    %v319 = vld [vmem:[%s224 + $0x178] sm:$0xf]
    %v320 = vld [vmem:[%s224 + $0x17c] sm:$0xf]
    %v321 = vld [vmem:[%s224 + $0x180] sm:$0xf]
    %v322 = vld [vmem:[%s224 + $0x184] sm:$0xf]
    %v323 = vld [vmem:[%s224 + $0x188] sm:$0xf]
    %v324 = vld [vmem:[%s224 + $0x18c] sm:$0xf]
    %v325 = vld [vmem:[%s224 + $0x190] sm:$0xf]
    %v326 = vld [vmem:[%s224 + $0x194] sm:$0xf]
    %v327 = vld [vmem:[%s224 + $0x198] sm:$0xf]
    %v328 = vld [vmem:[%s224 + $0x19c] sm:$0xf]
    %v329 = vld [vmem:[%s224 + $0x1a0] sm:$0xf]
    %v330 = vld [vmem:[%s224 + $0x1a4] sm:$0xf]
    %v331 = vld [vmem:[%s224 + $0x1a8] sm:$0xf]
    %v332 = vld [vmem:[%s224 + $0x1ac] sm:$0xf]
    %v333 = vld [vmem:[%s224 + $0x1b0] sm:$0xf]
    %v334 = vld [vmem:[%s224 + $0x1b4] sm:$0xf]
    %v335 = vld [vmem:[%s224 + $0x1b8] sm:$0xf]
    %v336 = vld [vmem:[%s224 + $0x1bc] sm:$0xf]
    %v337 = vld [vmem:[%s224 + $0x1c0] sm:$0xf]
    %v338 = vld [vmem:[%s224 + $0x1c4] sm:$0xf]
    %v339 = vld [vmem:[%s224 + $0x1c8] sm:$0xf]
    %v340 = vld [vmem:[%s224 + $0x1cc] sm:$0xf]
    %v341 = vld [vmem:[%s224 + $0x1d0] sm:$0xf]
    %v342 = vld [vmem:[%s224 + $0x1d4] sm:$0xf]
    %v343 = vld [vmem:[%s224 + $0x1d8] sm:$0xf]
    %v344 = vld [vmem:[%s224 + $0x1dc] sm:$0xf]
    %v345 = vld [vmem:[%s224 + $0x1e0] sm:$0xf]
    %v346 = vld [vmem:[%s224 + $0x1e4] sm:$0xf]
    %v347 = vld [vmem:[%s224 + $0x1e8] sm:$0xf]
    %v348 = vld [vmem:[%s224 + $0x1ec] sm:$0xf]
    %v349 = vld [vmem:[%s224 + $0x1f0] sm:$0xf]
    %v350 = vld [vmem:[%s224 + $0x1f4] sm:$0xf]
    %v351 = vld [vmem:[%s224 + $0x1f8] sm:$0xf]
    %v352 = vld [vmem:[%s224 + $0x1fc] sm:$0xf]
    %v353 = vld [vmem:[%s224 + $0x200] sm:$0xf]
    %v354 = vld [vmem:[%s224 + $0x204] sm:$0xf]
    %v355 = vld [vmem:[%s224 + $0x208] sm:$0xf]
    %v356 = vld [vmem:[%s224 + $0x20c] sm:$0xf]
    %v357 = vld [vmem:[%s224 + $0x210] sm:$0xf]
    %v358 = vld [vmem:[%s224 + $0x214] sm:$0xf]
    %v359 = vld [vmem:[%s224 + $0x218] sm:$0xf]
    %v360 = vld [vmem:[%s224 + $0x21c] sm:$0xf]
    %v361 = vld [vmem:[%s224 + $0x220] sm:$0xf]
    %v362 = vld [vmem:[%s224 + $0x224] sm:$0xf]
    %v363 = vld [vmem:[%s224 + $0x228] sm:$0xf]
    %v364 = vld [vmem:[%s224 + $0x22c] sm:$0xf]
    %v365 = vld [vmem:[%s224 + $0x230] sm:$0xf]
    %v366 = vld [vmem:[%s224 + $0x234] sm:$0xf]
    %v367 = vld [vmem:[%s224 + $0x238] sm:$0xf]
    %v368 = vld [vmem:[%s224 + $0x23c] sm:$0xf]
    %v369 = vld [vmem:[%s224 + $0x240] sm:$0xf]
    %v370 = vld [vmem:[%s224 + $0x244] sm:$0xf]
    %v371 = vld [vmem:[%s224 + $0x248] sm:$0xf]
    %v372 = vld [vmem:[%s224 + $0x24c] sm:$0xf]
    %v373 = vld [vmem:[%s224 + $0x250] sm:$0xf]
    %v374 = vld [vmem:[%s224 + $0x254] sm:$0xf]
    %v375 = vld [vmem:[%s224 + $0x258] sm:$0xf]
    %v376 = vld [vmem:[%s224 + $0x25c] sm:$0xf]
    %v377 = vld [vmem:[%s224 + $0x260] sm:$0xf]
    %v378 = vld [vmem:[%s224 + $0x264] sm:$0xf]
    %v379 = vld [vmem:[%s224 + $0x268] sm:$0xf]
    %v380 = vld [vmem:[%s224 + $0x26c] sm:$0xf]
    %v381 = vld [vmem:[%s224 + $0x270] sm:$0xf]
    %v382 = vld [vmem:[%s224 + $0x274] sm:$0xf]
    %v383 = vld [vmem:[%s224 + $0x278] sm:$0xf]
    %v384 = vld [vmem:[%s224 + $0x27c] sm:$0xf]
    %v385 = vld [vmem:[%s224 + $0x280] sm:$0xf]
    %v386 = vld [vmem:[%s224 + $0x284] sm:$0xf]
    %v387 = vld [vmem:[%s224 + $0x288] sm:$0xf]
    %v388 = vld [vmem:[%s224 + $0x28c] sm:$0xf]
    %v389 = vld [vmem:[%s224 + $0x290] sm:$0xf]
    %v390 = vld [vmem:[%s224 + $0x294] sm:$0xf]
    %v391 = vld [vmem:[%s224 + $0x298] sm:$0xf]
    %v392 = vld [vmem:[%s224 + $0x29c] sm:$0xf]
    %v393 = vld [vmem:[%s224 + $0x2a0] sm:$0xf]
    %v394 = vld [vmem:[%s224 + $0x2a4] sm:$0xf]
    %v395 = vld [vmem:[%s224 + $0x2a8] sm:$0xf]
    %v396 = vld [vmem:[%s224 + $0x2ac] sm:$0xf]
    %v397 = vld [vmem:[%s224 + $0x2b0] sm:$0xf]
    %v398 = vld [vmem:[%s224 + $0x2b4] sm:$0xf]
    %v399 = vld [vmem:[%s224 + $0x2b8] sm:$0xf]
    %v400 = vld [vmem:[%s224 + $0x2bc] sm:$0xf]
    %v401 = vld [vmem:[%s224 + $0x2c0] sm:$0xf]
    %v402 = vld [vmem:[%s224 + $0x2c4] sm:$0xf]
    %v403 = vld [vmem:[%s224 + $0x2c8] sm:$0xf]
    %v404 = vld [vmem:[%s224 + $0x2cc] sm:$0xf]
    %v405 = vld [vmem:[%s224 + $0x2d0] sm:$0xf]
    %v406 = vld [vmem:[%s224 + $0x2d4] sm:$0xf]
    %v407 = vld [vmem:[%s224 + $0x2d8] sm:$0xf]
    %v408 = vld [vmem:[%s224 + $0x2dc] sm:$0xf]
    %v409 = vld [vmem:[%s224 + $0x2e0] sm:$0xf]
    %v410 = vld [vmem:[%s224 + $0x2e4] sm:$0xf]
    %v411 = vld [vmem:[%s224 + $0x2e8] sm:$0xf]
    %v412 = vld [vmem:[%s224 + $0x2ec] sm:$0xf]
    %v413 = vld [vmem:[%s224 + $0x2f0] sm:$0xf]
    %v414 = vld [vmem:[%s224 + $0x2f4] sm:$0xf]
    %v415 = vld [vmem:[%s224 + $0x2f8] sm:$0xf]
    %v416 = vld [vmem:[%s224 + $0x2fc] sm:$0xf]
    %v417 = vld [vmem:[%s224 + $0x300] sm:$0xf]
    %v418 = vld [vmem:[%s224 + $0x304] sm:$0xf]
    %v419 = vld [vmem:[%s224 + $0x308] sm:$0xf]
    %v420 = vld [vmem:[%s224 + $0x30c] sm:$0xf]
    %v421 = vld [vmem:[%s224 + $0x310] sm:$0xf]
    %v422 = vld [vmem:[%s224 + $0x314] sm:$0xf]
    %v423 = vld [vmem:[%s224 + $0x318] sm:$0xf]
    %v424 = vld [vmem:[%s224 + $0x31c] sm:$0xf]
    %v425 = vld [vmem:[%s224 + $0x320] sm:$0xf]
    %v426 = vld [vmem:[%s224 + $0x324] sm:$0xf]
    %v427 = vld [vmem:[%s224 + $0x328] sm:$0xf]
    %v428 = vld [vmem:[%s224 + $0x32c] sm:$0xf]
    %v429 = vld [vmem:[%s224 + $0x330] sm:$0xf]
    %v430 = vld [vmem:[%s224 + $0x334] sm:$0xf]
    %v431 = vld [vmem:[%s224 + $0x338] sm:$0xf]
    %v432 = vld [vmem:[%s224 + $0x33c] sm:$0xf]
    %v433 = vld [vmem:[%s224 + $0x340] sm:$0xf]
    %v434 = vld [vmem:[%s224 + $0x344] sm:$0xf]
    %v435 = vld [vmem:[%s224 + $0x348] sm:$0xf]
    %v436 = vld [vmem:[%s224 + $0x34c] sm:$0xf]
    %v437 = vld [vmem:[%s224 + $0x350] sm:$0xf]
    %v438 = vld [vmem:[%s224 + $0x354] sm:$0xf]
    %v439 = vld [vmem:[%s224 + $0x358] sm:$0xf]
    %v440 = vld [vmem:[%s224 + $0x35c] sm:$0xf]
    %v441 = vld [vmem:[%s224 + $0x360] sm:$0xf]
    %v442 = vld [vmem:[%s224 + $0x364] sm:$0xf]
    %v443 = vld [vmem:[%s224 + $0x368] sm:$0xf]
    %v444 = vld [vmem:[%s224 + $0x36c] sm:$0xf]
    %v445 = vld [vmem:[%s224 + $0x370] sm:$0xf]
    %v446 = vld [vmem:[%s224 + $0x374] sm:$0xf]
    %v447 = vld [vmem:[%s224 + $0x378] sm:$0xf]
    %v448 = vld [vmem:[%s224 + $0x37c] sm:$0xf]
    %v449 = vld [vmem:[%s224 + $0x380] sm:$0xf]
    %v450 = vld [vmem:[%s224 + $0x384] sm:$0xf]
    %v451 = vld [vmem:[%s224 + $0x388] sm:$0xf]
    %v452 = vld [vmem:[%s224 + $0x38c] sm:$0xf]
    %v453 = vld [vmem:[%s224 + $0x390] sm:$0xf]
    %v454 = vld [vmem:[%s224 + $0x394] sm:$0xf]
    %v455 = vld [vmem:[%s224 + $0x398] sm:$0xf]
    %v456 = vld [vmem:[%s224 + $0x39c] sm:$0xf]
    %v457 = vld [vmem:[%s224 + $0x3a0] sm:$0xf]
    %v458 = vld [vmem:[%s224 + $0x3a4] sm:$0xf]
    %v459 = vld [vmem:[%s224 + $0x3a8] sm:$0xf]
    %v460 = vld [vmem:[%s224 + $0x3ac] sm:$0xf]
    %v461 = vld [vmem:[%s224 + $0x3b0] sm:$0xf]
    %v462 = vld [vmem:[%s224 + $0x3b4] sm:$0xf]
    %v463 = vld [vmem:[%s224 + $0x3b8] sm:$0xf]
    %v464 = vld [vmem:[%s224 + $0x3bc] sm:$0xf]
    %v465 = vld [vmem:[%s224 + $0x3c0] sm:$0xf]
    %v466 = vld [vmem:[%s224 + $0x3c4] sm:$0xf]
    %v467 = vld [vmem:[%s224 + $0x3c8] sm:$0xf]
    %v468 = vld [vmem:[%s224 + $0x3cc] sm:$0xf]
    %v469 = vld [vmem:[%s224 + $0x3d0] sm:$0xf]
    %v470 = vld [vmem:[%s224 + $0x3d4] sm:$0xf]
    %v471 = vld [vmem:[%s224 + $0x3d8] sm:$0xf]
    %v472 = vld [vmem:[%s224 + $0x3dc] sm:$0xf]
    %v473 = vld [vmem:[%s224 + $0x3e0] sm:$0xf]
    %v474 = vld [vmem:[%s224 + $0x3e4] sm:$0xf]
    %v475 = vld [vmem:[%s224 + $0x3e8] sm:$0xf]
    %v476 = vld [vmem:[%s224 + $0x3ec] sm:$0xf]
    %v477 = vld [vmem:[%s224 + $0x3f0] sm:$0xf]
    %v478 = vld [vmem:[%s224 + $0x3f4] sm:$0xf]
    %v479 = vld [vmem:[%s224 + $0x3f8] sm:$0xf]
    %v480 = vld [vmem:[%s224 + $0x3fc] sm:$0xf]
    %s481 = smul.u32 %s217, 8
    %s482 = scalar_lea.vmem %s1, %s481
    %v483 = vld [vmem:[%s482] sm:$0xff]
    %v484 = vld [vmem:[%s6] sm:$0xff]
    %v485 = vld [vmem:[%s6 + $0x8] sm:$0xff]
    %v486 = vld [vmem:[%s6 + $0x10] sm:$0xff]
    %v487 = vld [vmem:[%s6 + $0x18] sm:$0xff]
    %v488 = vld [vmem:[%s6 + $0x20] sm:$0xff]
    %v489 = vld [vmem:[%s6 + $0x28] sm:$0xff]
    %v490 = vld [vmem:[%s6 + $0x30] sm:$0xff]
    %v491 = vld [vmem:[%s6 + $0x38] sm:$0xff]
    %v492 = vld [vmem:[%s6 + $0x40] sm:$0xff]
    %v493 = vld [vmem:[%s6 + $0x48] sm:$0xff]
    %v494 = vld [vmem:[%s6 + $0x50] sm:$0xff]
    %v495 = vld [vmem:[%s6 + $0x58] sm:$0xff]
    %v496 = vld [vmem:[%s6 + $0x60] sm:$0xff]
    %v497 = vld [vmem:[%s6 + $0x68] sm:$0xff]
    %v498 = vld [vmem:[%s6 + $0x70] sm:$0xff]
    %v499 = vld [vmem:[%s6 + $0x78] sm:$0xff]
    %v500 = vld [vmem:[%s8] sm:$0xff]
    %v501 = vld [vmem:[%s8 + $0x8] sm:$0xff]
    %v502 = vld [vmem:[%s8 + $0x10] sm:$0xff]
    %v503 = vld [vmem:[%s8 + $0x18] sm:$0xff]
    %v504 = vld [vmem:[%s8 + $0x20] sm:$0xff]
    %v505 = vld [vmem:[%s8 + $0x28] sm:$0xff]
    %v506 = vld [vmem:[%s8 + $0x30] sm:$0xff]
    %v507 = vld [vmem:[%s8 + $0x38] sm:$0xff]
    %v508 = vld [vmem:[%s8 + $0x40] sm:$0xff]
    %v509 = vld [vmem:[%s8 + $0x48] sm:$0xff]
    %v510 = vld [vmem:[%s8 + $0x50] sm:$0xff]
    %v511 = vld [vmem:[%s8 + $0x58] sm:$0xff]
    %v512 = vld [vmem:[%s8 + $0x60] sm:$0xff]
    %v513 = vld [vmem:[%s8 + $0x68] sm:$0xff]
    %v514 = vld [vmem:[%s8 + $0x70] sm:$0xff]
    %v515 = vld [vmem:[%s8 + $0x78] sm:$0xff]
    %v516 = vpack.c.bf16 %v485, %v484
    %v517 = vpack.c.bf16 %v487, %v486
    %v518 = vpack.c.bf16 %v489, %v488
    %v519 = vpack.c.bf16 %v491, %v490
    %v520 = vpack.c.bf16 %v493, %v492
    %v521 = vpack.c.bf16 %v495, %v494
    %v522 = vpack.c.bf16 %v497, %v496
    %v523 = vpack.c.bf16 %v499, %v498
    %v524 = vld [vmem:[%s7] sm:$0x1]
    %v526 = vlaneseq
    %v527 = vshrl.u32 %v526, 7
    %v528 = vsub.s32 0, %v527
    %v529 = vrot.slane %v524, %v528
    %v787 = vunpack.c.l.b16 %v225
    %v788 = vunpack.c.l.b16 %v226
    %v789 = vunpack.c.l.b16 %v227
    %v790 = vunpack.c.l.b16 %v228
    %v791 = vunpack.c.l.b16 %v229
    %v792 = vunpack.c.l.b16 %v230
    %v793 = vunpack.c.l.b16 %v231
    %v794 = vunpack.c.l.b16 %v232
    %v795 = vunpack.c.l.b16 %v233
    %v796 = vunpack.c.l.b16 %v234
    %v797 = vunpack.c.l.b16 %v235
    %v798 = vunpack.c.l.b16 %v236
    %v799 = vunpack.c.l.b16 %v237
    %v800 = vunpack.c.l.b16 %v238
    %v801 = vunpack.c.l.b16 %v239
    %v802 = vunpack.c.l.b16 %v240
    %v803 = vunpack.c.l.b16 %v241
    %v804 = vunpack.c.l.b16 %v242
    %v805 = vunpack.c.l.b16 %v243
    %v806 = vunpack.c.l.b16 %v244
    %v807 = vunpack.c.l.b16 %v245
    %v808 = vunpack.c.l.b16 %v246
    %v809 = vunpack.c.l.b16 %v247
    %v810 = vunpack.c.l.b16 %v248
    %v811 = vunpack.c.l.b16 %v249
    %v812 = vunpack.c.l.b16 %v250
    %v813 = vunpack.c.l.b16 %v251
    %v814 = vunpack.c.l.b16 %v252
    %v815 = vunpack.c.l.b16 %v253
    %v816 = vunpack.c.l.b16 %v254
    %v817 = vunpack.c.l.b16 %v255
    %v818 = vunpack.c.l.b16 %v256
    %v819 = vunpack.c.l.b16 %v257
    %v820 = vunpack.c.l.b16 %v258
    %v821 = vunpack.c.l.b16 %v259
    %v822 = vunpack.c.l.b16 %v260
    %v823 = vunpack.c.l.b16 %v261
    %v824 = vunpack.c.l.b16 %v262
    %v825 = vunpack.c.l.b16 %v263
    %v826 = vunpack.c.l.b16 %v264
    %v827 = vunpack.c.l.b16 %v265
    %v828 = vunpack.c.l.b16 %v266
    %v829 = vunpack.c.l.b16 %v267
    %v830 = vunpack.c.l.b16 %v268
    %v831 = vunpack.c.l.b16 %v269
    %v832 = vunpack.c.l.b16 %v270
    %v833 = vunpack.c.l.b16 %v271
    %v834 = vunpack.c.l.b16 %v272
    %v835 = vunpack.c.l.b16 %v273
    %v836 = vunpack.c.l.b16 %v274
    %v837 = vunpack.c.l.b16 %v275
    %v838 = vunpack.c.l.b16 %v276
    %v839 = vunpack.c.l.b16 %v277
    %v840 = vunpack.c.l.b16 %v278
    %v841 = vunpack.c.l.b16 %v279
    %v842 = vunpack.c.l.b16 %v280
    %v843 = vunpack.c.l.b16 %v281
    %v844 = vunpack.c.l.b16 %v282
    %v845 = vunpack.c.l.b16 %v283
    %v846 = vunpack.c.l.b16 %v284
    %v847 = vunpack.c.l.b16 %v285
    %v848 = vunpack.c.l.b16 %v286
    %v849 = vunpack.c.l.b16 %v287
    %v850 = vunpack.c.l.b16 %v288
    %v851 = vunpack.c.l.b16 %v289
    %v852 = vunpack.c.l.b16 %v290
    %v853 = vunpack.c.l.b16 %v291
    %v854 = vunpack.c.l.b16 %v292
    %v855 = vunpack.c.l.b16 %v293
    %v856 = vunpack.c.l.b16 %v294
    %v857 = vunpack.c.l.b16 %v295
    %v858 = vunpack.c.l.b16 %v296
    %v859 = vunpack.c.l.b16 %v297
    %v860 = vunpack.c.l.b16 %v298
    %v861 = vunpack.c.l.b16 %v299
    %v862 = vunpack.c.l.b16 %v300
    %v863 = vunpack.c.l.b16 %v301
    %v864 = vunpack.c.l.b16 %v302
    %v865 = vunpack.c.l.b16 %v303
    %v866 = vunpack.c.l.b16 %v304
    %v867 = vunpack.c.l.b16 %v305
    %v868 = vunpack.c.l.b16 %v306
    %v869 = vunpack.c.l.b16 %v307
    %v870 = vunpack.c.l.b16 %v308
    %v871 = vunpack.c.l.b16 %v309
    %v872 = vunpack.c.l.b16 %v310
    %v873 = vunpack.c.l.b16 %v311
    %v874 = vunpack.c.l.b16 %v312
    %v875 = vunpack.c.l.b16 %v313
    %v876 = vunpack.c.l.b16 %v314
    %v877 = vunpack.c.l.b16 %v315
    %v878 = vunpack.c.l.b16 %v316
    %v879 = vunpack.c.l.b16 %v317
    %v880 = vunpack.c.l.b16 %v318
    %v881 = vunpack.c.l.b16 %v319
    %v882 = vunpack.c.l.b16 %v320
    %v883 = vunpack.c.l.b16 %v321
    %v884 = vunpack.c.l.b16 %v322
    %v885 = vunpack.c.l.b16 %v323
    %v886 = vunpack.c.l.b16 %v324
    %v887 = vunpack.c.l.b16 %v325
    %v888 = vunpack.c.l.b16 %v326
    %v889 = vunpack.c.l.b16 %v327
    %v890 = vunpack.c.l.b16 %v328
    %v891 = vunpack.c.l.b16 %v329
    %v892 = vunpack.c.l.b16 %v330
    %v893 = vunpack.c.l.b16 %v331
    %v894 = vunpack.c.l.b16 %v332
    %v895 = vunpack.c.l.b16 %v333
    %v896 = vunpack.c.l.b16 %v334
    %v897 = vunpack.c.l.b16 %v335
    %v898 = vunpack.c.l.b16 %v336
    %v899 = vunpack.c.l.b16 %v337
    %v900 = vunpack.c.l.b16 %v338
    %v901 = vunpack.c.l.b16 %v339
    %v902 = vunpack.c.l.b16 %v340
    %v903 = vunpack.c.l.b16 %v341
    %v904 = vunpack.c.l.b16 %v342
    %v905 = vunpack.c.l.b16 %v343
    %v906 = vunpack.c.l.b16 %v344
    %v907 = vunpack.c.l.b16 %v345
    %v908 = vunpack.c.l.b16 %v346
    %v909 = vunpack.c.l.b16 %v347
    %v910 = vunpack.c.l.b16 %v348
    %v911 = vunpack.c.l.b16 %v349
    %v912 = vunpack.c.l.b16 %v350
    %v913 = vunpack.c.l.b16 %v351
    %v914 = vunpack.c.l.b16 %v352
    %v915 = vunpack.c.l.b16 %v353
    %v916 = vunpack.c.l.b16 %v354
    %v917 = vunpack.c.l.b16 %v355
    %v918 = vunpack.c.l.b16 %v356
    %v919 = vunpack.c.l.b16 %v357
    %v920 = vunpack.c.l.b16 %v358
    %v921 = vunpack.c.l.b16 %v359
    %v922 = vunpack.c.l.b16 %v360
    %v923 = vunpack.c.l.b16 %v361
    %v924 = vunpack.c.l.b16 %v362
    %v925 = vunpack.c.l.b16 %v363
    %v926 = vunpack.c.l.b16 %v364
    %v927 = vunpack.c.l.b16 %v365
    %v928 = vunpack.c.l.b16 %v366
    %v929 = vunpack.c.l.b16 %v367
    %v930 = vunpack.c.l.b16 %v368
    %v931 = vunpack.c.l.b16 %v369
    %v932 = vunpack.c.l.b16 %v370
    %v933 = vunpack.c.l.b16 %v371
    %v934 = vunpack.c.l.b16 %v372
    %v935 = vunpack.c.l.b16 %v373
    %v936 = vunpack.c.l.b16 %v374
    %v937 = vunpack.c.l.b16 %v375
    %v938 = vunpack.c.l.b16 %v376
    %v939 = vunpack.c.l.b16 %v377
    %v940 = vunpack.c.l.b16 %v378
    %v941 = vunpack.c.l.b16 %v379
    %v942 = vunpack.c.l.b16 %v380
    %v943 = vunpack.c.l.b16 %v381
    %v944 = vunpack.c.l.b16 %v382
    %v945 = vunpack.c.l.b16 %v383
    %v946 = vunpack.c.l.b16 %v384
    %v947 = vunpack.c.l.b16 %v385
    %v948 = vunpack.c.l.b16 %v386
    %v949 = vunpack.c.l.b16 %v387
    %v950 = vunpack.c.l.b16 %v388
    %v951 = vunpack.c.l.b16 %v389
    %v952 = vunpack.c.l.b16 %v390
    %v953 = vunpack.c.l.b16 %v391
    %v954 = vunpack.c.l.b16 %v392
    %v955 = vunpack.c.l.b16 %v393
    %v956 = vunpack.c.l.b16 %v394
    %v957 = vunpack.c.l.b16 %v395
    %v958 = vunpack.c.l.b16 %v396
    %v959 = vunpack.c.l.b16 %v397
    %v960 = vunpack.c.l.b16 %v398
    %v961 = vunpack.c.l.b16 %v399
    %v962 = vunpack.c.l.b16 %v400
    %v963 = vunpack.c.l.b16 %v401
    %v964 = vunpack.c.l.b16 %v402
    %v965 = vunpack.c.l.b16 %v403
    %v966 = vunpack.c.l.b16 %v404
    %v967 = vunpack.c.l.b16 %v405
    %v968 = vunpack.c.l.b16 %v406
    %v969 = vunpack.c.l.b16 %v407
    %v970 = vunpack.c.l.b16 %v408
    %v971 = vunpack.c.l.b16 %v409
    %v972 = vunpack.c.l.b16 %v410
    %v973 = vunpack.c.l.b16 %v411
    %v974 = vunpack.c.l.b16 %v412
    %v975 = vunpack.c.l.b16 %v413
    %v976 = vunpack.c.l.b16 %v414
    %v977 = vunpack.c.l.b16 %v415
    %v978 = vunpack.c.l.b16 %v416
    %v979 = vunpack.c.l.b16 %v417
    %v980 = vunpack.c.l.b16 %v418
    %v981 = vunpack.c.l.b16 %v419
    %v982 = vunpack.c.l.b16 %v420
    %v983 = vunpack.c.l.b16 %v421
    %v984 = vunpack.c.l.b16 %v422
    %v985 = vunpack.c.l.b16 %v423
    %v986 = vunpack.c.l.b16 %v424
    %v987 = vunpack.c.l.b16 %v425
    %v988 = vunpack.c.l.b16 %v426
    %v989 = vunpack.c.l.b16 %v427
    %v990 = vunpack.c.l.b16 %v428
    %v991 = vunpack.c.l.b16 %v429
    %v992 = vunpack.c.l.b16 %v430
    %v993 = vunpack.c.l.b16 %v431
    %v994 = vunpack.c.l.b16 %v432
    %v995 = vunpack.c.l.b16 %v433
    %v996 = vunpack.c.l.b16 %v434
    %v997 = vunpack.c.l.b16 %v435
    %v998 = vunpack.c.l.b16 %v436
    %v999 = vunpack.c.l.b16 %v437
    %v1000 = vunpack.c.l.b16 %v438
    %v1001 = vunpack.c.l.b16 %v439
    %v1002 = vunpack.c.l.b16 %v440
    %v1003 = vunpack.c.l.b16 %v441
    %v1004 = vunpack.c.l.b16 %v442
    %v1005 = vunpack.c.l.b16 %v443
    %v1006 = vunpack.c.l.b16 %v444
    %v1007 = vunpack.c.l.b16 %v445
    %v1008 = vunpack.c.l.b16 %v446
    %v1009 = vunpack.c.l.b16 %v447
    %v1010 = vunpack.c.l.b16 %v448
    %v1011 = vunpack.c.l.b16 %v449
    %v1012 = vunpack.c.l.b16 %v450
    %v1013 = vunpack.c.l.b16 %v451
    %v1014 = vunpack.c.l.b16 %v452
    %v1015 = vunpack.c.l.b16 %v453
    %v1016 = vunpack.c.l.b16 %v454
    %v1017 = vunpack.c.l.b16 %v455
    %v1018 = vunpack.c.l.b16 %v456
    %v1019 = vunpack.c.l.b16 %v457
    %v1020 = vunpack.c.l.b16 %v458
    %v1021 = vunpack.c.l.b16 %v459
    %v1022 = vunpack.c.l.b16 %v460
    %v1023 = vunpack.c.l.b16 %v461
    %v1024 = vunpack.c.l.b16 %v462
    %v1025 = vunpack.c.l.b16 %v463
    %v1026 = vunpack.c.l.b16 %v464
    %v1027 = vunpack.c.l.b16 %v465
    %v1028 = vunpack.c.l.b16 %v466
    %v1029 = vunpack.c.l.b16 %v467
    %v1030 = vunpack.c.l.b16 %v468
    %v1031 = vunpack.c.l.b16 %v469
    %v1032 = vunpack.c.l.b16 %v470
    %v1033 = vunpack.c.l.b16 %v471
    %v1034 = vunpack.c.l.b16 %v472
    %v1035 = vunpack.c.l.b16 %v473
    %v1036 = vunpack.c.l.b16 %v474
    %v1037 = vunpack.c.l.b16 %v475
    %v1038 = vunpack.c.l.b16 %v476
    %v1039 = vunpack.c.l.b16 %v477
    %v1040 = vunpack.c.l.b16 %v478
    %v1041 = vunpack.c.l.b16 %v479
    %v1042 = vunpack.c.l.b16 %v480
    %v1043 = vpack.c.b16 %v788, %v787
    %v1044 = vpack.c.b16 %v790, %v789
    %v1045 = vpack.c.b16 %v792, %v791
    %v1046 = vpack.c.b16 %v794, %v793
    %v1047 = vpack.c.b16 %v796, %v795
    %v1048 = vpack.c.b16 %v798, %v797
    %v1049 = vpack.c.b16 %v800, %v799
    %v1050 = vpack.c.b16 %v802, %v801
    %v1051 = vpack.c.b16 %v804, %v803
    %v1052 = vpack.c.b16 %v806, %v805
    %v1053 = vpack.c.b16 %v808, %v807
    %v1054 = vpack.c.b16 %v810, %v809
    %v1055 = vpack.c.b16 %v812, %v811
    %v1056 = vpack.c.b16 %v814, %v813
    %v1057 = vpack.c.b16 %v816, %v815
    %v1058 = vpack.c.b16 %v818, %v817
    %v1059 = vpack.c.b16 %v820, %v819
    %v1060 = vpack.c.b16 %v822, %v821
    %v1061 = vpack.c.b16 %v824, %v823
    %v1062 = vpack.c.b16 %v826, %v825
    %v1063 = vpack.c.b16 %v828, %v827
    %v1064 = vpack.c.b16 %v830, %v829
    %v1065 = vpack.c.b16 %v832, %v831
    %v1066 = vpack.c.b16 %v834, %v833
    %v1067 = vpack.c.b16 %v836, %v835
    %v1068 = vpack.c.b16 %v838, %v837
    %v1069 = vpack.c.b16 %v840, %v839
    %v1070 = vpack.c.b16 %v842, %v841
    %v1071 = vpack.c.b16 %v844, %v843
    %v1072 = vpack.c.b16 %v846, %v845
    %v1073 = vpack.c.b16 %v848, %v847
    %v1074 = vpack.c.b16 %v850, %v849
    %v1075 = vpack.c.b16 %v852, %v851
    %v1076 = vpack.c.b16 %v854, %v853
    %v1077 = vpack.c.b16 %v856, %v855
    %v1078 = vpack.c.b16 %v858, %v857
    %v1079 = vpack.c.b16 %v860, %v859
    %v1080 = vpack.c.b16 %v862, %v861
    %v1081 = vpack.c.b16 %v864, %v863
    %v1082 = vpack.c.b16 %v866, %v865
    %v1083 = vpack.c.b16 %v868, %v867
    %v1084 = vpack.c.b16 %v870, %v869
    %v1085 = vpack.c.b16 %v872, %v871
    %v1086 = vpack.c.b16 %v874, %v873
    %v1087 = vpack.c.b16 %v876, %v875
    %v1088 = vpack.c.b16 %v878, %v877
    %v1089 = vpack.c.b16 %v880, %v879
    %v1090 = vpack.c.b16 %v882, %v881
    %v1091 = vpack.c.b16 %v884, %v883
    %v1092 = vpack.c.b16 %v886, %v885
    %v1093 = vpack.c.b16 %v888, %v887
    %v1094 = vpack.c.b16 %v890, %v889
    %v1095 = vpack.c.b16 %v892, %v891
    %v1096 = vpack.c.b16 %v894, %v893
    %v1097 = vpack.c.b16 %v896, %v895
    %v1098 = vpack.c.b16 %v898, %v897
    %v1099 = vpack.c.b16 %v900, %v899
    %v1100 = vpack.c.b16 %v902, %v901
    %v1101 = vpack.c.b16 %v904, %v903
    %v1102 = vpack.c.b16 %v906, %v905
    %v1103 = vpack.c.b16 %v908, %v907
    %v1104 = vpack.c.b16 %v910, %v909
    %v1105 = vpack.c.b16 %v912, %v911
    %v1106 = vpack.c.b16 %v914, %v913
    %v1107 = vpack.c.b16 %v916, %v915
    %v1108 = vpack.c.b16 %v918, %v917
    %v1109 = vpack.c.b16 %v920, %v919
    %v1110 = vpack.c.b16 %v922, %v921
    %v1111 = vpack.c.b16 %v924, %v923
    %v1112 = vpack.c.b16 %v926, %v925
    %v1113 = vpack.c.b16 %v928, %v927
    %v1114 = vpack.c.b16 %v930, %v929
    %v1115 = vpack.c.b16 %v932, %v931
    %v1116 = vpack.c.b16 %v934, %v933
    %v1117 = vpack.c.b16 %v936, %v935
    %v1118 = vpack.c.b16 %v938, %v937
    %v1119 = vpack.c.b16 %v940, %v939
    %v1120 = vpack.c.b16 %v942, %v941
    %v1121 = vpack.c.b16 %v944, %v943
    %v1122 = vpack.c.b16 %v946, %v945
    %v1123 = vpack.c.b16 %v948, %v947
    %v1124 = vpack.c.b16 %v950, %v949
    %v1125 = vpack.c.b16 %v952, %v951
    %v1126 = vpack.c.b16 %v954, %v953
    %v1127 = vpack.c.b16 %v956, %v955
    %v1128 = vpack.c.b16 %v958, %v957
    %v1129 = vpack.c.b16 %v960, %v959
    %v1130 = vpack.c.b16 %v962, %v961
    %v1131 = vpack.c.b16 %v964, %v963
    %v1132 = vpack.c.b16 %v966, %v965
    %v1133 = vpack.c.b16 %v968, %v967
    %v1134 = vpack.c.b16 %v970, %v969
    %v1135 = vpack.c.b16 %v972, %v971
    %v1136 = vpack.c.b16 %v974, %v973
    %v1137 = vpack.c.b16 %v976, %v975
    %v1138 = vpack.c.b16 %v978, %v977
    %v1139 = vpack.c.b16 %v980, %v979
    %v1140 = vpack.c.b16 %v982, %v981
    %v1141 = vpack.c.b16 %v984, %v983
    %v1142 = vpack.c.b16 %v986, %v985
    %v1143 = vpack.c.b16 %v988, %v987
    %v1144 = vpack.c.b16 %v990, %v989
    %v1145 = vpack.c.b16 %v992, %v991
    %v1146 = vpack.c.b16 %v994, %v993
    %v1147 = vpack.c.b16 %v996, %v995
    %v1148 = vpack.c.b16 %v998, %v997
    %v1149 = vpack.c.b16 %v1000, %v999
    %v1150 = vpack.c.b16 %v1002, %v1001
    %v1151 = vpack.c.b16 %v1004, %v1003
    %v1152 = vpack.c.b16 %v1006, %v1005
    %v1153 = vpack.c.b16 %v1008, %v1007
    %v1154 = vpack.c.b16 %v1010, %v1009
    %v1155 = vpack.c.b16 %v1012, %v1011
    %v1156 = vpack.c.b16 %v1014, %v1013
    %v1157 = vpack.c.b16 %v1016, %v1015
    %v1158 = vpack.c.b16 %v1018, %v1017
    %v1159 = vpack.c.b16 %v1020, %v1019
    %v1160 = vpack.c.b16 %v1022, %v1021
    %v1161 = vpack.c.b16 %v1024, %v1023
    %v1162 = vpack.c.b16 %v1026, %v1025
    %v1163 = vpack.c.b16 %v1028, %v1027
    %v1164 = vpack.c.b16 %v1030, %v1029
    %v1165 = vpack.c.b16 %v1032, %v1031
    %v1166 = vpack.c.b16 %v1034, %v1033
    %v1167 = vpack.c.b16 %v1036, %v1035
    %v1168 = vpack.c.b16 %v1038, %v1037
    %v1169 = vpack.c.b16 %v1040, %v1039
    %v1170 = vpack.c.b16 %v1042, %v1041
    %1299 = vmatprep.subr.bf16.mxu0 0
    %1300 = vmatpush1.bf16.msra.mxu0 %v516
    %1301 = vmatprep.subr.bf16.mxu0 0
    %1302 = vmatpush1.bf16.msra.mxu0 %v517
    %1303 = vmatprep.subr.bf16.mxu0 0
    %1304 = vmatpush1.bf16.msra.mxu0 %v518
    %1305 = vmatprep.subr.bf16.mxu0 0
    %1306 = vmatpush1.bf16.msra.mxu0 %v519
    %1307 = vmatprep.subr.bf16.mxu0 0
    %1308 = vmatpush1.bf16.msra.mxu0 %v520
    %1309 = vmatprep.subr.bf16.mxu0 0
    %1310 = vmatpush1.bf16.msra.mxu0 %v521
    %1311 = vmatprep.subr.bf16.mxu0 0
    %1312 = vmatpush1.bf16.msra.mxu0 %v522
    %1313 = vmatprep.subr.bf16.mxu0 0
    %1314 = vmatpush1.bf16.msra.mxu0 %v523
    %1315 = vmatprep.subr.bf16.mxu0 0
    %1316 = vmatpush1.bf16.msra.mxu0 0
    %1317 = vmatprep.subr.bf16.mxu0 0
    %1318 = vmatpush1.bf16.msra.mxu0 0
    %1319 = vmatprep.subr.bf16.mxu0 0
    %1320 = vmatpush1.bf16.msra.mxu0 0
    %1321 = vmatprep.subr.bf16.mxu0 0
    %1322 = vmatpush1.bf16.msra.mxu0 0
    %1323 = vmatprep.subr.bf16.mxu0 0
    %1324 = vmatpush1.bf16.msra.mxu0 0
    %1325 = vmatprep.subr.bf16.mxu0 0
    %1326 = vmatpush1.bf16.msra.mxu0 0
    %1327 = vmatprep.subr.bf16.mxu0 0
    %1328 = vmatpush1.bf16.msra.mxu0 0
    %1329 = vmatprep.subr.bf16.mxu0 0
    %1330 = vmatpush1.bf16.msra.mxu0 0
    %1331 = vmatprep.mubr.bf16.mxu0 0
    %1332 = vmatmul.mubr.bf16.gmra.mrb[0].mxu0 %v1043
    %v1333 = vpop.f32.mrb[0].mxu0
    %v1334 = vadd.f32 %v529, %v1333
    %v1335 = vpop.f32.mrb[0].mxu0
    %v1336 = vpop.f32.mrb[0].mxu0
    %v1337 = vadd.f32 %v529, %v1336
    %v1338 = vpop.f32.mrb[0].mxu0
    %1339 = vmatprep.mubr.bf16.mxu0 0
    %1340 = vmatmul.mubr.bf16.gmra.mrb[0].mxu0 %v1044
    %v1341 = vpop.f32.mrb[0].mxu0
    %v1342 = vadd.f32 %v529, %v1341
    %v1343 = vpop.f32.mrb[0].mxu0
    %v1344 = vpop.f32.mrb[0].mxu0
    %v1345 = vadd.f32 %v529, %v1344
    %v1346 = vpop.f32.mrb[0].mxu0
    %1347 = vmatprep.mubr.bf16.mxu0 0
    %1348 = vmatmul.mubr.bf16.gmra.mrb[0].mxu0 %v1045
    %v1349 = vpop.f32.mrb[0].mxu0
    %v1350 = vadd.f32 %v529, %v1349
    %v1351 = vpop.f32.mrb[0].mxu0
    %v1352 = vpop.f32.mrb[0].mxu0
    %v1353 = vadd.f32 %v529, %v1352
    %v1354 = vpop.f32.mrb[0].mxu0
    %1355 = vmatprep.mubr.bf16.mxu0 0
    %1356 = vmatmul.mubr.bf16.gmra.mrb[0].mxu0 %v1046
    %v1357 = vpop.f32.mrb[0].mxu0
    %v1358 = vadd.f32 %v529, %v1357
    %v1359 = vpop.f32.mrb[0].mxu0
    %v1360 = vpop.f32.mrb[0].mxu0
    %v1361 = vadd.f32 %v529, %v1360
    %v1362 = vpop.f32.mrb[0].mxu0
    %1363 = vmatprep.mubr.bf16.mxu0 0
    %1364 = vmatmul.mubr.bf16.gmra.mrb[0].mxu0 %v1047
    %v1365 = vpop.f32.mrb[0].mxu0
    %v1366 = vadd.f32 %v529, %v1365
    %v1367 = vpop.f32.mrb[0].mxu0
    %v1368 = vpop.f32.mrb[0].mxu0
    %v1369 = vadd.f32 %v529, %v1368
    %v1370 = vpop.f32.mrb[0].mxu0
    %1371 = vmatprep.mubr.bf16.mxu0 0
    %1372 = vmatmul.mubr.bf16.gmra.mrb[0].mxu0 %v1048
    %v1373 = vpop.f32.mrb[0].mxu0
    %v1374 = vadd.f32 %v529, %v1373
    %v1375 = vpop.f32.mrb[0].mxu0
    %v1376 = vpop.f32.mrb[0].mxu0
    %v1377 = vadd.f32 %v529, %v1376
    %v1378 = vpop.f32.mrb[0].mxu0
    %1379 = vmatprep.mubr.bf16.mxu0 0
    %1380 = vmatmul.mubr.bf16.gmra.mrb[0].mxu0 %v1049
    %v1381 = vpop.f32.mrb[0].mxu0
    %v1382 = vadd.f32 %v529, %v1381
    %v1383 = vpop.f32.mrb[0].mxu0
    %v1384 = vpop.f32.mrb[0].mxu0
    %v1385 = vadd.f32 %v529, %v1384
    %v1386 = vpop.f32.mrb[0].mxu0
    %1387 = vmatprep.mubr.bf16.mxu0 0
    %1388 = vmatmul.mubr.bf16.gmra.mrb[0].mxu0 %v1050
    %v1389 = vpop.f32.mrb[0].mxu0
    %v1390 = vadd.f32 %v529, %v1389
    %v1391 = vpop.f32.mrb[0].mxu0
    %v1392 = vpop.f32.mrb[0].mxu0
    %v1393 = vadd.f32 %v529, %v1392
    %v1394 = vpop.f32.mrb[0].mxu0
    %1395 = vmatprep.mubr.bf16.mxu0 0
    %1396 = vmatmul.mubr.bf16.gmra.mrb[0].mxu0 %v1051
    %v1397 = vpop.f32.mrb[0].mxu0
    %v1398 = vadd.f32 %v529, %v1397
    %v1399 = vpop.f32.mrb[0].mxu0
    %v1400 = vpop.f32.mrb[0].mxu0
    %v1401 = vadd.f32 %v529, %v1400
    %v1402 = vpop.f32.mrb[0].mxu0
    %1403 = vmatprep.mubr.bf16.mxu0 0
    %1404 = vmatmul.mubr.bf16.gmra.mrb[0].mxu0 %v1052
    %v1405 = vpop.f32.mrb[0].mxu0
    %v1406 = vadd.f32 %v529, %v1405
    %v1407 = vpop.f32.mrb[0].mxu0
    %v1408 = vpop.f32.mrb[0].mxu0
    %v1409 = vadd.f32 %v529, %v1408
    %v1410 = vpop.f32.mrb[0].mxu0
    %1411 = vmatprep.mubr.bf16.mxu0 0
    %1412 = vmatmul.mubr.bf16.gmra.mrb[0].mxu0 %v1053
    %v1413 = vpop.f32.mrb[0].mxu0
    %v1414 = vadd.f32 %v529, %v1413
    %v1415 = vpop.f32.mrb[0].mxu0
    %v1416 = vpop.f32.mrb[0].mxu0
    %v1417 = vadd.f32 %v529, %v1416
    %v1418 = vpop.f32.mrb[0].mxu0
    %1419 = vmatprep.mubr.bf16.mxu0 0
    %1420 = vmatmul.mubr.bf16.gmra.mrb[0].mxu0 %v1054
    %v1421 = vpop.f32.mrb[0].mxu0
    %v1422 = vadd.f32 %v529, %v1421
    %v1423 = vpop.f32.mrb[0].mxu0
    %v1424 = vpop.f32.mrb[0].mxu0
    %v1425 = vadd.f32 %v529, %v1424
    %v1426 = vpop.f32.mrb[0].mxu0
    %1427 = vmatprep.mubr.bf16.mxu0 0
    %1428 = vmatmul.mubr.bf16.gmra.mrb[0].mxu0 %v1055
    %v1429 = vpop.f32.mrb[0].mxu0
    %v1430 = vadd.f32 %v529, %v1429
    %v1431 = vpop.f32.mrb[0].mxu0
    %v1432 = vpop.f32.mrb[0].mxu0
    %v1433 = vadd.f32 %v529, %v1432
    %v1434 = vpop.f32.mrb[0].mxu0
    %1435 = vmatprep.mubr.bf16.mxu0 0
    %1436 = vmatmul.mubr.bf16.gmra.mrb[0].mxu0 %v1056
    %v1437 = vpop.f32.mrb[0].mxu0
    %v1438 = vadd.f32 %v529, %v1437
    %v1439 = vpop.f32.mrb[0].mxu0
    %v1440 = vpop.f32.mrb[0].mxu0
    %v1441 = vadd.f32 %v529, %v1440
    %v1442 = vpop.f32.mrb[0].mxu0
    %1443 = vmatprep.mubr.bf16.mxu0 0
    %1444 = vmatmul.mubr.bf16.gmra.mrb[0].mxu0 %v1057
    %v1445 = vpop.f32.mrb[0].mxu0
    %v1446 = vadd.f32 %v529, %v1445
    %v1447 = vpop.f32.mrb[0].mxu0
    %v1448 = vpop.f32.mrb[0].mxu0
    %v1449 = vadd.f32 %v529, %v1448
    %v1450 = vpop.f32.mrb[0].mxu0
    %1451 = vmatprep.mubr.bf16.mxu0 0
    %1452 = vmatmul.mubr.bf16.gmra.mrb[0].mxu0 %v1058
    %v1453 = vpop.f32.mrb[0].mxu0
    %v1454 = vadd.f32 %v529, %v1453
    %v1455 = vpop.f32.mrb[0].mxu0
    %v1456 = vpop.f32.mrb[0].mxu0
    %v1457 = vadd.f32 %v529, %v1456
    %v1458 = vpop.f32.mrb[0].mxu0
    %1459 = vmatprep.mubr.bf16.mxu0 0
    %1460 = vmatmul.mubr.bf16.gmra.mrb[0].mxu0 %v1059
    %v1461 = vpop.f32.mrb[0].mxu0
    %v1462 = vadd.f32 %v529, %v1461
    %v1463 = vpop.f32.mrb[0].mxu0
    %v1464 = vpop.f32.mrb[0].mxu0
    %v1465 = vadd.f32 %v529, %v1464
    %v1466 = vpop.f32.mrb[0].mxu0
    %1467 = vmatprep.mubr.bf16.mxu0 0
    %1468 = vmatmul.mubr.bf16.gmra.mrb[0].mxu0 %v1060
    %v1469 = vpop.f32.mrb[0].mxu0
    %v1470 = vadd.f32 %v529, %v1469
    %v1471 = vpop.f32.mrb[0].mxu0
    %v1472 = vpop.f32.mrb[0].mxu0
    %v1473 = vadd.f32 %v529, %v1472
    %v1474 = vpop.f32.mrb[0].mxu0
    %1475 = vmatprep.mubr.bf16.mxu0 0
    %1476 = vmatmul.mubr.bf16.gmra.mrb[0].mxu0 %v1061
    %v1477 = vpop.f32.mrb[0].mxu0
    %v1478 = vadd.f32 %v529, %v1477
    %v1479 = vpop.f32.mrb[0].mxu0
    %v1480 = vpop.f32.mrb[0].mxu0
    %v1481 = vadd.f32 %v529, %v1480
    %v1482 = vpop.f32.mrb[0].mxu0
    %1483 = vmatprep.mubr.bf16.mxu0 0
    %1484 = vmatmul.mubr.bf16.gmra.mrb[0].mxu0 %v1062
    %v1485 = vpop.f32.mrb[0].mxu0
    %v1486 = vadd.f32 %v529, %v1485
    %v1487 = vpop.f32.mrb[0].mxu0
    %v1488 = vpop.f32.mrb[0].mxu0
    %v1489 = vadd.f32 %v529, %v1488
    %v1490 = vpop.f32.mrb[0].mxu0
    %1491 = vmatprep.mubr.bf16.mxu0 0
    %1492 = vmatmul.mubr.bf16.gmra.mrb[0].mxu0 %v1063
    %v1493 = vpop.f32.mrb[0].mxu0
    %v1494 = vadd.f32 %v529, %v1493
    %v1495 = vpop.f32.mrb[0].mxu0
    %v1496 = vpop.f32.mrb[0].mxu0
    %v1497 = vadd.f32 %v529, %v1496
    %v1498 = vpop.f32.mrb[0].mxu0
    %1499 = vmatprep.mubr.bf16.mxu0 0
    %1500 = vmatmul.mubr.bf16.gmra.mrb[0].mxu0 %v1064
    %v1501 = vpop.f32.mrb[0].mxu0
    %v1502 = vadd.f32 %v529, %v1501
    %v1503 = vpop.f32.mrb[0].mxu0
    %v1504 = vpop.f32.mrb[0].mxu0
    %v1505 = vadd.f32 %v529, %v1504
    %v1506 = vpop.f32.mrb[0].mxu0
    %1507 = vmatprep.mubr.bf16.mxu0 0
    %1508 = vmatmul.mubr.bf16.gmra.mrb[0].mxu0 %v1065
    %v1509 = vpop.f32.mrb[0].mxu0
    %v1510 = vadd.f32 %v529, %v1509
    %v1511 = vpop.f32.mrb[0].mxu0
    %v1512 = vpop.f32.mrb[0].mxu0
    %v1513 = vadd.f32 %v529, %v1512
    %v1514 = vpop.f32.mrb[0].mxu0
    %1515 = vmatprep.mubr.bf16.mxu0 0
    %1516 = vmatmul.mubr.bf16.gmra.mrb[0].mxu0 %v1066
    %v1517 = vpop.f32.mrb[0].mxu0
    %v1518 = vadd.f32 %v529, %v1517
    %v1519 = vpop.f32.mrb[0].mxu0
    %v1520 = vpop.f32.mrb[0].mxu0
    %v1521 = vadd.f32 %v529, %v1520
    %v1522 = vpop.f32.mrb[0].mxu0
    %1523 = vmatprep.mubr.bf16.mxu0 0
    %1524 = vmatmul.mubr.bf16.gmra.mrb[0].mxu0 %v1067
    %v1525 = vpop.f32.mrb[0].mxu0
    %v1526 = vadd.f32 %v529, %v1525
    %v1527 = vpop.f32.mrb[0].mxu0
    %v1528 = vpop.f32.mrb[0].mxu0
    %v1529 = vadd.f32 %v529, %v1528
    %v1530 = vpop.f32.mrb[0].mxu0
    %1531 = vmatprep.mubr.bf16.mxu0 0
    %1532 = vmatmul.mubr.bf16.gmra.mrb[0].mxu0 %v1068
    %v1533 = vpop.f32.mrb[0].mxu0
    %v1534 = vadd.f32 %v529, %v1533
    %v1535 = vpop.f32.mrb[0].mxu0
    %v1536 = vpop.f32.mrb[0].mxu0
    %v1537 = vadd.f32 %v529, %v1536
    %v1538 = vpop.f32.mrb[0].mxu0
    %1539 = vmatprep.mubr.bf16.mxu0 0
    %1540 = vmatmul.mubr.bf16.gmra.mrb[0].mxu0 %v1069
    %v1541 = vpop.f32.mrb[0].mxu0
    %v1542 = vadd.f32 %v529, %v1541
    %v1543 = vpop.f32.mrb[0].mxu0
    %v1544 = vpop.f32.mrb[0].mxu0
    %v1545 = vadd.f32 %v529, %v1544
    %v1546 = vpop.f32.mrb[0].mxu0
    %1547 = vmatprep.mubr.bf16.mxu0 0
    %1548 = vmatmul.mubr.bf16.gmra.mrb[0].mxu0 %v1070
    %v1549 = vpop.f32.mrb[0].mxu0
    %v1550 = vadd.f32 %v529, %v1549
    %v1551 = vpop.f32.mrb[0].mxu0
    %v1552 = vpop.f32.mrb[0].mxu0
    %v1553 = vadd.f32 %v529, %v1552
    %v1554 = vpop.f32.mrb[0].mxu0
    %1555 = vmatprep.mubr.bf16.mxu0 0
    %1556 = vmatmul.mubr.bf16.gmra.mrb[0].mxu0 %v1071
    %v1557 = vpop.f32.mrb[0].mxu0
    %v1558 = vadd.f32 %v529, %v1557
    %v1559 = vpop.f32.mrb[0].mxu0
    %v1560 = vpop.f32.mrb[0].mxu0
    %v1561 = vadd.f32 %v529, %v1560
    %v1562 = vpop.f32.mrb[0].mxu0
    %1563 = vmatprep.mubr.bf16.mxu0 0
    %1564 = vmatmul.mubr.bf16.gmra.mrb[0].mxu0 %v1072
    %v1565 = vpop.f32.mrb[0].mxu0
    %v1566 = vadd.f32 %v529, %v1565
    %v1567 = vpop.f32.mrb[0].mxu0
    %v1568 = vpop.f32.mrb[0].mxu0
    %v1569 = vadd.f32 %v529, %v1568
    %v1570 = vpop.f32.mrb[0].mxu0
    %1571 = vmatprep.mubr.bf16.mxu0 0
    %1572 = vmatmul.mubr.bf16.gmra.mrb[0].mxu0 %v1073
    %v1573 = vpop.f32.mrb[0].mxu0
    %v1574 = vadd.f32 %v529, %v1573
    %v1575 = vpop.f32.mrb[0].mxu0
    %v1576 = vpop.f32.mrb[0].mxu0
    %v1577 = vadd.f32 %v529, %v1576
    %v1578 = vpop.f32.mrb[0].mxu0
    %1579 = vmatprep.mubr.bf16.mxu0 0
    %1580 = vmatmul.mubr.bf16.gmra.mrb[0].mxu0 %v1074
    %v1581 = vpop.f32.mrb[0].mxu0
    %v1582 = vadd.f32 %v529, %v1581
    %v1583 = vpop.f32.mrb[0].mxu0
    %v1584 = vpop.f32.mrb[0].mxu0
    %v1585 = vadd.f32 %v529, %v1584
    %v1586 = vpop.f32.mrb[0].mxu0
    %1587 = vmatprep.mubr.bf16.mxu0 0
    %1588 = vmatmul.mubr.bf16.gmra.mrb[0].mxu0 %v1075
    %v1589 = vpop.f32.mrb[0].mxu0
    %v1590 = vadd.f32 %v529, %v1589
    %v1591 = vpop.f32.mrb[0].mxu0
    %v1592 = vpop.f32.mrb[0].mxu0
    %v1593 = vadd.f32 %v529, %v1592
    %v1594 = vpop.f32.mrb[0].mxu0
    %1595 = vmatprep.mubr.bf16.mxu0 0
    %1596 = vmatmul.mubr.bf16.gmra.mrb[0].mxu0 %v1076
    %v1597 = vpop.f32.mrb[0].mxu0
    %v1598 = vadd.f32 %v529, %v1597
    %v1599 = vpop.f32.mrb[0].mxu0
    %v1600 = vpop.f32.mrb[0].mxu0
    %v1601 = vadd.f32 %v529, %v1600
    %v1602 = vpop.f32.mrb[0].mxu0
    %1603 = vmatprep.mubr.bf16.mxu0 0
    %1604 = vmatmul.mubr.bf16.gmra.mrb[0].mxu0 %v1077
    %v1605 = vpop.f32.mrb[0].mxu0
    %v1606 = vadd.f32 %v529, %v1605
    %v1607 = vpop.f32.mrb[0].mxu0
    %v1608 = vpop.f32.mrb[0].mxu0
    %v1609 = vadd.f32 %v529, %v1608
    %v1610 = vpop.f32.mrb[0].mxu0
    %1611 = vmatprep.mubr.bf16.mxu0 0
    %1612 = vmatmul.mubr.bf16.gmra.mrb[0].mxu0 %v1078
    %v1613 = vpop.f32.mrb[0].mxu0
    %v1614 = vadd.f32 %v529, %v1613
    %v1615 = vpop.f32.mrb[0].mxu0
    %v1616 = vpop.f32.mrb[0].mxu0
    %v1617 = vadd.f32 %v529, %v1616
    %v1618 = vpop.f32.mrb[0].mxu0
    %1619 = vmatprep.mubr.bf16.mxu0 0
    %1620 = vmatmul.mubr.bf16.gmra.mrb[0].mxu0 %v1079
    %v1621 = vpop.f32.mrb[0].mxu0
    %v1622 = vadd.f32 %v529, %v1621
    %v1623 = vpop.f32.mrb[0].mxu0
    %v1624 = vpop.f32.mrb[0].mxu0
    %v1625 = vadd.f32 %v529, %v1624
    %v1626 = vpop.f32.mrb[0].mxu0
    %1627 = vmatprep.mubr.bf16.mxu0 0
    %1628 = vmatmul.mubr.bf16.gmra.mrb[0].mxu0 %v1080
    %v1629 = vpop.f32.mrb[0].mxu0
    %v1630 = vadd.f32 %v529, %v1629
    %v1631 = vpop.f32.mrb[0].mxu0
    %v1632 = vpop.f32.mrb[0].mxu0
    %v1633 = vadd.f32 %v529, %v1632
    %v1634 = vpop.f32.mrb[0].mxu0
    %1635 = vmatprep.mubr.bf16.mxu0 0
    %1636 = vmatmul.mubr.bf16.gmra.mrb[0].mxu0 %v1081
    %v1637 = vpop.f32.mrb[0].mxu0
    %v1638 = vadd.f32 %v529, %v1637
    %v1639 = vpop.f32.mrb[0].mxu0
    %v1640 = vpop.f32.mrb[0].mxu0
    %v1641 = vadd.f32 %v529, %v1640
    %v1642 = vpop.f32.mrb[0].mxu0
    %1643 = vmatprep.mubr.bf16.mxu0 0
    %1644 = vmatmul.mubr.bf16.gmra.mrb[0].mxu0 %v1082
    %v1645 = vpop.f32.mrb[0].mxu0
    %v1646 = vadd.f32 %v529, %v1645
    %v1647 = vpop.f32.mrb[0].mxu0
    %v1648 = vpop.f32.mrb[0].mxu0
    %v1649 = vadd.f32 %v529, %v1648
    %v1650 = vpop.f32.mrb[0].mxu0
    %1651 = vmatprep.mubr.bf16.mxu0 0
    %1652 = vmatmul.mubr.bf16.gmra.mrb[0].mxu0 %v1083
    %v1653 = vpop.f32.mrb[0].mxu0
    %v1654 = vadd.f32 %v529, %v1653
    %v1655 = vpop.f32.mrb[0].mxu0
    %v1656 = vpop.f32.mrb[0].mxu0
    %v1657 = vadd.f32 %v529, %v1656
    %v1658 = vpop.f32.mrb[0].mxu0
    %1659 = vmatprep.mubr.bf16.mxu0 0
    %1660 = vmatmul.mubr.bf16.gmra.mrb[0].mxu0 %v1084
    %v1661 = vpop.f32.mrb[0].mxu0
    %v1662 = vadd.f32 %v529, %v1661
    %v1663 = vpop.f32.mrb[0].mxu0
    %v1664 = vpop.f32.mrb[0].mxu0
    %v1665 = vadd.f32 %v529, %v1664
    %v1666 = vpop.f32.mrb[0].mxu0
    %1667 = vmatprep.mubr.bf16.mxu0 0
    %1668 = vmatmul.mubr.bf16.gmra.mrb[0].mxu0 %v1085
    %v1669 = vpop.f32.mrb[0].mxu0
    %v1670 = vadd.f32 %v529, %v1669
    %v1671 = vpop.f32.mrb[0].mxu0
    %v1672 = vpop.f32.mrb[0].mxu0
    %v1673 = vadd.f32 %v529, %v1672
    %v1674 = vpop.f32.mrb[0].mxu0
    %1675 = vmatprep.mubr.bf16.mxu0 0
    %1676 = vmatmul.mubr.bf16.gmra.mrb[0].mxu0 %v1086
    %v1677 = vpop.f32.mrb[0].mxu0
    %v1678 = vadd.f32 %v529, %v1677
    %v1679 = vpop.f32.mrb[0].mxu0
    %v1680 = vpop.f32.mrb[0].mxu0
    %v1681 = vadd.f32 %v529, %v1680
    %v1682 = vpop.f32.mrb[0].mxu0
    %1683 = vmatprep.mubr.bf16.mxu0 0
    %1684 = vmatmul.mubr.bf16.gmra.mrb[0].mxu0 %v1087
    %v1685 = vpop.f32.mrb[0].mxu0
    %v1686 = vadd.f32 %v529, %v1685
    %v1687 = vpop.f32.mrb[0].mxu0
    %v1688 = vpop.f32.mrb[0].mxu0
    %v1689 = vadd.f32 %v529, %v1688
    %v1690 = vpop.f32.mrb[0].mxu0
    %1691 = vmatprep.mubr.bf16.mxu0 0
    %1692 = vmatmul.mubr.bf16.gmra.mrb[0].mxu0 %v1088
    %v1693 = vpop.f32.mrb[0].mxu0
    %v1694 = vadd.f32 %v529, %v1693
    %v1695 = vpop.f32.mrb[0].mxu0
    %v1696 = vpop.f32.mrb[0].mxu0
    %v1697 = vadd.f32 %v529, %v1696
    %v1698 = vpop.f32.mrb[0].mxu0
    %1699 = vmatprep.mubr.bf16.mxu0 0
    %1700 = vmatmul.mubr.bf16.gmra.mrb[0].mxu0 %v1089
    %v1701 = vpop.f32.mrb[0].mxu0
    %v1702 = vadd.f32 %v529, %v1701
    %v1703 = vpop.f32.mrb[0].mxu0
    %v1704 = vpop.f32.mrb[0].mxu0
    %v1705 = vadd.f32 %v529, %v1704
    %v1706 = vpop.f32.mrb[0].mxu0
    %1707 = vmatprep.mubr.bf16.mxu0 0
    %1708 = vmatmul.mubr.bf16.gmra.mrb[0].mxu0 %v1090
    %v1709 = vpop.f32.mrb[0].mxu0
    %v1710 = vadd.f32 %v529, %v1709
    %v1711 = vpop.f32.mrb[0].mxu0
    %v1712 = vpop.f32.mrb[0].mxu0
    %v1713 = vadd.f32 %v529, %v1712
    %v1714 = vpop.f32.mrb[0].mxu0
    %1715 = vmatprep.mubr.bf16.mxu0 0
    %1716 = vmatmul.mubr.bf16.gmra.mrb[0].mxu0 %v1091
    %v1717 = vpop.f32.mrb[0].mxu0
    %v1718 = vadd.f32 %v529, %v1717
    %v1719 = vpop.f32.mrb[0].mxu0
    %v1720 = vpop.f32.mrb[0].mxu0
    %v1721 = vadd.f32 %v529, %v1720
    %v1722 = vpop.f32.mrb[0].mxu0
    %1723 = vmatprep.mubr.bf16.mxu0 0
    %1724 = vmatmul.mubr.bf16.gmra.mrb[0].mxu0 %v1092
    %v1725 = vpop.f32.mrb[0].mxu0
    %v1726 = vadd.f32 %v529, %v1725
    %v1727 = vpop.f32.mrb[0].mxu0
    %v1728 = vpop.f32.mrb[0].mxu0
    %v1729 = vadd.f32 %v529, %v1728
    %v1730 = vpop.f32.mrb[0].mxu0
    %1731 = vmatprep.mubr.bf16.mxu0 0
    %1732 = vmatmul.mubr.bf16.gmra.mrb[0].mxu0 %v1093
    %v1733 = vpop.f32.mrb[0].mxu0
    %v1734 = vadd.f32 %v529, %v1733
    %v1735 = vpop.f32.mrb[0].mxu0
    %v1736 = vpop.f32.mrb[0].mxu0
    %v1737 = vadd.f32 %v529, %v1736
    %v1738 = vpop.f32.mrb[0].mxu0
    %1739 = vmatprep.mubr.bf16.mxu0 0
    %1740 = vmatmul.mubr.bf16.gmra.mrb[0].mxu0 %v1094
    %v1741 = vpop.f32.mrb[0].mxu0
    %v1742 = vadd.f32 %v529, %v1741
    %v1743 = vpop.f32.mrb[0].mxu0
    %v1744 = vpop.f32.mrb[0].mxu0
    %v1745 = vadd.f32 %v529, %v1744
    %v1746 = vpop.f32.mrb[0].mxu0
    %1747 = vmatprep.mubr.bf16.mxu0 0
    %1748 = vmatmul.mubr.bf16.gmra.mrb[0].mxu0 %v1095
    %v1749 = vpop.f32.mrb[0].mxu0
    %v1750 = vadd.f32 %v529, %v1749
    %v1751 = vpop.f32.mrb[0].mxu0
    %v1752 = vpop.f32.mrb[0].mxu0
    %v1753 = vadd.f32 %v529, %v1752
    %v1754 = vpop.f32.mrb[0].mxu0
    %1755 = vmatprep.mubr.bf16.mxu0 0
    %1756 = vmatmul.mubr.bf16.gmra.mrb[0].mxu0 %v1096
    %v1757 = vpop.f32.mrb[0].mxu0
    %v1758 = vadd.f32 %v529, %v1757
    %v1759 = vpop.f32.mrb[0].mxu0
    %v1760 = vpop.f32.mrb[0].mxu0
    %v1761 = vadd.f32 %v529, %v1760
    %v1762 = vpop.f32.mrb[0].mxu0
    %1763 = vmatprep.mubr.bf16.mxu0 0
    %1764 = vmatmul.mubr.bf16.gmra.mrb[0].mxu0 %v1097
    %v1765 = vpop.f32.mrb[0].mxu0
    %v1766 = vadd.f32 %v529, %v1765
    %v1767 = vpop.f32.mrb[0].mxu0
    %v1768 = vpop.f32.mrb[0].mxu0
    %v1769 = vadd.f32 %v529, %v1768
    %v1770 = vpop.f32.mrb[0].mxu0
    %1771 = vmatprep.mubr.bf16.mxu0 0
    %1772 = vmatmul.mubr.bf16.gmra.mrb[0].mxu0 %v1098
    %v1773 = vpop.f32.mrb[0].mxu0
    %v1774 = vadd.f32 %v529, %v1773
    %v1775 = vpop.f32.mrb[0].mxu0
    %v1776 = vpop.f32.mrb[0].mxu0
    %v1777 = vadd.f32 %v529, %v1776
    %v1778 = vpop.f32.mrb[0].mxu0
    %1779 = vmatprep.mubr.bf16.mxu0 0
    %1780 = vmatmul.mubr.bf16.gmra.mrb[0].mxu0 %v1099
    %v1781 = vpop.f32.mrb[0].mxu0
    %v1782 = vadd.f32 %v529, %v1781
    %v1783 = vpop.f32.mrb[0].mxu0
    %v1784 = vpop.f32.mrb[0].mxu0
    %v1785 = vadd.f32 %v529, %v1784
    %v1786 = vpop.f32.mrb[0].mxu0
    %1787 = vmatprep.mubr.bf16.mxu0 0
    %1788 = vmatmul.mubr.bf16.gmra.mrb[0].mxu0 %v1100
    %v1789 = vpop.f32.mrb[0].mxu0
    %v1790 = vadd.f32 %v529, %v1789
    %v1791 = vpop.f32.mrb[0].mxu0
    %v1792 = vpop.f32.mrb[0].mxu0
    %v1793 = vadd.f32 %v529, %v1792
    %v1794 = vpop.f32.mrb[0].mxu0
    %1795 = vmatprep.mubr.bf16.mxu0 0
    %1796 = vmatmul.mubr.bf16.gmra.mrb[0].mxu0 %v1101
    %v1797 = vpop.f32.mrb[0].mxu0
    %v1798 = vadd.f32 %v529, %v1797
    %v1799 = vpop.f32.mrb[0].mxu0
    %v1800 = vpop.f32.mrb[0].mxu0
    %v1801 = vadd.f32 %v529, %v1800
    %v1802 = vpop.f32.mrb[0].mxu0
    %1803 = vmatprep.mubr.bf16.mxu0 0
    %1804 = vmatmul.mubr.bf16.gmra.mrb[0].mxu0 %v1102
    %v1805 = vpop.f32.mrb[0].mxu0
    %v1806 = vadd.f32 %v529, %v1805
    %v1807 = vpop.f32.mrb[0].mxu0
    %v1808 = vpop.f32.mrb[0].mxu0
    %v1809 = vadd.f32 %v529, %v1808
    %v1810 = vpop.f32.mrb[0].mxu0
    %1811 = vmatprep.mubr.bf16.mxu0 0
    %1812 = vmatmul.mubr.bf16.gmra.mrb[0].mxu0 %v1103
    %v1813 = vpop.f32.mrb[0].mxu0
    %v1814 = vadd.f32 %v529, %v1813
    %v1815 = vpop.f32.mrb[0].mxu0
    %v1816 = vpop.f32.mrb[0].mxu0
    %v1817 = vadd.f32 %v529, %v1816
    %v1818 = vpop.f32.mrb[0].mxu0
    %1819 = vmatprep.mubr.bf16.mxu0 0
    %1820 = vmatmul.mubr.bf16.gmra.mrb[0].mxu0 %v1104
    %v1821 = vpop.f32.mrb[0].mxu0
    %v1822 = vadd.f32 %v529, %v1821
    %v1823 = vpop.f32.mrb[0].mxu0
    %v1824 = vpop.f32.mrb[0].mxu0
    %v1825 = vadd.f32 %v529, %v1824
    %v1826 = vpop.f32.mrb[0].mxu0
    %1827 = vmatprep.mubr.bf16.mxu0 0
    %1828 = vmatmul.mubr.bf16.gmra.mrb[0].mxu0 %v1105
    %v1829 = vpop.f32.mrb[0].mxu0
    %v1830 = vadd.f32 %v529, %v1829
    %v1831 = vpop.f32.mrb[0].mxu0
    %v1832 = vpop.f32.mrb[0].mxu0
    %v1833 = vadd.f32 %v529, %v1832
    %v1834 = vpop.f32.mrb[0].mxu0
    %1835 = vmatprep.mubr.bf16.mxu0 0
    %1836 = vmatmul.mubr.bf16.gmra.mrb[0].mxu0 %v1106
    %v1837 = vpop.f32.mrb[0].mxu0
    %v1838 = vadd.f32 %v529, %v1837
    %v1839 = vpop.f32.mrb[0].mxu0
    %v1840 = vpop.f32.mrb[0].mxu0
    %v1841 = vadd.f32 %v529, %v1840
    %v1842 = vpop.f32.mrb[0].mxu0
    %1843 = vmatprep.mubr.bf16.mxu0 0
    %1844 = vmatmul.mubr.bf16.gmra.mrb[0].mxu0 %v1107
    %v1845 = vpop.f32.mrb[0].mxu0
    %v1846 = vadd.f32 %v529, %v1845
    %v1847 = vpop.f32.mrb[0].mxu0
    %v1848 = vpop.f32.mrb[0].mxu0
    %v1849 = vadd.f32 %v529, %v1848
    %v1850 = vpop.f32.mrb[0].mxu0
    %1851 = vmatprep.mubr.bf16.mxu0 0
    %1852 = vmatmul.mubr.bf16.gmra.mrb[0].mxu0 %v1108
    %v1853 = vpop.f32.mrb[0].mxu0
    %v1854 = vadd.f32 %v529, %v1853
    %v1855 = vpop.f32.mrb[0].mxu0
    %v1856 = vpop.f32.mrb[0].mxu0
    %v1857 = vadd.f32 %v529, %v1856
    %v1858 = vpop.f32.mrb[0].mxu0
    %1859 = vmatprep.mubr.bf16.mxu0 0
    %1860 = vmatmul.mubr.bf16.gmra.mrb[0].mxu0 %v1109
    %v1861 = vpop.f32.mrb[0].mxu0
    %v1862 = vadd.f32 %v529, %v1861
    %v1863 = vpop.f32.mrb[0].mxu0
    %v1864 = vpop.f32.mrb[0].mxu0
    %v1865 = vadd.f32 %v529, %v1864
    %v1866 = vpop.f32.mrb[0].mxu0
    %1867 = vmatprep.mubr.bf16.mxu0 0
    %1868 = vmatmul.mubr.bf16.gmra.mrb[0].mxu0 %v1110
    %v1869 = vpop.f32.mrb[0].mxu0
    %v1870 = vadd.f32 %v529, %v1869
    %v1871 = vpop.f32.mrb[0].mxu0
    %v1872 = vpop.f32.mrb[0].mxu0
    %v1873 = vadd.f32 %v529, %v1872
    %v1874 = vpop.f32.mrb[0].mxu0
    %1875 = vmatprep.mubr.bf16.mxu0 0
    %1876 = vmatmul.mubr.bf16.gmra.mrb[0].mxu0 %v1111
    %v1877 = vpop.f32.mrb[0].mxu0
    %v1878 = vadd.f32 %v529, %v1877
    %v1879 = vpop.f32.mrb[0].mxu0
    %v1880 = vpop.f32.mrb[0].mxu0
    %v1881 = vadd.f32 %v529, %v1880
    %v1882 = vpop.f32.mrb[0].mxu0
    %1883 = vmatprep.mubr.bf16.mxu0 0
    %1884 = vmatmul.mubr.bf16.gmra.mrb[0].mxu0 %v1112
    %v1885 = vpop.f32.mrb[0].mxu0
    %v1886 = vadd.f32 %v529, %v1885
    %v1887 = vpop.f32.mrb[0].mxu0
    %v1888 = vpop.f32.mrb[0].mxu0
    %v1889 = vadd.f32 %v529, %v1888
    %v1890 = vpop.f32.mrb[0].mxu0
    %1891 = vmatprep.mubr.bf16.mxu0 0
    %1892 = vmatmul.mubr.bf16.gmra.mrb[0].mxu0 %v1113
    %v1893 = vpop.f32.mrb[0].mxu0
    %v1894 = vadd.f32 %v529, %v1893
    %v1895 = vpop.f32.mrb[0].mxu0
    %v1896 = vpop.f32.mrb[0].mxu0
    %v1897 = vadd.f32 %v529, %v1896
    %v1898 = vpop.f32.mrb[0].mxu0
    %1899 = vmatprep.mubr.bf16.mxu0 0
    %1900 = vmatmul.mubr.bf16.gmra.mrb[0].mxu0 %v1114
    %v1901 = vpop.f32.mrb[0].mxu0
    %v1902 = vadd.f32 %v529, %v1901
    %v1903 = vpop.f32.mrb[0].mxu0
    %v1904 = vpop.f32.mrb[0].mxu0
    %v1905 = vadd.f32 %v529, %v1904
    %v1906 = vpop.f32.mrb[0].mxu0
    %1907 = vmatprep.mubr.bf16.mxu0 0
    %1908 = vmatmul.mubr.bf16.gmra.mrb[0].mxu0 %v1115
    %v1909 = vpop.f32.mrb[0].mxu0
    %v1910 = vadd.f32 %v529, %v1909
    %v1911 = vpop.f32.mrb[0].mxu0
    %v1912 = vpop.f32.mrb[0].mxu0
    %v1913 = vadd.f32 %v529, %v1912
    %v1914 = vpop.f32.mrb[0].mxu0
    %1915 = vmatprep.mubr.bf16.mxu0 0
    %1916 = vmatmul.mubr.bf16.gmra.mrb[0].mxu0 %v1116
    %v1917 = vpop.f32.mrb[0].mxu0
    %v1918 = vadd.f32 %v529, %v1917
    %v1919 = vpop.f32.mrb[0].mxu0
    %v1920 = vpop.f32.mrb[0].mxu0
    %v1921 = vadd.f32 %v529, %v1920
    %v1922 = vpop.f32.mrb[0].mxu0
    %1923 = vmatprep.mubr.bf16.mxu0 0
    %1924 = vmatmul.mubr.bf16.gmra.mrb[0].mxu0 %v1117
    %v1925 = vpop.f32.mrb[0].mxu0
    %v1926 = vadd.f32 %v529, %v1925
    %v1927 = vpop.f32.mrb[0].mxu0
    %v1928 = vpop.f32.mrb[0].mxu0
    %v1929 = vadd.f32 %v529, %v1928
    %v1930 = vpop.f32.mrb[0].mxu0
    %1931 = vmatprep.mubr.bf16.mxu0 0
    %1932 = vmatmul.mubr.bf16.gmra.mrb[0].mxu0 %v1118
    %v1933 = vpop.f32.mrb[0].mxu0
    %v1934 = vadd.f32 %v529, %v1933
    %v1935 = vpop.f32.mrb[0].mxu0
    %v1936 = vpop.f32.mrb[0].mxu0
    %v1937 = vadd.f32 %v529, %v1936
    %v1938 = vpop.f32.mrb[0].mxu0
    %1939 = vmatprep.mubr.bf16.mxu0 0
    %1940 = vmatmul.mubr.bf16.gmra.mrb[0].mxu0 %v1119
    %v1941 = vpop.f32.mrb[0].mxu0
    %v1942 = vadd.f32 %v529, %v1941
    %v1943 = vpop.f32.mrb[0].mxu0
    %v1944 = vpop.f32.mrb[0].mxu0
    %v1945 = vadd.f32 %v529, %v1944
    %v1946 = vpop.f32.mrb[0].mxu0
    %1947 = vmatprep.mubr.bf16.mxu0 0
    %1948 = vmatmul.mubr.bf16.gmra.mrb[0].mxu0 %v1120
    %v1949 = vpop.f32.mrb[0].mxu0
    %v1950 = vadd.f32 %v529, %v1949
    %v1951 = vpop.f32.mrb[0].mxu0
    %v1952 = vpop.f32.mrb[0].mxu0
    %v1953 = vadd.f32 %v529, %v1952
    %v1954 = vpop.f32.mrb[0].mxu0
    %1955 = vmatprep.mubr.bf16.mxu0 0
    %1956 = vmatmul.mubr.bf16.gmra.mrb[0].mxu0 %v1121
    %v1957 = vpop.f32.mrb[0].mxu0
    %v1958 = vadd.f32 %v529, %v1957
    %v1959 = vpop.f32.mrb[0].mxu0
    %v1960 = vpop.f32.mrb[0].mxu0
    %v1961 = vadd.f32 %v529, %v1960
    %v1962 = vpop.f32.mrb[0].mxu0
    %1963 = vmatprep.mubr.bf16.mxu0 0
    %1964 = vmatmul.mubr.bf16.gmra.mrb[0].mxu0 %v1122
    %v1965 = vpop.f32.mrb[0].mxu0
    %v1966 = vadd.f32 %v529, %v1965
    %v1967 = vpop.f32.mrb[0].mxu0
    %v1968 = vpop.f32.mrb[0].mxu0
    %v1969 = vadd.f32 %v529, %v1968
    %v1970 = vpop.f32.mrb[0].mxu0
    %1971 = vmatprep.mubr.bf16.mxu0 0
    %1972 = vmatmul.mubr.bf16.gmra.mrb[0].mxu0 %v1123
    %v1973 = vpop.f32.mrb[0].mxu0
    %v1974 = vadd.f32 %v529, %v1973
    %v1975 = vpop.f32.mrb[0].mxu0
    %v1976 = vpop.f32.mrb[0].mxu0
    %v1977 = vadd.f32 %v529, %v1976
    %v1978 = vpop.f32.mrb[0].mxu0
    %1979 = vmatprep.mubr.bf16.mxu0 0
    %1980 = vmatmul.mubr.bf16.gmra.mrb[0].mxu0 %v1124
    %v1981 = vpop.f32.mrb[0].mxu0
    %v1982 = vadd.f32 %v529, %v1981
    %v1983 = vpop.f32.mrb[0].mxu0
    %v1984 = vpop.f32.mrb[0].mxu0
    %v1985 = vadd.f32 %v529, %v1984
    %v1986 = vpop.f32.mrb[0].mxu0
    %1987 = vmatprep.mubr.bf16.mxu0 0
    %1988 = vmatmul.mubr.bf16.gmra.mrb[0].mxu0 %v1125
    %v1989 = vpop.f32.mrb[0].mxu0
    %v1990 = vadd.f32 %v529, %v1989
    %v1991 = vpop.f32.mrb[0].mxu0
    %v1992 = vpop.f32.mrb[0].mxu0
    %v1993 = vadd.f32 %v529, %v1992
    %v1994 = vpop.f32.mrb[0].mxu0
    %1995 = vmatprep.mubr.bf16.mxu0 0
    %1996 = vmatmul.mubr.bf16.gmra.mrb[0].mxu0 %v1126
    %v1997 = vpop.f32.mrb[0].mxu0
    %v1998 = vadd.f32 %v529, %v1997
    %v1999 = vpop.f32.mrb[0].mxu0
    %v2000 = vpop.f32.mrb[0].mxu0
    %v2001 = vadd.f32 %v529, %v2000
    %v2002 = vpop.f32.mrb[0].mxu0
    %2003 = vmatprep.mubr.bf16.mxu0 0
    %2004 = vmatmul.mubr.bf16.gmra.mrb[0].mxu0 %v1127
    %v2005 = vpop.f32.mrb[0].mxu0
    %v2006 = vadd.f32 %v529, %v2005
    %v2007 = vpop.f32.mrb[0].mxu0
    %v2008 = vpop.f32.mrb[0].mxu0
    %v2009 = vadd.f32 %v529, %v2008
    %v2010 = vpop.f32.mrb[0].mxu0
    %2011 = vmatprep.mubr.bf16.mxu0 0
    %2012 = vmatmul.mubr.bf16.gmra.mrb[0].mxu0 %v1128
    %v2013 = vpop.f32.mrb[0].mxu0
    %v2014 = vadd.f32 %v529, %v2013
    %v2015 = vpop.f32.mrb[0].mxu0
    %v2016 = vpop.f32.mrb[0].mxu0
    %v2017 = vadd.f32 %v529, %v2016
    %v2018 = vpop.f32.mrb[0].mxu0
    %2019 = vmatprep.mubr.bf16.mxu0 0
    %2020 = vmatmul.mubr.bf16.gmra.mrb[0].mxu0 %v1129
    %v2021 = vpop.f32.mrb[0].mxu0
    %v2022 = vadd.f32 %v529, %v2021
    %v2023 = vpop.f32.mrb[0].mxu0
    %v2024 = vpop.f32.mrb[0].mxu0
    %v2025 = vadd.f32 %v529, %v2024
    %v2026 = vpop.f32.mrb[0].mxu0
    %2027 = vmatprep.mubr.bf16.mxu0 0
    %2028 = vmatmul.mubr.bf16.gmra.mrb[0].mxu0 %v1130
    %v2029 = vpop.f32.mrb[0].mxu0
    %v2030 = vadd.f32 %v529, %v2029
    %v2031 = vpop.f32.mrb[0].mxu0
    %v2032 = vpop.f32.mrb[0].mxu0
    %v2033 = vadd.f32 %v529, %v2032
    %v2034 = vpop.f32.mrb[0].mxu0
    %2035 = vmatprep.mubr.bf16.mxu0 0
    %2036 = vmatmul.mubr.bf16.gmra.mrb[0].mxu0 %v1131
    %v2037 = vpop.f32.mrb[0].mxu0
    %v2038 = vadd.f32 %v529, %v2037
    %v2039 = vpop.f32.mrb[0].mxu0
    %v2040 = vpop.f32.mrb[0].mxu0
    %v2041 = vadd.f32 %v529, %v2040
    %v2042 = vpop.f32.mrb[0].mxu0
    %2043 = vmatprep.mubr.bf16.mxu0 0
    %2044 = vmatmul.mubr.bf16.gmra.mrb[0].mxu0 %v1132
    %v2045 = vpop.f32.mrb[0].mxu0
    %v2046 = vadd.f32 %v529, %v2045
    %v2047 = vpop.f32.mrb[0].mxu0
    %v2048 = vpop.f32.mrb[0].mxu0
    %v2049 = vadd.f32 %v529, %v2048
    %v2050 = vpop.f32.mrb[0].mxu0
    %2051 = vmatprep.mubr.bf16.mxu0 0
    %2052 = vmatmul.mubr.bf16.gmra.mrb[0].mxu0 %v1133
    %v2053 = vpop.f32.mrb[0].mxu0
    %v2054 = vadd.f32 %v529, %v2053
    %v2055 = vpop.f32.mrb[0].mxu0
    %v2056 = vpop.f32.mrb[0].mxu0
    %v2057 = vadd.f32 %v529, %v2056
    %v2058 = vpop.f32.mrb[0].mxu0
    %2059 = vmatprep.mubr.bf16.mxu0 0
    %2060 = vmatmul.mubr.bf16.gmra.mrb[0].mxu0 %v1134
    %v2061 = vpop.f32.mrb[0].mxu0
    %v2062 = vadd.f32 %v529, %v2061
    %v2063 = vpop.f32.mrb[0].mxu0
    %v2064 = vpop.f32.mrb[0].mxu0
    %v2065 = vadd.f32 %v529, %v2064
    %v2066 = vpop.f32.mrb[0].mxu0
    %2067 = vmatprep.mubr.bf16.mxu0 0
    %2068 = vmatmul.mubr.bf16.gmra.mrb[0].mxu0 %v1135
    %v2069 = vpop.f32.mrb[0].mxu0
    %v2070 = vadd.f32 %v529, %v2069
    %v2071 = vpop.f32.mrb[0].mxu0
    %v2072 = vpop.f32.mrb[0].mxu0
    %v2073 = vadd.f32 %v529, %v2072
    %v2074 = vpop.f32.mrb[0].mxu0
    %2075 = vmatprep.mubr.bf16.mxu0 0
    %2076 = vmatmul.mubr.bf16.gmra.mrb[0].mxu0 %v1136
    %v2077 = vpop.f32.mrb[0].mxu0
    %v2078 = vadd.f32 %v529, %v2077
    %v2079 = vpop.f32.mrb[0].mxu0
    %v2080 = vpop.f32.mrb[0].mxu0
    %v2081 = vadd.f32 %v529, %v2080
    %v2082 = vpop.f32.mrb[0].mxu0
    %2083 = vmatprep.mubr.bf16.mxu0 0
    %2084 = vmatmul.mubr.bf16.gmra.mrb[0].mxu0 %v1137
    %v2085 = vpop.f32.mrb[0].mxu0
    %v2086 = vadd.f32 %v529, %v2085
    %v2087 = vpop.f32.mrb[0].mxu0
    %v2088 = vpop.f32.mrb[0].mxu0
    %v2089 = vadd.f32 %v529, %v2088
    %v2090 = vpop.f32.mrb[0].mxu0
    %2091 = vmatprep.mubr.bf16.mxu0 0
    %2092 = vmatmul.mubr.bf16.gmra.mrb[0].mxu0 %v1138
    %v2093 = vpop.f32.mrb[0].mxu0
    %v2094 = vadd.f32 %v529, %v2093
    %v2095 = vpop.f32.mrb[0].mxu0
    %v2096 = vpop.f32.mrb[0].mxu0
    %v2097 = vadd.f32 %v529, %v2096
    %v2098 = vpop.f32.mrb[0].mxu0
    %2099 = vmatprep.mubr.bf16.mxu0 0
    %2100 = vmatmul.mubr.bf16.gmra.mrb[0].mxu0 %v1139
    %v2101 = vpop.f32.mrb[0].mxu0
    %v2102 = vadd.f32 %v529, %v2101
    %v2103 = vpop.f32.mrb[0].mxu0
    %v2104 = vpop.f32.mrb[0].mxu0
    %v2105 = vadd.f32 %v529, %v2104
    %v2106 = vpop.f32.mrb[0].mxu0
    %2107 = vmatprep.mubr.bf16.mxu0 0
    %2108 = vmatmul.mubr.bf16.gmra.mrb[0].mxu0 %v1140
    %v2109 = vpop.f32.mrb[0].mxu0
    %v2110 = vadd.f32 %v529, %v2109
    %v2111 = vpop.f32.mrb[0].mxu0
    %v2112 = vpop.f32.mrb[0].mxu0
    %v2113 = vadd.f32 %v529, %v2112
    %v2114 = vpop.f32.mrb[0].mxu0
    %2115 = vmatprep.mubr.bf16.mxu0 0
    %2116 = vmatmul.mubr.bf16.gmra.mrb[0].mxu0 %v1141
    %v2117 = vpop.f32.mrb[0].mxu0
    %v2118 = vadd.f32 %v529, %v2117
    %v2119 = vpop.f32.mrb[0].mxu0
    %v2120 = vpop.f32.mrb[0].mxu0
    %v2121 = vadd.f32 %v529, %v2120
    %v2122 = vpop.f32.mrb[0].mxu0
    %2123 = vmatprep.mubr.bf16.mxu0 0
    %2124 = vmatmul.mubr.bf16.gmra.mrb[0].mxu0 %v1142
    %v2125 = vpop.f32.mrb[0].mxu0
    %v2126 = vadd.f32 %v529, %v2125
    %v2127 = vpop.f32.mrb[0].mxu0
    %v2128 = vpop.f32.mrb[0].mxu0
    %v2129 = vadd.f32 %v529, %v2128
    %v2130 = vpop.f32.mrb[0].mxu0
    %2131 = vmatprep.mubr.bf16.mxu0 0
    %2132 = vmatmul.mubr.bf16.gmra.mrb[0].mxu0 %v1143
    %v2133 = vpop.f32.mrb[0].mxu0
    %v2134 = vadd.f32 %v529, %v2133
    %v2135 = vpop.f32.mrb[0].mxu0
    %v2136 = vpop.f32.mrb[0].mxu0
    %v2137 = vadd.f32 %v529, %v2136
    %v2138 = vpop.f32.mrb[0].mxu0
    %2139 = vmatprep.mubr.bf16.mxu0 0
    %2140 = vmatmul.mubr.bf16.gmra.mrb[0].mxu0 %v1144
    %v2141 = vpop.f32.mrb[0].mxu0
    %v2142 = vadd.f32 %v529, %v2141
    %v2143 = vpop.f32.mrb[0].mxu0
    %v2144 = vpop.f32.mrb[0].mxu0
    %v2145 = vadd.f32 %v529, %v2144
    %v2146 = vpop.f32.mrb[0].mxu0
    %2147 = vmatprep.mubr.bf16.mxu0 0
    %2148 = vmatmul.mubr.bf16.gmra.mrb[0].mxu0 %v1145
    %v2149 = vpop.f32.mrb[0].mxu0
    %v2150 = vadd.f32 %v529, %v2149
    %v2151 = vpop.f32.mrb[0].mxu0
    %v2152 = vpop.f32.mrb[0].mxu0
    %v2153 = vadd.f32 %v529, %v2152
    %v2154 = vpop.f32.mrb[0].mxu0
    %2155 = vmatprep.mubr.bf16.mxu0 0
    %2156 = vmatmul.mubr.bf16.gmra.mrb[0].mxu0 %v1146
    %v2157 = vpop.f32.mrb[0].mxu0
    %v2158 = vadd.f32 %v529, %v2157
    %v2159 = vpop.f32.mrb[0].mxu0
    %v2160 = vpop.f32.mrb[0].mxu0
    %v2161 = vadd.f32 %v529, %v2160
    %v2162 = vpop.f32.mrb[0].mxu0
    %2163 = vmatprep.mubr.bf16.mxu0 0
    %2164 = vmatmul.mubr.bf16.gmra.mrb[0].mxu0 %v1147
    %v2165 = vpop.f32.mrb[0].mxu0
    %v2166 = vadd.f32 %v529, %v2165
    %v2167 = vpop.f32.mrb[0].mxu0
    %v2168 = vpop.f32.mrb[0].mxu0
    %v2169 = vadd.f32 %v529, %v2168
    %v2170 = vpop.f32.mrb[0].mxu0
    %2171 = vmatprep.mubr.bf16.mxu0 0
    %2172 = vmatmul.mubr.bf16.gmra.mrb[0].mxu0 %v1148
    %v2173 = vpop.f32.mrb[0].mxu0
    %v2174 = vadd.f32 %v529, %v2173
    %v2175 = vpop.f32.mrb[0].mxu0
    %v2176 = vpop.f32.mrb[0].mxu0
    %v2177 = vadd.f32 %v529, %v2176
    %v2178 = vpop.f32.mrb[0].mxu0
    %2179 = vmatprep.mubr.bf16.mxu0 0
    %2180 = vmatmul.mubr.bf16.gmra.mrb[0].mxu0 %v1149
    %v2181 = vpop.f32.mrb[0].mxu0
    %v2182 = vadd.f32 %v529, %v2181
    %v2183 = vpop.f32.mrb[0].mxu0
    %v2184 = vpop.f32.mrb[0].mxu0
    %v2185 = vadd.f32 %v529, %v2184
    %v2186 = vpop.f32.mrb[0].mxu0
    %2187 = vmatprep.mubr.bf16.mxu0 0
    %2188 = vmatmul.mubr.bf16.gmra.mrb[0].mxu0 %v1150
    %v2189 = vpop.f32.mrb[0].mxu0
    %v2190 = vadd.f32 %v529, %v2189
    %v2191 = vpop.f32.mrb[0].mxu0
    %v2192 = vpop.f32.mrb[0].mxu0
    %v2193 = vadd.f32 %v529, %v2192
    %v2194 = vpop.f32.mrb[0].mxu0
    %2195 = vmatprep.mubr.bf16.mxu0 0
    %2196 = vmatmul.mubr.bf16.gmra.mrb[0].mxu0 %v1151
    %v2197 = vpop.f32.mrb[0].mxu0
    %v2198 = vadd.f32 %v529, %v2197
    %v2199 = vpop.f32.mrb[0].mxu0
    %v2200 = vpop.f32.mrb[0].mxu0
    %v2201 = vadd.f32 %v529, %v2200
    %v2202 = vpop.f32.mrb[0].mxu0
    %2203 = vmatprep.mubr.bf16.mxu0 0
    %2204 = vmatmul.mubr.bf16.gmra.mrb[0].mxu0 %v1152
    %v2205 = vpop.f32.mrb[0].mxu0
    %v2206 = vadd.f32 %v529, %v2205
    %v2207 = vpop.f32.mrb[0].mxu0
    %v2208 = vpop.f32.mrb[0].mxu0
    %v2209 = vadd.f32 %v529, %v2208
    %v2210 = vpop.f32.mrb[0].mxu0
    %2211 = vmatprep.mubr.bf16.mxu0 0
    %2212 = vmatmul.mubr.bf16.gmra.mrb[0].mxu0 %v1153
    %v2213 = vpop.f32.mrb[0].mxu0
    %v2214 = vadd.f32 %v529, %v2213
    %v2215 = vpop.f32.mrb[0].mxu0
    %v2216 = vpop.f32.mrb[0].mxu0
    %v2217 = vadd.f32 %v529, %v2216
    %v2218 = vpop.f32.mrb[0].mxu0
    %2219 = vmatprep.mubr.bf16.mxu0 0
    %2220 = vmatmul.mubr.bf16.gmra.mrb[0].mxu0 %v1154
    %v2221 = vpop.f32.mrb[0].mxu0
    %v2222 = vadd.f32 %v529, %v2221
    %v2223 = vpop.f32.mrb[0].mxu0
    %v2224 = vpop.f32.mrb[0].mxu0
    %v2225 = vadd.f32 %v529, %v2224
    %v2226 = vpop.f32.mrb[0].mxu0
    %2227 = vmatprep.mubr.bf16.mxu0 0
    %2228 = vmatmul.mubr.bf16.gmra.mrb[0].mxu0 %v1155
    %v2229 = vpop.f32.mrb[0].mxu0
    %v2230 = vadd.f32 %v529, %v2229
    %v2231 = vpop.f32.mrb[0].mxu0
    %v2232 = vpop.f32.mrb[0].mxu0
    %v2233 = vadd.f32 %v529, %v2232
    %v2234 = vpop.f32.mrb[0].mxu0
    %2235 = vmatprep.mubr.bf16.mxu0 0
    %2236 = vmatmul.mubr.bf16.gmra.mrb[0].mxu0 %v1156
    %v2237 = vpop.f32.mrb[0].mxu0
    %v2238 = vadd.f32 %v529, %v2237
    %v2239 = vpop.f32.mrb[0].mxu0
    %v2240 = vpop.f32.mrb[0].mxu0
    %v2241 = vadd.f32 %v529, %v2240
    %v2242 = vpop.f32.mrb[0].mxu0
    %2243 = vmatprep.mubr.bf16.mxu0 0
    %2244 = vmatmul.mubr.bf16.gmra.mrb[0].mxu0 %v1157
    %v2245 = vpop.f32.mrb[0].mxu0
    %v2246 = vadd.f32 %v529, %v2245
    %v2247 = vpop.f32.mrb[0].mxu0
    %v2248 = vpop.f32.mrb[0].mxu0
    %v2249 = vadd.f32 %v529, %v2248
    %v2250 = vpop.f32.mrb[0].mxu0
    %2251 = vmatprep.mubr.bf16.mxu0 0
    %2252 = vmatmul.mubr.bf16.gmra.mrb[0].mxu0 %v1158
    %v2253 = vpop.f32.mrb[0].mxu0
    %v2254 = vadd.f32 %v529, %v2253
    %v2255 = vpop.f32.mrb[0].mxu0
    %v2256 = vpop.f32.mrb[0].mxu0
    %v2257 = vadd.f32 %v529, %v2256
    %v2258 = vpop.f32.mrb[0].mxu0
    %2259 = vmatprep.mubr.bf16.mxu0 0
    %2260 = vmatmul.mubr.bf16.gmra.mrb[0].mxu0 %v1159
    %v2261 = vpop.f32.mrb[0].mxu0
    %v2262 = vadd.f32 %v529, %v2261
    %v2263 = vpop.f32.mrb[0].mxu0
    %v2264 = vpop.f32.mrb[0].mxu0
    %v2265 = vadd.f32 %v529, %v2264
    %v2266 = vpop.f32.mrb[0].mxu0
    %2267 = vmatprep.mubr.bf16.mxu0 0
    %2268 = vmatmul.mubr.bf16.gmra.mrb[0].mxu0 %v1160
    %v2269 = vpop.f32.mrb[0].mxu0
    %v2270 = vadd.f32 %v529, %v2269
    %v2271 = vpop.f32.mrb[0].mxu0
    %v2272 = vpop.f32.mrb[0].mxu0
    %v2273 = vadd.f32 %v529, %v2272
    %v2274 = vpop.f32.mrb[0].mxu0
    %2275 = vmatprep.mubr.bf16.mxu0 0
    %2276 = vmatmul.mubr.bf16.gmra.mrb[0].mxu0 %v1161
    %v2277 = vpop.f32.mrb[0].mxu0
    %v2278 = vadd.f32 %v529, %v2277
    %v2279 = vpop.f32.mrb[0].mxu0
    %v2280 = vpop.f32.mrb[0].mxu0
    %v2281 = vadd.f32 %v529, %v2280
    %v2282 = vpop.f32.mrb[0].mxu0
    %2283 = vmatprep.mubr.bf16.mxu0 0
    %2284 = vmatmul.mubr.bf16.gmra.mrb[0].mxu0 %v1162
    %v2285 = vpop.f32.mrb[0].mxu0
    %v2286 = vadd.f32 %v529, %v2285
    %v2287 = vpop.f32.mrb[0].mxu0
    %v2288 = vpop.f32.mrb[0].mxu0
    %v2289 = vadd.f32 %v529, %v2288
    %v2290 = vpop.f32.mrb[0].mxu0
    %2291 = vmatprep.mubr.bf16.mxu0 0
    %2292 = vmatmul.mubr.bf16.gmra.mrb[0].mxu0 %v1163
    %v2293 = vpop.f32.mrb[0].mxu0
    %v2294 = vadd.f32 %v529, %v2293
    %v2295 = vpop.f32.mrb[0].mxu0
    %v2296 = vpop.f32.mrb[0].mxu0
    %v2297 = vadd.f32 %v529, %v2296
    %v2298 = vpop.f32.mrb[0].mxu0
    %2299 = vmatprep.mubr.bf16.mxu0 0
    %2300 = vmatmul.mubr.bf16.gmra.mrb[0].mxu0 %v1164
    %v2301 = vpop.f32.mrb[0].mxu0
    %v2302 = vadd.f32 %v529, %v2301
    %v2303 = vpop.f32.mrb[0].mxu0
    %v2304 = vpop.f32.mrb[0].mxu0
    %v2305 = vadd.f32 %v529, %v2304
    %v2306 = vpop.f32.mrb[0].mxu0
    %2307 = vmatprep.mubr.bf16.mxu0 0
    %2308 = vmatmul.mubr.bf16.gmra.mrb[0].mxu0 %v1165
    %v2309 = vpop.f32.mrb[0].mxu0
    %v2310 = vadd.f32 %v529, %v2309
    %v2311 = vpop.f32.mrb[0].mxu0
    %v2312 = vpop.f32.mrb[0].mxu0
    %v2313 = vadd.f32 %v529, %v2312
    %v2314 = vpop.f32.mrb[0].mxu0
    %2315 = vmatprep.mubr.bf16.mxu0 0
    %2316 = vmatmul.mubr.bf16.gmra.mrb[0].mxu0 %v1166
    %v2317 = vpop.f32.mrb[0].mxu0
    %v2318 = vadd.f32 %v529, %v2317
    %v2319 = vpop.f32.mrb[0].mxu0
    %v2320 = vpop.f32.mrb[0].mxu0
    %v2321 = vadd.f32 %v529, %v2320
    %v2322 = vpop.f32.mrb[0].mxu0
    %2323 = vmatprep.mubr.bf16.mxu0 0
    %2324 = vmatmul.mubr.bf16.gmra.mrb[0].mxu0 %v1167
    %v2325 = vpop.f32.mrb[0].mxu0
    %v2326 = vadd.f32 %v529, %v2325
    %v2327 = vpop.f32.mrb[0].mxu0
    %v2328 = vpop.f32.mrb[0].mxu0
    %v2329 = vadd.f32 %v529, %v2328
    %v2330 = vpop.f32.mrb[0].mxu0
    %2331 = vmatprep.mubr.bf16.mxu0 0
    %2332 = vmatmul.mubr.bf16.gmra.mrb[0].mxu0 %v1168
    %v2333 = vpop.f32.mrb[0].mxu0
    %v2334 = vadd.f32 %v529, %v2333
    %v2335 = vpop.f32.mrb[0].mxu0
    %v2336 = vpop.f32.mrb[0].mxu0
    %v2337 = vadd.f32 %v529, %v2336
    %v2338 = vpop.f32.mrb[0].mxu0
    %2339 = vmatprep.mubr.bf16.mxu0 0
    %2340 = vmatmul.mubr.bf16.gmra.mrb[0].mxu0 %v1169
    %v2341 = vpop.f32.mrb[0].mxu0
    %v2342 = vadd.f32 %v529, %v2341
    %v2343 = vpop.f32.mrb[0].mxu0
    %v2344 = vpop.f32.mrb[0].mxu0
    %v2345 = vadd.f32 %v529, %v2344
    %v2346 = vpop.f32.mrb[0].mxu0
    %2347 = vmatprep.mubr.bf16.mxu0 0
    %2348 = vmatmul.mubr.bf16.gmra.mrb[0].mxu0 %v1170
    %v2349 = vpop.f32.mrb[0].mxu0
    %v2350 = vadd.f32 %v529, %v2349
    %v2351 = vpop.f32.mrb[0].mxu0
    %v2352 = vpop.f32.mrb[0].mxu0
    %v2353 = vadd.f32 %v529, %v2352
    %v2354 = vpop.f32.mrb[0].mxu0
    %2355 = vdwg.mxu0
    %v2356 = vmax.f32 %v1334, 0.0
    %v2357 = vmax.f32 %v1337, 0.0
    %v2358 = vmax.f32 %v1342, 0.0
    %v2359 = vmax.f32 %v1345, 0.0
    %v2360 = vmax.f32 %v1350, 0.0
    %v2361 = vmax.f32 %v1353, 0.0
    %v2362 = vmax.f32 %v1358, 0.0
    %v2363 = vmax.f32 %v1361, 0.0
    %v2364 = vmax.f32 %v1366, 0.0
    %v2365 = vmax.f32 %v1369, 0.0
    %v2366 = vmax.f32 %v1374, 0.0
    %v2367 = vmax.f32 %v1377, 0.0
    %v2368 = vmax.f32 %v1382, 0.0
    %v2369 = vmax.f32 %v1385, 0.0
    %v2370 = vmax.f32 %v1390, 0.0
    %v2371 = vmax.f32 %v1393, 0.0
    %v2372 = vmax.f32 %v1398, 0.0
    %v2373 = vmax.f32 %v1401, 0.0
    %v2374 = vmax.f32 %v1406, 0.0
    %v2375 = vmax.f32 %v1409, 0.0
    %v2376 = vmax.f32 %v1414, 0.0
    %v2377 = vmax.f32 %v1417, 0.0
    %v2378 = vmax.f32 %v1422, 0.0
    %v2379 = vmax.f32 %v1425, 0.0
    %v2380 = vmax.f32 %v1430, 0.0
    %v2381 = vmax.f32 %v1433, 0.0
    %v2382 = vmax.f32 %v1438, 0.0
    %v2383 = vmax.f32 %v1441, 0.0
    %v2384 = vmax.f32 %v1446, 0.0
    %v2385 = vmax.f32 %v1449, 0.0
    %v2386 = vmax.f32 %v1454, 0.0
    %v2387 = vmax.f32 %v1457, 0.0
    %v2388 = vmax.f32 %v1462, 0.0
    %v2389 = vmax.f32 %v1465, 0.0
    %v2390 = vmax.f32 %v1470, 0.0
    %v2391 = vmax.f32 %v1473, 0.0
    %v2392 = vmax.f32 %v1478, 0.0
    %v2393 = vmax.f32 %v1481, 0.0
    %v2394 = vmax.f32 %v1486, 0.0
    %v2395 = vmax.f32 %v1489, 0.0
    %v2396 = vmax.f32 %v1494, 0.0
    %v2397 = vmax.f32 %v1497, 0.0
    %v2398 = vmax.f32 %v1502, 0.0
    %v2399 = vmax.f32 %v1505, 0.0
    %v2400 = vmax.f32 %v1510, 0.0
    %v2401 = vmax.f32 %v1513, 0.0
    %v2402 = vmax.f32 %v1518, 0.0
    %v2403 = vmax.f32 %v1521, 0.0
    %v2404 = vmax.f32 %v1526, 0.0
    %v2405 = vmax.f32 %v1529, 0.0
    %v2406 = vmax.f32 %v1534, 0.0
    %v2407 = vmax.f32 %v1537, 0.0
    %v2408 = vmax.f32 %v1542, 0.0
    %v2409 = vmax.f32 %v1545, 0.0
    %v2410 = vmax.f32 %v1550, 0.0
    %v2411 = vmax.f32 %v1553, 0.0
    %v2412 = vmax.f32 %v1558, 0.0
    %v2413 = vmax.f32 %v1561, 0.0
    %v2414 = vmax.f32 %v1566, 0.0
    %v2415 = vmax.f32 %v1569, 0.0
    %v2416 = vmax.f32 %v1574, 0.0
    %v2417 = vmax.f32 %v1577, 0.0
    %v2418 = vmax.f32 %v1582, 0.0
    %v2419 = vmax.f32 %v1585, 0.0
    %v2420 = vmax.f32 %v1590, 0.0
    %v2421 = vmax.f32 %v1593, 0.0
    %v2422 = vmax.f32 %v1598, 0.0
    %v2423 = vmax.f32 %v1601, 0.0
    %v2424 = vmax.f32 %v1606, 0.0
    %v2425 = vmax.f32 %v1609, 0.0
    %v2426 = vmax.f32 %v1614, 0.0
    %v2427 = vmax.f32 %v1617, 0.0
    %v2428 = vmax.f32 %v1622, 0.0
    %v2429 = vmax.f32 %v1625, 0.0
    %v2430 = vmax.f32 %v1630, 0.0
    %v2431 = vmax.f32 %v1633, 0.0
    %v2432 = vmax.f32 %v1638, 0.0
    %v2433 = vmax.f32 %v1641, 0.0
    %v2434 = vmax.f32 %v1646, 0.0
    %v2435 = vmax.f32 %v1649, 0.0
    %v2436 = vmax.f32 %v1654, 0.0
    %v2437 = vmax.f32 %v1657, 0.0
    %v2438 = vmax.f32 %v1662, 0.0
    %v2439 = vmax.f32 %v1665, 0.0
    %v2440 = vmax.f32 %v1670, 0.0
    %v2441 = vmax.f32 %v1673, 0.0
    %v2442 = vmax.f32 %v1678, 0.0
    %v2443 = vmax.f32 %v1681, 0.0
    %v2444 = vmax.f32 %v1686, 0.0
    %v2445 = vmax.f32 %v1689, 0.0
    %v2446 = vmax.f32 %v1694, 0.0
    %v2447 = vmax.f32 %v1697, 0.0
    %v2448 = vmax.f32 %v1702, 0.0
    %v2449 = vmax.f32 %v1705, 0.0
    %v2450 = vmax.f32 %v1710, 0.0
    %v2451 = vmax.f32 %v1713, 0.0
    %v2452 = vmax.f32 %v1718, 0.0
    %v2453 = vmax.f32 %v1721, 0.0
    %v2454 = vmax.f32 %v1726, 0.0
    %v2455 = vmax.f32 %v1729, 0.0
    %v2456 = vmax.f32 %v1734, 0.0
    %v2457 = vmax.f32 %v1737, 0.0
    %v2458 = vmax.f32 %v1742, 0.0
    %v2459 = vmax.f32 %v1745, 0.0
    %v2460 = vmax.f32 %v1750, 0.0
    %v2461 = vmax.f32 %v1753, 0.0
    %v2462 = vmax.f32 %v1758, 0.0
    %v2463 = vmax.f32 %v1761, 0.0
    %v2464 = vmax.f32 %v1766, 0.0
    %v2465 = vmax.f32 %v1769, 0.0
    %v2466 = vmax.f32 %v1774, 0.0
    %v2467 = vmax.f32 %v1777, 0.0
    %v2468 = vmax.f32 %v1782, 0.0
    %v2469 = vmax.f32 %v1785, 0.0
    %v2470 = vmax.f32 %v1790, 0.0
    %v2471 = vmax.f32 %v1793, 0.0
    %v2472 = vmax.f32 %v1798, 0.0
    %v2473 = vmax.f32 %v1801, 0.0
    %v2474 = vmax.f32 %v1806, 0.0
    %v2475 = vmax.f32 %v1809, 0.0
    %v2476 = vmax.f32 %v1814, 0.0
    %v2477 = vmax.f32 %v1817, 0.0
    %v2478 = vmax.f32 %v1822, 0.0
    %v2479 = vmax.f32 %v1825, 0.0
    %v2480 = vmax.f32 %v1830, 0.0
    %v2481 = vmax.f32 %v1833, 0.0
    %v2482 = vmax.f32 %v1838, 0.0
    %v2483 = vmax.f32 %v1841, 0.0
    %v2484 = vmax.f32 %v1846, 0.0
    %v2485 = vmax.f32 %v1849, 0.0
    %v2486 = vmax.f32 %v1854, 0.0
    %v2487 = vmax.f32 %v1857, 0.0
    %v2488 = vmax.f32 %v1862, 0.0
    %v2489 = vmax.f32 %v1865, 0.0
    %v2490 = vmax.f32 %v1870, 0.0
    %v2491 = vmax.f32 %v1873, 0.0
    %v2492 = vmax.f32 %v1878, 0.0
    %v2493 = vmax.f32 %v1881, 0.0
    %v2494 = vmax.f32 %v1886, 0.0
    %v2495 = vmax.f32 %v1889, 0.0
    %v2496 = vmax.f32 %v1894, 0.0
    %v2497 = vmax.f32 %v1897, 0.0
    %v2498 = vmax.f32 %v1902, 0.0
    %v2499 = vmax.f32 %v1905, 0.0
    %v2500 = vmax.f32 %v1910, 0.0
    %v2501 = vmax.f32 %v1913, 0.0
    %v2502 = vmax.f32 %v1918, 0.0
    %v2503 = vmax.f32 %v1921, 0.0
    %v2504 = vmax.f32 %v1926, 0.0
    %v2505 = vmax.f32 %v1929, 0.0
    %v2506 = vmax.f32 %v1934, 0.0
    %v2507 = vmax.f32 %v1937, 0.0
    %v2508 = vmax.f32 %v1942, 0.0
    %v2509 = vmax.f32 %v1945, 0.0
    %v2510 = vmax.f32 %v1950, 0.0
    %v2511 = vmax.f32 %v1953, 0.0
    %v2512 = vmax.f32 %v1958, 0.0
    %v2513 = vmax.f32 %v1961, 0.0
    %v2514 = vmax.f32 %v1966, 0.0
    %v2515 = vmax.f32 %v1969, 0.0
    %v2516 = vmax.f32 %v1974, 0.0
    %v2517 = vmax.f32 %v1977, 0.0
    %v2518 = vmax.f32 %v1982, 0.0
    %v2519 = vmax.f32 %v1985, 0.0
    %v2520 = vmax.f32 %v1990, 0.0
    %v2521 = vmax.f32 %v1993, 0.0
    %v2522 = vmax.f32 %v1998, 0.0
    %v2523 = vmax.f32 %v2001, 0.0
    %v2524 = vmax.f32 %v2006, 0.0
    %v2525 = vmax.f32 %v2009, 0.0
    %v2526 = vmax.f32 %v2014, 0.0
    %v2527 = vmax.f32 %v2017, 0.0
    %v2528 = vmax.f32 %v2022, 0.0
    %v2529 = vmax.f32 %v2025, 0.0
    %v2530 = vmax.f32 %v2030, 0.0
    %v2531 = vmax.f32 %v2033, 0.0
    %v2532 = vmax.f32 %v2038, 0.0
    %v2533 = vmax.f32 %v2041, 0.0
    %v2534 = vmax.f32 %v2046, 0.0
    %v2535 = vmax.f32 %v2049, 0.0
    %v2536 = vmax.f32 %v2054, 0.0
    %v2537 = vmax.f32 %v2057, 0.0
    %v2538 = vmax.f32 %v2062, 0.0
    %v2539 = vmax.f32 %v2065, 0.0
    %v2540 = vmax.f32 %v2070, 0.0
    %v2541 = vmax.f32 %v2073, 0.0
    %v2542 = vmax.f32 %v2078, 0.0
    %v2543 = vmax.f32 %v2081, 0.0
    %v2544 = vmax.f32 %v2086, 0.0
    %v2545 = vmax.f32 %v2089, 0.0
    %v2546 = vmax.f32 %v2094, 0.0
    %v2547 = vmax.f32 %v2097, 0.0
    %v2548 = vmax.f32 %v2102, 0.0
    %v2549 = vmax.f32 %v2105, 0.0
    %v2550 = vmax.f32 %v2110, 0.0
    %v2551 = vmax.f32 %v2113, 0.0
    %v2552 = vmax.f32 %v2118, 0.0
    %v2553 = vmax.f32 %v2121, 0.0
    %v2554 = vmax.f32 %v2126, 0.0
    %v2555 = vmax.f32 %v2129, 0.0
    %v2556 = vmax.f32 %v2134, 0.0
    %v2557 = vmax.f32 %v2137, 0.0
    %v2558 = vmax.f32 %v2142, 0.0
    %v2559 = vmax.f32 %v2145, 0.0
    %v2560 = vmax.f32 %v2150, 0.0
    %v2561 = vmax.f32 %v2153, 0.0
    %v2562 = vmax.f32 %v2158, 0.0
    %v2563 = vmax.f32 %v2161, 0.0
    %v2564 = vmax.f32 %v2166, 0.0
    %v2565 = vmax.f32 %v2169, 0.0
    %v2566 = vmax.f32 %v2174, 0.0
    %v2567 = vmax.f32 %v2177, 0.0
    %v2568 = vmax.f32 %v2182, 0.0
    %v2569 = vmax.f32 %v2185, 0.0
    %v2570 = vmax.f32 %v2190, 0.0
    %v2571 = vmax.f32 %v2193, 0.0
    %v2572 = vmax.f32 %v2198, 0.0
    %v2573 = vmax.f32 %v2201, 0.0
    %v2574 = vmax.f32 %v2206, 0.0
    %v2575 = vmax.f32 %v2209, 0.0
    %v2576 = vmax.f32 %v2214, 0.0
    %v2577 = vmax.f32 %v2217, 0.0
    %v2578 = vmax.f32 %v2222, 0.0
    %v2579 = vmax.f32 %v2225, 0.0
    %v2580 = vmax.f32 %v2230, 0.0
    %v2581 = vmax.f32 %v2233, 0.0
    %v2582 = vmax.f32 %v2238, 0.0
    %v2583 = vmax.f32 %v2241, 0.0
    %v2584 = vmax.f32 %v2246, 0.0
    %v2585 = vmax.f32 %v2249, 0.0
    %v2586 = vmax.f32 %v2254, 0.0
    %v2587 = vmax.f32 %v2257, 0.0
    %v2588 = vmax.f32 %v2262, 0.0
    %v2589 = vmax.f32 %v2265, 0.0
    %v2590 = vmax.f32 %v2270, 0.0
    %v2591 = vmax.f32 %v2273, 0.0
    %v2592 = vmax.f32 %v2278, 0.0
    %v2593 = vmax.f32 %v2281, 0.0
    %v2594 = vmax.f32 %v2286, 0.0
    %v2595 = vmax.f32 %v2289, 0.0
    %v2596 = vmax.f32 %v2294, 0.0
    %v2597 = vmax.f32 %v2297, 0.0
    %v2598 = vmax.f32 %v2302, 0.0
    %v2599 = vmax.f32 %v2305, 0.0
    %v2600 = vmax.f32 %v2310, 0.0
    %v2601 = vmax.f32 %v2313, 0.0
    %v2602 = vmax.f32 %v2318, 0.0
    %v2603 = vmax.f32 %v2321, 0.0
    %v2604 = vmax.f32 %v2326, 0.0
    %v2605 = vmax.f32 %v2329, 0.0
    %v2606 = vmax.f32 %v2334, 0.0
    %v2607 = vmax.f32 %v2337, 0.0
    %v2608 = vmax.f32 %v2342, 0.0
    %v2609 = vmax.f32 %v2345, 0.0
    %v2610 = vmax.f32 %v2350, 0.0
    %v2611 = vmax.f32 %v2353, 0.0
    %2612 = vmatprep.subr.mxu0 0.0
    %2613 = vmatpush1.msra.mxu0 %v2356
    %2614 = vmatprep.subr.mxu0 0.0
    %2615 = vmatpush1.msra.mxu0 %v2357
    %2616 = vmatprep.subr.mxu0 0.0
    %2617 = vmatpush1.msra.mxu0 %v2358
    %2618 = vmatprep.subr.mxu0 0.0
    %2619 = vmatpush1.msra.mxu0 %v2359
    %2620 = vmatprep.subr.mxu0 0.0
    %2621 = vmatpush1.msra.mxu0 %v2360
    %2622 = vmatprep.subr.mxu0 0.0
    %2623 = vmatpush1.msra.mxu0 %v2361
    %2624 = vmatprep.subr.mxu0 0.0
    %2625 = vmatpush1.msra.mxu0 %v2362
    %2626 = vmatprep.subr.mxu0 0.0
    %2627 = vmatpush1.msra.mxu0 %v2363
    %2628 = vmatprep.subr.mxu0 0.0
    %2629 = vmatpush1.msra.mxu0 %v2364
    %2630 = vmatprep.subr.mxu0 0.0
    %2631 = vmatpush1.msra.mxu0 %v2365
    %2632 = vmatprep.subr.mxu0 0.0
    %2633 = vmatpush1.msra.mxu0 %v2366
    %2634 = vmatprep.subr.mxu0 0.0
    %2635 = vmatpush1.msra.mxu0 %v2367
    %2636 = vmatprep.subr.mxu0 0.0
    %2637 = vmatpush1.msra.mxu0 %v2368
    %2638 = vmatprep.subr.mxu0 0.0
    %2639 = vmatpush1.msra.mxu0 %v2369
    %2640 = vmatprep.subr.mxu0 0.0
    %2641 = vmatpush1.msra.mxu0 %v2370
    %2642 = vmatprep.subr.mxu0 0.0
    %2643 = vmatpush1.msra.mxu0 %v2371
    %2644 = vmatprep.subr.mxu0 0.0
    %2645 = vmatpush1.msra.mxu0 %v2372
    %2646 = vmatprep.subr.mxu0 0.0
    %2647 = vmatpush1.msra.mxu0 %v2373
    %2648 = vmatprep.subr.mxu0 0.0
    %2649 = vmatpush1.msra.mxu0 %v2374
    %2650 = vmatprep.subr.mxu0 0.0
    %2651 = vmatpush1.msra.mxu0 %v2375
    %2652 = vmatprep.subr.mxu0 0.0
    %2653 = vmatpush1.msra.mxu0 %v2376
    %2654 = vmatprep.subr.mxu0 0.0
    %2655 = vmatpush1.msra.mxu0 %v2377
    %2656 = vmatprep.subr.mxu0 0.0
    %2657 = vmatpush1.msra.mxu0 %v2378
    %2658 = vmatprep.subr.mxu0 0.0
    %2659 = vmatpush1.msra.mxu0 %v2379
    %2660 = vmatprep.subr.mxu0 0.0
    %2661 = vmatpush1.msra.mxu0 %v2380
    %2662 = vmatprep.subr.mxu0 0.0
    %2663 = vmatpush1.msra.mxu0 %v2381
    %2664 = vmatprep.subr.mxu0 0.0
    %2665 = vmatpush1.msra.mxu0 %v2382
    %2666 = vmatprep.subr.mxu0 0.0
    %2667 = vmatpush1.msra.mxu0 %v2383
    %2668 = vmatprep.subr.mxu0 0.0
    %2669 = vmatpush1.msra.mxu0 %v2384
    %2670 = vmatprep.subr.mxu0 0.0
    %2671 = vmatpush1.msra.mxu0 %v2385
    %2672 = vmatprep.subr.mxu0 0.0
    %2673 = vmatpush1.msra.mxu0 %v2386
    %2674 = vmatprep.subr.mxu0 0.0
    %2675 = vmatpush1.msra.mxu0 %v2387
    %2676 = vmatprep.mubr.f32.mxu0 %v200
    %2677 = vmatmul.mubr.f32.gmra.mrb[0].mxu0 %v199
    %v2678 = vpop.f32.mrb[0].mxu0
    %v2679 = vadd.f32 0.0, %v2678
    %v2680 = vpop.f32.mrb[0].mxu0
    %2681 = vdwg.mxu0
    %2682 = vmatprep.subr.mxu0 0.0
    %2683 = vmatpush1.msra.mxu0 %v2388
    %2684 = vmatprep.subr.mxu0 0.0
    %2685 = vmatpush1.msra.mxu0 %v2389
    %2686 = vmatprep.subr.mxu0 0.0
    %2687 = vmatpush1.msra.mxu0 %v2390
    %2688 = vmatprep.subr.mxu0 0.0
    %2689 = vmatpush1.msra.mxu0 %v2391
    %2690 = vmatprep.subr.mxu0 0.0
    %2691 = vmatpush1.msra.mxu0 %v2392
    %2692 = vmatprep.subr.mxu0 0.0
    %2693 = vmatpush1.msra.mxu0 %v2393
    %2694 = vmatprep.subr.mxu0 0.0
    %2695 = vmatpush1.msra.mxu0 %v2394
    %2696 = vmatprep.subr.mxu0 0.0
    %2697 = vmatpush1.msra.mxu0 %v2395
    %2698 = vmatprep.subr.mxu0 0.0
    %2699 = vmatpush1.msra.mxu0 %v2396
    %2700 = vmatprep.subr.mxu0 0.0
    %2701 = vmatpush1.msra.mxu0 %v2397
    %2702 = vmatprep.subr.mxu0 0.0
    %2703 = vmatpush1.msra.mxu0 %v2398
    %2704 = vmatprep.subr.mxu0 0.0
    %2705 = vmatpush1.msra.mxu0 %v2399
    %2706 = vmatprep.subr.mxu0 0.0
    %2707 = vmatpush1.msra.mxu0 %v2400
    %2708 = vmatprep.subr.mxu0 0.0
    %2709 = vmatpush1.msra.mxu0 %v2401
    %2710 = vmatprep.subr.mxu0 0.0
    %2711 = vmatpush1.msra.mxu0 %v2402
    %2712 = vmatprep.subr.mxu0 0.0
    %2713 = vmatpush1.msra.mxu0 %v2403
    %2714 = vmatprep.subr.mxu0 0.0
    %2715 = vmatpush1.msra.mxu0 %v2404
    %2716 = vmatprep.subr.mxu0 0.0
    %2717 = vmatpush1.msra.mxu0 %v2405
    %2718 = vmatprep.subr.mxu0 0.0
    %2719 = vmatpush1.msra.mxu0 %v2406
    %2720 = vmatprep.subr.mxu0 0.0
    %2721 = vmatpush1.msra.mxu0 %v2407
    %2722 = vmatprep.subr.mxu0 0.0
    %2723 = vmatpush1.msra.mxu0 %v2408
    %2724 = vmatprep.subr.mxu0 0.0
    %2725 = vmatpush1.msra.mxu0 %v2409
    %2726 = vmatprep.subr.mxu0 0.0
    %2727 = vmatpush1.msra.mxu0 %v2410
    %2728 = vmatprep.subr.mxu0 0.0
    %2729 = vmatpush1.msra.mxu0 %v2411
    %2730 = vmatprep.subr.mxu0 0.0
    %2731 = vmatpush1.msra.mxu0 %v2412
    %2732 = vmatprep.subr.mxu0 0.0
    %2733 = vmatpush1.msra.mxu0 %v2413
    %2734 = vmatprep.subr.mxu0 0.0
    %2735 = vmatpush1.msra.mxu0 %v2414
    %2736 = vmatprep.subr.mxu0 0.0
    %2737 = vmatpush1.msra.mxu0 %v2415
    %2738 = vmatprep.subr.mxu0 0.0
    %2739 = vmatpush1.msra.mxu0 %v2416
    %2740 = vmatprep.subr.mxu0 0.0
    %2741 = vmatpush1.msra.mxu0 %v2417
    %2742 = vmatprep.subr.mxu0 0.0
    %2743 = vmatpush1.msra.mxu0 %v2418
    %2744 = vmatprep.subr.mxu0 0.0
    %2745 = vmatpush1.msra.mxu0 %v2419
    %2746 = vmatprep.mubr.f32.mxu0 %v202
    %2747 = vmatmul.mubr.f32.gmra.mrb[0].mxu0 %v201
    %v2748 = vpop.f32.mrb[0].mxu0
    %v2749 = vadd.f32 %v2679, %v2748
    %v2750 = vpop.f32.mrb[0].mxu0
    %2751 = vdwg.mxu0
    %2752 = vmatprep.subr.mxu0 0.0
    %2753 = vmatpush1.msra.mxu0 %v2420
    %2754 = vmatprep.subr.mxu0 0.0
    %2755 = vmatpush1.msra.mxu0 %v2421
    %2756 = vmatprep.subr.mxu0 0.0
    %2757 = vmatpush1.msra.mxu0 %v2422
    %2758 = vmatprep.subr.mxu0 0.0
    %2759 = vmatpush1.msra.mxu0 %v2423
    %2760 = vmatprep.subr.mxu0 0.0
    %2761 = vmatpush1.msra.mxu0 %v2424
    %2762 = vmatprep.subr.mxu0 0.0
    %2763 = vmatpush1.msra.mxu0 %v2425
    %2764 = vmatprep.subr.mxu0 0.0
    %2765 = vmatpush1.msra.mxu0 %v2426
    %2766 = vmatprep.subr.mxu0 0.0
    %2767 = vmatpush1.msra.mxu0 %v2427
    %2768 = vmatprep.subr.mxu0 0.0
    %2769 = vmatpush1.msra.mxu0 %v2428
    %2770 = vmatprep.subr.mxu0 0.0
    %2771 = vmatpush1.msra.mxu0 %v2429
    %2772 = vmatprep.subr.mxu0 0.0
    %2773 = vmatpush1.msra.mxu0 %v2430
    %2774 = vmatprep.subr.mxu0 0.0
    %2775 = vmatpush1.msra.mxu0 %v2431
    %2776 = vmatprep.subr.mxu0 0.0
    %2777 = vmatpush1.msra.mxu0 %v2432
    %2778 = vmatprep.subr.mxu0 0.0
    %2779 = vmatpush1.msra.mxu0 %v2433
    %2780 = vmatprep.subr.mxu0 0.0
    %2781 = vmatpush1.msra.mxu0 %v2434
    %2782 = vmatprep.subr.mxu0 0.0
    %2783 = vmatpush1.msra.mxu0 %v2435
    %2784 = vmatprep.subr.mxu0 0.0
    %2785 = vmatpush1.msra.mxu0 %v2436
    %2786 = vmatprep.subr.mxu0 0.0
    %2787 = vmatpush1.msra.mxu0 %v2437
    %2788 = vmatprep.subr.mxu0 0.0
    %2789 = vmatpush1.msra.mxu0 %v2438
    %2790 = vmatprep.subr.mxu0 0.0
    %2791 = vmatpush1.msra.mxu0 %v2439
    %2792 = vmatprep.subr.mxu0 0.0
    %2793 = vmatpush1.msra.mxu0 %v2440
    %2794 = vmatprep.subr.mxu0 0.0
    %2795 = vmatpush1.msra.mxu0 %v2441
    %2796 = vmatprep.subr.mxu0 0.0
    %2797 = vmatpush1.msra.mxu0 %v2442
    %2798 = vmatprep.subr.mxu0 0.0
    %2799 = vmatpush1.msra.mxu0 %v2443
    %2800 = vmatprep.subr.mxu0 0.0
    %2801 = vmatpush1.msra.mxu0 %v2444
    %2802 = vmatprep.subr.mxu0 0.0
    %2803 = vmatpush1.msra.mxu0 %v2445
    %2804 = vmatprep.subr.mxu0 0.0
    %2805 = vmatpush1.msra.mxu0 %v2446
    %2806 = vmatprep.subr.mxu0 0.0
    %2807 = vmatpush1.msra.mxu0 %v2447
    %2808 = vmatprep.subr.mxu0 0.0
    %2809 = vmatpush1.msra.mxu0 %v2448
    %2810 = vmatprep.subr.mxu0 0.0
    %2811 = vmatpush1.msra.mxu0 %v2449
    %2812 = vmatprep.subr.mxu0 0.0
    %2813 = vmatpush1.msra.mxu0 %v2450
    %2814 = vmatprep.subr.mxu0 0.0
    %2815 = vmatpush1.msra.mxu0 %v2451
    %2816 = vmatprep.mubr.f32.mxu0 %v204
    %2817 = vmatmul.mubr.f32.gmra.mrb[0].mxu0 %v203
    %v2818 = vpop.f32.mrb[0].mxu0
    %v2819 = vadd.f32 %v2749, %v2818
    %v2820 = vpop.f32.mrb[0].mxu0
    %2821 = vdwg.mxu0
    %2822 = vmatprep.subr.mxu0 0.0
    %2823 = vmatpush1.msra.mxu0 %v2452
    %2824 = vmatprep.subr.mxu0 0.0
    %2825 = vmatpush1.msra.mxu0 %v2453
    %2826 = vmatprep.subr.mxu0 0.0
    %2827 = vmatpush1.msra.mxu0 %v2454
    %2828 = vmatprep.subr.mxu0 0.0
    %2829 = vmatpush1.msra.mxu0 %v2455
    %2830 = vmatprep.subr.mxu0 0.0
    %2831 = vmatpush1.msra.mxu0 %v2456
    %2832 = vmatprep.subr.mxu0 0.0
    %2833 = vmatpush1.msra.mxu0 %v2457
    %2834 = vmatprep.subr.mxu0 0.0
    %2835 = vmatpush1.msra.mxu0 %v2458
    %2836 = vmatprep.subr.mxu0 0.0
    %2837 = vmatpush1.msra.mxu0 %v2459
    %2838 = vmatprep.subr.mxu0 0.0
    %2839 = vmatpush1.msra.mxu0 %v2460
    %2840 = vmatprep.subr.mxu0 0.0
    %2841 = vmatpush1.msra.mxu0 %v2461
    %2842 = vmatprep.subr.mxu0 0.0
    %2843 = vmatpush1.msra.mxu0 %v2462
    %2844 = vmatprep.subr.mxu0 0.0
    %2845 = vmatpush1.msra.mxu0 %v2463
    %2846 = vmatprep.subr.mxu0 0.0
    %2847 = vmatpush1.msra.mxu0 %v2464
    %2848 = vmatprep.subr.mxu0 0.0
    %2849 = vmatpush1.msra.mxu0 %v2465
    %2850 = vmatprep.subr.mxu0 0.0
    %2851 = vmatpush1.msra.mxu0 %v2466
    %2852 = vmatprep.subr.mxu0 0.0
    %2853 = vmatpush1.msra.mxu0 %v2467
    %2854 = vmatprep.subr.mxu0 0.0
    %2855 = vmatpush1.msra.mxu0 %v2468
    %2856 = vmatprep.subr.mxu0 0.0
    %2857 = vmatpush1.msra.mxu0 %v2469
    %2858 = vmatprep.subr.mxu0 0.0
    %2859 = vmatpush1.msra.mxu0 %v2470
    %2860 = vmatprep.subr.mxu0 0.0
    %2861 = vmatpush1.msra.mxu0 %v2471
    %2862 = vmatprep.subr.mxu0 0.0
    %2863 = vmatpush1.msra.mxu0 %v2472
    %2864 = vmatprep.subr.mxu0 0.0
    %2865 = vmatpush1.msra.mxu0 %v2473
    %2866 = vmatprep.subr.mxu0 0.0
    %2867 = vmatpush1.msra.mxu0 %v2474
    %2868 = vmatprep.subr.mxu0 0.0
    %2869 = vmatpush1.msra.mxu0 %v2475
    %2870 = vmatprep.subr.mxu0 0.0
    %2871 = vmatpush1.msra.mxu0 %v2476
    %2872 = vmatprep.subr.mxu0 0.0
    %2873 = vmatpush1.msra.mxu0 %v2477
    %2874 = vmatprep.subr.mxu0 0.0
    %2875 = vmatpush1.msra.mxu0 %v2478
    %2876 = vmatprep.subr.mxu0 0.0
    %2877 = vmatpush1.msra.mxu0 %v2479
    %2878 = vmatprep.subr.mxu0 0.0
    %2879 = vmatpush1.msra.mxu0 %v2480
    %2880 = vmatprep.subr.mxu0 0.0
    %2881 = vmatpush1.msra.mxu0 %v2481
    %2882 = vmatprep.subr.mxu0 0.0
    %2883 = vmatpush1.msra.mxu0 %v2482
    %2884 = vmatprep.subr.mxu0 0.0
    %2885 = vmatpush1.msra.mxu0 %v2483
    %2886 = vmatprep.mubr.f32.mxu0 %v206
    %2887 = vmatmul.mubr.f32.gmra.mrb[0].mxu0 %v205
    %v2888 = vpop.f32.mrb[0].mxu0
    %v2889 = vadd.f32 %v2819, %v2888
    %v2890 = vpop.f32.mrb[0].mxu0
    %2891 = vdwg.mxu0
    %2892 = vmatprep.subr.mxu0 0.0
    %2893 = vmatpush1.msra.mxu0 %v2484
    %2894 = vmatprep.subr.mxu0 0.0
    %2895 = vmatpush1.msra.mxu0 %v2485
    %2896 = vmatprep.subr.mxu0 0.0
    %2897 = vmatpush1.msra.mxu0 %v2486
    %2898 = vmatprep.subr.mxu0 0.0
    %2899 = vmatpush1.msra.mxu0 %v2487
    %2900 = vmatprep.subr.mxu0 0.0
    %2901 = vmatpush1.msra.mxu0 %v2488
    %2902 = vmatprep.subr.mxu0 0.0
    %2903 = vmatpush1.msra.mxu0 %v2489
    %2904 = vmatprep.subr.mxu0 0.0
    %2905 = vmatpush1.msra.mxu0 %v2490
    %2906 = vmatprep.subr.mxu0 0.0
    %2907 = vmatpush1.msra.mxu0 %v2491
    %2908 = vmatprep.subr.mxu0 0.0
    %2909 = vmatpush1.msra.mxu0 %v2492
    %2910 = vmatprep.subr.mxu0 0.0
    %2911 = vmatpush1.msra.mxu0 %v2493
    %2912 = vmatprep.subr.mxu0 0.0
    %2913 = vmatpush1.msra.mxu0 %v2494
    %2914 = vmatprep.subr.mxu0 0.0
    %2915 = vmatpush1.msra.mxu0 %v2495
    %2916 = vmatprep.subr.mxu0 0.0
    %2917 = vmatpush1.msra.mxu0 %v2496
    %2918 = vmatprep.subr.mxu0 0.0
    %2919 = vmatpush1.msra.mxu0 %v2497
    %2920 = vmatprep.subr.mxu0 0.0
    %2921 = vmatpush1.msra.mxu0 %v2498
    %2922 = vmatprep.subr.mxu0 0.0
    %2923 = vmatpush1.msra.mxu0 %v2499
    %2924 = vmatprep.subr.mxu0 0.0
    %2925 = vmatpush1.msra.mxu0 %v2500
    %2926 = vmatprep.subr.mxu0 0.0
    %2927 = vmatpush1.msra.mxu0 %v2501
    %2928 = vmatprep.subr.mxu0 0.0
    %2929 = vmatpush1.msra.mxu0 %v2502
    %2930 = vmatprep.subr.mxu0 0.0
    %2931 = vmatpush1.msra.mxu0 %v2503
    %2932 = vmatprep.subr.mxu0 0.0
    %2933 = vmatpush1.msra.mxu0 %v2504
    %2934 = vmatprep.subr.mxu0 0.0
    %2935 = vmatpush1.msra.mxu0 %v2505
    %2936 = vmatprep.subr.mxu0 0.0
    %2937 = vmatpush1.msra.mxu0 %v2506
    %2938 = vmatprep.subr.mxu0 0.0
    %2939 = vmatpush1.msra.mxu0 %v2507
    %2940 = vmatprep.subr.mxu0 0.0
    %2941 = vmatpush1.msra.mxu0 %v2508
    %2942 = vmatprep.subr.mxu0 0.0
    %2943 = vmatpush1.msra.mxu0 %v2509
    %2944 = vmatprep.subr.mxu0 0.0
    %2945 = vmatpush1.msra.mxu0 %v2510
    %2946 = vmatprep.subr.mxu0 0.0
    %2947 = vmatpush1.msra.mxu0 %v2511
    %2948 = vmatprep.subr.mxu0 0.0
    %2949 = vmatpush1.msra.mxu0 %v2512
    %2950 = vmatprep.subr.mxu0 0.0
    %2951 = vmatpush1.msra.mxu0 %v2513
    %2952 = vmatprep.subr.mxu0 0.0
    %2953 = vmatpush1.msra.mxu0 %v2514
    %2954 = vmatprep.subr.mxu0 0.0
    %2955 = vmatpush1.msra.mxu0 %v2515
    %2956 = vmatprep.mubr.f32.mxu0 %v208
    %2957 = vmatmul.mubr.f32.gmra.mrb[0].mxu0 %v207
    %v2958 = vpop.f32.mrb[0].mxu0
    %v2959 = vadd.f32 %v2889, %v2958
    %v2960 = vpop.f32.mrb[0].mxu0
    %2961 = vdwg.mxu0
    %2962 = vmatprep.subr.mxu0 0.0
    %2963 = vmatpush1.msra.mxu0 %v2516
    %2964 = vmatprep.subr.mxu0 0.0
    %2965 = vmatpush1.msra.mxu0 %v2517
    %2966 = vmatprep.subr.mxu0 0.0
    %2967 = vmatpush1.msra.mxu0 %v2518
    %2968 = vmatprep.subr.mxu0 0.0
    %2969 = vmatpush1.msra.mxu0 %v2519
    %2970 = vmatprep.subr.mxu0 0.0
    %2971 = vmatpush1.msra.mxu0 %v2520
    %2972 = vmatprep.subr.mxu0 0.0
    %2973 = vmatpush1.msra.mxu0 %v2521
    %2974 = vmatprep.subr.mxu0 0.0
    %2975 = vmatpush1.msra.mxu0 %v2522
    %2976 = vmatprep.subr.mxu0 0.0
    %2977 = vmatpush1.msra.mxu0 %v2523
    %2978 = vmatprep.subr.mxu0 0.0
    %2979 = vmatpush1.msra.mxu0 %v2524
    %2980 = vmatprep.subr.mxu0 0.0
    %2981 = vmatpush1.msra.mxu0 %v2525
    %2982 = vmatprep.subr.mxu0 0.0
    %2983 = vmatpush1.msra.mxu0 %v2526
    %2984 = vmatprep.subr.mxu0 0.0
    %2985 = vmatpush1.msra.mxu0 %v2527
    %2986 = vmatprep.subr.mxu0 0.0
    %2987 = vmatpush1.msra.mxu0 %v2528
    %2988 = vmatprep.subr.mxu0 0.0
    %2989 = vmatpush1.msra.mxu0 %v2529
    %2990 = vmatprep.subr.mxu0 0.0
    %2991 = vmatpush1.msra.mxu0 %v2530
    %2992 = vmatprep.subr.mxu0 0.0
    %2993 = vmatpush1.msra.mxu0 %v2531
    %2994 = vmatprep.subr.mxu0 0.0
    %2995 = vmatpush1.msra.mxu0 %v2532
    %2996 = vmatprep.subr.mxu0 0.0
    %2997 = vmatpush1.msra.mxu0 %v2533
    %2998 = vmatprep.subr.mxu0 0.0
    %2999 = vmatpush1.msra.mxu0 %v2534
    %3000 = vmatprep.subr.mxu0 0.0
    %3001 = vmatpush1.msra.mxu0 %v2535
    %3002 = vmatprep.subr.mxu0 0.0
    %3003 = vmatpush1.msra.mxu0 %v2536
    %3004 = vmatprep.subr.mxu0 0.0
    %3005 = vmatpush1.msra.mxu0 %v2537
    %3006 = vmatprep.subr.mxu0 0.0
    %3007 = vmatpush1.msra.mxu0 %v2538
    %3008 = vmatprep.subr.mxu0 0.0
    %3009 = vmatpush1.msra.mxu0 %v2539
    %3010 = vmatprep.subr.mxu0 0.0
    %3011 = vmatpush1.msra.mxu0 %v2540
    %3012 = vmatprep.subr.mxu0 0.0
    %3013 = vmatpush1.msra.mxu0 %v2541
    %3014 = vmatprep.subr.mxu0 0.0
    %3015 = vmatpush1.msra.mxu0 %v2542
    %3016 = vmatprep.subr.mxu0 0.0
    %3017 = vmatpush1.msra.mxu0 %v2543
    %3018 = vmatprep.subr.mxu0 0.0
    %3019 = vmatpush1.msra.mxu0 %v2544
    %3020 = vmatprep.subr.mxu0 0.0
    %3021 = vmatpush1.msra.mxu0 %v2545
    %3022 = vmatprep.subr.mxu0 0.0
    %3023 = vmatpush1.msra.mxu0 %v2546
    %3024 = vmatprep.subr.mxu0 0.0
    %3025 = vmatpush1.msra.mxu0 %v2547
    %3026 = vmatprep.mubr.f32.mxu0 %v210
    %3027 = vmatmul.mubr.f32.gmra.mrb[0].mxu0 %v209
    %v3028 = vpop.f32.mrb[0].mxu0
    %v3029 = vadd.f32 %v2959, %v3028
    %v3030 = vpop.f32.mrb[0].mxu0
    %3031 = vdwg.mxu0
    %3032 = vmatprep.subr.mxu0 0.0
    %3033 = vmatpush1.msra.mxu0 %v2548
    %3034 = vmatprep.subr.mxu0 0.0
    %3035 = vmatpush1.msra.mxu0 %v2549
    %3036 = vmatprep.subr.mxu0 0.0
    %3037 = vmatpush1.msra.mxu0 %v2550
    %3038 = vmatprep.subr.mxu0 0.0
    %3039 = vmatpush1.msra.mxu0 %v2551
    %3040 = vmatprep.subr.mxu0 0.0
    %3041 = vmatpush1.msra.mxu0 %v2552
    %3042 = vmatprep.subr.mxu0 0.0
    %3043 = vmatpush1.msra.mxu0 %v2553
    %3044 = vmatprep.subr.mxu0 0.0
    %3045 = vmatpush1.msra.mxu0 %v2554
    %3046 = vmatprep.subr.mxu0 0.0
    %3047 = vmatpush1.msra.mxu0 %v2555
    %3048 = vmatprep.subr.mxu0 0.0
    %3049 = vmatpush1.msra.mxu0 %v2556
    %3050 = vmatprep.subr.mxu0 0.0
    %3051 = vmatpush1.msra.mxu0 %v2557
    %3052 = vmatprep.subr.mxu0 0.0
    %3053 = vmatpush1.msra.mxu0 %v2558
    %3054 = vmatprep.subr.mxu0 0.0
    %3055 = vmatpush1.msra.mxu0 %v2559
    %3056 = vmatprep.subr.mxu0 0.0
    %3057 = vmatpush1.msra.mxu0 %v2560
    %3058 = vmatprep.subr.mxu0 0.0
    %3059 = vmatpush1.msra.mxu0 %v2561
    %3060 = vmatprep.subr.mxu0 0.0
    %3061 = vmatpush1.msra.mxu0 %v2562
    %3062 = vmatprep.subr.mxu0 0.0
    %3063 = vmatpush1.msra.mxu0 %v2563
    %3064 = vmatprep.subr.mxu0 0.0
    %3065 = vmatpush1.msra.mxu0 %v2564
    %3066 = vmatprep.subr.mxu0 0.0
    %3067 = vmatpush1.msra.mxu0 %v2565
    %3068 = vmatprep.subr.mxu0 0.0
    %3069 = vmatpush1.msra.mxu0 %v2566
    %3070 = vmatprep.subr.mxu0 0.0
    %3071 = vmatpush1.msra.mxu0 %v2567
    %3072 = vmatprep.subr.mxu0 0.0
    %3073 = vmatpush1.msra.mxu0 %v2568
    %3074 = vmatprep.subr.mxu0 0.0
    %3075 = vmatpush1.msra.mxu0 %v2569
    %3076 = vmatprep.subr.mxu0 0.0
    %3077 = vmatpush1.msra.mxu0 %v2570
    %3078 = vmatprep.subr.mxu0 0.0
    %3079 = vmatpush1.msra.mxu0 %v2571
    %3080 = vmatprep.subr.mxu0 0.0
    %3081 = vmatpush1.msra.mxu0 %v2572
    %3082 = vmatprep.subr.mxu0 0.0
    %3083 = vmatpush1.msra.mxu0 %v2573
    %3084 = vmatprep.subr.mxu0 0.0
    %3085 = vmatpush1.msra.mxu0 %v2574
    %3086 = vmatprep.subr.mxu0 0.0
    %3087 = vmatpush1.msra.mxu0 %v2575
    %3088 = vmatprep.subr.mxu0 0.0
    %3089 = vmatpush1.msra.mxu0 %v2576
    %3090 = vmatprep.subr.mxu0 0.0
    %3091 = vmatpush1.msra.mxu0 %v2577
    %3092 = vmatprep.subr.mxu0 0.0
    %3093 = vmatpush1.msra.mxu0 %v2578
    %3094 = vmatprep.subr.mxu0 0.0
    %3095 = vmatpush1.msra.mxu0 %v2579
    %3096 = vmatprep.mubr.f32.mxu0 %v212
    %3097 = vmatmul.mubr.f32.gmra.mrb[0].mxu0 %v211
    %v3098 = vpop.f32.mrb[0].mxu0
    %v3099 = vadd.f32 %v3029, %v3098
    %v3100 = vpop.f32.mrb[0].mxu0
    %3101 = vdwg.mxu0
    %3102 = vmatprep.subr.mxu0 0.0
    %3103 = vmatpush1.msra.mxu0 %v2580
    %3104 = vmatprep.subr.mxu0 0.0
    %3105 = vmatpush1.msra.mxu0 %v2581
    %3106 = vmatprep.subr.mxu0 0.0
    %3107 = vmatpush1.msra.mxu0 %v2582
    %3108 = vmatprep.subr.mxu0 0.0
    %3109 = vmatpush1.msra.mxu0 %v2583
    %3110 = vmatprep.subr.mxu0 0.0
    %3111 = vmatpush1.msra.mxu0 %v2584
    %3112 = vmatprep.subr.mxu0 0.0
    %3113 = vmatpush1.msra.mxu0 %v2585
    %3114 = vmatprep.subr.mxu0 0.0
    %3115 = vmatpush1.msra.mxu0 %v2586
    %3116 = vmatprep.subr.mxu0 0.0
    %3117 = vmatpush1.msra.mxu0 %v2587
    %3118 = vmatprep.subr.mxu0 0.0
    %3119 = vmatpush1.msra.mxu0 %v2588
    %3120 = vmatprep.subr.mxu0 0.0
    %3121 = vmatpush1.msra.mxu0 %v2589
    %3122 = vmatprep.subr.mxu0 0.0
    %3123 = vmatpush1.msra.mxu0 %v2590
    %3124 = vmatprep.subr.mxu0 0.0
    %3125 = vmatpush1.msra.mxu0 %v2591
    %3126 = vmatprep.subr.mxu0 0.0
    %3127 = vmatpush1.msra.mxu0 %v2592
    %3128 = vmatprep.subr.mxu0 0.0
    %3129 = vmatpush1.msra.mxu0 %v2593
    %3130 = vmatprep.subr.mxu0 0.0
    %3131 = vmatpush1.msra.mxu0 %v2594
    %3132 = vmatprep.subr.mxu0 0.0
    %3133 = vmatpush1.msra.mxu0 %v2595
    %3134 = vmatprep.subr.mxu0 0.0
    %3135 = vmatpush1.msra.mxu0 %v2596
    %3136 = vmatprep.subr.mxu0 0.0
    %3137 = vmatpush1.msra.mxu0 %v2597
    %3138 = vmatprep.subr.mxu0 0.0
    %3139 = vmatpush1.msra.mxu0 %v2598
    %3140 = vmatprep.subr.mxu0 0.0
    %3141 = vmatpush1.msra.mxu0 %v2599
    %3142 = vmatprep.subr.mxu0 0.0
    %3143 = vmatpush1.msra.mxu0 %v2600
    %3144 = vmatprep.subr.mxu0 0.0
    %3145 = vmatpush1.msra.mxu0 %v2601
    %3146 = vmatprep.subr.mxu0 0.0
    %3147 = vmatpush1.msra.mxu0 %v2602
    %3148 = vmatprep.subr.mxu0 0.0
    %3149 = vmatpush1.msra.mxu0 %v2603
    %3150 = vmatprep.subr.mxu0 0.0
    %3151 = vmatpush1.msra.mxu0 %v2604
    %3152 = vmatprep.subr.mxu0 0.0
    %3153 = vmatpush1.msra.mxu0 %v2605
    %3154 = vmatprep.subr.mxu0 0.0
    %3155 = vmatpush1.msra.mxu0 %v2606
    %3156 = vmatprep.subr.mxu0 0.0
    %3157 = vmatpush1.msra.mxu0 %v2607
    %3158 = vmatprep.subr.mxu0 0.0
    %3159 = vmatpush1.msra.mxu0 %v2608
    %3160 = vmatprep.subr.mxu0 0.0
    %3161 = vmatpush1.msra.mxu0 %v2609
    %3162 = vmatprep.subr.mxu0 0.0
    %3163 = vmatpush1.msra.mxu0 %v2610
    %3164 = vmatprep.subr.mxu0 0.0
    %3165 = vmatpush1.msra.mxu0 %v2611
    %3166 = vmatprep.mubr.f32.mxu0 %v214
    %3167 = vmatmul.mubr.f32.gmra.mrb[0].mxu0 %v213
    %v3168 = vpop.f32.mrb[0].mxu0
    %v3169 = vadd.f32 %v3099, %v3168
    %v3170 = vpop.f32.mrb[0].mxu0
    %3171 = vdwg.mxu0
    %v3172 = vld [vmem:[%s9] sm:$0x1]
    %v3174 = vlaneseq
    %v3175 = vshrl.u32 %v3174, 7
    %v3176 = vsub.s32 0, %v3175
    %v3177 = vrot.slane %v3172, %v3176
    %3179 = vmatprep.subr.mxu0 0.0
    %3180 = vmatpush1.msra.mxu0 %v500
    %3181 = vmatprep.subr.mxu0 0.0
    %3182 = vmatpush1.msra.mxu0 %v501
    %3183 = vmatprep.subr.mxu0 0.0
    %3184 = vmatpush1.msra.mxu0 %v502
    %3185 = vmatprep.subr.mxu0 0.0
    %3186 = vmatpush1.msra.mxu0 %v503
    %3187 = vmatprep.subr.mxu0 0.0
    %3188 = vmatpush1.msra.mxu0 %v504
    %3189 = vmatprep.subr.mxu0 0.0
    %3190 = vmatpush1.msra.mxu0 %v505
    %3191 = vmatprep.subr.mxu0 0.0
    %3192 = vmatpush1.msra.mxu0 %v506
    %3193 = vmatprep.subr.mxu0 0.0
    %3194 = vmatpush1.msra.mxu0 %v507
    %3195 = vmatprep.subr.mxu0 0.0
    %3196 = vmatpush1.msra.mxu0 %v508
    %3197 = vmatprep.subr.mxu0 0.0
    %3198 = vmatpush1.msra.mxu0 %v509
    %3199 = vmatprep.subr.mxu0 0.0
    %3200 = vmatpush1.msra.mxu0 %v510
    %3201 = vmatprep.subr.mxu0 0.0
    %3202 = vmatpush1.msra.mxu0 %v511
    %3203 = vmatprep.subr.mxu0 0.0
    %3204 = vmatpush1.msra.mxu0 %v512
    %3205 = vmatprep.subr.mxu0 0.0
    %3206 = vmatpush1.msra.mxu0 %v513
    %3207 = vmatprep.subr.mxu0 0.0
    %3208 = vmatpush1.msra.mxu0 %v514
    %3209 = vmatprep.subr.mxu0 0.0
    %3210 = vmatpush1.msra.mxu0 %v515
    %3211 = vmatprep.subr.mxu0 0.0
    %3212 = vmatpush1.msra.mxu0 0.0
    %3213 = vmatprep.subr.mxu0 0.0
    %3214 = vmatpush1.msra.mxu0 0.0
    %3215 = vmatprep.subr.mxu0 0.0
    %3216 = vmatpush1.msra.mxu0 0.0
    %3217 = vmatprep.subr.mxu0 0.0
    %3218 = vmatpush1.msra.mxu0 0.0
    %3219 = vmatprep.subr.mxu0 0.0
    %3220 = vmatpush1.msra.mxu0 0.0
    %3221 = vmatprep.subr.mxu0 0.0
    %3222 = vmatpush1.msra.mxu0 0.0
    %3223 = vmatprep.subr.mxu0 0.0
    %3224 = vmatpush1.msra.mxu0 0.0
    %3225 = vmatprep.subr.mxu0 0.0
    %3226 = vmatpush1.msra.mxu0 0.0
    %3227 = vmatprep.subr.mxu0 0.0
    %3228 = vmatpush1.msra.mxu0 0.0
    %3229 = vmatprep.subr.mxu0 0.0
    %3230 = vmatpush1.msra.mxu0 0.0
    %3231 = vmatprep.subr.mxu0 0.0
    %3232 = vmatpush1.msra.mxu0 0.0
    %3233 = vmatprep.subr.mxu0 0.0
    %3234 = vmatpush1.msra.mxu0 0.0
    %3235 = vmatprep.subr.mxu0 0.0
    %3236 = vmatpush1.msra.mxu0 0.0
    %3237 = vmatprep.subr.mxu0 0.0
    %3238 = vmatpush1.msra.mxu0 0.0
    %3239 = vmatprep.subr.mxu0 0.0
    %3240 = vmatpush1.msra.mxu0 0.0
    %3241 = vmatprep.subr.mxu0 0.0
    %3242 = vmatpush1.msra.mxu0 0.0
    %3243 = vmatprep.mubr.f32.mxu0 0.0
    %3244 = vmatmul.mubr.f32.gmra.mrb[0].mxu0 %v3169
    %v3245 = vpop.f32.mrb[0].mxu0
    %v3246 = vadd.f32 %v3177, %v3245
    %v3247 = vpop.f32.mrb[0].mxu0
    %3248 = vdwg.mxu0
    %v3249 = vsel %vm215, %v3246, -1e+30
    %3250 = vmax.xlane.f32.xlu0 %v3249
    %v3251 = vpop.xlane.xlu0 %3250
    %v3252 = vsub.f32 %v3249, %v3251
    %v3253 = vmul.f32 %v3252, 1.442695
    %v3254 = vpow.pop %v3253
    %v3255 = vsel %vm215, %v3254, 0.0
    %3256 = vadd.xlane.f32.xlu0 %v3255
    %v3257 = vpop.xlane.xlu0 %3256
    %v3258 = vrcp.pop %v3257
    %v3259 = vmul.f32 %v3255, %v3258
    %v3260 = vsub.f32 %v3259, %v483
    %v3261 = vmul.f32 %v3260, 0.125
    %v3262 = vrot.slane %v3261, 4
    %v3263 = vadd.f32 %v3261, %v3262
    %v3264 = vrot.slane %v3263, 2
    %v3265 = vadd.f32 %v3263, %v3264
    %v3266 = vrot.slane %v3265, 1
    %v3267 = vadd.f32 %v3265, %v3266
    %3268 = vmatprep.subr.mxu0 0.0
    %3269 = vmatpush1.xpose.msra.mxu0 %v500
    %3270 = vmatprep.subr.mxu0 0.0
    %3271 = vmatpush1.xpose.msra.mxu0 %v501
    %3272 = vmatprep.subr.mxu0 0.0
    %3273 = vmatpush1.xpose.msra.mxu0 %v502
    %3274 = vmatprep.subr.mxu0 0.0
    %3275 = vmatpush1.xpose.msra.mxu0 %v503
    %3276 = vmatprep.subr.mxu0 0.0
    %3277 = vmatpush1.xpose.msra.mxu0 %v504
    %3278 = vmatprep.subr.mxu0 0.0
    %3279 = vmatpush1.xpose.msra.mxu0 %v505
    %3280 = vmatprep.subr.mxu0 0.0
    %3281 = vmatpush1.xpose.msra.mxu0 %v506
    %3282 = vmatprep.subr.mxu0 0.0
    %3283 = vmatpush1.xpose.msra.mxu0 %v507
    %3284 = vmatprep.subr.mxu0 0.0
    %3285 = vmatpush1.xpose.msra.mxu0 %v508
    %3286 = vmatprep.subr.mxu0 0.0
    %3287 = vmatpush1.xpose.msra.mxu0 %v509
    %3288 = vmatprep.subr.mxu0 0.0
    %3289 = vmatpush1.xpose.msra.mxu0 %v510
    %3290 = vmatprep.subr.mxu0 0.0
    %3291 = vmatpush1.xpose.msra.mxu0 %v511
    %3292 = vmatprep.subr.mxu0 0.0
    %3293 = vmatpush1.xpose.msra.mxu0 %v512
    %3294 = vmatprep.subr.mxu0 0.0
    %3295 = vmatpush1.xpose.msra.mxu0 %v513
    %3296 = vmatprep.subr.mxu0 0.0
    %3297 = vmatpush1.xpose.msra.mxu0 %v514
    %3298 = vmatprep.subr.mxu0 0.0
    %3299 = vmatpush1.xpose.msra.mxu0 %v515
    %3300 = vmatprep.subr.mxu0 0.0
    %3301 = vmatpush1.xpose.msra.mxu0 0.0
    %3302 = vmatprep.subr.mxu0 0.0
    %3303 = vmatpush1.xpose.msra.mxu0 0.0
    %3304 = vmatprep.subr.mxu0 0.0
    %3305 = vmatpush1.xpose.msra.mxu0 0.0
    %3306 = vmatprep.subr.mxu0 0.0
    %3307 = vmatpush1.xpose.msra.mxu0 0.0
    %3308 = vmatprep.subr.mxu0 0.0
    %3309 = vmatpush1.xpose.msra.mxu0 0.0
    %3310 = vmatprep.subr.mxu0 0.0
    %3311 = vmatpush1.xpose.msra.mxu0 0.0
    %3312 = vmatprep.subr.mxu0 0.0
    %3313 = vmatpush1.xpose.msra.mxu0 0.0
    %3314 = vmatprep.subr.mxu0 0.0
    %3315 = vmatpush1.xpose.msra.mxu0 0.0
    %3316 = vmatprep.subr.mxu0 0.0
    %3317 = vmatpush1.xpose.msra.mxu0 0.0
    %3318 = vmatprep.subr.mxu0 0.0
    %3319 = vmatpush1.xpose.msra.mxu0 0.0
    %3320 = vmatprep.subr.mxu0 0.0
    %3321 = vmatpush1.xpose.msra.mxu0 0.0
    %3322 = vmatprep.subr.mxu0 0.0
    %3323 = vmatpush1.xpose.msra.mxu0 0.0
    %3324 = vmatprep.subr.mxu0 0.0
    %3325 = vmatpush1.xpose.msra.mxu0 0.0
    %3326 = vmatprep.subr.mxu0 0.0
    %3327 = vmatpush1.xpose.msra.mxu0 0.0
    %3328 = vmatprep.subr.mxu0 0.0
    %3329 = vmatpush1.xpose.msra.mxu0 0.0
    %3330 = vmatprep.subr.mxu0 0.0
    %3331 = vmatpush1.xpose.msra.mxu0 0.0
    %3332 = vmatprep.mubr.f32.mxu0 0.0
    %3333 = vmatmul.mubr.f32.gmra.mrb[0].mxu0 %v3261
    %v3334 = vpop.f32.mrb[0].mxu0
    %v3335 = vadd.f32 0.0, %v3334
    %v3336 = vpop.f32.mrb[0].mxu0
    %3337 = vdwg.mxu0
    %3338 = vxpose.xlu0.b32.start [1/16] %v199, 128
    %3339 = vxpose.xlu0.b32.cont [2/16] 0.0, 128
    %3340 = vxpose.xlu0.b32.cont [3/16] 0.0, 128
    %3341 = vxpose.xlu0.b32.cont [4/16] 0.0, 128
    %3342 = vxpose.xlu0.b32.cont [5/16] 0.0, 128
    %3343 = vxpose.xlu0.b32.cont [6/16] 0.0, 128
    %3344 = vxpose.xlu0.b32.cont [7/16] 0.0, 128
    %3345 = vxpose.xlu0.b32.cont [8/16] 0.0, 128
    %3346 = vxpose.xlu0.b32.cont [9/16] 0.0, 128
    %3347 = vxpose.xlu0.b32.cont [10/16] 0.0, 128
    %3348 = vxpose.xlu0.b32.cont [11/16] 0.0, 128
    %3349 = vxpose.xlu0.b32.cont [12/16] 0.0, 128
    %3350 = vxpose.xlu0.b32.cont [13/16] 0.0, 128
    %3351 = vxpose.xlu0.b32.cont [14/16] 0.0, 128
    %3352 = vxpose.xlu0.b32.cont [15/16] 0.0, 128
    %3353 = vxpose.xlu0.b32.end [16/16] 0.0, 128
    %v3354 = vpop.trf.xlu0
    %v3355 = vpop.trf.xlu0
    %v3356 = vpop.trf.xlu0
    %v3357 = vpop.trf.xlu0
    %v3358 = vpop.trf.xlu0
    %v3359 = vpop.trf.xlu0
    %v3360 = vpop.trf.xlu0
    %v3361 = vpop.trf.xlu0
    %v3362 = vpop.trf.xlu0
    %v3363 = vpop.trf.xlu0
    %v3364 = vpop.trf.xlu0
    %v3365 = vpop.trf.xlu0
    %v3366 = vpop.trf.xlu0
    %v3367 = vpop.trf.xlu0
    %v3368 = vpop.trf.xlu0
    %v3369 = vpop.trf.xlu0
    %3370 = vxpose.xlu0.b32.start [1/16] %v200, 128
    %3371 = vxpose.xlu0.b32.cont [2/16] 0.0, 128
    %3372 = vxpose.xlu0.b32.cont [3/16] 0.0, 128
    %3373 = vxpose.xlu0.b32.cont [4/16] 0.0, 128
    %3374 = vxpose.xlu0.b32.cont [5/16] 0.0, 128
    %3375 = vxpose.xlu0.b32.cont [6/16] 0.0, 128
    %3376 = vxpose.xlu0.b32.cont [7/16] 0.0, 128
    %3377 = vxpose.xlu0.b32.cont [8/16] 0.0, 128
    %3378 = vxpose.xlu0.b32.cont [9/16] 0.0, 128
    %3379 = vxpose.xlu0.b32.cont [10/16] 0.0, 128
    %3380 = vxpose.xlu0.b32.cont [11/16] 0.0, 128
    %3381 = vxpose.xlu0.b32.cont [12/16] 0.0, 128
    %3382 = vxpose.xlu0.b32.cont [13/16] 0.0, 128
    %3383 = vxpose.xlu0.b32.cont [14/16] 0.0, 128
    %3384 = vxpose.xlu0.b32.cont [15/16] 0.0, 128
    %3385 = vxpose.xlu0.b32.end [16/16] 0.0, 128
    %v3386 = vpop.trf.xlu0
    %v3387 = vpop.trf.xlu0
    %v3388 = vpop.trf.xlu0
    %v3389 = vpop.trf.xlu0
    %v3390 = vpop.trf.xlu0
    %v3391 = vpop.trf.xlu0
    %v3392 = vpop.trf.xlu0
    %v3393 = vpop.trf.xlu0
    %v3394 = vpop.trf.xlu0
    %v3395 = vpop.trf.xlu0
    %v3396 = vpop.trf.xlu0
    %v3397 = vpop.trf.xlu0
    %v3398 = vpop.trf.xlu0
    %v3399 = vpop.trf.xlu0
    %v3400 = vpop.trf.xlu0
    %v3401 = vpop.trf.xlu0
    %3402 = vxpose.xlu0.b32.start [1/16] %v201, 128
    %3403 = vxpose.xlu0.b32.cont [2/16] 0.0, 128
    %3404 = vxpose.xlu0.b32.cont [3/16] 0.0, 128
    %3405 = vxpose.xlu0.b32.cont [4/16] 0.0, 128
    %3406 = vxpose.xlu0.b32.cont [5/16] 0.0, 128
    %3407 = vxpose.xlu0.b32.cont [6/16] 0.0, 128
    %3408 = vxpose.xlu0.b32.cont [7/16] 0.0, 128
    %3409 = vxpose.xlu0.b32.cont [8/16] 0.0, 128
    %3410 = vxpose.xlu0.b32.cont [9/16] 0.0, 128
    %3411 = vxpose.xlu0.b32.cont [10/16] 0.0, 128
    %3412 = vxpose.xlu0.b32.cont [11/16] 0.0, 128
    %3413 = vxpose.xlu0.b32.cont [12/16] 0.0, 128
    %3414 = vxpose.xlu0.b32.cont [13/16] 0.0, 128
    %3415 = vxpose.xlu0.b32.cont [14/16] 0.0, 128
    %3416 = vxpose.xlu0.b32.cont [15/16] 0.0, 128
    %3417 = vxpose.xlu0.b32.end [16/16] 0.0, 128
    %v3418 = vpop.trf.xlu0
    %v3419 = vpop.trf.xlu0
    %v3420 = vpop.trf.xlu0
    %v3421 = vpop.trf.xlu0
    %v3422 = vpop.trf.xlu0
    %v3423 = vpop.trf.xlu0
    %v3424 = vpop.trf.xlu0
    %v3425 = vpop.trf.xlu0
    %v3426 = vpop.trf.xlu0
    %v3427 = vpop.trf.xlu0
    %v3428 = vpop.trf.xlu0
    %v3429 = vpop.trf.xlu0
    %v3430 = vpop.trf.xlu0
    %v3431 = vpop.trf.xlu0
    %v3432 = vpop.trf.xlu0
    %v3433 = vpop.trf.xlu0
    %3434 = vxpose.xlu0.b32.start [1/16] %v202, 128
    %3435 = vxpose.xlu0.b32.cont [2/16] 0.0, 128
    %3436 = vxpose.xlu0.b32.cont [3/16] 0.0, 128
    %3437 = vxpose.xlu0.b32.cont [4/16] 0.0, 128
    %3438 = vxpose.xlu0.b32.cont [5/16] 0.0, 128
    %3439 = vxpose.xlu0.b32.cont [6/16] 0.0, 128
    %3440 = vxpose.xlu0.b32.cont [7/16] 0.0, 128
    %3441 = vxpose.xlu0.b32.cont [8/16] 0.0, 128
    %3442 = vxpose.xlu0.b32.cont [9/16] 0.0, 128
    %3443 = vxpose.xlu0.b32.cont [10/16] 0.0, 128
    %3444 = vxpose.xlu0.b32.cont [11/16] 0.0, 128
    %3445 = vxpose.xlu0.b32.cont [12/16] 0.0, 128
    %3446 = vxpose.xlu0.b32.cont [13/16] 0.0, 128
    %3447 = vxpose.xlu0.b32.cont [14/16] 0.0, 128
    %3448 = vxpose.xlu0.b32.cont [15/16] 0.0, 128
    %3449 = vxpose.xlu0.b32.end [16/16] 0.0, 128
    %v3450 = vpop.trf.xlu0
    %v3451 = vpop.trf.xlu0
    %v3452 = vpop.trf.xlu0
    %v3453 = vpop.trf.xlu0
    %v3454 = vpop.trf.xlu0
    %v3455 = vpop.trf.xlu0
    %v3456 = vpop.trf.xlu0
    %v3457 = vpop.trf.xlu0
    %v3458 = vpop.trf.xlu0
    %v3459 = vpop.trf.xlu0
    %v3460 = vpop.trf.xlu0
    %v3461 = vpop.trf.xlu0
    %v3462 = vpop.trf.xlu0
    %v3463 = vpop.trf.xlu0
    %v3464 = vpop.trf.xlu0
    %v3465 = vpop.trf.xlu0
    %3466 = vxpose.xlu0.b32.start [1/16] %v203, 128
    %3467 = vxpose.xlu0.b32.cont [2/16] 0.0, 128
    %3468 = vxpose.xlu0.b32.cont [3/16] 0.0, 128
    %3469 = vxpose.xlu0.b32.cont [4/16] 0.0, 128
    %3470 = vxpose.xlu0.b32.cont [5/16] 0.0, 128
    %3471 = vxpose.xlu0.b32.cont [6/16] 0.0, 128
    %3472 = vxpose.xlu0.b32.cont [7/16] 0.0, 128
    %3473 = vxpose.xlu0.b32.cont [8/16] 0.0, 128
    %3474 = vxpose.xlu0.b32.cont [9/16] 0.0, 128
    %3475 = vxpose.xlu0.b32.cont [10/16] 0.0, 128
    %3476 = vxpose.xlu0.b32.cont [11/16] 0.0, 128
    %3477 = vxpose.xlu0.b32.cont [12/16] 0.0, 128
    %3478 = vxpose.xlu0.b32.cont [13/16] 0.0, 128
    %3479 = vxpose.xlu0.b32.cont [14/16] 0.0, 128
    %3480 = vxpose.xlu0.b32.cont [15/16] 0.0, 128
    %3481 = vxpose.xlu0.b32.end [16/16] 0.0, 128
    %v3482 = vpop.trf.xlu0
    %v3483 = vpop.trf.xlu0
    %v3484 = vpop.trf.xlu0
    %v3485 = vpop.trf.xlu0
    %v3486 = vpop.trf.xlu0
    %v3487 = vpop.trf.xlu0
    %v3488 = vpop.trf.xlu0
    %v3489 = vpop.trf.xlu0
    %v3490 = vpop.trf.xlu0
    %v3491 = vpop.trf.xlu0
    %v3492 = vpop.trf.xlu0
    %v3493 = vpop.trf.xlu0
    %v3494 = vpop.trf.xlu0
    %v3495 = vpop.trf.xlu0
    %v3496 = vpop.trf.xlu0
    %v3497 = vpop.trf.xlu0
    %3498 = vxpose.xlu0.b32.start [1/16] %v204, 128
    %3499 = vxpose.xlu0.b32.cont [2/16] 0.0, 128
    %3500 = vxpose.xlu0.b32.cont [3/16] 0.0, 128
    %3501 = vxpose.xlu0.b32.cont [4/16] 0.0, 128
    %3502 = vxpose.xlu0.b32.cont [5/16] 0.0, 128
    %3503 = vxpose.xlu0.b32.cont [6/16] 0.0, 128
    %3504 = vxpose.xlu0.b32.cont [7/16] 0.0, 128
    %3505 = vxpose.xlu0.b32.cont [8/16] 0.0, 128
    %3506 = vxpose.xlu0.b32.cont [9/16] 0.0, 128
    %3507 = vxpose.xlu0.b32.cont [10/16] 0.0, 128
    %3508 = vxpose.xlu0.b32.cont [11/16] 0.0, 128
    %3509 = vxpose.xlu0.b32.cont [12/16] 0.0, 128
    %3510 = vxpose.xlu0.b32.cont [13/16] 0.0, 128
    %3511 = vxpose.xlu0.b32.cont [14/16] 0.0, 128
    %3512 = vxpose.xlu0.b32.cont [15/16] 0.0, 128
    %3513 = vxpose.xlu0.b32.end [16/16] 0.0, 128
    %v3514 = vpop.trf.xlu0
    %v3515 = vpop.trf.xlu0
    %v3516 = vpop.trf.xlu0
    %v3517 = vpop.trf.xlu0
    %v3518 = vpop.trf.xlu0
    %v3519 = vpop.trf.xlu0
    %v3520 = vpop.trf.xlu0
    %v3521 = vpop.trf.xlu0
    %v3522 = vpop.trf.xlu0
    %v3523 = vpop.trf.xlu0
    %v3524 = vpop.trf.xlu0
    %v3525 = vpop.trf.xlu0
    %v3526 = vpop.trf.xlu0
    %v3527 = vpop.trf.xlu0
    %v3528 = vpop.trf.xlu0
    %v3529 = vpop.trf.xlu0
    %3530 = vxpose.xlu0.b32.start [1/16] %v205, 128
    %3531 = vxpose.xlu0.b32.cont [2/16] 0.0, 128
    %3532 = vxpose.xlu0.b32.cont [3/16] 0.0, 128
    %3533 = vxpose.xlu0.b32.cont [4/16] 0.0, 128
    %3534 = vxpose.xlu0.b32.cont [5/16] 0.0, 128
    %3535 = vxpose.xlu0.b32.cont [6/16] 0.0, 128
    %3536 = vxpose.xlu0.b32.cont [7/16] 0.0, 128
    %3537 = vxpose.xlu0.b32.cont [8/16] 0.0, 128
    %3538 = vxpose.xlu0.b32.cont [9/16] 0.0, 128
    %3539 = vxpose.xlu0.b32.cont [10/16] 0.0, 128
    %3540 = vxpose.xlu0.b32.cont [11/16] 0.0, 128
    %3541 = vxpose.xlu0.b32.cont [12/16] 0.0, 128
    %3542 = vxpose.xlu0.b32.cont [13/16] 0.0, 128
    %3543 = vxpose.xlu0.b32.cont [14/16] 0.0, 128
    %3544 = vxpose.xlu0.b32.cont [15/16] 0.0, 128
    %3545 = vxpose.xlu0.b32.end [16/16] 0.0, 128
    %v3546 = vpop.trf.xlu0
    %v3547 = vpop.trf.xlu0
    %v3548 = vpop.trf.xlu0
    %v3549 = vpop.trf.xlu0
    %v3550 = vpop.trf.xlu0
    %v3551 = vpop.trf.xlu0
    %v3552 = vpop.trf.xlu0
    %v3553 = vpop.trf.xlu0
    %v3554 = vpop.trf.xlu0
    %v3555 = vpop.trf.xlu0
    %v3556 = vpop.trf.xlu0
    %v3557 = vpop.trf.xlu0
    %v3558 = vpop.trf.xlu0
    %v3559 = vpop.trf.xlu0
    %v3560 = vpop.trf.xlu0
    %v3561 = vpop.trf.xlu0
    %3562 = vxpose.xlu0.b32.start [1/16] %v206, 128
    %3563 = vxpose.xlu0.b32.cont [2/16] 0.0, 128
    %3564 = vxpose.xlu0.b32.cont [3/16] 0.0, 128
    %3565 = vxpose.xlu0.b32.cont [4/16] 0.0, 128
    %3566 = vxpose.xlu0.b32.cont [5/16] 0.0, 128
    %3567 = vxpose.xlu0.b32.cont [6/16] 0.0, 128
    %3568 = vxpose.xlu0.b32.cont [7/16] 0.0, 128
    %3569 = vxpose.xlu0.b32.cont [8/16] 0.0, 128
    %3570 = vxpose.xlu0.b32.cont [9/16] 0.0, 128
    %3571 = vxpose.xlu0.b32.cont [10/16] 0.0, 128
    %3572 = vxpose.xlu0.b32.cont [11/16] 0.0, 128
    %3573 = vxpose.xlu0.b32.cont [12/16] 0.0, 128
    %3574 = vxpose.xlu0.b32.cont [13/16] 0.0, 128
    %3575 = vxpose.xlu0.b32.cont [14/16] 0.0, 128
    %3576 = vxpose.xlu0.b32.cont [15/16] 0.0, 128
    %3577 = vxpose.xlu0.b32.end [16/16] 0.0, 128
    %v3578 = vpop.trf.xlu0
    %v3579 = vpop.trf.xlu0
    %v3580 = vpop.trf.xlu0
    %v3581 = vpop.trf.xlu0
    %v3582 = vpop.trf.xlu0
    %v3583 = vpop.trf.xlu0
    %v3584 = vpop.trf.xlu0
    %v3585 = vpop.trf.xlu0
    %v3586 = vpop.trf.xlu0
    %v3587 = vpop.trf.xlu0
    %v3588 = vpop.trf.xlu0
    %v3589 = vpop.trf.xlu0
    %v3590 = vpop.trf.xlu0
    %v3591 = vpop.trf.xlu0
    %v3592 = vpop.trf.xlu0
    %v3593 = vpop.trf.xlu0
    %3594 = vxpose.xlu0.b32.start [1/16] %v207, 128
    %3595 = vxpose.xlu0.b32.cont [2/16] 0.0, 128
    %3596 = vxpose.xlu0.b32.cont [3/16] 0.0, 128
    %3597 = vxpose.xlu0.b32.cont [4/16] 0.0, 128
    %3598 = vxpose.xlu0.b32.cont [5/16] 0.0, 128
    %3599 = vxpose.xlu0.b32.cont [6/16] 0.0, 128
    %3600 = vxpose.xlu0.b32.cont [7/16] 0.0, 128
    %3601 = vxpose.xlu0.b32.cont [8/16] 0.0, 128
    %3602 = vxpose.xlu0.b32.cont [9/16] 0.0, 128
    %3603 = vxpose.xlu0.b32.cont [10/16] 0.0, 128
    %3604 = vxpose.xlu0.b32.cont [11/16] 0.0, 128
    %3605 = vxpose.xlu0.b32.cont [12/16] 0.0, 128
    %3606 = vxpose.xlu0.b32.cont [13/16] 0.0, 128
    %3607 = vxpose.xlu0.b32.cont [14/16] 0.0, 128
    %3608 = vxpose.xlu0.b32.cont [15/16] 0.0, 128
    %3609 = vxpose.xlu0.b32.end [16/16] 0.0, 128
    %v3610 = vpop.trf.xlu0
    %v3611 = vpop.trf.xlu0
    %v3612 = vpop.trf.xlu0
    %v3613 = vpop.trf.xlu0
    %v3614 = vpop.trf.xlu0
    %v3615 = vpop.trf.xlu0
    %v3616 = vpop.trf.xlu0
    %v3617 = vpop.trf.xlu0
    %v3618 = vpop.trf.xlu0
    %v3619 = vpop.trf.xlu0
    %v3620 = vpop.trf.xlu0
    %v3621 = vpop.trf.xlu0
    %v3622 = vpop.trf.xlu0
    %v3623 = vpop.trf.xlu0
    %v3624 = vpop.trf.xlu0
    %v3625 = vpop.trf.xlu0
    %3626 = vxpose.xlu0.b32.start [1/16] %v208, 128
    %3627 = vxpose.xlu0.b32.cont [2/16] 0.0, 128
    %3628 = vxpose.xlu0.b32.cont [3/16] 0.0, 128
    %3629 = vxpose.xlu0.b32.cont [4/16] 0.0, 128
    %3630 = vxpose.xlu0.b32.cont [5/16] 0.0, 128
    %3631 = vxpose.xlu0.b32.cont [6/16] 0.0, 128
    %3632 = vxpose.xlu0.b32.cont [7/16] 0.0, 128
    %3633 = vxpose.xlu0.b32.cont [8/16] 0.0, 128
    %3634 = vxpose.xlu0.b32.cont [9/16] 0.0, 128
    %3635 = vxpose.xlu0.b32.cont [10/16] 0.0, 128
    %3636 = vxpose.xlu0.b32.cont [11/16] 0.0, 128
    %3637 = vxpose.xlu0.b32.cont [12/16] 0.0, 128
    %3638 = vxpose.xlu0.b32.cont [13/16] 0.0, 128
    %3639 = vxpose.xlu0.b32.cont [14/16] 0.0, 128
    %3640 = vxpose.xlu0.b32.cont [15/16] 0.0, 128
    %3641 = vxpose.xlu0.b32.end [16/16] 0.0, 128
    %v3642 = vpop.trf.xlu0
    %v3643 = vpop.trf.xlu0
    %v3644 = vpop.trf.xlu0
    %v3645 = vpop.trf.xlu0
    %v3646 = vpop.trf.xlu0
    %v3647 = vpop.trf.xlu0
    %v3648 = vpop.trf.xlu0
    %v3649 = vpop.trf.xlu0
    %v3650 = vpop.trf.xlu0
    %v3651 = vpop.trf.xlu0
    %v3652 = vpop.trf.xlu0
    %v3653 = vpop.trf.xlu0
    %v3654 = vpop.trf.xlu0
    %v3655 = vpop.trf.xlu0
    %v3656 = vpop.trf.xlu0
    %v3657 = vpop.trf.xlu0
    %3658 = vxpose.xlu0.b32.start [1/16] %v209, 128
    %3659 = vxpose.xlu0.b32.cont [2/16] 0.0, 128
    %3660 = vxpose.xlu0.b32.cont [3/16] 0.0, 128
    %3661 = vxpose.xlu0.b32.cont [4/16] 0.0, 128
    %3662 = vxpose.xlu0.b32.cont [5/16] 0.0, 128
    %3663 = vxpose.xlu0.b32.cont [6/16] 0.0, 128
    %3664 = vxpose.xlu0.b32.cont [7/16] 0.0, 128
    %3665 = vxpose.xlu0.b32.cont [8/16] 0.0, 128
    %3666 = vxpose.xlu0.b32.cont [9/16] 0.0, 128
    %3667 = vxpose.xlu0.b32.cont [10/16] 0.0, 128
    %3668 = vxpose.xlu0.b32.cont [11/16] 0.0, 128
    %3669 = vxpose.xlu0.b32.cont [12/16] 0.0, 128
    %3670 = vxpose.xlu0.b32.cont [13/16] 0.0, 128
    %3671 = vxpose.xlu0.b32.cont [14/16] 0.0, 128
    %3672 = vxpose.xlu0.b32.cont [15/16] 0.0, 128
    %3673 = vxpose.xlu0.b32.end [16/16] 0.0, 128
    %v3674 = vpop.trf.xlu0
    %v3675 = vpop.trf.xlu0
    %v3676 = vpop.trf.xlu0
    %v3677 = vpop.trf.xlu0
    %v3678 = vpop.trf.xlu0
    %v3679 = vpop.trf.xlu0
    %v3680 = vpop.trf.xlu0
    %v3681 = vpop.trf.xlu0
    %v3682 = vpop.trf.xlu0
    %v3683 = vpop.trf.xlu0
    %v3684 = vpop.trf.xlu0
    %v3685 = vpop.trf.xlu0
    %v3686 = vpop.trf.xlu0
    %v3687 = vpop.trf.xlu0
    %v3688 = vpop.trf.xlu0
    %v3689 = vpop.trf.xlu0
    %3690 = vxpose.xlu0.b32.start [1/16] %v210, 128
    %3691 = vxpose.xlu0.b32.cont [2/16] 0.0, 128
    %3692 = vxpose.xlu0.b32.cont [3/16] 0.0, 128
    %3693 = vxpose.xlu0.b32.cont [4/16] 0.0, 128
    %3694 = vxpose.xlu0.b32.cont [5/16] 0.0, 128
    %3695 = vxpose.xlu0.b32.cont [6/16] 0.0, 128
    %3696 = vxpose.xlu0.b32.cont [7/16] 0.0, 128
    %3697 = vxpose.xlu0.b32.cont [8/16] 0.0, 128
    %3698 = vxpose.xlu0.b32.cont [9/16] 0.0, 128
    %3699 = vxpose.xlu0.b32.cont [10/16] 0.0, 128
    %3700 = vxpose.xlu0.b32.cont [11/16] 0.0, 128
    %3701 = vxpose.xlu0.b32.cont [12/16] 0.0, 128
    %3702 = vxpose.xlu0.b32.cont [13/16] 0.0, 128
    %3703 = vxpose.xlu0.b32.cont [14/16] 0.0, 128
    %3704 = vxpose.xlu0.b32.cont [15/16] 0.0, 128
    %3705 = vxpose.xlu0.b32.end [16/16] 0.0, 128
    %v3706 = vpop.trf.xlu0
    %v3707 = vpop.trf.xlu0
    %v3708 = vpop.trf.xlu0
    %v3709 = vpop.trf.xlu0
    %v3710 = vpop.trf.xlu0
    %v3711 = vpop.trf.xlu0
    %v3712 = vpop.trf.xlu0
    %v3713 = vpop.trf.xlu0
    %v3714 = vpop.trf.xlu0
    %v3715 = vpop.trf.xlu0
    %v3716 = vpop.trf.xlu0
    %v3717 = vpop.trf.xlu0
    %v3718 = vpop.trf.xlu0
    %v3719 = vpop.trf.xlu0
    %v3720 = vpop.trf.xlu0
    %v3721 = vpop.trf.xlu0
    %3722 = vxpose.xlu0.b32.start [1/16] %v211, 128
    %3723 = vxpose.xlu0.b32.cont [2/16] 0.0, 128
    %3724 = vxpose.xlu0.b32.cont [3/16] 0.0, 128
    %3725 = vxpose.xlu0.b32.cont [4/16] 0.0, 128
    %3726 = vxpose.xlu0.b32.cont [5/16] 0.0, 128
    %3727 = vxpose.xlu0.b32.cont [6/16] 0.0, 128
    %3728 = vxpose.xlu0.b32.cont [7/16] 0.0, 128
    %3729 = vxpose.xlu0.b32.cont [8/16] 0.0, 128
    %3730 = vxpose.xlu0.b32.cont [9/16] 0.0, 128
    %3731 = vxpose.xlu0.b32.cont [10/16] 0.0, 128
    %3732 = vxpose.xlu0.b32.cont [11/16] 0.0, 128
    %3733 = vxpose.xlu0.b32.cont [12/16] 0.0, 128
    %3734 = vxpose.xlu0.b32.cont [13/16] 0.0, 128
    %3735 = vxpose.xlu0.b32.cont [14/16] 0.0, 128
    %3736 = vxpose.xlu0.b32.cont [15/16] 0.0, 128
    %3737 = vxpose.xlu0.b32.end [16/16] 0.0, 128
    %v3738 = vpop.trf.xlu0
    %v3739 = vpop.trf.xlu0
    %v3740 = vpop.trf.xlu0
    %v3741 = vpop.trf.xlu0
    %v3742 = vpop.trf.xlu0
    %v3743 = vpop.trf.xlu0
    %v3744 = vpop.trf.xlu0
    %v3745 = vpop.trf.xlu0
    %v3746 = vpop.trf.xlu0
    %v3747 = vpop.trf.xlu0
    %v3748 = vpop.trf.xlu0
    %v3749 = vpop.trf.xlu0
    %v3750 = vpop.trf.xlu0
    %v3751 = vpop.trf.xlu0
    %v3752 = vpop.trf.xlu0
    %v3753 = vpop.trf.xlu0
    %3754 = vxpose.xlu0.b32.start [1/16] %v212, 128
    %3755 = vxpose.xlu0.b32.cont [2/16] 0.0, 128
    %3756 = vxpose.xlu0.b32.cont [3/16] 0.0, 128
    %3757 = vxpose.xlu0.b32.cont [4/16] 0.0, 128
    %3758 = vxpose.xlu0.b32.cont [5/16] 0.0, 128
    %3759 = vxpose.xlu0.b32.cont [6/16] 0.0, 128
    %3760 = vxpose.xlu0.b32.cont [7/16] 0.0, 128
    %3761 = vxpose.xlu0.b32.cont [8/16] 0.0, 128
    %3762 = vxpose.xlu0.b32.cont [9/16] 0.0, 128
    %3763 = vxpose.xlu0.b32.cont [10/16] 0.0, 128
    %3764 = vxpose.xlu0.b32.cont [11/16] 0.0, 128
    %3765 = vxpose.xlu0.b32.cont [12/16] 0.0, 128
    %3766 = vxpose.xlu0.b32.cont [13/16] 0.0, 128
    %3767 = vxpose.xlu0.b32.cont [14/16] 0.0, 128
    %3768 = vxpose.xlu0.b32.cont [15/16] 0.0, 128
    %3769 = vxpose.xlu0.b32.end [16/16] 0.0, 128
    %v3770 = vpop.trf.xlu0
    %v3771 = vpop.trf.xlu0
    %v3772 = vpop.trf.xlu0
    %v3773 = vpop.trf.xlu0
    %v3774 = vpop.trf.xlu0
    %v3775 = vpop.trf.xlu0
    %v3776 = vpop.trf.xlu0
    %v3777 = vpop.trf.xlu0
    %v3778 = vpop.trf.xlu0
    %v3779 = vpop.trf.xlu0
    %v3780 = vpop.trf.xlu0
    %v3781 = vpop.trf.xlu0
    %v3782 = vpop.trf.xlu0
    %v3783 = vpop.trf.xlu0
    %v3784 = vpop.trf.xlu0
    %v3785 = vpop.trf.xlu0
    %3786 = vxpose.xlu0.b32.start [1/16] %v213, 128
    %3787 = vxpose.xlu0.b32.cont [2/16] 0.0, 128
    %3788 = vxpose.xlu0.b32.cont [3/16] 0.0, 128
    %3789 = vxpose.xlu0.b32.cont [4/16] 0.0, 128
    %3790 = vxpose.xlu0.b32.cont [5/16] 0.0, 128
    %3791 = vxpose.xlu0.b32.cont [6/16] 0.0, 128
    %3792 = vxpose.xlu0.b32.cont [7/16] 0.0, 128
    %3793 = vxpose.xlu0.b32.cont [8/16] 0.0, 128
    %3794 = vxpose.xlu0.b32.cont [9/16] 0.0, 128
    %3795 = vxpose.xlu0.b32.cont [10/16] 0.0, 128
    %3796 = vxpose.xlu0.b32.cont [11/16] 0.0, 128
    %3797 = vxpose.xlu0.b32.cont [12/16] 0.0, 128
    %3798 = vxpose.xlu0.b32.cont [13/16] 0.0, 128
    %3799 = vxpose.xlu0.b32.cont [14/16] 0.0, 128
    %3800 = vxpose.xlu0.b32.cont [15/16] 0.0, 128
    %3801 = vxpose.xlu0.b32.end [16/16] 0.0, 128
    %v3802 = vpop.trf.xlu0
    %v3803 = vpop.trf.xlu0
    %v3804 = vpop.trf.xlu0
    %v3805 = vpop.trf.xlu0
    %v3806 = vpop.trf.xlu0
    %v3807 = vpop.trf.xlu0
    %v3808 = vpop.trf.xlu0
    %v3809 = vpop.trf.xlu0
    %v3810 = vpop.trf.xlu0
    %v3811 = vpop.trf.xlu0
    %v3812 = vpop.trf.xlu0
    %v3813 = vpop.trf.xlu0
    %v3814 = vpop.trf.xlu0
    %v3815 = vpop.trf.xlu0
    %v3816 = vpop.trf.xlu0
    %v3817 = vpop.trf.xlu0
    %3818 = vxpose.xlu0.b32.start [1/16] %v214, 128
    %3819 = vxpose.xlu0.b32.cont [2/16] 0.0, 128
    %3820 = vxpose.xlu0.b32.cont [3/16] 0.0, 128
    %3821 = vxpose.xlu0.b32.cont [4/16] 0.0, 128
    %3822 = vxpose.xlu0.b32.cont [5/16] 0.0, 128
    %3823 = vxpose.xlu0.b32.cont [6/16] 0.0, 128
    %3824 = vxpose.xlu0.b32.cont [7/16] 0.0, 128
    %3825 = vxpose.xlu0.b32.cont [8/16] 0.0, 128
    %3826 = vxpose.xlu0.b32.cont [9/16] 0.0, 128
    %3827 = vxpose.xlu0.b32.cont [10/16] 0.0, 128
    %3828 = vxpose.xlu0.b32.cont [11/16] 0.0, 128
    %3829 = vxpose.xlu0.b32.cont [12/16] 0.0, 128
    %3830 = vxpose.xlu0.b32.cont [13/16] 0.0, 128
    %3831 = vxpose.xlu0.b32.cont [14/16] 0.0, 128
    %3832 = vxpose.xlu0.b32.cont [15/16] 0.0, 128
    %3833 = vxpose.xlu0.b32.end [16/16] 0.0, 128
    %v3834 = vpop.trf.xlu0
    %v3835 = vpop.trf.xlu0
    %v3836 = vpop.trf.xlu0
    %v3837 = vpop.trf.xlu0
    %v3838 = vpop.trf.xlu0
    %v3839 = vpop.trf.xlu0
    %v3840 = vpop.trf.xlu0
    %v3841 = vpop.trf.xlu0
    %v3842 = vpop.trf.xlu0
    %v3843 = vpop.trf.xlu0
    %v3844 = vpop.trf.xlu0
    %v3845 = vpop.trf.xlu0
    %v3846 = vpop.trf.xlu0
    %v3847 = vpop.trf.xlu0
    %v3848 = vpop.trf.xlu0
    %v3849 = vpop.trf.xlu0
    %vm3850 = vcmask 64512
    %v3852 = vsel %vm3850, %v3354, 0
    %v3855 = vsel %vm3850, %v3355, 0
    %v3858 = vsel %vm3850, %v3356, 0
    %v3861 = vsel %vm3850, %v3357, 0
    %v3864 = vsel %vm3850, %v3358, 0
    %v3867 = vsel %vm3850, %v3359, 0
    %v3870 = vsel %vm3850, %v3360, 0
    %v3873 = vsel %vm3850, %v3361, 0
    %v3876 = vsel %vm3850, %v3362, 0
    %v3879 = vsel %vm3850, %v3363, 0
    %v3882 = vsel %vm3850, %v3364, 0
    %v3885 = vsel %vm3850, %v3365, 0
    %v3888 = vsel %vm3850, %v3366, 0
    %v3891 = vsel %vm3850, %v3367, 0
    %v3894 = vsel %vm3850, %v3368, 0
    %v3897 = vsel %vm3850, %v3369, 0
    %v3900 = vsel %vm3850, %v3386, 0
    %v3903 = vsel %vm3850, %v3387, 0
    %v3906 = vsel %vm3850, %v3388, 0
    %v3909 = vsel %vm3850, %v3389, 0
    %v3912 = vsel %vm3850, %v3390, 0
    %v3915 = vsel %vm3850, %v3391, 0
    %v3918 = vsel %vm3850, %v3392, 0
    %v3921 = vsel %vm3850, %v3393, 0
    %v3924 = vsel %vm3850, %v3394, 0
    %v3927 = vsel %vm3850, %v3395, 0
    %v3930 = vsel %vm3850, %v3396, 0
    %v3933 = vsel %vm3850, %v3397, 0
    %v3936 = vsel %vm3850, %v3398, 0
    %v3939 = vsel %vm3850, %v3399, 0
    %v3942 = vsel %vm3850, %v3400, 0
    %v3945 = vsel %vm3850, %v3401, 0
    %v3948 = vsel %vm3850, %v3418, 0
    %v3951 = vsel %vm3850, %v3419, 0
    %v3954 = vsel %vm3850, %v3420, 0
    %v3957 = vsel %vm3850, %v3421, 0
    %v3960 = vsel %vm3850, %v3422, 0
    %v3963 = vsel %vm3850, %v3423, 0
    %v3966 = vsel %vm3850, %v3424, 0
    %v3969 = vsel %vm3850, %v3425, 0
    %v3972 = vsel %vm3850, %v3426, 0
    %v3975 = vsel %vm3850, %v3427, 0
    %v3978 = vsel %vm3850, %v3428, 0
    %v3981 = vsel %vm3850, %v3429, 0
    %v3984 = vsel %vm3850, %v3430, 0
    %v3987 = vsel %vm3850, %v3431, 0
    %v3990 = vsel %vm3850, %v3432, 0
    %v3993 = vsel %vm3850, %v3433, 0
    %v3996 = vsel %vm3850, %v3450, 0
    %v3999 = vsel %vm3850, %v3451, 0
    %v4002 = vsel %vm3850, %v3452, 0
    %v4005 = vsel %vm3850, %v3453, 0
    %v4008 = vsel %vm3850, %v3454, 0
    %v4011 = vsel %vm3850, %v3455, 0
    %v4014 = vsel %vm3850, %v3456, 0
    %v4017 = vsel %vm3850, %v3457, 0
    %v4020 = vsel %vm3850, %v3458, 0
    %v4023 = vsel %vm3850, %v3459, 0
    %v4026 = vsel %vm3850, %v3460, 0
    %v4029 = vsel %vm3850, %v3461, 0
    %v4032 = vsel %vm3850, %v3462, 0
    %v4035 = vsel %vm3850, %v3463, 0
    %v4038 = vsel %vm3850, %v3464, 0
    %v4041 = vsel %vm3850, %v3465, 0
    %v4044 = vsel %vm3850, %v3482, 0
    %v4047 = vsel %vm3850, %v3483, 0
    %v4050 = vsel %vm3850, %v3484, 0
    %v4053 = vsel %vm3850, %v3485, 0
    %v4056 = vsel %vm3850, %v3486, 0
    %v4059 = vsel %vm3850, %v3487, 0
    %v4062 = vsel %vm3850, %v3488, 0
    %v4065 = vsel %vm3850, %v3489, 0
    %v4068 = vsel %vm3850, %v3490, 0
    %v4071 = vsel %vm3850, %v3491, 0
    %v4074 = vsel %vm3850, %v3492, 0
    %v4077 = vsel %vm3850, %v3493, 0
    %v4080 = vsel %vm3850, %v3494, 0
    %v4083 = vsel %vm3850, %v3495, 0
    %v4086 = vsel %vm3850, %v3496, 0
    %v4089 = vsel %vm3850, %v3497, 0
    %v4092 = vsel %vm3850, %v3514, 0
    %v4095 = vsel %vm3850, %v3515, 0
    %v4098 = vsel %vm3850, %v3516, 0
    %v4101 = vsel %vm3850, %v3517, 0
    %v4104 = vsel %vm3850, %v3518, 0
    %v4107 = vsel %vm3850, %v3519, 0
    %v4110 = vsel %vm3850, %v3520, 0
    %v4113 = vsel %vm3850, %v3521, 0
    %v4116 = vsel %vm3850, %v3522, 0
    %v4119 = vsel %vm3850, %v3523, 0
    %v4122 = vsel %vm3850, %v3524, 0
    %v4125 = vsel %vm3850, %v3525, 0
    %v4128 = vsel %vm3850, %v3526, 0
    %v4131 = vsel %vm3850, %v3527, 0
    %v4134 = vsel %vm3850, %v3528, 0
    %v4137 = vsel %vm3850, %v3529, 0
    %v4140 = vsel %vm3850, %v3546, 0
    %v4143 = vsel %vm3850, %v3547, 0
    %v4146 = vsel %vm3850, %v3548, 0
    %v4149 = vsel %vm3850, %v3549, 0
    %v4152 = vsel %vm3850, %v3550, 0
    %v4155 = vsel %vm3850, %v3551, 0
    %v4158 = vsel %vm3850, %v3552, 0
    %v4161 = vsel %vm3850, %v3553, 0
    %v4164 = vsel %vm3850, %v3554, 0
    %v4167 = vsel %vm3850, %v3555, 0
    %v4170 = vsel %vm3850, %v3556, 0
    %v4173 = vsel %vm3850, %v3557, 0
    %v4176 = vsel %vm3850, %v3558, 0
    %v4179 = vsel %vm3850, %v3559, 0
    %v4182 = vsel %vm3850, %v3560, 0
    %v4185 = vsel %vm3850, %v3561, 0
    %v4188 = vsel %vm3850, %v3578, 0
    %v4191 = vsel %vm3850, %v3579, 0
    %v4194 = vsel %vm3850, %v3580, 0
    %v4197 = vsel %vm3850, %v3581, 0
    %v4200 = vsel %vm3850, %v3582, 0
    %v4203 = vsel %vm3850, %v3583, 0
    %v4206 = vsel %vm3850, %v3584, 0
    %v4209 = vsel %vm3850, %v3585, 0
    %v4212 = vsel %vm3850, %v3586, 0
    %v4215 = vsel %vm3850, %v3587, 0
    %v4218 = vsel %vm3850, %v3588, 0
    %v4221 = vsel %vm3850, %v3589, 0
    %v4224 = vsel %vm3850, %v3590, 0
    %v4227 = vsel %vm3850, %v3591, 0
    %v4230 = vsel %vm3850, %v3592, 0
    %v4233 = vsel %vm3850, %v3593, 0
    %v4236 = vsel %vm3850, %v3610, 0
    %v4239 = vsel %vm3850, %v3611, 0
    %v4242 = vsel %vm3850, %v3612, 0
    %v4245 = vsel %vm3850, %v3613, 0
    %v4248 = vsel %vm3850, %v3614, 0
    %v4251 = vsel %vm3850, %v3615, 0
    %v4254 = vsel %vm3850, %v3616, 0
    %v4257 = vsel %vm3850, %v3617, 0
    %v4260 = vsel %vm3850, %v3618, 0
    %v4263 = vsel %vm3850, %v3619, 0
    %v4266 = vsel %vm3850, %v3620, 0
    %v4269 = vsel %vm3850, %v3621, 0
    %v4272 = vsel %vm3850, %v3622, 0
    %v4275 = vsel %vm3850, %v3623, 0
    %v4278 = vsel %vm3850, %v3624, 0
    %v4281 = vsel %vm3850, %v3625, 0
    %v4284 = vsel %vm3850, %v3642, 0
    %v4287 = vsel %vm3850, %v3643, 0
    %v4290 = vsel %vm3850, %v3644, 0
    %v4293 = vsel %vm3850, %v3645, 0
    %v4296 = vsel %vm3850, %v3646, 0
    %v4299 = vsel %vm3850, %v3647, 0
    %v4302 = vsel %vm3850, %v3648, 0
    %v4305 = vsel %vm3850, %v3649, 0
    %v4308 = vsel %vm3850, %v3650, 0
    %v4311 = vsel %vm3850, %v3651, 0
    %v4314 = vsel %vm3850, %v3652, 0
    %v4317 = vsel %vm3850, %v3653, 0
    %v4320 = vsel %vm3850, %v3654, 0
    %v4323 = vsel %vm3850, %v3655, 0
    %v4326 = vsel %vm3850, %v3656, 0
    %v4329 = vsel %vm3850, %v3657, 0
    %v4332 = vsel %vm3850, %v3674, 0
    %v4335 = vsel %vm3850, %v3675, 0
    %v4338 = vsel %vm3850, %v3676, 0
    %v4341 = vsel %vm3850, %v3677, 0
    %v4344 = vsel %vm3850, %v3678, 0
    %v4347 = vsel %vm3850, %v3679, 0
    %v4350 = vsel %vm3850, %v3680, 0
    %v4353 = vsel %vm3850, %v3681, 0
    %v4356 = vsel %vm3850, %v3682, 0
    %v4359 = vsel %vm3850, %v3683, 0
    %v4362 = vsel %vm3850, %v3684, 0
    %v4365 = vsel %vm3850, %v3685, 0
    %v4368 = vsel %vm3850, %v3686, 0
    %v4371 = vsel %vm3850, %v3687, 0
    %v4374 = vsel %vm3850, %v3688, 0
    %v4377 = vsel %vm3850, %v3689, 0
    %v4380 = vsel %vm3850, %v3706, 0
    %v4383 = vsel %vm3850, %v3707, 0
    %v4386 = vsel %vm3850, %v3708, 0
    %v4389 = vsel %vm3850, %v3709, 0
    %v4392 = vsel %vm3850, %v3710, 0
    %v4395 = vsel %vm3850, %v3711, 0
    %v4398 = vsel %vm3850, %v3712, 0
    %v4401 = vsel %vm3850, %v3713, 0
    %v4404 = vsel %vm3850, %v3714, 0
    %v4407 = vsel %vm3850, %v3715, 0
    %v4410 = vsel %vm3850, %v3716, 0
    %v4413 = vsel %vm3850, %v3717, 0
    %v4416 = vsel %vm3850, %v3718, 0
    %v4419 = vsel %vm3850, %v3719, 0
    %v4422 = vsel %vm3850, %v3720, 0
    %v4425 = vsel %vm3850, %v3721, 0
    %v4428 = vsel %vm3850, %v3738, 0
    %v4431 = vsel %vm3850, %v3739, 0
    %v4434 = vsel %vm3850, %v3740, 0
    %v4437 = vsel %vm3850, %v3741, 0
    %v4440 = vsel %vm3850, %v3742, 0
    %v4443 = vsel %vm3850, %v3743, 0
    %v4446 = vsel %vm3850, %v3744, 0
    %v4449 = vsel %vm3850, %v3745, 0
    %v4452 = vsel %vm3850, %v3746, 0
    %v4455 = vsel %vm3850, %v3747, 0
    %v4458 = vsel %vm3850, %v3748, 0
    %v4461 = vsel %vm3850, %v3749, 0
    %v4464 = vsel %vm3850, %v3750, 0
    %v4467 = vsel %vm3850, %v3751, 0
    %v4470 = vsel %vm3850, %v3752, 0
    %v4473 = vsel %vm3850, %v3753, 0
    %v4476 = vsel %vm3850, %v3770, 0
    %v4479 = vsel %vm3850, %v3771, 0
    %v4482 = vsel %vm3850, %v3772, 0
    %v4485 = vsel %vm3850, %v3773, 0
    %v4488 = vsel %vm3850, %v3774, 0
    %v4491 = vsel %vm3850, %v3775, 0
    %v4494 = vsel %vm3850, %v3776, 0
    %v4497 = vsel %vm3850, %v3777, 0
    %v4500 = vsel %vm3850, %v3778, 0
    %v4503 = vsel %vm3850, %v3779, 0
    %v4506 = vsel %vm3850, %v3780, 0
    %v4509 = vsel %vm3850, %v3781, 0
    %v4512 = vsel %vm3850, %v3782, 0
    %v4515 = vsel %vm3850, %v3783, 0
    %v4518 = vsel %vm3850, %v3784, 0
    %v4521 = vsel %vm3850, %v3785, 0
    %v4524 = vsel %vm3850, %v3802, 0
    %v4527 = vsel %vm3850, %v3803, 0
    %v4530 = vsel %vm3850, %v3804, 0
    %v4533 = vsel %vm3850, %v3805, 0
    %v4536 = vsel %vm3850, %v3806, 0
    %v4539 = vsel %vm3850, %v3807, 0
    %v4542 = vsel %vm3850, %v3808, 0
    %v4545 = vsel %vm3850, %v3809, 0
    %v4548 = vsel %vm3850, %v3810, 0
    %v4551 = vsel %vm3850, %v3811, 0
    %v4554 = vsel %vm3850, %v3812, 0
    %v4557 = vsel %vm3850, %v3813, 0
    %v4560 = vsel %vm3850, %v3814, 0
    %v4563 = vsel %vm3850, %v3815, 0
    %v4566 = vsel %vm3850, %v3816, 0
    %v4569 = vsel %vm3850, %v3817, 0
    %v4572 = vsel %vm3850, %v3834, 0
    %v4575 = vsel %vm3850, %v3835, 0
    %v4578 = vsel %vm3850, %v3836, 0
    %v4581 = vsel %vm3850, %v3837, 0
    %v4584 = vsel %vm3850, %v3838, 0
    %v4587 = vsel %vm3850, %v3839, 0
    %v4590 = vsel %vm3850, %v3840, 0
    %v4593 = vsel %vm3850, %v3841, 0
    %v4596 = vsel %vm3850, %v3842, 0
    %v4599 = vsel %vm3850, %v3843, 0
    %v4602 = vsel %vm3850, %v3844, 0
    %v4605 = vsel %vm3850, %v3845, 0
    %v4608 = vsel %vm3850, %v3846, 0
    %v4611 = vsel %vm3850, %v3847, 0
    %v4614 = vsel %vm3850, %v3848, 0
    %v4617 = vsel %vm3850, %v3849, 0
    %4619 = vmatprep.subr.mxu0 0.0
    %4620 = vmatpush1.msra.mxu0 %v3335
    %4621 = vmatprep.subr.mxu0 0.0
    %4622 = vmatpush1.msra.mxu0 0.0
    %4623 = vmatprep.subr.mxu0 0.0
    %4624 = vmatpush1.msra.mxu0 0.0
    %4625 = vmatprep.subr.mxu0 0.0
    %4626 = vmatpush1.msra.mxu0 0.0
    %4627 = vmatprep.subr.mxu0 0.0
    %4628 = vmatpush1.msra.mxu0 0.0
    %4629 = vmatprep.subr.mxu0 0.0
    %4630 = vmatpush1.msra.mxu0 0.0
    %4631 = vmatprep.subr.mxu0 0.0
    %4632 = vmatpush1.msra.mxu0 0.0
    %4633 = vmatprep.subr.mxu0 0.0
    %4634 = vmatpush1.msra.mxu0 0.0
    %4635 = vmatprep.subr.mxu0 0.0
    %4636 = vmatpush1.msra.mxu0 0.0
    %4637 = vmatprep.subr.mxu0 0.0
    %4638 = vmatpush1.msra.mxu0 0.0
    %4639 = vmatprep.subr.mxu0 0.0
    %4640 = vmatpush1.msra.mxu0 0.0
    %4641 = vmatprep.subr.mxu0 0.0
    %4642 = vmatpush1.msra.mxu0 0.0
    %4643 = vmatprep.subr.mxu0 0.0
    %4644 = vmatpush1.msra.mxu0 0.0
    %4645 = vmatprep.subr.mxu0 0.0
    %4646 = vmatpush1.msra.mxu0 0.0
    %4647 = vmatprep.subr.mxu0 0.0
    %4648 = vmatpush1.msra.mxu0 0.0
    %4649 = vmatprep.subr.mxu0 0.0
    %4650 = vmatpush1.msra.mxu0 0.0
    %4651 = vmatprep.subr.mxu0 0.0
    %4652 = vmatpush1.msra.mxu0 0.0
    %4653 = vmatprep.subr.mxu0 0.0
    %4654 = vmatpush1.msra.mxu0 0.0
    %4655 = vmatprep.subr.mxu0 0.0
    %4656 = vmatpush1.msra.mxu0 0.0
    %4657 = vmatprep.subr.mxu0 0.0
    %4658 = vmatpush1.msra.mxu0 0.0
    %4659 = vmatprep.subr.mxu0 0.0
    %4660 = vmatpush1.msra.mxu0 0.0
    %4661 = vmatprep.subr.mxu0 0.0
    %4662 = vmatpush1.msra.mxu0 0.0
    %4663 = vmatprep.subr.mxu0 0.0
    %4664 = vmatpush1.msra.mxu0 0.0
    %4665 = vmatprep.subr.mxu0 0.0
    %4666 = vmatpush1.msra.mxu0 0.0
    %4667 = vmatprep.subr.mxu0 0.0
    %4668 = vmatpush1.msra.mxu0 0.0
    %4669 = vmatprep.subr.mxu0 0.0
    %4670 = vmatpush1.msra.mxu0 0.0
    %4671 = vmatprep.subr.mxu0 0.0
    %4672 = vmatpush1.msra.mxu0 0.0
    %4673 = vmatprep.subr.mxu0 0.0
    %4674 = vmatpush1.msra.mxu0 0.0
    %4675 = vmatprep.subr.mxu0 0.0
    %4676 = vmatpush1.msra.mxu0 0.0
    %4677 = vmatprep.subr.mxu0 0.0
    %4678 = vmatpush1.msra.mxu0 0.0
    %4679 = vmatprep.subr.mxu0 0.0
    %4680 = vmatpush1.msra.mxu0 0.0
    %4681 = vmatprep.subr.mxu0 0.0
    %4682 = vmatpush1.msra.mxu0 0.0
    %4683 = vmatprep.mubr.f32.mxu0 0.0
    %4684 = vmatmul.mubr.f32.gmra.mrb[0].mxu0 %v3852
    %v4685 = vpop.f32.mrb[0].mxu0
    %v4686 = vadd.f32 0.0, %v4685
    %v4687 = vpop.f32.mrb[0].mxu0
    %4688 = vmatprep.mubr.f32.mxu0 0.0
    %4689 = vmatmul.mubr.f32.gmra.mrb[0].mxu0 %v3855
    %v4690 = vpop.f32.mrb[0].mxu0
    %v4691 = vadd.f32 0.0, %v4690
    %v4692 = vpop.f32.mrb[0].mxu0
    %4693 = vmatprep.mubr.f32.mxu0 0.0
    %4694 = vmatmul.mubr.f32.gmra.mrb[0].mxu0 %v3858
    %v4695 = vpop.f32.mrb[0].mxu0
    %v4696 = vadd.f32 0.0, %v4695
    %v4697 = vpop.f32.mrb[0].mxu0
    %4698 = vmatprep.mubr.f32.mxu0 0.0
    %4699 = vmatmul.mubr.f32.gmra.mrb[0].mxu0 %v3861
    %v4700 = vpop.f32.mrb[0].mxu0
    %v4701 = vadd.f32 0.0, %v4700
    %v4702 = vpop.f32.mrb[0].mxu0
    %4703 = vmatprep.mubr.f32.mxu0 0.0
    %4704 = vmatmul.mubr.f32.gmra.mrb[0].mxu0 %v3864
    %v4705 = vpop.f32.mrb[0].mxu0
    %v4706 = vadd.f32 0.0, %v4705
    %v4707 = vpop.f32.mrb[0].mxu0
    %4708 = vmatprep.mubr.f32.mxu0 0.0
    %4709 = vmatmul.mubr.f32.gmra.mrb[0].mxu0 %v3867
    %v4710 = vpop.f32.mrb[0].mxu0
    %v4711 = vadd.f32 0.0, %v4710
    %v4712 = vpop.f32.mrb[0].mxu0
    %4713 = vmatprep.mubr.f32.mxu0 0.0
    %4714 = vmatmul.mubr.f32.gmra.mrb[0].mxu0 %v3870
    %v4715 = vpop.f32.mrb[0].mxu0
    %v4716 = vadd.f32 0.0, %v4715
    %v4717 = vpop.f32.mrb[0].mxu0
    %4718 = vmatprep.mubr.f32.mxu0 0.0
    %4719 = vmatmul.mubr.f32.gmra.mrb[0].mxu0 %v3873
    %v4720 = vpop.f32.mrb[0].mxu0
    %v4721 = vadd.f32 0.0, %v4720
    %v4722 = vpop.f32.mrb[0].mxu0
    %4723 = vmatprep.mubr.f32.mxu0 0.0
    %4724 = vmatmul.mubr.f32.gmra.mrb[0].mxu0 %v3876
    %v4725 = vpop.f32.mrb[0].mxu0
    %v4726 = vadd.f32 0.0, %v4725
    %v4727 = vpop.f32.mrb[0].mxu0
    %4728 = vmatprep.mubr.f32.mxu0 0.0
    %4729 = vmatmul.mubr.f32.gmra.mrb[0].mxu0 %v3879
    %v4730 = vpop.f32.mrb[0].mxu0
    %v4731 = vadd.f32 0.0, %v4730
    %v4732 = vpop.f32.mrb[0].mxu0
    %4733 = vmatprep.mubr.f32.mxu0 0.0
    %4734 = vmatmul.mubr.f32.gmra.mrb[0].mxu0 %v3882
    %v4735 = vpop.f32.mrb[0].mxu0
    %v4736 = vadd.f32 0.0, %v4735
    %v4737 = vpop.f32.mrb[0].mxu0
    %4738 = vmatprep.mubr.f32.mxu0 0.0
    %4739 = vmatmul.mubr.f32.gmra.mrb[0].mxu0 %v3885
    %v4740 = vpop.f32.mrb[0].mxu0
    %v4741 = vadd.f32 0.0, %v4740
    %v4742 = vpop.f32.mrb[0].mxu0
    %4743 = vmatprep.mubr.f32.mxu0 0.0
    %4744 = vmatmul.mubr.f32.gmra.mrb[0].mxu0 %v3888
    %v4745 = vpop.f32.mrb[0].mxu0
    %v4746 = vadd.f32 0.0, %v4745
    %v4747 = vpop.f32.mrb[0].mxu0
    %4748 = vmatprep.mubr.f32.mxu0 0.0
    %4749 = vmatmul.mubr.f32.gmra.mrb[0].mxu0 %v3891
    %v4750 = vpop.f32.mrb[0].mxu0
    %v4751 = vadd.f32 0.0, %v4750
    %v4752 = vpop.f32.mrb[0].mxu0
    %4753 = vmatprep.mubr.f32.mxu0 0.0
    %4754 = vmatmul.mubr.f32.gmra.mrb[0].mxu0 %v3894
    %v4755 = vpop.f32.mrb[0].mxu0
    %v4756 = vadd.f32 0.0, %v4755
    %v4757 = vpop.f32.mrb[0].mxu0
    %4758 = vmatprep.mubr.f32.mxu0 0.0
    %4759 = vmatmul.mubr.f32.gmra.mrb[0].mxu0 %v3897
    %v4760 = vpop.f32.mrb[0].mxu0
    %v4761 = vadd.f32 0.0, %v4760
    %v4762 = vpop.f32.mrb[0].mxu0
    %4763 = vmatprep.mubr.f32.mxu0 0.0
    %4764 = vmatmul.mubr.f32.gmra.mrb[0].mxu0 %v3900
    %v4765 = vpop.f32.mrb[0].mxu0
    %v4766 = vadd.f32 0.0, %v4765
    %v4767 = vpop.f32.mrb[0].mxu0
    %4768 = vmatprep.mubr.f32.mxu0 0.0
    %4769 = vmatmul.mubr.f32.gmra.mrb[0].mxu0 %v3903
    %v4770 = vpop.f32.mrb[0].mxu0
    %v4771 = vadd.f32 0.0, %v4770
    %v4772 = vpop.f32.mrb[0].mxu0
    %4773 = vmatprep.mubr.f32.mxu0 0.0
    %4774 = vmatmul.mubr.f32.gmra.mrb[0].mxu0 %v3906
    %v4775 = vpop.f32.mrb[0].mxu0
    %v4776 = vadd.f32 0.0, %v4775
    %v4777 = vpop.f32.mrb[0].mxu0
    %4778 = vmatprep.mubr.f32.mxu0 0.0
    %4779 = vmatmul.mubr.f32.gmra.mrb[0].mxu0 %v3909
    %v4780 = vpop.f32.mrb[0].mxu0
    %v4781 = vadd.f32 0.0, %v4780
    %v4782 = vpop.f32.mrb[0].mxu0
    %4783 = vmatprep.mubr.f32.mxu0 0.0
    %4784 = vmatmul.mubr.f32.gmra.mrb[0].mxu0 %v3912
    %v4785 = vpop.f32.mrb[0].mxu0
    %v4786 = vadd.f32 0.0, %v4785
    %v4787 = vpop.f32.mrb[0].mxu0
    %4788 = vmatprep.mubr.f32.mxu0 0.0
    %4789 = vmatmul.mubr.f32.gmra.mrb[0].mxu0 %v3915
    %v4790 = vpop.f32.mrb[0].mxu0
    %v4791 = vadd.f32 0.0, %v4790
    %v4792 = vpop.f32.mrb[0].mxu0
    %4793 = vmatprep.mubr.f32.mxu0 0.0
    %4794 = vmatmul.mubr.f32.gmra.mrb[0].mxu0 %v3918
    %v4795 = vpop.f32.mrb[0].mxu0
    %v4796 = vadd.f32 0.0, %v4795
    %v4797 = vpop.f32.mrb[0].mxu0
    %4798 = vmatprep.mubr.f32.mxu0 0.0
    %4799 = vmatmul.mubr.f32.gmra.mrb[0].mxu0 %v3921
    %v4800 = vpop.f32.mrb[0].mxu0
    %v4801 = vadd.f32 0.0, %v4800
    %v4802 = vpop.f32.mrb[0].mxu0
    %4803 = vmatprep.mubr.f32.mxu0 0.0
    %4804 = vmatmul.mubr.f32.gmra.mrb[0].mxu0 %v3924
    %v4805 = vpop.f32.mrb[0].mxu0
    %v4806 = vadd.f32 0.0, %v4805
    %v4807 = vpop.f32.mrb[0].mxu0
    %4808 = vmatprep.mubr.f32.mxu0 0.0
    %4809 = vmatmul.mubr.f32.gmra.mrb[0].mxu0 %v3927
    %v4810 = vpop.f32.mrb[0].mxu0
    %v4811 = vadd.f32 0.0, %v4810
    %v4812 = vpop.f32.mrb[0].mxu0
    %4813 = vmatprep.mubr.f32.mxu0 0.0
    %4814 = vmatmul.mubr.f32.gmra.mrb[0].mxu0 %v3930
    %v4815 = vpop.f32.mrb[0].mxu0
    %v4816 = vadd.f32 0.0, %v4815
    %v4817 = vpop.f32.mrb[0].mxu0
    %4818 = vmatprep.mubr.f32.mxu0 0.0
    %4819 = vmatmul.mubr.f32.gmra.mrb[0].mxu0 %v3933
    %v4820 = vpop.f32.mrb[0].mxu0
    %v4821 = vadd.f32 0.0, %v4820
    %v4822 = vpop.f32.mrb[0].mxu0
    %4823 = vmatprep.mubr.f32.mxu0 0.0
    %4824 = vmatmul.mubr.f32.gmra.mrb[0].mxu0 %v3936
    %v4825 = vpop.f32.mrb[0].mxu0
    %v4826 = vadd.f32 0.0, %v4825
    %v4827 = vpop.f32.mrb[0].mxu0
    %4828 = vmatprep.mubr.f32.mxu0 0.0
    %4829 = vmatmul.mubr.f32.gmra.mrb[0].mxu0 %v3939
    %v4830 = vpop.f32.mrb[0].mxu0
    %v4831 = vadd.f32 0.0, %v4830
    %v4832 = vpop.f32.mrb[0].mxu0
    %4833 = vmatprep.mubr.f32.mxu0 0.0
    %4834 = vmatmul.mubr.f32.gmra.mrb[0].mxu0 %v3942
    %v4835 = vpop.f32.mrb[0].mxu0
    %v4836 = vadd.f32 0.0, %v4835
    %v4837 = vpop.f32.mrb[0].mxu0
    %4838 = vmatprep.mubr.f32.mxu0 0.0
    %4839 = vmatmul.mubr.f32.gmra.mrb[0].mxu0 %v3945
    %v4840 = vpop.f32.mrb[0].mxu0
    %v4841 = vadd.f32 0.0, %v4840
    %v4842 = vpop.f32.mrb[0].mxu0
    %4843 = vmatprep.mubr.f32.mxu0 0.0
    %4844 = vmatmul.mubr.f32.gmra.mrb[0].mxu0 %v3948
    %v4845 = vpop.f32.mrb[0].mxu0
    %v4846 = vadd.f32 0.0, %v4845
    %v4847 = vpop.f32.mrb[0].mxu0
    %4848 = vmatprep.mubr.f32.mxu0 0.0
    %4849 = vmatmul.mubr.f32.gmra.mrb[0].mxu0 %v3951
    %v4850 = vpop.f32.mrb[0].mxu0
    %v4851 = vadd.f32 0.0, %v4850
    %v4852 = vpop.f32.mrb[0].mxu0
    %4853 = vmatprep.mubr.f32.mxu0 0.0
    %4854 = vmatmul.mubr.f32.gmra.mrb[0].mxu0 %v3954
    %v4855 = vpop.f32.mrb[0].mxu0
    %v4856 = vadd.f32 0.0, %v4855
    %v4857 = vpop.f32.mrb[0].mxu0
    %4858 = vmatprep.mubr.f32.mxu0 0.0
    %4859 = vmatmul.mubr.f32.gmra.mrb[0].mxu0 %v3957
    %v4860 = vpop.f32.mrb[0].mxu0
    %v4861 = vadd.f32 0.0, %v4860
    %v4862 = vpop.f32.mrb[0].mxu0
    %4863 = vmatprep.mubr.f32.mxu0 0.0
    %4864 = vmatmul.mubr.f32.gmra.mrb[0].mxu0 %v3960
    %v4865 = vpop.f32.mrb[0].mxu0
    %v4866 = vadd.f32 0.0, %v4865
    %v4867 = vpop.f32.mrb[0].mxu0
    %4868 = vmatprep.mubr.f32.mxu0 0.0
    %4869 = vmatmul.mubr.f32.gmra.mrb[0].mxu0 %v3963
    %v4870 = vpop.f32.mrb[0].mxu0
    %v4871 = vadd.f32 0.0, %v4870
    %v4872 = vpop.f32.mrb[0].mxu0
    %4873 = vmatprep.mubr.f32.mxu0 0.0
    %4874 = vmatmul.mubr.f32.gmra.mrb[0].mxu0 %v3966
    %v4875 = vpop.f32.mrb[0].mxu0
    %v4876 = vadd.f32 0.0, %v4875
    %v4877 = vpop.f32.mrb[0].mxu0
    %4878 = vmatprep.mubr.f32.mxu0 0.0
    %4879 = vmatmul.mubr.f32.gmra.mrb[0].mxu0 %v3969
    %v4880 = vpop.f32.mrb[0].mxu0
    %v4881 = vadd.f32 0.0, %v4880
    %v4882 = vpop.f32.mrb[0].mxu0
    %4883 = vmatprep.mubr.f32.mxu0 0.0
    %4884 = vmatmul.mubr.f32.gmra.mrb[0].mxu0 %v3972
    %v4885 = vpop.f32.mrb[0].mxu0
    %v4886 = vadd.f32 0.0, %v4885
    %v4887 = vpop.f32.mrb[0].mxu0
    %4888 = vmatprep.mubr.f32.mxu0 0.0
    %4889 = vmatmul.mubr.f32.gmra.mrb[0].mxu0 %v3975
    %v4890 = vpop.f32.mrb[0].mxu0
    %v4891 = vadd.f32 0.0, %v4890
    %v4892 = vpop.f32.mrb[0].mxu0
    %4893 = vmatprep.mubr.f32.mxu0 0.0
    %4894 = vmatmul.mubr.f32.gmra.mrb[0].mxu0 %v3978
    %v4895 = vpop.f32.mrb[0].mxu0
    %v4896 = vadd.f32 0.0, %v4895
    %v4897 = vpop.f32.mrb[0].mxu0
    %4898 = vmatprep.mubr.f32.mxu0 0.0
    %4899 = vmatmul.mubr.f32.gmra.mrb[0].mxu0 %v3981
    %v4900 = vpop.f32.mrb[0].mxu0
    %v4901 = vadd.f32 0.0, %v4900
    %v4902 = vpop.f32.mrb[0].mxu0
    %4903 = vmatprep.mubr.f32.mxu0 0.0
    %4904 = vmatmul.mubr.f32.gmra.mrb[0].mxu0 %v3984
    %v4905 = vpop.f32.mrb[0].mxu0
    %v4906 = vadd.f32 0.0, %v4905
    %v4907 = vpop.f32.mrb[0].mxu0
    %4908 = vmatprep.mubr.f32.mxu0 0.0
    %4909 = vmatmul.mubr.f32.gmra.mrb[0].mxu0 %v3987
    %v4910 = vpop.f32.mrb[0].mxu0
    %v4911 = vadd.f32 0.0, %v4910
    %v4912 = vpop.f32.mrb[0].mxu0
    %4913 = vmatprep.mubr.f32.mxu0 0.0
    %4914 = vmatmul.mubr.f32.gmra.mrb[0].mxu0 %v3990
    %v4915 = vpop.f32.mrb[0].mxu0
    %v4916 = vadd.f32 0.0, %v4915
    %v4917 = vpop.f32.mrb[0].mxu0
    %4918 = vmatprep.mubr.f32.mxu0 0.0
    %4919 = vmatmul.mubr.f32.gmra.mrb[0].mxu0 %v3993
    %v4920 = vpop.f32.mrb[0].mxu0
    %v4921 = vadd.f32 0.0, %v4920
    %v4922 = vpop.f32.mrb[0].mxu0
    %4923 = vmatprep.mubr.f32.mxu0 0.0
    %4924 = vmatmul.mubr.f32.gmra.mrb[0].mxu0 %v3996
    %v4925 = vpop.f32.mrb[0].mxu0
    %v4926 = vadd.f32 0.0, %v4925
    %v4927 = vpop.f32.mrb[0].mxu0
    %4928 = vmatprep.mubr.f32.mxu0 0.0
    %4929 = vmatmul.mubr.f32.gmra.mrb[0].mxu0 %v3999
    %v4930 = vpop.f32.mrb[0].mxu0
    %v4931 = vadd.f32 0.0, %v4930
    %v4932 = vpop.f32.mrb[0].mxu0
    %4933 = vmatprep.mubr.f32.mxu0 0.0
    %4934 = vmatmul.mubr.f32.gmra.mrb[0].mxu0 %v4002
    %v4935 = vpop.f32.mrb[0].mxu0
    %v4936 = vadd.f32 0.0, %v4935
    %v4937 = vpop.f32.mrb[0].mxu0
    %4938 = vmatprep.mubr.f32.mxu0 0.0
    %4939 = vmatmul.mubr.f32.gmra.mrb[0].mxu0 %v4005
    %v4940 = vpop.f32.mrb[0].mxu0
    %v4941 = vadd.f32 0.0, %v4940
    %v4942 = vpop.f32.mrb[0].mxu0
    %4943 = vmatprep.mubr.f32.mxu0 0.0
    %4944 = vmatmul.mubr.f32.gmra.mrb[0].mxu0 %v4008
    %v4945 = vpop.f32.mrb[0].mxu0
    %v4946 = vadd.f32 0.0, %v4945
    %v4947 = vpop.f32.mrb[0].mxu0
    %4948 = vmatprep.mubr.f32.mxu0 0.0
    %4949 = vmatmul.mubr.f32.gmra.mrb[0].mxu0 %v4011
    %v4950 = vpop.f32.mrb[0].mxu0
    %v4951 = vadd.f32 0.0, %v4950
    %v4952 = vpop.f32.mrb[0].mxu0
    %4953 = vmatprep.mubr.f32.mxu0 0.0
    %4954 = vmatmul.mubr.f32.gmra.mrb[0].mxu0 %v4014
    %v4955 = vpop.f32.mrb[0].mxu0
    %v4956 = vadd.f32 0.0, %v4955
    %v4957 = vpop.f32.mrb[0].mxu0
    %4958 = vmatprep.mubr.f32.mxu0 0.0
    %4959 = vmatmul.mubr.f32.gmra.mrb[0].mxu0 %v4017
    %v4960 = vpop.f32.mrb[0].mxu0
    %v4961 = vadd.f32 0.0, %v4960
    %v4962 = vpop.f32.mrb[0].mxu0
    %4963 = vmatprep.mubr.f32.mxu0 0.0
    %4964 = vmatmul.mubr.f32.gmra.mrb[0].mxu0 %v4020
    %v4965 = vpop.f32.mrb[0].mxu0
    %v4966 = vadd.f32 0.0, %v4965
    %v4967 = vpop.f32.mrb[0].mxu0
    %4968 = vmatprep.mubr.f32.mxu0 0.0
    %4969 = vmatmul.mubr.f32.gmra.mrb[0].mxu0 %v4023
    %v4970 = vpop.f32.mrb[0].mxu0
    %v4971 = vadd.f32 0.0, %v4970
    %v4972 = vpop.f32.mrb[0].mxu0
    %4973 = vmatprep.mubr.f32.mxu0 0.0
    %4974 = vmatmul.mubr.f32.gmra.mrb[0].mxu0 %v4026
    %v4975 = vpop.f32.mrb[0].mxu0
    %v4976 = vadd.f32 0.0, %v4975
    %v4977 = vpop.f32.mrb[0].mxu0
    %4978 = vmatprep.mubr.f32.mxu0 0.0
    %4979 = vmatmul.mubr.f32.gmra.mrb[0].mxu0 %v4029
    %v4980 = vpop.f32.mrb[0].mxu0
    %v4981 = vadd.f32 0.0, %v4980
    %v4982 = vpop.f32.mrb[0].mxu0
    %4983 = vmatprep.mubr.f32.mxu0 0.0
    %4984 = vmatmul.mubr.f32.gmra.mrb[0].mxu0 %v4032
    %v4985 = vpop.f32.mrb[0].mxu0
    %v4986 = vadd.f32 0.0, %v4985
    %v4987 = vpop.f32.mrb[0].mxu0
    %4988 = vmatprep.mubr.f32.mxu0 0.0
    %4989 = vmatmul.mubr.f32.gmra.mrb[0].mxu0 %v4035
    %v4990 = vpop.f32.mrb[0].mxu0
    %v4991 = vadd.f32 0.0, %v4990
    %v4992 = vpop.f32.mrb[0].mxu0
    %4993 = vmatprep.mubr.f32.mxu0 0.0
    %4994 = vmatmul.mubr.f32.gmra.mrb[0].mxu0 %v4038
    %v4995 = vpop.f32.mrb[0].mxu0
    %v4996 = vadd.f32 0.0, %v4995
    %v4997 = vpop.f32.mrb[0].mxu0
    %4998 = vmatprep.mubr.f32.mxu0 0.0
    %4999 = vmatmul.mubr.f32.gmra.mrb[0].mxu0 %v4041
    %v5000 = vpop.f32.mrb[0].mxu0
    %v5001 = vadd.f32 0.0, %v5000
    %v5002 = vpop.f32.mrb[0].mxu0
    %5003 = vmatprep.mubr.f32.mxu0 0.0
    %5004 = vmatmul.mubr.f32.gmra.mrb[0].mxu0 %v4044
    %v5005 = vpop.f32.mrb[0].mxu0
    %v5006 = vadd.f32 0.0, %v5005
    %v5007 = vpop.f32.mrb[0].mxu0
    %5008 = vmatprep.mubr.f32.mxu0 0.0
    %5009 = vmatmul.mubr.f32.gmra.mrb[0].mxu0 %v4047
    %v5010 = vpop.f32.mrb[0].mxu0
    %v5011 = vadd.f32 0.0, %v5010
    %v5012 = vpop.f32.mrb[0].mxu0
    %5013 = vmatprep.mubr.f32.mxu0 0.0
    %5014 = vmatmul.mubr.f32.gmra.mrb[0].mxu0 %v4050
    %v5015 = vpop.f32.mrb[0].mxu0
    %v5016 = vadd.f32 0.0, %v5015
    %v5017 = vpop.f32.mrb[0].mxu0
    %5018 = vmatprep.mubr.f32.mxu0 0.0
    %5019 = vmatmul.mubr.f32.gmra.mrb[0].mxu0 %v4053
    %v5020 = vpop.f32.mrb[0].mxu0
    %v5021 = vadd.f32 0.0, %v5020
    %v5022 = vpop.f32.mrb[0].mxu0
    %5023 = vmatprep.mubr.f32.mxu0 0.0
    %5024 = vmatmul.mubr.f32.gmra.mrb[0].mxu0 %v4056
    %v5025 = vpop.f32.mrb[0].mxu0
    %v5026 = vadd.f32 0.0, %v5025
    %v5027 = vpop.f32.mrb[0].mxu0
    %5028 = vmatprep.mubr.f32.mxu0 0.0
    %5029 = vmatmul.mubr.f32.gmra.mrb[0].mxu0 %v4059
    %v5030 = vpop.f32.mrb[0].mxu0
    %v5031 = vadd.f32 0.0, %v5030
    %v5032 = vpop.f32.mrb[0].mxu0
    %5033 = vmatprep.mubr.f32.mxu0 0.0
    %5034 = vmatmul.mubr.f32.gmra.mrb[0].mxu0 %v4062
    %v5035 = vpop.f32.mrb[0].mxu0
    %v5036 = vadd.f32 0.0, %v5035
    %v5037 = vpop.f32.mrb[0].mxu0
    %5038 = vmatprep.mubr.f32.mxu0 0.0
    %5039 = vmatmul.mubr.f32.gmra.mrb[0].mxu0 %v4065
    %v5040 = vpop.f32.mrb[0].mxu0
    %v5041 = vadd.f32 0.0, %v5040
    %v5042 = vpop.f32.mrb[0].mxu0
    %5043 = vmatprep.mubr.f32.mxu0 0.0
    %5044 = vmatmul.mubr.f32.gmra.mrb[0].mxu0 %v4068
    %v5045 = vpop.f32.mrb[0].mxu0
    %v5046 = vadd.f32 0.0, %v5045
    %v5047 = vpop.f32.mrb[0].mxu0
    %5048 = vmatprep.mubr.f32.mxu0 0.0
    %5049 = vmatmul.mubr.f32.gmra.mrb[0].mxu0 %v4071
    %v5050 = vpop.f32.mrb[0].mxu0
    %v5051 = vadd.f32 0.0, %v5050
    %v5052 = vpop.f32.mrb[0].mxu0
    %5053 = vmatprep.mubr.f32.mxu0 0.0
    %5054 = vmatmul.mubr.f32.gmra.mrb[0].mxu0 %v4074
    %v5055 = vpop.f32.mrb[0].mxu0
    %v5056 = vadd.f32 0.0, %v5055
    %v5057 = vpop.f32.mrb[0].mxu0
    %5058 = vmatprep.mubr.f32.mxu0 0.0
    %5059 = vmatmul.mubr.f32.gmra.mrb[0].mxu0 %v4077
    %v5060 = vpop.f32.mrb[0].mxu0
    %v5061 = vadd.f32 0.0, %v5060
    %v5062 = vpop.f32.mrb[0].mxu0
    %5063 = vmatprep.mubr.f32.mxu0 0.0
    %5064 = vmatmul.mubr.f32.gmra.mrb[0].mxu0 %v4080
    %v5065 = vpop.f32.mrb[0].mxu0
    %v5066 = vadd.f32 0.0, %v5065
    %v5067 = vpop.f32.mrb[0].mxu0
    %5068 = vmatprep.mubr.f32.mxu0 0.0
    %5069 = vmatmul.mubr.f32.gmra.mrb[0].mxu0 %v4083
    %v5070 = vpop.f32.mrb[0].mxu0
    %v5071 = vadd.f32 0.0, %v5070
    %v5072 = vpop.f32.mrb[0].mxu0
    %5073 = vmatprep.mubr.f32.mxu0 0.0
    %5074 = vmatmul.mubr.f32.gmra.mrb[0].mxu0 %v4086
    %v5075 = vpop.f32.mrb[0].mxu0
    %v5076 = vadd.f32 0.0, %v5075
    %v5077 = vpop.f32.mrb[0].mxu0
    %5078 = vmatprep.mubr.f32.mxu0 0.0
    %5079 = vmatmul.mubr.f32.gmra.mrb[0].mxu0 %v4089
    %v5080 = vpop.f32.mrb[0].mxu0
    %v5081 = vadd.f32 0.0, %v5080
    %v5082 = vpop.f32.mrb[0].mxu0
    %5083 = vmatprep.mubr.f32.mxu0 0.0
    %5084 = vmatmul.mubr.f32.gmra.mrb[0].mxu0 %v4092
    %v5085 = vpop.f32.mrb[0].mxu0
    %v5086 = vadd.f32 0.0, %v5085
    %v5087 = vpop.f32.mrb[0].mxu0
    %5088 = vmatprep.mubr.f32.mxu0 0.0
    %5089 = vmatmul.mubr.f32.gmra.mrb[0].mxu0 %v4095
    %v5090 = vpop.f32.mrb[0].mxu0
    %v5091 = vadd.f32 0.0, %v5090
    %v5092 = vpop.f32.mrb[0].mxu0
    %5093 = vmatprep.mubr.f32.mxu0 0.0
    %5094 = vmatmul.mubr.f32.gmra.mrb[0].mxu0 %v4098
    %v5095 = vpop.f32.mrb[0].mxu0
    %v5096 = vadd.f32 0.0, %v5095
    %v5097 = vpop.f32.mrb[0].mxu0
    %5098 = vmatprep.mubr.f32.mxu0 0.0
    %5099 = vmatmul.mubr.f32.gmra.mrb[0].mxu0 %v4101
    %v5100 = vpop.f32.mrb[0].mxu0
    %v5101 = vadd.f32 0.0, %v5100
    %v5102 = vpop.f32.mrb[0].mxu0
    %5103 = vmatprep.mubr.f32.mxu0 0.0
    %5104 = vmatmul.mubr.f32.gmra.mrb[0].mxu0 %v4104
    %v5105 = vpop.f32.mrb[0].mxu0
    %v5106 = vadd.f32 0.0, %v5105
    %v5107 = vpop.f32.mrb[0].mxu0
    %5108 = vmatprep.mubr.f32.mxu0 0.0
    %5109 = vmatmul.mubr.f32.gmra.mrb[0].mxu0 %v4107
    %v5110 = vpop.f32.mrb[0].mxu0
    %v5111 = vadd.f32 0.0, %v5110
    %v5112 = vpop.f32.mrb[0].mxu0
    %5113 = vmatprep.mubr.f32.mxu0 0.0
    %5114 = vmatmul.mubr.f32.gmra.mrb[0].mxu0 %v4110
    %v5115 = vpop.f32.mrb[0].mxu0
    %v5116 = vadd.f32 0.0, %v5115
    %v5117 = vpop.f32.mrb[0].mxu0
    %5118 = vmatprep.mubr.f32.mxu0 0.0
    %5119 = vmatmul.mubr.f32.gmra.mrb[0].mxu0 %v4113
    %v5120 = vpop.f32.mrb[0].mxu0
    %v5121 = vadd.f32 0.0, %v5120
    %v5122 = vpop.f32.mrb[0].mxu0
    %5123 = vmatprep.mubr.f32.mxu0 0.0
    %5124 = vmatmul.mubr.f32.gmra.mrb[0].mxu0 %v4116
    %v5125 = vpop.f32.mrb[0].mxu0
    %v5126 = vadd.f32 0.0, %v5125
    %v5127 = vpop.f32.mrb[0].mxu0
    %5128 = vmatprep.mubr.f32.mxu0 0.0
    %5129 = vmatmul.mubr.f32.gmra.mrb[0].mxu0 %v4119
    %v5130 = vpop.f32.mrb[0].mxu0
    %v5131 = vadd.f32 0.0, %v5130
    %v5132 = vpop.f32.mrb[0].mxu0
    %5133 = vmatprep.mubr.f32.mxu0 0.0
    %5134 = vmatmul.mubr.f32.gmra.mrb[0].mxu0 %v4122
    %v5135 = vpop.f32.mrb[0].mxu0
    %v5136 = vadd.f32 0.0, %v5135
    %v5137 = vpop.f32.mrb[0].mxu0
    %5138 = vmatprep.mubr.f32.mxu0 0.0
    %5139 = vmatmul.mubr.f32.gmra.mrb[0].mxu0 %v4125
    %v5140 = vpop.f32.mrb[0].mxu0
    %v5141 = vadd.f32 0.0, %v5140
    %v5142 = vpop.f32.mrb[0].mxu0
    %5143 = vmatprep.mubr.f32.mxu0 0.0
    %5144 = vmatmul.mubr.f32.gmra.mrb[0].mxu0 %v4128
    %v5145 = vpop.f32.mrb[0].mxu0
    %v5146 = vadd.f32 0.0, %v5145
    %v5147 = vpop.f32.mrb[0].mxu0
    %5148 = vmatprep.mubr.f32.mxu0 0.0
    %5149 = vmatmul.mubr.f32.gmra.mrb[0].mxu0 %v4131
    %v5150 = vpop.f32.mrb[0].mxu0
    %v5151 = vadd.f32 0.0, %v5150
    %v5152 = vpop.f32.mrb[0].mxu0
    %5153 = vmatprep.mubr.f32.mxu0 0.0
    %5154 = vmatmul.mubr.f32.gmra.mrb[0].mxu0 %v4134
    %v5155 = vpop.f32.mrb[0].mxu0
    %v5156 = vadd.f32 0.0, %v5155
    %v5157 = vpop.f32.mrb[0].mxu0
    %5158 = vmatprep.mubr.f32.mxu0 0.0
    %5159 = vmatmul.mubr.f32.gmra.mrb[0].mxu0 %v4137
    %v5160 = vpop.f32.mrb[0].mxu0
    %v5161 = vadd.f32 0.0, %v5160
    %v5162 = vpop.f32.mrb[0].mxu0
    %5163 = vmatprep.mubr.f32.mxu0 0.0
    %5164 = vmatmul.mubr.f32.gmra.mrb[0].mxu0 %v4140
    %v5165 = vpop.f32.mrb[0].mxu0
    %v5166 = vadd.f32 0.0, %v5165
    %v5167 = vpop.f32.mrb[0].mxu0
    %5168 = vmatprep.mubr.f32.mxu0 0.0
    %5169 = vmatmul.mubr.f32.gmra.mrb[0].mxu0 %v4143
    %v5170 = vpop.f32.mrb[0].mxu0
    %v5171 = vadd.f32 0.0, %v5170
    %v5172 = vpop.f32.mrb[0].mxu0
    %5173 = vmatprep.mubr.f32.mxu0 0.0
    %5174 = vmatmul.mubr.f32.gmra.mrb[0].mxu0 %v4146
    %v5175 = vpop.f32.mrb[0].mxu0
    %v5176 = vadd.f32 0.0, %v5175
    %v5177 = vpop.f32.mrb[0].mxu0
    %5178 = vmatprep.mubr.f32.mxu0 0.0
    %5179 = vmatmul.mubr.f32.gmra.mrb[0].mxu0 %v4149
    %v5180 = vpop.f32.mrb[0].mxu0
    %v5181 = vadd.f32 0.0, %v5180
    %v5182 = vpop.f32.mrb[0].mxu0
    %5183 = vmatprep.mubr.f32.mxu0 0.0
    %5184 = vmatmul.mubr.f32.gmra.mrb[0].mxu0 %v4152
    %v5185 = vpop.f32.mrb[0].mxu0
    %v5186 = vadd.f32 0.0, %v5185
    %v5187 = vpop.f32.mrb[0].mxu0
    %5188 = vmatprep.mubr.f32.mxu0 0.0
    %5189 = vmatmul.mubr.f32.gmra.mrb[0].mxu0 %v4155
    %v5190 = vpop.f32.mrb[0].mxu0
    %v5191 = vadd.f32 0.0, %v5190
    %v5192 = vpop.f32.mrb[0].mxu0
    %5193 = vmatprep.mubr.f32.mxu0 0.0
    %5194 = vmatmul.mubr.f32.gmra.mrb[0].mxu0 %v4158
    %v5195 = vpop.f32.mrb[0].mxu0
    %v5196 = vadd.f32 0.0, %v5195
    %v5197 = vpop.f32.mrb[0].mxu0
    %5198 = vmatprep.mubr.f32.mxu0 0.0
    %5199 = vmatmul.mubr.f32.gmra.mrb[0].mxu0 %v4161
    %v5200 = vpop.f32.mrb[0].mxu0
    %v5201 = vadd.f32 0.0, %v5200
    %v5202 = vpop.f32.mrb[0].mxu0
    %5203 = vmatprep.mubr.f32.mxu0 0.0
    %5204 = vmatmul.mubr.f32.gmra.mrb[0].mxu0 %v4164
    %v5205 = vpop.f32.mrb[0].mxu0
    %v5206 = vadd.f32 0.0, %v5205
    %v5207 = vpop.f32.mrb[0].mxu0
    %5208 = vmatprep.mubr.f32.mxu0 0.0
    %5209 = vmatmul.mubr.f32.gmra.mrb[0].mxu0 %v4167
    %v5210 = vpop.f32.mrb[0].mxu0
    %v5211 = vadd.f32 0.0, %v5210
    %v5212 = vpop.f32.mrb[0].mxu0
    %5213 = vmatprep.mubr.f32.mxu0 0.0
    %5214 = vmatmul.mubr.f32.gmra.mrb[0].mxu0 %v4170
    %v5215 = vpop.f32.mrb[0].mxu0
    %v5216 = vadd.f32 0.0, %v5215
    %v5217 = vpop.f32.mrb[0].mxu0
    %5218 = vmatprep.mubr.f32.mxu0 0.0
    %5219 = vmatmul.mubr.f32.gmra.mrb[0].mxu0 %v4173
    %v5220 = vpop.f32.mrb[0].mxu0
    %v5221 = vadd.f32 0.0, %v5220
    %v5222 = vpop.f32.mrb[0].mxu0
    %5223 = vmatprep.mubr.f32.mxu0 0.0
    %5224 = vmatmul.mubr.f32.gmra.mrb[0].mxu0 %v4176
    %v5225 = vpop.f32.mrb[0].mxu0
    %v5226 = vadd.f32 0.0, %v5225
    %v5227 = vpop.f32.mrb[0].mxu0
    %5228 = vmatprep.mubr.f32.mxu0 0.0
    %5229 = vmatmul.mubr.f32.gmra.mrb[0].mxu0 %v4179
    %v5230 = vpop.f32.mrb[0].mxu0
    %v5231 = vadd.f32 0.0, %v5230
    %v5232 = vpop.f32.mrb[0].mxu0
    %5233 = vmatprep.mubr.f32.mxu0 0.0
    %5234 = vmatmul.mubr.f32.gmra.mrb[0].mxu0 %v4182
    %v5235 = vpop.f32.mrb[0].mxu0
    %v5236 = vadd.f32 0.0, %v5235
    %v5237 = vpop.f32.mrb[0].mxu0
    %5238 = vmatprep.mubr.f32.mxu0 0.0
    %5239 = vmatmul.mubr.f32.gmra.mrb[0].mxu0 %v4185
    %v5240 = vpop.f32.mrb[0].mxu0
    %v5241 = vadd.f32 0.0, %v5240
    %v5242 = vpop.f32.mrb[0].mxu0
    %5243 = vmatprep.mubr.f32.mxu0 0.0
    %5244 = vmatmul.mubr.f32.gmra.mrb[0].mxu0 %v4188
    %v5245 = vpop.f32.mrb[0].mxu0
    %v5246 = vadd.f32 0.0, %v5245
    %v5247 = vpop.f32.mrb[0].mxu0
    %5248 = vmatprep.mubr.f32.mxu0 0.0
    %5249 = vmatmul.mubr.f32.gmra.mrb[0].mxu0 %v4191
    %v5250 = vpop.f32.mrb[0].mxu0
    %v5251 = vadd.f32 0.0, %v5250
    %v5252 = vpop.f32.mrb[0].mxu0
    %5253 = vmatprep.mubr.f32.mxu0 0.0
    %5254 = vmatmul.mubr.f32.gmra.mrb[0].mxu0 %v4194
    %v5255 = vpop.f32.mrb[0].mxu0
    %v5256 = vadd.f32 0.0, %v5255
    %v5257 = vpop.f32.mrb[0].mxu0
    %5258 = vmatprep.mubr.f32.mxu0 0.0
    %5259 = vmatmul.mubr.f32.gmra.mrb[0].mxu0 %v4197
    %v5260 = vpop.f32.mrb[0].mxu0
    %v5261 = vadd.f32 0.0, %v5260
    %v5262 = vpop.f32.mrb[0].mxu0
    %5263 = vmatprep.mubr.f32.mxu0 0.0
    %5264 = vmatmul.mubr.f32.gmra.mrb[0].mxu0 %v4200
    %v5265 = vpop.f32.mrb[0].mxu0
    %v5266 = vadd.f32 0.0, %v5265
    %v5267 = vpop.f32.mrb[0].mxu0
    %5268 = vmatprep.mubr.f32.mxu0 0.0
    %5269 = vmatmul.mubr.f32.gmra.mrb[0].mxu0 %v4203
    %v5270 = vpop.f32.mrb[0].mxu0
    %v5271 = vadd.f32 0.0, %v5270
    %v5272 = vpop.f32.mrb[0].mxu0
    %5273 = vmatprep.mubr.f32.mxu0 0.0
    %5274 = vmatmul.mubr.f32.gmra.mrb[0].mxu0 %v4206
    %v5275 = vpop.f32.mrb[0].mxu0
    %v5276 = vadd.f32 0.0, %v5275
    %v5277 = vpop.f32.mrb[0].mxu0
    %5278 = vmatprep.mubr.f32.mxu0 0.0
    %5279 = vmatmul.mubr.f32.gmra.mrb[0].mxu0 %v4209
    %v5280 = vpop.f32.mrb[0].mxu0
    %v5281 = vadd.f32 0.0, %v5280
    %v5282 = vpop.f32.mrb[0].mxu0
    %5283 = vmatprep.mubr.f32.mxu0 0.0
    %5284 = vmatmul.mubr.f32.gmra.mrb[0].mxu0 %v4212
    %v5285 = vpop.f32.mrb[0].mxu0
    %v5286 = vadd.f32 0.0, %v5285
    %v5287 = vpop.f32.mrb[0].mxu0
    %5288 = vmatprep.mubr.f32.mxu0 0.0
    %5289 = vmatmul.mubr.f32.gmra.mrb[0].mxu0 %v4215
    %v5290 = vpop.f32.mrb[0].mxu0
    %v5291 = vadd.f32 0.0, %v5290
    %v5292 = vpop.f32.mrb[0].mxu0
    %5293 = vmatprep.mubr.f32.mxu0 0.0
    %5294 = vmatmul.mubr.f32.gmra.mrb[0].mxu0 %v4218
    %v5295 = vpop.f32.mrb[0].mxu0
    %v5296 = vadd.f32 0.0, %v5295
    %v5297 = vpop.f32.mrb[0].mxu0
    %5298 = vmatprep.mubr.f32.mxu0 0.0
    %5299 = vmatmul.mubr.f32.gmra.mrb[0].mxu0 %v4221
    %v5300 = vpop.f32.mrb[0].mxu0
    %v5301 = vadd.f32 0.0, %v5300
    %v5302 = vpop.f32.mrb[0].mxu0
    %5303 = vmatprep.mubr.f32.mxu0 0.0
    %5304 = vmatmul.mubr.f32.gmra.mrb[0].mxu0 %v4224
    %v5305 = vpop.f32.mrb[0].mxu0
    %v5306 = vadd.f32 0.0, %v5305
    %v5307 = vpop.f32.mrb[0].mxu0
    %5308 = vmatprep.mubr.f32.mxu0 0.0
    %5309 = vmatmul.mubr.f32.gmra.mrb[0].mxu0 %v4227
    %v5310 = vpop.f32.mrb[0].mxu0
    %v5311 = vadd.f32 0.0, %v5310
    %v5312 = vpop.f32.mrb[0].mxu0
    %5313 = vmatprep.mubr.f32.mxu0 0.0
    %5314 = vmatmul.mubr.f32.gmra.mrb[0].mxu0 %v4230
    %v5315 = vpop.f32.mrb[0].mxu0
    %v5316 = vadd.f32 0.0, %v5315
    %v5317 = vpop.f32.mrb[0].mxu0
    %5318 = vmatprep.mubr.f32.mxu0 0.0
    %5319 = vmatmul.mubr.f32.gmra.mrb[0].mxu0 %v4233
    %v5320 = vpop.f32.mrb[0].mxu0
    %v5321 = vadd.f32 0.0, %v5320
    %v5322 = vpop.f32.mrb[0].mxu0
    %5323 = vmatprep.mubr.f32.mxu0 0.0
    %5324 = vmatmul.mubr.f32.gmra.mrb[0].mxu0 %v4236
    %v5325 = vpop.f32.mrb[0].mxu0
    %v5326 = vadd.f32 0.0, %v5325
    %v5327 = vpop.f32.mrb[0].mxu0
    %5328 = vmatprep.mubr.f32.mxu0 0.0
    %5329 = vmatmul.mubr.f32.gmra.mrb[0].mxu0 %v4239
    %v5330 = vpop.f32.mrb[0].mxu0
    %v5331 = vadd.f32 0.0, %v5330
    %v5332 = vpop.f32.mrb[0].mxu0
    %5333 = vmatprep.mubr.f32.mxu0 0.0
    %5334 = vmatmul.mubr.f32.gmra.mrb[0].mxu0 %v4242
    %v5335 = vpop.f32.mrb[0].mxu0
    %v5336 = vadd.f32 0.0, %v5335
    %v5337 = vpop.f32.mrb[0].mxu0
    %5338 = vmatprep.mubr.f32.mxu0 0.0
    %5339 = vmatmul.mubr.f32.gmra.mrb[0].mxu0 %v4245
    %v5340 = vpop.f32.mrb[0].mxu0
    %v5341 = vadd.f32 0.0, %v5340
    %v5342 = vpop.f32.mrb[0].mxu0
    %5343 = vmatprep.mubr.f32.mxu0 0.0
    %5344 = vmatmul.mubr.f32.gmra.mrb[0].mxu0 %v4248
    %v5345 = vpop.f32.mrb[0].mxu0
    %v5346 = vadd.f32 0.0, %v5345
    %v5347 = vpop.f32.mrb[0].mxu0
    %5348 = vmatprep.mubr.f32.mxu0 0.0
    %5349 = vmatmul.mubr.f32.gmra.mrb[0].mxu0 %v4251
    %v5350 = vpop.f32.mrb[0].mxu0
    %v5351 = vadd.f32 0.0, %v5350
    %v5352 = vpop.f32.mrb[0].mxu0
    %5353 = vmatprep.mubr.f32.mxu0 0.0
    %5354 = vmatmul.mubr.f32.gmra.mrb[0].mxu0 %v4254
    %v5355 = vpop.f32.mrb[0].mxu0
    %v5356 = vadd.f32 0.0, %v5355
    %v5357 = vpop.f32.mrb[0].mxu0
    %5358 = vmatprep.mubr.f32.mxu0 0.0
    %5359 = vmatmul.mubr.f32.gmra.mrb[0].mxu0 %v4257
    %v5360 = vpop.f32.mrb[0].mxu0
    %v5361 = vadd.f32 0.0, %v5360
    %v5362 = vpop.f32.mrb[0].mxu0
    %5363 = vmatprep.mubr.f32.mxu0 0.0
    %5364 = vmatmul.mubr.f32.gmra.mrb[0].mxu0 %v4260
    %v5365 = vpop.f32.mrb[0].mxu0
    %v5366 = vadd.f32 0.0, %v5365
    %v5367 = vpop.f32.mrb[0].mxu0
    %5368 = vmatprep.mubr.f32.mxu0 0.0
    %5369 = vmatmul.mubr.f32.gmra.mrb[0].mxu0 %v4263
    %v5370 = vpop.f32.mrb[0].mxu0
    %v5371 = vadd.f32 0.0, %v5370
    %v5372 = vpop.f32.mrb[0].mxu0
    %5373 = vmatprep.mubr.f32.mxu0 0.0
    %5374 = vmatmul.mubr.f32.gmra.mrb[0].mxu0 %v4266
    %v5375 = vpop.f32.mrb[0].mxu0
    %v5376 = vadd.f32 0.0, %v5375
    %v5377 = vpop.f32.mrb[0].mxu0
    %5378 = vmatprep.mubr.f32.mxu0 0.0
    %5379 = vmatmul.mubr.f32.gmra.mrb[0].mxu0 %v4269
    %v5380 = vpop.f32.mrb[0].mxu0
    %v5381 = vadd.f32 0.0, %v5380
    %v5382 = vpop.f32.mrb[0].mxu0
    %5383 = vmatprep.mubr.f32.mxu0 0.0
    %5384 = vmatmul.mubr.f32.gmra.mrb[0].mxu0 %v4272
    %v5385 = vpop.f32.mrb[0].mxu0
    %v5386 = vadd.f32 0.0, %v5385
    %v5387 = vpop.f32.mrb[0].mxu0
    %5388 = vmatprep.mubr.f32.mxu0 0.0
    %5389 = vmatmul.mubr.f32.gmra.mrb[0].mxu0 %v4275
    %v5390 = vpop.f32.mrb[0].mxu0
    %v5391 = vadd.f32 0.0, %v5390
    %v5392 = vpop.f32.mrb[0].mxu0
    %5393 = vmatprep.mubr.f32.mxu0 0.0
    %5394 = vmatmul.mubr.f32.gmra.mrb[0].mxu0 %v4278
    %v5395 = vpop.f32.mrb[0].mxu0
    %v5396 = vadd.f32 0.0, %v5395
    %v5397 = vpop.f32.mrb[0].mxu0
    %5398 = vmatprep.mubr.f32.mxu0 0.0
    %5399 = vmatmul.mubr.f32.gmra.mrb[0].mxu0 %v4281
    %v5400 = vpop.f32.mrb[0].mxu0
    %v5401 = vadd.f32 0.0, %v5400
    %v5402 = vpop.f32.mrb[0].mxu0
    %5403 = vmatprep.mubr.f32.mxu0 0.0
    %5404 = vmatmul.mubr.f32.gmra.mrb[0].mxu0 %v4284
    %v5405 = vpop.f32.mrb[0].mxu0
    %v5406 = vadd.f32 0.0, %v5405
    %v5407 = vpop.f32.mrb[0].mxu0
    %5408 = vmatprep.mubr.f32.mxu0 0.0
    %5409 = vmatmul.mubr.f32.gmra.mrb[0].mxu0 %v4287
    %v5410 = vpop.f32.mrb[0].mxu0
    %v5411 = vadd.f32 0.0, %v5410
    %v5412 = vpop.f32.mrb[0].mxu0
    %5413 = vmatprep.mubr.f32.mxu0 0.0
    %5414 = vmatmul.mubr.f32.gmra.mrb[0].mxu0 %v4290
    %v5415 = vpop.f32.mrb[0].mxu0
    %v5416 = vadd.f32 0.0, %v5415
    %v5417 = vpop.f32.mrb[0].mxu0
    %5418 = vmatprep.mubr.f32.mxu0 0.0
    %5419 = vmatmul.mubr.f32.gmra.mrb[0].mxu0 %v4293
    %v5420 = vpop.f32.mrb[0].mxu0
    %v5421 = vadd.f32 0.0, %v5420
    %v5422 = vpop.f32.mrb[0].mxu0
    %5423 = vmatprep.mubr.f32.mxu0 0.0
    %5424 = vmatmul.mubr.f32.gmra.mrb[0].mxu0 %v4296
    %v5425 = vpop.f32.mrb[0].mxu0
    %v5426 = vadd.f32 0.0, %v5425
    %v5427 = vpop.f32.mrb[0].mxu0
    %5428 = vmatprep.mubr.f32.mxu0 0.0
    %5429 = vmatmul.mubr.f32.gmra.mrb[0].mxu0 %v4299
    %v5430 = vpop.f32.mrb[0].mxu0
    %v5431 = vadd.f32 0.0, %v5430
    %v5432 = vpop.f32.mrb[0].mxu0
    %5433 = vmatprep.mubr.f32.mxu0 0.0
    %5434 = vmatmul.mubr.f32.gmra.mrb[0].mxu0 %v4302
    %v5435 = vpop.f32.mrb[0].mxu0
    %v5436 = vadd.f32 0.0, %v5435
    %v5437 = vpop.f32.mrb[0].mxu0
    %5438 = vmatprep.mubr.f32.mxu0 0.0
    %5439 = vmatmul.mubr.f32.gmra.mrb[0].mxu0 %v4305
    %v5440 = vpop.f32.mrb[0].mxu0
    %v5441 = vadd.f32 0.0, %v5440
    %v5442 = vpop.f32.mrb[0].mxu0
    %5443 = vmatprep.mubr.f32.mxu0 0.0
    %5444 = vmatmul.mubr.f32.gmra.mrb[0].mxu0 %v4308
    %v5445 = vpop.f32.mrb[0].mxu0
    %v5446 = vadd.f32 0.0, %v5445
    %v5447 = vpop.f32.mrb[0].mxu0
    %5448 = vmatprep.mubr.f32.mxu0 0.0
    %5449 = vmatmul.mubr.f32.gmra.mrb[0].mxu0 %v4311
    %v5450 = vpop.f32.mrb[0].mxu0
    %v5451 = vadd.f32 0.0, %v5450
    %v5452 = vpop.f32.mrb[0].mxu0
    %5453 = vmatprep.mubr.f32.mxu0 0.0
    %5454 = vmatmul.mubr.f32.gmra.mrb[0].mxu0 %v4314
    %v5455 = vpop.f32.mrb[0].mxu0
    %v5456 = vadd.f32 0.0, %v5455
    %v5457 = vpop.f32.mrb[0].mxu0
    %5458 = vmatprep.mubr.f32.mxu0 0.0
    %5459 = vmatmul.mubr.f32.gmra.mrb[0].mxu0 %v4317
    %v5460 = vpop.f32.mrb[0].mxu0
    %v5461 = vadd.f32 0.0, %v5460
    %v5462 = vpop.f32.mrb[0].mxu0
    %5463 = vmatprep.mubr.f32.mxu0 0.0
    %5464 = vmatmul.mubr.f32.gmra.mrb[0].mxu0 %v4320
    %v5465 = vpop.f32.mrb[0].mxu0
    %v5466 = vadd.f32 0.0, %v5465
    %v5467 = vpop.f32.mrb[0].mxu0
    %5468 = vmatprep.mubr.f32.mxu0 0.0
    %5469 = vmatmul.mubr.f32.gmra.mrb[0].mxu0 %v4323
    %v5470 = vpop.f32.mrb[0].mxu0
    %v5471 = vadd.f32 0.0, %v5470
    %v5472 = vpop.f32.mrb[0].mxu0
    %5473 = vmatprep.mubr.f32.mxu0 0.0
    %5474 = vmatmul.mubr.f32.gmra.mrb[0].mxu0 %v4326
    %v5475 = vpop.f32.mrb[0].mxu0
    %v5476 = vadd.f32 0.0, %v5475
    %v5477 = vpop.f32.mrb[0].mxu0
    %5478 = vmatprep.mubr.f32.mxu0 0.0
    %5479 = vmatmul.mubr.f32.gmra.mrb[0].mxu0 %v4329
    %v5480 = vpop.f32.mrb[0].mxu0
    %v5481 = vadd.f32 0.0, %v5480
    %v5482 = vpop.f32.mrb[0].mxu0
    %5483 = vmatprep.mubr.f32.mxu0 0.0
    %5484 = vmatmul.mubr.f32.gmra.mrb[0].mxu0 %v4332
    %v5485 = vpop.f32.mrb[0].mxu0
    %v5486 = vadd.f32 0.0, %v5485
    %v5487 = vpop.f32.mrb[0].mxu0
    %5488 = vmatprep.mubr.f32.mxu0 0.0
    %5489 = vmatmul.mubr.f32.gmra.mrb[0].mxu0 %v4335
    %v5490 = vpop.f32.mrb[0].mxu0
    %v5491 = vadd.f32 0.0, %v5490
    %v5492 = vpop.f32.mrb[0].mxu0
    %5493 = vmatprep.mubr.f32.mxu0 0.0
    %5494 = vmatmul.mubr.f32.gmra.mrb[0].mxu0 %v4338
    %v5495 = vpop.f32.mrb[0].mxu0
    %v5496 = vadd.f32 0.0, %v5495
    %v5497 = vpop.f32.mrb[0].mxu0
    %5498 = vmatprep.mubr.f32.mxu0 0.0
    %5499 = vmatmul.mubr.f32.gmra.mrb[0].mxu0 %v4341
    %v5500 = vpop.f32.mrb[0].mxu0
    %v5501 = vadd.f32 0.0, %v5500
    %v5502 = vpop.f32.mrb[0].mxu0
    %5503 = vmatprep.mubr.f32.mxu0 0.0
    %5504 = vmatmul.mubr.f32.gmra.mrb[0].mxu0 %v4344
    %v5505 = vpop.f32.mrb[0].mxu0
    %v5506 = vadd.f32 0.0, %v5505
    %v5507 = vpop.f32.mrb[0].mxu0
    %5508 = vmatprep.mubr.f32.mxu0 0.0
    %5509 = vmatmul.mubr.f32.gmra.mrb[0].mxu0 %v4347
    %v5510 = vpop.f32.mrb[0].mxu0
    %v5511 = vadd.f32 0.0, %v5510
    %v5512 = vpop.f32.mrb[0].mxu0
    %5513 = vmatprep.mubr.f32.mxu0 0.0
    %5514 = vmatmul.mubr.f32.gmra.mrb[0].mxu0 %v4350
    %v5515 = vpop.f32.mrb[0].mxu0
    %v5516 = vadd.f32 0.0, %v5515
    %v5517 = vpop.f32.mrb[0].mxu0
    %5518 = vmatprep.mubr.f32.mxu0 0.0
    %5519 = vmatmul.mubr.f32.gmra.mrb[0].mxu0 %v4353
    %v5520 = vpop.f32.mrb[0].mxu0
    %v5521 = vadd.f32 0.0, %v5520
    %v5522 = vpop.f32.mrb[0].mxu0
    %5523 = vmatprep.mubr.f32.mxu0 0.0
    %5524 = vmatmul.mubr.f32.gmra.mrb[0].mxu0 %v4356
    %v5525 = vpop.f32.mrb[0].mxu0
    %v5526 = vadd.f32 0.0, %v5525
    %v5527 = vpop.f32.mrb[0].mxu0
    %5528 = vmatprep.mubr.f32.mxu0 0.0
    %5529 = vmatmul.mubr.f32.gmra.mrb[0].mxu0 %v4359
    %v5530 = vpop.f32.mrb[0].mxu0
    %v5531 = vadd.f32 0.0, %v5530
    %v5532 = vpop.f32.mrb[0].mxu0
    %5533 = vmatprep.mubr.f32.mxu0 0.0
    %5534 = vmatmul.mubr.f32.gmra.mrb[0].mxu0 %v4362
    %v5535 = vpop.f32.mrb[0].mxu0
    %v5536 = vadd.f32 0.0, %v5535
    %v5537 = vpop.f32.mrb[0].mxu0
    %5538 = vmatprep.mubr.f32.mxu0 0.0
    %5539 = vmatmul.mubr.f32.gmra.mrb[0].mxu0 %v4365
    %v5540 = vpop.f32.mrb[0].mxu0
    %v5541 = vadd.f32 0.0, %v5540
    %v5542 = vpop.f32.mrb[0].mxu0
    %5543 = vmatprep.mubr.f32.mxu0 0.0
    %5544 = vmatmul.mubr.f32.gmra.mrb[0].mxu0 %v4368
    %v5545 = vpop.f32.mrb[0].mxu0
    %v5546 = vadd.f32 0.0, %v5545
    %v5547 = vpop.f32.mrb[0].mxu0
    %5548 = vmatprep.mubr.f32.mxu0 0.0
    %5549 = vmatmul.mubr.f32.gmra.mrb[0].mxu0 %v4371
    %v5550 = vpop.f32.mrb[0].mxu0
    %v5551 = vadd.f32 0.0, %v5550
    %v5552 = vpop.f32.mrb[0].mxu0
    %5553 = vmatprep.mubr.f32.mxu0 0.0
    %5554 = vmatmul.mubr.f32.gmra.mrb[0].mxu0 %v4374
    %v5555 = vpop.f32.mrb[0].mxu0
    %v5556 = vadd.f32 0.0, %v5555
    %v5557 = vpop.f32.mrb[0].mxu0
    %5558 = vmatprep.mubr.f32.mxu0 0.0
    %5559 = vmatmul.mubr.f32.gmra.mrb[0].mxu0 %v4377
    %v5560 = vpop.f32.mrb[0].mxu0
    %v5561 = vadd.f32 0.0, %v5560
    %v5562 = vpop.f32.mrb[0].mxu0
    %5563 = vmatprep.mubr.f32.mxu0 0.0
    %5564 = vmatmul.mubr.f32.gmra.mrb[0].mxu0 %v4380
    %v5565 = vpop.f32.mrb[0].mxu0
    %v5566 = vadd.f32 0.0, %v5565
    %v5567 = vpop.f32.mrb[0].mxu0
    %5568 = vmatprep.mubr.f32.mxu0 0.0
    %5569 = vmatmul.mubr.f32.gmra.mrb[0].mxu0 %v4383
    %v5570 = vpop.f32.mrb[0].mxu0
    %v5571 = vadd.f32 0.0, %v5570
    %v5572 = vpop.f32.mrb[0].mxu0
    %5573 = vmatprep.mubr.f32.mxu0 0.0
    %5574 = vmatmul.mubr.f32.gmra.mrb[0].mxu0 %v4386
    %v5575 = vpop.f32.mrb[0].mxu0
    %v5576 = vadd.f32 0.0, %v5575
    %v5577 = vpop.f32.mrb[0].mxu0
    %5578 = vmatprep.mubr.f32.mxu0 0.0
    %5579 = vmatmul.mubr.f32.gmra.mrb[0].mxu0 %v4389
    %v5580 = vpop.f32.mrb[0].mxu0
    %v5581 = vadd.f32 0.0, %v5580
    %v5582 = vpop.f32.mrb[0].mxu0
    %5583 = vmatprep.mubr.f32.mxu0 0.0
    %5584 = vmatmul.mubr.f32.gmra.mrb[0].mxu0 %v4392
    %v5585 = vpop.f32.mrb[0].mxu0
    %v5586 = vadd.f32 0.0, %v5585
    %v5587 = vpop.f32.mrb[0].mxu0
    %5588 = vmatprep.mubr.f32.mxu0 0.0
    %5589 = vmatmul.mubr.f32.gmra.mrb[0].mxu0 %v4395
    %v5590 = vpop.f32.mrb[0].mxu0
    %v5591 = vadd.f32 0.0, %v5590
    %v5592 = vpop.f32.mrb[0].mxu0
    %5593 = vmatprep.mubr.f32.mxu0 0.0
    %5594 = vmatmul.mubr.f32.gmra.mrb[0].mxu0 %v4398
    %v5595 = vpop.f32.mrb[0].mxu0
    %v5596 = vadd.f32 0.0, %v5595
    %v5597 = vpop.f32.mrb[0].mxu0
    %5598 = vmatprep.mubr.f32.mxu0 0.0
    %5599 = vmatmul.mubr.f32.gmra.mrb[0].mxu0 %v4401
    %v5600 = vpop.f32.mrb[0].mxu0
    %v5601 = vadd.f32 0.0, %v5600
    %v5602 = vpop.f32.mrb[0].mxu0
    %5603 = vmatprep.mubr.f32.mxu0 0.0
    %5604 = vmatmul.mubr.f32.gmra.mrb[0].mxu0 %v4404
    %v5605 = vpop.f32.mrb[0].mxu0
    %v5606 = vadd.f32 0.0, %v5605
    %v5607 = vpop.f32.mrb[0].mxu0
    %5608 = vmatprep.mubr.f32.mxu0 0.0
    %5609 = vmatmul.mubr.f32.gmra.mrb[0].mxu0 %v4407
    %v5610 = vpop.f32.mrb[0].mxu0
    %v5611 = vadd.f32 0.0, %v5610
    %v5612 = vpop.f32.mrb[0].mxu0
    %5613 = vmatprep.mubr.f32.mxu0 0.0
    %5614 = vmatmul.mubr.f32.gmra.mrb[0].mxu0 %v4410
    %v5615 = vpop.f32.mrb[0].mxu0
    %v5616 = vadd.f32 0.0, %v5615
    %v5617 = vpop.f32.mrb[0].mxu0
    %5618 = vmatprep.mubr.f32.mxu0 0.0
    %5619 = vmatmul.mubr.f32.gmra.mrb[0].mxu0 %v4413
    %v5620 = vpop.f32.mrb[0].mxu0
    %v5621 = vadd.f32 0.0, %v5620
    %v5622 = vpop.f32.mrb[0].mxu0
    %5623 = vmatprep.mubr.f32.mxu0 0.0
    %5624 = vmatmul.mubr.f32.gmra.mrb[0].mxu0 %v4416
    %v5625 = vpop.f32.mrb[0].mxu0
    %v5626 = vadd.f32 0.0, %v5625
    %v5627 = vpop.f32.mrb[0].mxu0
    %5628 = vmatprep.mubr.f32.mxu0 0.0
    %5629 = vmatmul.mubr.f32.gmra.mrb[0].mxu0 %v4419
    %v5630 = vpop.f32.mrb[0].mxu0
    %v5631 = vadd.f32 0.0, %v5630
    %v5632 = vpop.f32.mrb[0].mxu0
    %5633 = vmatprep.mubr.f32.mxu0 0.0
    %5634 = vmatmul.mubr.f32.gmra.mrb[0].mxu0 %v4422
    %v5635 = vpop.f32.mrb[0].mxu0
    %v5636 = vadd.f32 0.0, %v5635
    %v5637 = vpop.f32.mrb[0].mxu0
    %5638 = vmatprep.mubr.f32.mxu0 0.0
    %5639 = vmatmul.mubr.f32.gmra.mrb[0].mxu0 %v4425
    %v5640 = vpop.f32.mrb[0].mxu0
    %v5641 = vadd.f32 0.0, %v5640
    %v5642 = vpop.f32.mrb[0].mxu0
    %5643 = vmatprep.mubr.f32.mxu0 0.0
    %5644 = vmatmul.mubr.f32.gmra.mrb[0].mxu0 %v4428
    %v5645 = vpop.f32.mrb[0].mxu0
    %v5646 = vadd.f32 0.0, %v5645
    %v5647 = vpop.f32.mrb[0].mxu0
    %5648 = vmatprep.mubr.f32.mxu0 0.0
    %5649 = vmatmul.mubr.f32.gmra.mrb[0].mxu0 %v4431
    %v5650 = vpop.f32.mrb[0].mxu0
    %v5651 = vadd.f32 0.0, %v5650
    %v5652 = vpop.f32.mrb[0].mxu0
    %5653 = vmatprep.mubr.f32.mxu0 0.0
    %5654 = vmatmul.mubr.f32.gmra.mrb[0].mxu0 %v4434
    %v5655 = vpop.f32.mrb[0].mxu0
    %v5656 = vadd.f32 0.0, %v5655
    %v5657 = vpop.f32.mrb[0].mxu0
    %5658 = vmatprep.mubr.f32.mxu0 0.0
    %5659 = vmatmul.mubr.f32.gmra.mrb[0].mxu0 %v4437
    %v5660 = vpop.f32.mrb[0].mxu0
    %v5661 = vadd.f32 0.0, %v5660
    %v5662 = vpop.f32.mrb[0].mxu0
    %5663 = vmatprep.mubr.f32.mxu0 0.0
    %5664 = vmatmul.mubr.f32.gmra.mrb[0].mxu0 %v4440
    %v5665 = vpop.f32.mrb[0].mxu0
    %v5666 = vadd.f32 0.0, %v5665
    %v5667 = vpop.f32.mrb[0].mxu0
    %5668 = vmatprep.mubr.f32.mxu0 0.0
    %5669 = vmatmul.mubr.f32.gmra.mrb[0].mxu0 %v4443
    %v5670 = vpop.f32.mrb[0].mxu0
    %v5671 = vadd.f32 0.0, %v5670
    %v5672 = vpop.f32.mrb[0].mxu0
    %5673 = vmatprep.mubr.f32.mxu0 0.0
    %5674 = vmatmul.mubr.f32.gmra.mrb[0].mxu0 %v4446
    %v5675 = vpop.f32.mrb[0].mxu0
    %v5676 = vadd.f32 0.0, %v5675
    %v5677 = vpop.f32.mrb[0].mxu0
    %5678 = vmatprep.mubr.f32.mxu0 0.0
    %5679 = vmatmul.mubr.f32.gmra.mrb[0].mxu0 %v4449
    %v5680 = vpop.f32.mrb[0].mxu0
    %v5681 = vadd.f32 0.0, %v5680
    %v5682 = vpop.f32.mrb[0].mxu0
    %5683 = vmatprep.mubr.f32.mxu0 0.0
    %5684 = vmatmul.mubr.f32.gmra.mrb[0].mxu0 %v4452
    %v5685 = vpop.f32.mrb[0].mxu0
    %v5686 = vadd.f32 0.0, %v5685
    %v5687 = vpop.f32.mrb[0].mxu0
    %5688 = vmatprep.mubr.f32.mxu0 0.0
    %5689 = vmatmul.mubr.f32.gmra.mrb[0].mxu0 %v4455
    %v5690 = vpop.f32.mrb[0].mxu0
    %v5691 = vadd.f32 0.0, %v5690
    %v5692 = vpop.f32.mrb[0].mxu0
    %5693 = vmatprep.mubr.f32.mxu0 0.0
    %5694 = vmatmul.mubr.f32.gmra.mrb[0].mxu0 %v4458
    %v5695 = vpop.f32.mrb[0].mxu0
    %v5696 = vadd.f32 0.0, %v5695
    %v5697 = vpop.f32.mrb[0].mxu0
    %5698 = vmatprep.mubr.f32.mxu0 0.0
    %5699 = vmatmul.mubr.f32.gmra.mrb[0].mxu0 %v4461
    %v5700 = vpop.f32.mrb[0].mxu0
    %v5701 = vadd.f32 0.0, %v5700
    %v5702 = vpop.f32.mrb[0].mxu0
    %5703 = vmatprep.mubr.f32.mxu0 0.0
    %5704 = vmatmul.mubr.f32.gmra.mrb[0].mxu0 %v4464
    %v5705 = vpop.f32.mrb[0].mxu0
    %v5706 = vadd.f32 0.0, %v5705
    %v5707 = vpop.f32.mrb[0].mxu0
    %5708 = vmatprep.mubr.f32.mxu0 0.0
    %5709 = vmatmul.mubr.f32.gmra.mrb[0].mxu0 %v4467
    %v5710 = vpop.f32.mrb[0].mxu0
    %v5711 = vadd.f32 0.0, %v5710
    %v5712 = vpop.f32.mrb[0].mxu0
    %5713 = vmatprep.mubr.f32.mxu0 0.0
    %5714 = vmatmul.mubr.f32.gmra.mrb[0].mxu0 %v4470
    %v5715 = vpop.f32.mrb[0].mxu0
    %v5716 = vadd.f32 0.0, %v5715
    %v5717 = vpop.f32.mrb[0].mxu0
    %5718 = vmatprep.mubr.f32.mxu0 0.0
    %5719 = vmatmul.mubr.f32.gmra.mrb[0].mxu0 %v4473
    %v5720 = vpop.f32.mrb[0].mxu0
    %v5721 = vadd.f32 0.0, %v5720
    %v5722 = vpop.f32.mrb[0].mxu0
    %5723 = vmatprep.mubr.f32.mxu0 0.0
    %5724 = vmatmul.mubr.f32.gmra.mrb[0].mxu0 %v4476
    %v5725 = vpop.f32.mrb[0].mxu0
    %v5726 = vadd.f32 0.0, %v5725
    %v5727 = vpop.f32.mrb[0].mxu0
    %5728 = vmatprep.mubr.f32.mxu0 0.0
    %5729 = vmatmul.mubr.f32.gmra.mrb[0].mxu0 %v4479
    %v5730 = vpop.f32.mrb[0].mxu0
    %v5731 = vadd.f32 0.0, %v5730
    %v5732 = vpop.f32.mrb[0].mxu0
    %5733 = vmatprep.mubr.f32.mxu0 0.0
    %5734 = vmatmul.mubr.f32.gmra.mrb[0].mxu0 %v4482
    %v5735 = vpop.f32.mrb[0].mxu0
    %v5736 = vadd.f32 0.0, %v5735
    %v5737 = vpop.f32.mrb[0].mxu0
    %5738 = vmatprep.mubr.f32.mxu0 0.0
    %5739 = vmatmul.mubr.f32.gmra.mrb[0].mxu0 %v4485
    %v5740 = vpop.f32.mrb[0].mxu0
    %v5741 = vadd.f32 0.0, %v5740
    %v5742 = vpop.f32.mrb[0].mxu0
    %5743 = vmatprep.mubr.f32.mxu0 0.0
    %5744 = vmatmul.mubr.f32.gmra.mrb[0].mxu0 %v4488
    %v5745 = vpop.f32.mrb[0].mxu0
    %v5746 = vadd.f32 0.0, %v5745
    %v5747 = vpop.f32.mrb[0].mxu0
    %5748 = vmatprep.mubr.f32.mxu0 0.0
    %5749 = vmatmul.mubr.f32.gmra.mrb[0].mxu0 %v4491
    %v5750 = vpop.f32.mrb[0].mxu0
    %v5751 = vadd.f32 0.0, %v5750
    %v5752 = vpop.f32.mrb[0].mxu0
    %5753 = vmatprep.mubr.f32.mxu0 0.0
    %5754 = vmatmul.mubr.f32.gmra.mrb[0].mxu0 %v4494
    %v5755 = vpop.f32.mrb[0].mxu0
    %v5756 = vadd.f32 0.0, %v5755
    %v5757 = vpop.f32.mrb[0].mxu0
    %5758 = vmatprep.mubr.f32.mxu0 0.0
    %5759 = vmatmul.mubr.f32.gmra.mrb[0].mxu0 %v4497
    %v5760 = vpop.f32.mrb[0].mxu0
    %v5761 = vadd.f32 0.0, %v5760
    %v5762 = vpop.f32.mrb[0].mxu0
    %5763 = vmatprep.mubr.f32.mxu0 0.0
    %5764 = vmatmul.mubr.f32.gmra.mrb[0].mxu0 %v4500
    %v5765 = vpop.f32.mrb[0].mxu0
    %v5766 = vadd.f32 0.0, %v5765
    %v5767 = vpop.f32.mrb[0].mxu0
    %5768 = vmatprep.mubr.f32.mxu0 0.0
    %5769 = vmatmul.mubr.f32.gmra.mrb[0].mxu0 %v4503
    %v5770 = vpop.f32.mrb[0].mxu0
    %v5771 = vadd.f32 0.0, %v5770
    %v5772 = vpop.f32.mrb[0].mxu0
    %5773 = vmatprep.mubr.f32.mxu0 0.0
    %5774 = vmatmul.mubr.f32.gmra.mrb[0].mxu0 %v4506
    %v5775 = vpop.f32.mrb[0].mxu0
    %v5776 = vadd.f32 0.0, %v5775
    %v5777 = vpop.f32.mrb[0].mxu0
    %5778 = vmatprep.mubr.f32.mxu0 0.0
    %5779 = vmatmul.mubr.f32.gmra.mrb[0].mxu0 %v4509
    %v5780 = vpop.f32.mrb[0].mxu0
    %v5781 = vadd.f32 0.0, %v5780
    %v5782 = vpop.f32.mrb[0].mxu0
    %5783 = vmatprep.mubr.f32.mxu0 0.0
    %5784 = vmatmul.mubr.f32.gmra.mrb[0].mxu0 %v4512
    %v5785 = vpop.f32.mrb[0].mxu0
    %v5786 = vadd.f32 0.0, %v5785
    %v5787 = vpop.f32.mrb[0].mxu0
    %5788 = vmatprep.mubr.f32.mxu0 0.0
    %5789 = vmatmul.mubr.f32.gmra.mrb[0].mxu0 %v4515
    %v5790 = vpop.f32.mrb[0].mxu0
    %v5791 = vadd.f32 0.0, %v5790
    %v5792 = vpop.f32.mrb[0].mxu0
    %5793 = vmatprep.mubr.f32.mxu0 0.0
    %5794 = vmatmul.mubr.f32.gmra.mrb[0].mxu0 %v4518
    %v5795 = vpop.f32.mrb[0].mxu0
    %v5796 = vadd.f32 0.0, %v5795
    %v5797 = vpop.f32.mrb[0].mxu0
    %5798 = vmatprep.mubr.f32.mxu0 0.0
    %5799 = vmatmul.mubr.f32.gmra.mrb[0].mxu0 %v4521
    %v5800 = vpop.f32.mrb[0].mxu0
    %v5801 = vadd.f32 0.0, %v5800
    %v5802 = vpop.f32.mrb[0].mxu0
    %5803 = vmatprep.mubr.f32.mxu0 0.0
    %5804 = vmatmul.mubr.f32.gmra.mrb[0].mxu0 %v4524
    %v5805 = vpop.f32.mrb[0].mxu0
    %v5806 = vadd.f32 0.0, %v5805
    %v5807 = vpop.f32.mrb[0].mxu0
    %5808 = vmatprep.mubr.f32.mxu0 0.0
    %5809 = vmatmul.mubr.f32.gmra.mrb[0].mxu0 %v4527
    %v5810 = vpop.f32.mrb[0].mxu0
    %v5811 = vadd.f32 0.0, %v5810
    %v5812 = vpop.f32.mrb[0].mxu0
    %5813 = vmatprep.mubr.f32.mxu0 0.0
    %5814 = vmatmul.mubr.f32.gmra.mrb[0].mxu0 %v4530
    %v5815 = vpop.f32.mrb[0].mxu0
    %v5816 = vadd.f32 0.0, %v5815
    %v5817 = vpop.f32.mrb[0].mxu0
    %5818 = vmatprep.mubr.f32.mxu0 0.0
    %5819 = vmatmul.mubr.f32.gmra.mrb[0].mxu0 %v4533
    %v5820 = vpop.f32.mrb[0].mxu0
    %v5821 = vadd.f32 0.0, %v5820
    %v5822 = vpop.f32.mrb[0].mxu0
    %5823 = vmatprep.mubr.f32.mxu0 0.0
    %5824 = vmatmul.mubr.f32.gmra.mrb[0].mxu0 %v4536
    %v5825 = vpop.f32.mrb[0].mxu0
    %v5826 = vadd.f32 0.0, %v5825
    %v5827 = vpop.f32.mrb[0].mxu0
    %5828 = vmatprep.mubr.f32.mxu0 0.0
    %5829 = vmatmul.mubr.f32.gmra.mrb[0].mxu0 %v4539
    %v5830 = vpop.f32.mrb[0].mxu0
    %v5831 = vadd.f32 0.0, %v5830
    %v5832 = vpop.f32.mrb[0].mxu0
    %5833 = vmatprep.mubr.f32.mxu0 0.0
    %5834 = vmatmul.mubr.f32.gmra.mrb[0].mxu0 %v4542
    %v5835 = vpop.f32.mrb[0].mxu0
    %v5836 = vadd.f32 0.0, %v5835
    %v5837 = vpop.f32.mrb[0].mxu0
    %5838 = vmatprep.mubr.f32.mxu0 0.0
    %5839 = vmatmul.mubr.f32.gmra.mrb[0].mxu0 %v4545
    %v5840 = vpop.f32.mrb[0].mxu0
    %v5841 = vadd.f32 0.0, %v5840
    %v5842 = vpop.f32.mrb[0].mxu0
    %5843 = vmatprep.mubr.f32.mxu0 0.0
    %5844 = vmatmul.mubr.f32.gmra.mrb[0].mxu0 %v4548
    %v5845 = vpop.f32.mrb[0].mxu0
    %v5846 = vadd.f32 0.0, %v5845
    %v5847 = vpop.f32.mrb[0].mxu0
    %5848 = vmatprep.mubr.f32.mxu0 0.0
    %5849 = vmatmul.mubr.f32.gmra.mrb[0].mxu0 %v4551
    %v5850 = vpop.f32.mrb[0].mxu0
    %v5851 = vadd.f32 0.0, %v5850
    %v5852 = vpop.f32.mrb[0].mxu0
    %5853 = vmatprep.mubr.f32.mxu0 0.0
    %5854 = vmatmul.mubr.f32.gmra.mrb[0].mxu0 %v4554
    %v5855 = vpop.f32.mrb[0].mxu0
    %v5856 = vadd.f32 0.0, %v5855
    %v5857 = vpop.f32.mrb[0].mxu0
    %5858 = vmatprep.mubr.f32.mxu0 0.0
    %5859 = vmatmul.mubr.f32.gmra.mrb[0].mxu0 %v4557
    %v5860 = vpop.f32.mrb[0].mxu0
    %v5861 = vadd.f32 0.0, %v5860
    %v5862 = vpop.f32.mrb[0].mxu0
    %5863 = vmatprep.mubr.f32.mxu0 0.0
    %5864 = vmatmul.mubr.f32.gmra.mrb[0].mxu0 %v4560
    %v5865 = vpop.f32.mrb[0].mxu0
    %v5866 = vadd.f32 0.0, %v5865
    %v5867 = vpop.f32.mrb[0].mxu0
    %5868 = vmatprep.mubr.f32.mxu0 0.0
    %5869 = vmatmul.mubr.f32.gmra.mrb[0].mxu0 %v4563
    %v5870 = vpop.f32.mrb[0].mxu0
    %v5871 = vadd.f32 0.0, %v5870
    %v5872 = vpop.f32.mrb[0].mxu0
    %5873 = vmatprep.mubr.f32.mxu0 0.0
    %5874 = vmatmul.mubr.f32.gmra.mrb[0].mxu0 %v4566
    %v5875 = vpop.f32.mrb[0].mxu0
    %v5876 = vadd.f32 0.0, %v5875
    %v5877 = vpop.f32.mrb[0].mxu0
    %5878 = vmatprep.mubr.f32.mxu0 0.0
    %5879 = vmatmul.mubr.f32.gmra.mrb[0].mxu0 %v4569
    %v5880 = vpop.f32.mrb[0].mxu0
    %v5881 = vadd.f32 0.0, %v5880
    %v5882 = vpop.f32.mrb[0].mxu0
    %5883 = vmatprep.mubr.f32.mxu0 0.0
    %5884 = vmatmul.mubr.f32.gmra.mrb[0].mxu0 %v4572
    %v5885 = vpop.f32.mrb[0].mxu0
    %v5886 = vadd.f32 0.0, %v5885
    %v5887 = vpop.f32.mrb[0].mxu0
    %5888 = vmatprep.mubr.f32.mxu0 0.0
    %5889 = vmatmul.mubr.f32.gmra.mrb[0].mxu0 %v4575
    %v5890 = vpop.f32.mrb[0].mxu0
    %v5891 = vadd.f32 0.0, %v5890
    %v5892 = vpop.f32.mrb[0].mxu0
    %5893 = vmatprep.mubr.f32.mxu0 0.0
    %5894 = vmatmul.mubr.f32.gmra.mrb[0].mxu0 %v4578
    %v5895 = vpop.f32.mrb[0].mxu0
    %v5896 = vadd.f32 0.0, %v5895
    %v5897 = vpop.f32.mrb[0].mxu0
    %5898 = vmatprep.mubr.f32.mxu0 0.0
    %5899 = vmatmul.mubr.f32.gmra.mrb[0].mxu0 %v4581
    %v5900 = vpop.f32.mrb[0].mxu0
    %v5901 = vadd.f32 0.0, %v5900
    %v5902 = vpop.f32.mrb[0].mxu0
    %5903 = vmatprep.mubr.f32.mxu0 0.0
    %5904 = vmatmul.mubr.f32.gmra.mrb[0].mxu0 %v4584
    %v5905 = vpop.f32.mrb[0].mxu0
    %v5906 = vadd.f32 0.0, %v5905
    %v5907 = vpop.f32.mrb[0].mxu0
    %5908 = vmatprep.mubr.f32.mxu0 0.0
    %5909 = vmatmul.mubr.f32.gmra.mrb[0].mxu0 %v4587
    %v5910 = vpop.f32.mrb[0].mxu0
    %v5911 = vadd.f32 0.0, %v5910
    %v5912 = vpop.f32.mrb[0].mxu0
    %5913 = vmatprep.mubr.f32.mxu0 0.0
    %5914 = vmatmul.mubr.f32.gmra.mrb[0].mxu0 %v4590
    %v5915 = vpop.f32.mrb[0].mxu0
    %v5916 = vadd.f32 0.0, %v5915
    %v5917 = vpop.f32.mrb[0].mxu0
    %5918 = vmatprep.mubr.f32.mxu0 0.0
    %5919 = vmatmul.mubr.f32.gmra.mrb[0].mxu0 %v4593
    %v5920 = vpop.f32.mrb[0].mxu0
    %v5921 = vadd.f32 0.0, %v5920
    %v5922 = vpop.f32.mrb[0].mxu0
    %5923 = vmatprep.mubr.f32.mxu0 0.0
    %5924 = vmatmul.mubr.f32.gmra.mrb[0].mxu0 %v4596
    %v5925 = vpop.f32.mrb[0].mxu0
    %v5926 = vadd.f32 0.0, %v5925
    %v5927 = vpop.f32.mrb[0].mxu0
    %5928 = vmatprep.mubr.f32.mxu0 0.0
    %5929 = vmatmul.mubr.f32.gmra.mrb[0].mxu0 %v4599
    %v5930 = vpop.f32.mrb[0].mxu0
    %v5931 = vadd.f32 0.0, %v5930
    %v5932 = vpop.f32.mrb[0].mxu0
    %5933 = vmatprep.mubr.f32.mxu0 0.0
    %5934 = vmatmul.mubr.f32.gmra.mrb[0].mxu0 %v4602
    %v5935 = vpop.f32.mrb[0].mxu0
    %v5936 = vadd.f32 0.0, %v5935
    %v5937 = vpop.f32.mrb[0].mxu0
    %5938 = vmatprep.mubr.f32.mxu0 0.0
    %5939 = vmatmul.mubr.f32.gmra.mrb[0].mxu0 %v4605
    %v5940 = vpop.f32.mrb[0].mxu0
    %v5941 = vadd.f32 0.0, %v5940
    %v5942 = vpop.f32.mrb[0].mxu0
    %5943 = vmatprep.mubr.f32.mxu0 0.0
    %5944 = vmatmul.mubr.f32.gmra.mrb[0].mxu0 %v4608
    %v5945 = vpop.f32.mrb[0].mxu0
    %v5946 = vadd.f32 0.0, %v5945
    %v5947 = vpop.f32.mrb[0].mxu0
    %5948 = vmatprep.mubr.f32.mxu0 0.0
    %5949 = vmatmul.mubr.f32.gmra.mrb[0].mxu0 %v4611
    %v5950 = vpop.f32.mrb[0].mxu0
    %v5951 = vadd.f32 0.0, %v5950
    %v5952 = vpop.f32.mrb[0].mxu0
    %5953 = vmatprep.mubr.f32.mxu0 0.0
    %5954 = vmatmul.mubr.f32.gmra.mrb[0].mxu0 %v4614
    %v5955 = vpop.f32.mrb[0].mxu0
    %v5956 = vadd.f32 0.0, %v5955
    %v5957 = vpop.f32.mrb[0].mxu0
    %5958 = vmatprep.mubr.f32.mxu0 0.0
    %5959 = vmatmul.mubr.f32.gmra.mrb[0].mxu0 %v4617
    %v5960 = vpop.f32.mrb[0].mxu0
    %v5961 = vadd.f32 0.0, %v5960
    %v5962 = vpop.f32.mrb[0].mxu0
    %5963 = vdwg.mxu0
    %vm5964 = vcmp.gt.f32.partialorder %v1334, 0.0
    %vm5965 = vcmp.gt.f32.partialorder %v1337, 0.0
    %vm5966 = vcmp.gt.f32.partialorder %v1342, 0.0
    %vm5967 = vcmp.gt.f32.partialorder %v1345, 0.0
    %vm5968 = vcmp.gt.f32.partialorder %v1350, 0.0
    %vm5969 = vcmp.gt.f32.partialorder %v1353, 0.0
    %vm5970 = vcmp.gt.f32.partialorder %v1358, 0.0
    %vm5971 = vcmp.gt.f32.partialorder %v1361, 0.0
    %vm5972 = vcmp.gt.f32.partialorder %v1366, 0.0
    %vm5973 = vcmp.gt.f32.partialorder %v1369, 0.0
    %vm5974 = vcmp.gt.f32.partialorder %v1374, 0.0
    %vm5975 = vcmp.gt.f32.partialorder %v1377, 0.0
    %vm5976 = vcmp.gt.f32.partialorder %v1382, 0.0
    %vm5977 = vcmp.gt.f32.partialorder %v1385, 0.0
    %vm5978 = vcmp.gt.f32.partialorder %v1390, 0.0
    %vm5979 = vcmp.gt.f32.partialorder %v1393, 0.0
    %vm5980 = vcmp.gt.f32.partialorder %v1398, 0.0
    %vm5981 = vcmp.gt.f32.partialorder %v1401, 0.0
    %vm5982 = vcmp.gt.f32.partialorder %v1406, 0.0
    %vm5983 = vcmp.gt.f32.partialorder %v1409, 0.0
    %vm5984 = vcmp.gt.f32.partialorder %v1414, 0.0
    %vm5985 = vcmp.gt.f32.partialorder %v1417, 0.0
    %vm5986 = vcmp.gt.f32.partialorder %v1422, 0.0
    %vm5987 = vcmp.gt.f32.partialorder %v1425, 0.0
    %vm5988 = vcmp.gt.f32.partialorder %v1430, 0.0
    %vm5989 = vcmp.gt.f32.partialorder %v1433, 0.0
    %vm5990 = vcmp.gt.f32.partialorder %v1438, 0.0
    %vm5991 = vcmp.gt.f32.partialorder %v1441, 0.0
    %vm5992 = vcmp.gt.f32.partialorder %v1446, 0.0
    %vm5993 = vcmp.gt.f32.partialorder %v1449, 0.0
    %vm5994 = vcmp.gt.f32.partialorder %v1454, 0.0
    %vm5995 = vcmp.gt.f32.partialorder %v1457, 0.0
    %vm5996 = vcmp.gt.f32.partialorder %v1462, 0.0
    %vm5997 = vcmp.gt.f32.partialorder %v1465, 0.0
    %vm5998 = vcmp.gt.f32.partialorder %v1470, 0.0
    %vm5999 = vcmp.gt.f32.partialorder %v1473, 0.0
    %vm6000 = vcmp.gt.f32.partialorder %v1478, 0.0
    %vm6001 = vcmp.gt.f32.partialorder %v1481, 0.0
    %vm6002 = vcmp.gt.f32.partialorder %v1486, 0.0
    %vm6003 = vcmp.gt.f32.partialorder %v1489, 0.0
    %vm6004 = vcmp.gt.f32.partialorder %v1494, 0.0
    %vm6005 = vcmp.gt.f32.partialorder %v1497, 0.0
    %vm6006 = vcmp.gt.f32.partialorder %v1502, 0.0
    %vm6007 = vcmp.gt.f32.partialorder %v1505, 0.0
    %vm6008 = vcmp.gt.f32.partialorder %v1510, 0.0
    %vm6009 = vcmp.gt.f32.partialorder %v1513, 0.0
    %vm6010 = vcmp.gt.f32.partialorder %v1518, 0.0
    %vm6011 = vcmp.gt.f32.partialorder %v1521, 0.0
    %vm6012 = vcmp.gt.f32.partialorder %v1526, 0.0
    %vm6013 = vcmp.gt.f32.partialorder %v1529, 0.0
    %vm6014 = vcmp.gt.f32.partialorder %v1534, 0.0
    %vm6015 = vcmp.gt.f32.partialorder %v1537, 0.0
    %vm6016 = vcmp.gt.f32.partialorder %v1542, 0.0
    %vm6017 = vcmp.gt.f32.partialorder %v1545, 0.0
    %vm6018 = vcmp.gt.f32.partialorder %v1550, 0.0
    %vm6019 = vcmp.gt.f32.partialorder %v1553, 0.0
    %vm6020 = vcmp.gt.f32.partialorder %v1558, 0.0
    %vm6021 = vcmp.gt.f32.partialorder %v1561, 0.0
    %vm6022 = vcmp.gt.f32.partialorder %v1566, 0.0
    %vm6023 = vcmp.gt.f32.partialorder %v1569, 0.0
    %vm6024 = vcmp.gt.f32.partialorder %v1574, 0.0
    %vm6025 = vcmp.gt.f32.partialorder %v1577, 0.0
    %vm6026 = vcmp.gt.f32.partialorder %v1582, 0.0
    %vm6027 = vcmp.gt.f32.partialorder %v1585, 0.0
    %vm6028 = vcmp.gt.f32.partialorder %v1590, 0.0
    %vm6029 = vcmp.gt.f32.partialorder %v1593, 0.0
    %vm6030 = vcmp.gt.f32.partialorder %v1598, 0.0
    %vm6031 = vcmp.gt.f32.partialorder %v1601, 0.0
    %vm6032 = vcmp.gt.f32.partialorder %v1606, 0.0
    %vm6033 = vcmp.gt.f32.partialorder %v1609, 0.0
    %vm6034 = vcmp.gt.f32.partialorder %v1614, 0.0
    %vm6035 = vcmp.gt.f32.partialorder %v1617, 0.0
    %vm6036 = vcmp.gt.f32.partialorder %v1622, 0.0
    %vm6037 = vcmp.gt.f32.partialorder %v1625, 0.0
    %vm6038 = vcmp.gt.f32.partialorder %v1630, 0.0
    %vm6039 = vcmp.gt.f32.partialorder %v1633, 0.0
    %vm6040 = vcmp.gt.f32.partialorder %v1638, 0.0
    %vm6041 = vcmp.gt.f32.partialorder %v1641, 0.0
    %vm6042 = vcmp.gt.f32.partialorder %v1646, 0.0
    %vm6043 = vcmp.gt.f32.partialorder %v1649, 0.0
    %vm6044 = vcmp.gt.f32.partialorder %v1654, 0.0
    %vm6045 = vcmp.gt.f32.partialorder %v1657, 0.0
    %vm6046 = vcmp.gt.f32.partialorder %v1662, 0.0
    %vm6047 = vcmp.gt.f32.partialorder %v1665, 0.0
    %vm6048 = vcmp.gt.f32.partialorder %v1670, 0.0
    %vm6049 = vcmp.gt.f32.partialorder %v1673, 0.0
    %vm6050 = vcmp.gt.f32.partialorder %v1678, 0.0
    %vm6051 = vcmp.gt.f32.partialorder %v1681, 0.0
    %vm6052 = vcmp.gt.f32.partialorder %v1686, 0.0
    %vm6053 = vcmp.gt.f32.partialorder %v1689, 0.0
    %vm6054 = vcmp.gt.f32.partialorder %v1694, 0.0
    %vm6055 = vcmp.gt.f32.partialorder %v1697, 0.0
    %vm6056 = vcmp.gt.f32.partialorder %v1702, 0.0
    %vm6057 = vcmp.gt.f32.partialorder %v1705, 0.0
    %vm6058 = vcmp.gt.f32.partialorder %v1710, 0.0
    %vm6059 = vcmp.gt.f32.partialorder %v1713, 0.0
    %vm6060 = vcmp.gt.f32.partialorder %v1718, 0.0
    %vm6061 = vcmp.gt.f32.partialorder %v1721, 0.0
    %vm6062 = vcmp.gt.f32.partialorder %v1726, 0.0
    %vm6063 = vcmp.gt.f32.partialorder %v1729, 0.0
    %vm6064 = vcmp.gt.f32.partialorder %v1734, 0.0
    %vm6065 = vcmp.gt.f32.partialorder %v1737, 0.0
    %vm6066 = vcmp.gt.f32.partialorder %v1742, 0.0
    %vm6067 = vcmp.gt.f32.partialorder %v1745, 0.0
    %vm6068 = vcmp.gt.f32.partialorder %v1750, 0.0
    %vm6069 = vcmp.gt.f32.partialorder %v1753, 0.0
    %vm6070 = vcmp.gt.f32.partialorder %v1758, 0.0
    %vm6071 = vcmp.gt.f32.partialorder %v1761, 0.0
    %vm6072 = vcmp.gt.f32.partialorder %v1766, 0.0
    %vm6073 = vcmp.gt.f32.partialorder %v1769, 0.0
    %vm6074 = vcmp.gt.f32.partialorder %v1774, 0.0
    %vm6075 = vcmp.gt.f32.partialorder %v1777, 0.0
    %vm6076 = vcmp.gt.f32.partialorder %v1782, 0.0
    %vm6077 = vcmp.gt.f32.partialorder %v1785, 0.0
    %vm6078 = vcmp.gt.f32.partialorder %v1790, 0.0
    %vm6079 = vcmp.gt.f32.partialorder %v1793, 0.0
    %vm6080 = vcmp.gt.f32.partialorder %v1798, 0.0
    %vm6081 = vcmp.gt.f32.partialorder %v1801, 0.0
    %vm6082 = vcmp.gt.f32.partialorder %v1806, 0.0
    %vm6083 = vcmp.gt.f32.partialorder %v1809, 0.0
    %vm6084 = vcmp.gt.f32.partialorder %v1814, 0.0
    %vm6085 = vcmp.gt.f32.partialorder %v1817, 0.0
    %vm6086 = vcmp.gt.f32.partialorder %v1822, 0.0
    %vm6087 = vcmp.gt.f32.partialorder %v1825, 0.0
    %vm6088 = vcmp.gt.f32.partialorder %v1830, 0.0
    %vm6089 = vcmp.gt.f32.partialorder %v1833, 0.0
    %vm6090 = vcmp.gt.f32.partialorder %v1838, 0.0
    %vm6091 = vcmp.gt.f32.partialorder %v1841, 0.0
    %vm6092 = vcmp.gt.f32.partialorder %v1846, 0.0
    %vm6093 = vcmp.gt.f32.partialorder %v1849, 0.0
    %vm6094 = vcmp.gt.f32.partialorder %v1854, 0.0
    %vm6095 = vcmp.gt.f32.partialorder %v1857, 0.0
    %vm6096 = vcmp.gt.f32.partialorder %v1862, 0.0
    %vm6097 = vcmp.gt.f32.partialorder %v1865, 0.0
    %vm6098 = vcmp.gt.f32.partialorder %v1870, 0.0
    %vm6099 = vcmp.gt.f32.partialorder %v1873, 0.0
    %vm6100 = vcmp.gt.f32.partialorder %v1878, 0.0
    %vm6101 = vcmp.gt.f32.partialorder %v1881, 0.0
    %vm6102 = vcmp.gt.f32.partialorder %v1886, 0.0
    %vm6103 = vcmp.gt.f32.partialorder %v1889, 0.0
    %vm6104 = vcmp.gt.f32.partialorder %v1894, 0.0
    %vm6105 = vcmp.gt.f32.partialorder %v1897, 0.0
    %vm6106 = vcmp.gt.f32.partialorder %v1902, 0.0
    %vm6107 = vcmp.gt.f32.partialorder %v1905, 0.0
    %vm6108 = vcmp.gt.f32.partialorder %v1910, 0.0
    %vm6109 = vcmp.gt.f32.partialorder %v1913, 0.0
    %vm6110 = vcmp.gt.f32.partialorder %v1918, 0.0
    %vm6111 = vcmp.gt.f32.partialorder %v1921, 0.0
    %vm6112 = vcmp.gt.f32.partialorder %v1926, 0.0
    %vm6113 = vcmp.gt.f32.partialorder %v1929, 0.0
    %vm6114 = vcmp.gt.f32.partialorder %v1934, 0.0
    %vm6115 = vcmp.gt.f32.partialorder %v1937, 0.0
    %vm6116 = vcmp.gt.f32.partialorder %v1942, 0.0
    %vm6117 = vcmp.gt.f32.partialorder %v1945, 0.0
    %vm6118 = vcmp.gt.f32.partialorder %v1950, 0.0
    %vm6119 = vcmp.gt.f32.partialorder %v1953, 0.0
    %vm6120 = vcmp.gt.f32.partialorder %v1958, 0.0
    %vm6121 = vcmp.gt.f32.partialorder %v1961, 0.0
    %vm6122 = vcmp.gt.f32.partialorder %v1966, 0.0
    %vm6123 = vcmp.gt.f32.partialorder %v1969, 0.0
    %vm6124 = vcmp.gt.f32.partialorder %v1974, 0.0
    %vm6125 = vcmp.gt.f32.partialorder %v1977, 0.0
    %vm6126 = vcmp.gt.f32.partialorder %v1982, 0.0
    %vm6127 = vcmp.gt.f32.partialorder %v1985, 0.0
    %vm6128 = vcmp.gt.f32.partialorder %v1990, 0.0
    %vm6129 = vcmp.gt.f32.partialorder %v1993, 0.0
    %vm6130 = vcmp.gt.f32.partialorder %v1998, 0.0
    %vm6131 = vcmp.gt.f32.partialorder %v2001, 0.0
    %vm6132 = vcmp.gt.f32.partialorder %v2006, 0.0
    %vm6133 = vcmp.gt.f32.partialorder %v2009, 0.0
    %vm6134 = vcmp.gt.f32.partialorder %v2014, 0.0
    %vm6135 = vcmp.gt.f32.partialorder %v2017, 0.0
    %vm6136 = vcmp.gt.f32.partialorder %v2022, 0.0
    %vm6137 = vcmp.gt.f32.partialorder %v2025, 0.0
    %vm6138 = vcmp.gt.f32.partialorder %v2030, 0.0
    %vm6139 = vcmp.gt.f32.partialorder %v2033, 0.0
    %vm6140 = vcmp.gt.f32.partialorder %v2038, 0.0
    %vm6141 = vcmp.gt.f32.partialorder %v2041, 0.0
    %vm6142 = vcmp.gt.f32.partialorder %v2046, 0.0
    %vm6143 = vcmp.gt.f32.partialorder %v2049, 0.0
    %vm6144 = vcmp.gt.f32.partialorder %v2054, 0.0
    %vm6145 = vcmp.gt.f32.partialorder %v2057, 0.0
    %vm6146 = vcmp.gt.f32.partialorder %v2062, 0.0
    %vm6147 = vcmp.gt.f32.partialorder %v2065, 0.0
    %vm6148 = vcmp.gt.f32.partialorder %v2070, 0.0
    %vm6149 = vcmp.gt.f32.partialorder %v2073, 0.0
    %vm6150 = vcmp.gt.f32.partialorder %v2078, 0.0
    %vm6151 = vcmp.gt.f32.partialorder %v2081, 0.0
    %vm6152 = vcmp.gt.f32.partialorder %v2086, 0.0
    %vm6153 = vcmp.gt.f32.partialorder %v2089, 0.0
    %vm6154 = vcmp.gt.f32.partialorder %v2094, 0.0
    %vm6155 = vcmp.gt.f32.partialorder %v2097, 0.0
    %vm6156 = vcmp.gt.f32.partialorder %v2102, 0.0
    %vm6157 = vcmp.gt.f32.partialorder %v2105, 0.0
    %vm6158 = vcmp.gt.f32.partialorder %v2110, 0.0
    %vm6159 = vcmp.gt.f32.partialorder %v2113, 0.0
    %vm6160 = vcmp.gt.f32.partialorder %v2118, 0.0
    %vm6161 = vcmp.gt.f32.partialorder %v2121, 0.0
    %vm6162 = vcmp.gt.f32.partialorder %v2126, 0.0
    %vm6163 = vcmp.gt.f32.partialorder %v2129, 0.0
    %vm6164 = vcmp.gt.f32.partialorder %v2134, 0.0
    %vm6165 = vcmp.gt.f32.partialorder %v2137, 0.0
    %vm6166 = vcmp.gt.f32.partialorder %v2142, 0.0
    %vm6167 = vcmp.gt.f32.partialorder %v2145, 0.0
    %vm6168 = vcmp.gt.f32.partialorder %v2150, 0.0
    %vm6169 = vcmp.gt.f32.partialorder %v2153, 0.0
    %vm6170 = vcmp.gt.f32.partialorder %v2158, 0.0
    %vm6171 = vcmp.gt.f32.partialorder %v2161, 0.0
    %vm6172 = vcmp.gt.f32.partialorder %v2166, 0.0
    %vm6173 = vcmp.gt.f32.partialorder %v2169, 0.0
    %vm6174 = vcmp.gt.f32.partialorder %v2174, 0.0
    %vm6175 = vcmp.gt.f32.partialorder %v2177, 0.0
    %vm6176 = vcmp.gt.f32.partialorder %v2182, 0.0
    %vm6177 = vcmp.gt.f32.partialorder %v2185, 0.0
    %vm6178 = vcmp.gt.f32.partialorder %v2190, 0.0
    %vm6179 = vcmp.gt.f32.partialorder %v2193, 0.0
    %vm6180 = vcmp.gt.f32.partialorder %v2198, 0.0
    %vm6181 = vcmp.gt.f32.partialorder %v2201, 0.0
    %vm6182 = vcmp.gt.f32.partialorder %v2206, 0.0
    %vm6183 = vcmp.gt.f32.partialorder %v2209, 0.0
    %vm6184 = vcmp.gt.f32.partialorder %v2214, 0.0
    %vm6185 = vcmp.gt.f32.partialorder %v2217, 0.0
    %vm6186 = vcmp.gt.f32.partialorder %v2222, 0.0
    %vm6187 = vcmp.gt.f32.partialorder %v2225, 0.0
    %vm6188 = vcmp.gt.f32.partialorder %v2230, 0.0
    %vm6189 = vcmp.gt.f32.partialorder %v2233, 0.0
    %vm6190 = vcmp.gt.f32.partialorder %v2238, 0.0
    %vm6191 = vcmp.gt.f32.partialorder %v2241, 0.0
    %vm6192 = vcmp.gt.f32.partialorder %v2246, 0.0
    %vm6193 = vcmp.gt.f32.partialorder %v2249, 0.0
    %vm6194 = vcmp.gt.f32.partialorder %v2254, 0.0
    %vm6195 = vcmp.gt.f32.partialorder %v2257, 0.0
    %vm6196 = vcmp.gt.f32.partialorder %v2262, 0.0
    %vm6197 = vcmp.gt.f32.partialorder %v2265, 0.0
    %vm6198 = vcmp.gt.f32.partialorder %v2270, 0.0
    %vm6199 = vcmp.gt.f32.partialorder %v2273, 0.0
    %vm6200 = vcmp.gt.f32.partialorder %v2278, 0.0
    %vm6201 = vcmp.gt.f32.partialorder %v2281, 0.0
    %vm6202 = vcmp.gt.f32.partialorder %v2286, 0.0
    %vm6203 = vcmp.gt.f32.partialorder %v2289, 0.0
    %vm6204 = vcmp.gt.f32.partialorder %v2294, 0.0
    %vm6205 = vcmp.gt.f32.partialorder %v2297, 0.0
    %vm6206 = vcmp.gt.f32.partialorder %v2302, 0.0
    %vm6207 = vcmp.gt.f32.partialorder %v2305, 0.0
    %vm6208 = vcmp.gt.f32.partialorder %v2310, 0.0
    %vm6209 = vcmp.gt.f32.partialorder %v2313, 0.0
    %vm6210 = vcmp.gt.f32.partialorder %v2318, 0.0
    %vm6211 = vcmp.gt.f32.partialorder %v2321, 0.0
    %vm6212 = vcmp.gt.f32.partialorder %v2326, 0.0
    %vm6213 = vcmp.gt.f32.partialorder %v2329, 0.0
    %vm6214 = vcmp.gt.f32.partialorder %v2334, 0.0
    %vm6215 = vcmp.gt.f32.partialorder %v2337, 0.0
    %vm6216 = vcmp.gt.f32.partialorder %v2342, 0.0
    %vm6217 = vcmp.gt.f32.partialorder %v2345, 0.0
    %vm6218 = vcmp.gt.f32.partialorder %v2350, 0.0
    %vm6219 = vcmp.gt.f32.partialorder %v2353, 0.0
    %v6220 = vsel %vm5964, %v4686, 0.0
    %v6221 = vsel %vm5965, %v4691, 0.0
    %v6222 = vsel %vm5966, %v4696, 0.0
    %v6223 = vsel %vm5967, %v4701, 0.0
    %v6224 = vsel %vm5968, %v4706, 0.0
    %v6225 = vsel %vm5969, %v4711, 0.0
    %v6226 = vsel %vm5970, %v4716, 0.0
    %v6227 = vsel %vm5971, %v4721, 0.0
    %v6228 = vsel %vm5972, %v4726, 0.0
    %v6229 = vsel %vm5973, %v4731, 0.0
    %v6230 = vsel %vm5974, %v4736, 0.0
    %v6231 = vsel %vm5975, %v4741, 0.0
    %v6232 = vsel %vm5976, %v4746, 0.0
    %v6233 = vsel %vm5977, %v4751, 0.0
    %v6234 = vsel %vm5978, %v4756, 0.0
    %v6235 = vsel %vm5979, %v4761, 0.0
    %v6236 = vsel %vm5980, %v4766, 0.0
    %v6237 = vsel %vm5981, %v4771, 0.0
    %v6238 = vsel %vm5982, %v4776, 0.0
    %v6239 = vsel %vm5983, %v4781, 0.0
    %v6240 = vsel %vm5984, %v4786, 0.0
    %v6241 = vsel %vm5985, %v4791, 0.0
    %v6242 = vsel %vm5986, %v4796, 0.0
    %v6243 = vsel %vm5987, %v4801, 0.0
    %v6244 = vsel %vm5988, %v4806, 0.0
    %v6245 = vsel %vm5989, %v4811, 0.0
    %v6246 = vsel %vm5990, %v4816, 0.0
    %v6247 = vsel %vm5991, %v4821, 0.0
    %v6248 = vsel %vm5992, %v4826, 0.0
    %v6249 = vsel %vm5993, %v4831, 0.0
    %v6250 = vsel %vm5994, %v4836, 0.0
    %v6251 = vsel %vm5995, %v4841, 0.0
    %v6252 = vsel %vm5996, %v4846, 0.0
    %v6253 = vsel %vm5997, %v4851, 0.0
    %v6254 = vsel %vm5998, %v4856, 0.0
    %v6255 = vsel %vm5999, %v4861, 0.0
    %v6256 = vsel %vm6000, %v4866, 0.0
    %v6257 = vsel %vm6001, %v4871, 0.0
    %v6258 = vsel %vm6002, %v4876, 0.0
    %v6259 = vsel %vm6003, %v4881, 0.0
    %v6260 = vsel %vm6004, %v4886, 0.0
    %v6261 = vsel %vm6005, %v4891, 0.0
    %v6262 = vsel %vm6006, %v4896, 0.0
    %v6263 = vsel %vm6007, %v4901, 0.0
    %v6264 = vsel %vm6008, %v4906, 0.0
    %v6265 = vsel %vm6009, %v4911, 0.0
    %v6266 = vsel %vm6010, %v4916, 0.0
    %v6267 = vsel %vm6011, %v4921, 0.0
    %v6268 = vsel %vm6012, %v4926, 0.0
    %v6269 = vsel %vm6013, %v4931, 0.0
    %v6270 = vsel %vm6014, %v4936, 0.0
    %v6271 = vsel %vm6015, %v4941, 0.0
    %v6272 = vsel %vm6016, %v4946, 0.0
    %v6273 = vsel %vm6017, %v4951, 0.0
    %v6274 = vsel %vm6018, %v4956, 0.0
    %v6275 = vsel %vm6019, %v4961, 0.0
    %v6276 = vsel %vm6020, %v4966, 0.0
    %v6277 = vsel %vm6021, %v4971, 0.0
    %v6278 = vsel %vm6022, %v4976, 0.0
    %v6279 = vsel %vm6023, %v4981, 0.0
    %v6280 = vsel %vm6024, %v4986, 0.0
    %v6281 = vsel %vm6025, %v4991, 0.0
    %v6282 = vsel %vm6026, %v4996, 0.0
    %v6283 = vsel %vm6027, %v5001, 0.0
    %v6284 = vsel %vm6028, %v5006, 0.0
    %v6285 = vsel %vm6029, %v5011, 0.0
    %v6286 = vsel %vm6030, %v5016, 0.0
    %v6287 = vsel %vm6031, %v5021, 0.0
    %v6288 = vsel %vm6032, %v5026, 0.0
    %v6289 = vsel %vm6033, %v5031, 0.0
    %v6290 = vsel %vm6034, %v5036, 0.0
    %v6291 = vsel %vm6035, %v5041, 0.0
    %v6292 = vsel %vm6036, %v5046, 0.0
    %v6293 = vsel %vm6037, %v5051, 0.0
    %v6294 = vsel %vm6038, %v5056, 0.0
    %v6295 = vsel %vm6039, %v5061, 0.0
    %v6296 = vsel %vm6040, %v5066, 0.0
    %v6297 = vsel %vm6041, %v5071, 0.0
    %v6298 = vsel %vm6042, %v5076, 0.0
    %v6299 = vsel %vm6043, %v5081, 0.0
    %v6300 = vsel %vm6044, %v5086, 0.0
    %v6301 = vsel %vm6045, %v5091, 0.0
    %v6302 = vsel %vm6046, %v5096, 0.0
    %v6303 = vsel %vm6047, %v5101, 0.0
    %v6304 = vsel %vm6048, %v5106, 0.0
    %v6305 = vsel %vm6049, %v5111, 0.0
    %v6306 = vsel %vm6050, %v5116, 0.0
    %v6307 = vsel %vm6051, %v5121, 0.0
    %v6308 = vsel %vm6052, %v5126, 0.0
    %v6309 = vsel %vm6053, %v5131, 0.0
    %v6310 = vsel %vm6054, %v5136, 0.0
    %v6311 = vsel %vm6055, %v5141, 0.0
    %v6312 = vsel %vm6056, %v5146, 0.0
    %v6313 = vsel %vm6057, %v5151, 0.0
    %v6314 = vsel %vm6058, %v5156, 0.0
    %v6315 = vsel %vm6059, %v5161, 0.0
    %v6316 = vsel %vm6060, %v5166, 0.0
    %v6317 = vsel %vm6061, %v5171, 0.0
    %v6318 = vsel %vm6062, %v5176, 0.0
    %v6319 = vsel %vm6063, %v5181, 0.0
    %v6320 = vsel %vm6064, %v5186, 0.0
    %v6321 = vsel %vm6065, %v5191, 0.0
    %v6322 = vsel %vm6066, %v5196, 0.0
    %v6323 = vsel %vm6067, %v5201, 0.0
    %v6324 = vsel %vm6068, %v5206, 0.0
    %v6325 = vsel %vm6069, %v5211, 0.0
    %v6326 = vsel %vm6070, %v5216, 0.0
    %v6327 = vsel %vm6071, %v5221, 0.0
    %v6328 = vsel %vm6072, %v5226, 0.0
    %v6329 = vsel %vm6073, %v5231, 0.0
    %v6330 = vsel %vm6074, %v5236, 0.0
    %v6331 = vsel %vm6075, %v5241, 0.0
    %v6332 = vsel %vm6076, %v5246, 0.0
    %v6333 = vsel %vm6077, %v5251, 0.0
    %v6334 = vsel %vm6078, %v5256, 0.0
    %v6335 = vsel %vm6079, %v5261, 0.0
    %v6336 = vsel %vm6080, %v5266, 0.0
    %v6337 = vsel %vm6081, %v5271, 0.0
    %v6338 = vsel %vm6082, %v5276, 0.0
    %v6339 = vsel %vm6083, %v5281, 0.0
    %v6340 = vsel %vm6084, %v5286, 0.0
    %v6341 = vsel %vm6085, %v5291, 0.0
    %v6342 = vsel %vm6086, %v5296, 0.0
    %v6343 = vsel %vm6087, %v5301, 0.0
    %v6344 = vsel %vm6088, %v5306, 0.0
    %v6345 = vsel %vm6089, %v5311, 0.0
    %v6346 = vsel %vm6090, %v5316, 0.0
    %v6347 = vsel %vm6091, %v5321, 0.0
    %v6348 = vsel %vm6092, %v5326, 0.0
    %v6349 = vsel %vm6093, %v5331, 0.0
    %v6350 = vsel %vm6094, %v5336, 0.0
    %v6351 = vsel %vm6095, %v5341, 0.0
    %v6352 = vsel %vm6096, %v5346, 0.0
    %v6353 = vsel %vm6097, %v5351, 0.0
    %v6354 = vsel %vm6098, %v5356, 0.0
    %v6355 = vsel %vm6099, %v5361, 0.0
    %v6356 = vsel %vm6100, %v5366, 0.0
    %v6357 = vsel %vm6101, %v5371, 0.0
    %v6358 = vsel %vm6102, %v5376, 0.0
    %v6359 = vsel %vm6103, %v5381, 0.0
    %v6360 = vsel %vm6104, %v5386, 0.0
    %v6361 = vsel %vm6105, %v5391, 0.0
    %v6362 = vsel %vm6106, %v5396, 0.0
    %v6363 = vsel %vm6107, %v5401, 0.0
    %v6364 = vsel %vm6108, %v5406, 0.0
    %v6365 = vsel %vm6109, %v5411, 0.0
    %v6366 = vsel %vm6110, %v5416, 0.0
    %v6367 = vsel %vm6111, %v5421, 0.0
    %v6368 = vsel %vm6112, %v5426, 0.0
    %v6369 = vsel %vm6113, %v5431, 0.0
    %v6370 = vsel %vm6114, %v5436, 0.0
    %v6371 = vsel %vm6115, %v5441, 0.0
    %v6372 = vsel %vm6116, %v5446, 0.0
    %v6373 = vsel %vm6117, %v5451, 0.0
    %v6374 = vsel %vm6118, %v5456, 0.0
    %v6375 = vsel %vm6119, %v5461, 0.0
    %v6376 = vsel %vm6120, %v5466, 0.0
    %v6377 = vsel %vm6121, %v5471, 0.0
    %v6378 = vsel %vm6122, %v5476, 0.0
    %v6379 = vsel %vm6123, %v5481, 0.0
    %v6380 = vsel %vm6124, %v5486, 0.0
    %v6381 = vsel %vm6125, %v5491, 0.0
    %v6382 = vsel %vm6126, %v5496, 0.0
    %v6383 = vsel %vm6127, %v5501, 0.0
    %v6384 = vsel %vm6128, %v5506, 0.0
    %v6385 = vsel %vm6129, %v5511, 0.0
    %v6386 = vsel %vm6130, %v5516, 0.0
    %v6387 = vsel %vm6131, %v5521, 0.0
    %v6388 = vsel %vm6132, %v5526, 0.0
    %v6389 = vsel %vm6133, %v5531, 0.0
    %v6390 = vsel %vm6134, %v5536, 0.0
    %v6391 = vsel %vm6135, %v5541, 0.0
    %v6392 = vsel %vm6136, %v5546, 0.0
    %v6393 = vsel %vm6137, %v5551, 0.0
    %v6394 = vsel %vm6138, %v5556, 0.0
    %v6395 = vsel %vm6139, %v5561, 0.0
    %v6396 = vsel %vm6140, %v5566, 0.0
    %v6397 = vsel %vm6141, %v5571, 0.0
    %v6398 = vsel %vm6142, %v5576, 0.0
    %v6399 = vsel %vm6143, %v5581, 0.0
    %v6400 = vsel %vm6144, %v5586, 0.0
    %v6401 = vsel %vm6145, %v5591, 0.0
    %v6402 = vsel %vm6146, %v5596, 0.0
    %v6403 = vsel %vm6147, %v5601, 0.0
    %v6404 = vsel %vm6148, %v5606, 0.0
    %v6405 = vsel %vm6149, %v5611, 0.0
    %v6406 = vsel %vm6150, %v5616, 0.0
    %v6407 = vsel %vm6151, %v5621, 0.0
    %v6408 = vsel %vm6152, %v5626, 0.0
    %v6409 = vsel %vm6153, %v5631, 0.0
    %v6410 = vsel %vm6154, %v5636, 0.0
    %v6411 = vsel %vm6155, %v5641, 0.0
    %v6412 = vsel %vm6156, %v5646, 0.0
    %v6413 = vsel %vm6157, %v5651, 0.0
    %v6414 = vsel %vm6158, %v5656, 0.0
    %v6415 = vsel %vm6159, %v5661, 0.0
    %v6416 = vsel %vm6160, %v5666, 0.0
    %v6417 = vsel %vm6161, %v5671, 0.0
    %v6418 = vsel %vm6162, %v5676, 0.0
    %v6419 = vsel %vm6163, %v5681, 0.0
    %v6420 = vsel %vm6164, %v5686, 0.0
    %v6421 = vsel %vm6165, %v5691, 0.0
    %v6422 = vsel %vm6166, %v5696, 0.0
    %v6423 = vsel %vm6167, %v5701, 0.0
    %v6424 = vsel %vm6168, %v5706, 0.0
    %v6425 = vsel %vm6169, %v5711, 0.0
    %v6426 = vsel %vm6170, %v5716, 0.0
    %v6427 = vsel %vm6171, %v5721, 0.0
    %v6428 = vsel %vm6172, %v5726, 0.0
    %v6429 = vsel %vm6173, %v5731, 0.0
    %v6430 = vsel %vm6174, %v5736, 0.0
    %v6431 = vsel %vm6175, %v5741, 0.0
    %v6432 = vsel %vm6176, %v5746, 0.0
    %v6433 = vsel %vm6177, %v5751, 0.0
    %v6434 = vsel %vm6178, %v5756, 0.0
    %v6435 = vsel %vm6179, %v5761, 0.0
    %v6436 = vsel %vm6180, %v5766, 0.0
    %v6437 = vsel %vm6181, %v5771, 0.0
    %v6438 = vsel %vm6182, %v5776, 0.0
    %v6439 = vsel %vm6183, %v5781, 0.0
    %v6440 = vsel %vm6184, %v5786, 0.0
    %v6441 = vsel %vm6185, %v5791, 0.0
    %v6442 = vsel %vm6186, %v5796, 0.0
    %v6443 = vsel %vm6187, %v5801, 0.0
    %v6444 = vsel %vm6188, %v5806, 0.0
    %v6445 = vsel %vm6189, %v5811, 0.0
    %v6446 = vsel %vm6190, %v5816, 0.0
    %v6447 = vsel %vm6191, %v5821, 0.0
    %v6448 = vsel %vm6192, %v5826, 0.0
    %v6449 = vsel %vm6193, %v5831, 0.0
    %v6450 = vsel %vm6194, %v5836, 0.0
    %v6451 = vsel %vm6195, %v5841, 0.0
    %v6452 = vsel %vm6196, %v5846, 0.0
    %v6453 = vsel %vm6197, %v5851, 0.0
    %v6454 = vsel %vm6198, %v5856, 0.0
    %v6455 = vsel %vm6199, %v5861, 0.0
    %v6456 = vsel %vm6200, %v5866, 0.0
    %v6457 = vsel %vm6201, %v5871, 0.0
    %v6458 = vsel %vm6202, %v5876, 0.0
    %v6459 = vsel %vm6203, %v5881, 0.0
    %v6460 = vsel %vm6204, %v5886, 0.0
    %v6461 = vsel %vm6205, %v5891, 0.0
    %v6462 = vsel %vm6206, %v5896, 0.0
    %v6463 = vsel %vm6207, %v5901, 0.0
    %v6464 = vsel %vm6208, %v5906, 0.0
    %v6465 = vsel %vm6209, %v5911, 0.0
    %v6466 = vsel %vm6210, %v5916, 0.0
    %v6467 = vsel %vm6211, %v5921, 0.0
    %v6468 = vsel %vm6212, %v5926, 0.0
    %v6469 = vsel %vm6213, %v5931, 0.0
    %v6470 = vsel %vm6214, %v5936, 0.0
    %v6471 = vsel %vm6215, %v5941, 0.0
    %v6472 = vsel %vm6216, %v5946, 0.0
    %v6473 = vsel %vm6217, %v5951, 0.0
    %v6474 = vsel %vm6218, %v5956, 0.0
    %v6475 = vsel %vm6219, %v5961, 0.0
    %v6476 = vunpack.c.l.bf16 %v225
    %v6477 = vunpack.c.l.bf16 %v226
    %v6478 = vunpack.c.l.bf16 %v227
    %v6479 = vunpack.c.l.bf16 %v228
    %v6480 = vunpack.c.l.bf16 %v229
    %v6481 = vunpack.c.l.bf16 %v230
    %v6482 = vunpack.c.l.bf16 %v231
    %v6483 = vunpack.c.l.bf16 %v232
    %v6484 = vunpack.c.l.bf16 %v233
    %v6485 = vunpack.c.l.bf16 %v234
    %v6486 = vunpack.c.l.bf16 %v235
    %v6487 = vunpack.c.l.bf16 %v236
    %v6488 = vunpack.c.l.bf16 %v237
    %v6489 = vunpack.c.l.bf16 %v238
    %v6490 = vunpack.c.l.bf16 %v239
    %v6491 = vunpack.c.l.bf16 %v240
    %v6492 = vunpack.c.l.bf16 %v241
    %v6493 = vunpack.c.l.bf16 %v242
    %v6494 = vunpack.c.l.bf16 %v243
    %v6495 = vunpack.c.l.bf16 %v244
    %v6496 = vunpack.c.l.bf16 %v245
    %v6497 = vunpack.c.l.bf16 %v246
    %v6498 = vunpack.c.l.bf16 %v247
    %v6499 = vunpack.c.l.bf16 %v248
    %v6500 = vunpack.c.l.bf16 %v249
    %v6501 = vunpack.c.l.bf16 %v250
    %v6502 = vunpack.c.l.bf16 %v251
    %v6503 = vunpack.c.l.bf16 %v252
    %v6504 = vunpack.c.l.bf16 %v253
    %v6505 = vunpack.c.l.bf16 %v254
    %v6506 = vunpack.c.l.bf16 %v255
    %v6507 = vunpack.c.l.bf16 %v256
    %v6508 = vunpack.c.l.bf16 %v257
    %v6509 = vunpack.c.l.bf16 %v258
    %v6510 = vunpack.c.l.bf16 %v259
    %v6511 = vunpack.c.l.bf16 %v260
    %v6512 = vunpack.c.l.bf16 %v261
    %v6513 = vunpack.c.l.bf16 %v262
    %v6514 = vunpack.c.l.bf16 %v263
    %v6515 = vunpack.c.l.bf16 %v264
    %v6516 = vunpack.c.l.bf16 %v265
    %v6517 = vunpack.c.l.bf16 %v266
    %v6518 = vunpack.c.l.bf16 %v267
    %v6519 = vunpack.c.l.bf16 %v268
    %v6520 = vunpack.c.l.bf16 %v269
    %v6521 = vunpack.c.l.bf16 %v270
    %v6522 = vunpack.c.l.bf16 %v271
    %v6523 = vunpack.c.l.bf16 %v272
    %v6524 = vunpack.c.l.bf16 %v273
    %v6525 = vunpack.c.l.bf16 %v274
    %v6526 = vunpack.c.l.bf16 %v275
    %v6527 = vunpack.c.l.bf16 %v276
    %v6528 = vunpack.c.l.bf16 %v277
    %v6529 = vunpack.c.l.bf16 %v278
    %v6530 = vunpack.c.l.bf16 %v279
    %v6531 = vunpack.c.l.bf16 %v280
    %v6532 = vunpack.c.l.bf16 %v281
    %v6533 = vunpack.c.l.bf16 %v282
    %v6534 = vunpack.c.l.bf16 %v283
    %v6535 = vunpack.c.l.bf16 %v284
    %v6536 = vunpack.c.l.bf16 %v285
    %v6537 = vunpack.c.l.bf16 %v286
    %v6538 = vunpack.c.l.bf16 %v287
    %v6539 = vunpack.c.l.bf16 %v288
    %v6540 = vunpack.c.l.bf16 %v289
    %v6541 = vunpack.c.l.bf16 %v290
    %v6542 = vunpack.c.l.bf16 %v291
    %v6543 = vunpack.c.l.bf16 %v292
    %v6544 = vunpack.c.l.bf16 %v293
    %v6545 = vunpack.c.l.bf16 %v294
    %v6546 = vunpack.c.l.bf16 %v295
    %v6547 = vunpack.c.l.bf16 %v296
    %v6548 = vunpack.c.l.bf16 %v297
    %v6549 = vunpack.c.l.bf16 %v298
    %v6550 = vunpack.c.l.bf16 %v299
    %v6551 = vunpack.c.l.bf16 %v300
    %v6552 = vunpack.c.l.bf16 %v301
    %v6553 = vunpack.c.l.bf16 %v302
    %v6554 = vunpack.c.l.bf16 %v303
    %v6555 = vunpack.c.l.bf16 %v304
    %v6556 = vunpack.c.l.bf16 %v305
    %v6557 = vunpack.c.l.bf16 %v306
    %v6558 = vunpack.c.l.bf16 %v307
    %v6559 = vunpack.c.l.bf16 %v308
    %v6560 = vunpack.c.l.bf16 %v309
    %v6561 = vunpack.c.l.bf16 %v310
    %v6562 = vunpack.c.l.bf16 %v311
    %v6563 = vunpack.c.l.bf16 %v312
    %v6564 = vunpack.c.l.bf16 %v313
    %v6565 = vunpack.c.l.bf16 %v314
    %v6566 = vunpack.c.l.bf16 %v315
    %v6567 = vunpack.c.l.bf16 %v316
    %v6568 = vunpack.c.l.bf16 %v317
    %v6569 = vunpack.c.l.bf16 %v318
    %v6570 = vunpack.c.l.bf16 %v319
    %v6571 = vunpack.c.l.bf16 %v320
    %v6572 = vunpack.c.l.bf16 %v321
    %v6573 = vunpack.c.l.bf16 %v322
    %v6574 = vunpack.c.l.bf16 %v323
    %v6575 = vunpack.c.l.bf16 %v324
    %v6576 = vunpack.c.l.bf16 %v325
    %v6577 = vunpack.c.l.bf16 %v326
    %v6578 = vunpack.c.l.bf16 %v327
    %v6579 = vunpack.c.l.bf16 %v328
    %v6580 = vunpack.c.l.bf16 %v329
    %v6581 = vunpack.c.l.bf16 %v330
    %v6582 = vunpack.c.l.bf16 %v331
    %v6583 = vunpack.c.l.bf16 %v332
    %v6584 = vunpack.c.l.bf16 %v333
    %v6585 = vunpack.c.l.bf16 %v334
    %v6586 = vunpack.c.l.bf16 %v335
    %v6587 = vunpack.c.l.bf16 %v336
    %v6588 = vunpack.c.l.bf16 %v337
    %v6589 = vunpack.c.l.bf16 %v338
    %v6590 = vunpack.c.l.bf16 %v339
    %v6591 = vunpack.c.l.bf16 %v340
    %v6592 = vunpack.c.l.bf16 %v341
    %v6593 = vunpack.c.l.bf16 %v342
    %v6594 = vunpack.c.l.bf16 %v343
    %v6595 = vunpack.c.l.bf16 %v344
    %v6596 = vunpack.c.l.bf16 %v345
    %v6597 = vunpack.c.l.bf16 %v346
    %v6598 = vunpack.c.l.bf16 %v347
    %v6599 = vunpack.c.l.bf16 %v348
    %v6600 = vunpack.c.l.bf16 %v349
    %v6601 = vunpack.c.l.bf16 %v350
    %v6602 = vunpack.c.l.bf16 %v351
    %v6603 = vunpack.c.l.bf16 %v352
    %v6604 = vunpack.c.l.bf16 %v353
    %v6605 = vunpack.c.l.bf16 %v354
    %v6606 = vunpack.c.l.bf16 %v355
    %v6607 = vunpack.c.l.bf16 %v356
    %v6608 = vunpack.c.l.bf16 %v357
    %v6609 = vunpack.c.l.bf16 %v358
    %v6610 = vunpack.c.l.bf16 %v359
    %v6611 = vunpack.c.l.bf16 %v360
    %v6612 = vunpack.c.l.bf16 %v361
    %v6613 = vunpack.c.l.bf16 %v362
    %v6614 = vunpack.c.l.bf16 %v363
    %v6615 = vunpack.c.l.bf16 %v364
    %v6616 = vunpack.c.l.bf16 %v365
    %v6617 = vunpack.c.l.bf16 %v366
    %v6618 = vunpack.c.l.bf16 %v367
    %v6619 = vunpack.c.l.bf16 %v368
    %v6620 = vunpack.c.l.bf16 %v369
    %v6621 = vunpack.c.l.bf16 %v370
    %v6622 = vunpack.c.l.bf16 %v371
    %v6623 = vunpack.c.l.bf16 %v372
    %v6624 = vunpack.c.l.bf16 %v373
    %v6625 = vunpack.c.l.bf16 %v374
    %v6626 = vunpack.c.l.bf16 %v375
    %v6627 = vunpack.c.l.bf16 %v376
    %v6628 = vunpack.c.l.bf16 %v377
    %v6629 = vunpack.c.l.bf16 %v378
    %v6630 = vunpack.c.l.bf16 %v379
    %v6631 = vunpack.c.l.bf16 %v380
    %v6632 = vunpack.c.l.bf16 %v381
    %v6633 = vunpack.c.l.bf16 %v382
    %v6634 = vunpack.c.l.bf16 %v383
    %v6635 = vunpack.c.l.bf16 %v384
    %v6636 = vunpack.c.l.bf16 %v385
    %v6637 = vunpack.c.l.bf16 %v386
    %v6638 = vunpack.c.l.bf16 %v387
    %v6639 = vunpack.c.l.bf16 %v388
    %v6640 = vunpack.c.l.bf16 %v389
    %v6641 = vunpack.c.l.bf16 %v390
    %v6642 = vunpack.c.l.bf16 %v391
    %v6643 = vunpack.c.l.bf16 %v392
    %v6644 = vunpack.c.l.bf16 %v393
    %v6645 = vunpack.c.l.bf16 %v394
    %v6646 = vunpack.c.l.bf16 %v395
    %v6647 = vunpack.c.l.bf16 %v396
    %v6648 = vunpack.c.l.bf16 %v397
    %v6649 = vunpack.c.l.bf16 %v398
    %v6650 = vunpack.c.l.bf16 %v399
    %v6651 = vunpack.c.l.bf16 %v400
    %v6652 = vunpack.c.l.bf16 %v401
    %v6653 = vunpack.c.l.bf16 %v402
    %v6654 = vunpack.c.l.bf16 %v403
    %v6655 = vunpack.c.l.bf16 %v404
    %v6656 = vunpack.c.l.bf16 %v405
    %v6657 = vunpack.c.l.bf16 %v406
    %v6658 = vunpack.c.l.bf16 %v407
    %v6659 = vunpack.c.l.bf16 %v408
    %v6660 = vunpack.c.l.bf16 %v409
    %v6661 = vunpack.c.l.bf16 %v410
    %v6662 = vunpack.c.l.bf16 %v411
    %v6663 = vunpack.c.l.bf16 %v412
    %v6664 = vunpack.c.l.bf16 %v413
    %v6665 = vunpack.c.l.bf16 %v414
    %v6666 = vunpack.c.l.bf16 %v415
    %v6667 = vunpack.c.l.bf16 %v416
    %v6668 = vunpack.c.l.bf16 %v417
    %v6669 = vunpack.c.l.bf16 %v418
    %v6670 = vunpack.c.l.bf16 %v419
    %v6671 = vunpack.c.l.bf16 %v420
    %v6672 = vunpack.c.l.bf16 %v421
    %v6673 = vunpack.c.l.bf16 %v422
    %v6674 = vunpack.c.l.bf16 %v423
    %v6675 = vunpack.c.l.bf16 %v424
    %v6676 = vunpack.c.l.bf16 %v425
    %v6677 = vunpack.c.l.bf16 %v426
    %v6678 = vunpack.c.l.bf16 %v427
    %v6679 = vunpack.c.l.bf16 %v428
    %v6680 = vunpack.c.l.bf16 %v429
    %v6681 = vunpack.c.l.bf16 %v430
    %v6682 = vunpack.c.l.bf16 %v431
    %v6683 = vunpack.c.l.bf16 %v432
    %v6684 = vunpack.c.l.bf16 %v433
    %v6685 = vunpack.c.l.bf16 %v434
    %v6686 = vunpack.c.l.bf16 %v435
    %v6687 = vunpack.c.l.bf16 %v436
    %v6688 = vunpack.c.l.bf16 %v437
    %v6689 = vunpack.c.l.bf16 %v438
    %v6690 = vunpack.c.l.bf16 %v439
    %v6691 = vunpack.c.l.bf16 %v440
    %v6692 = vunpack.c.l.bf16 %v441
    %v6693 = vunpack.c.l.bf16 %v442
    %v6694 = vunpack.c.l.bf16 %v443
    %v6695 = vunpack.c.l.bf16 %v444
    %v6696 = vunpack.c.l.bf16 %v445
    %v6697 = vunpack.c.l.bf16 %v446
    %v6698 = vunpack.c.l.bf16 %v447
    %v6699 = vunpack.c.l.bf16 %v448
    %v6700 = vunpack.c.l.bf16 %v449
    %v6701 = vunpack.c.l.bf16 %v450
    %v6702 = vunpack.c.l.bf16 %v451
    %v6703 = vunpack.c.l.bf16 %v452
    %v6704 = vunpack.c.l.bf16 %v453
    %v6705 = vunpack.c.l.bf16 %v454
    %v6706 = vunpack.c.l.bf16 %v455
    %v6707 = vunpack.c.l.bf16 %v456
    %v6708 = vunpack.c.l.bf16 %v457
    %v6709 = vunpack.c.l.bf16 %v458
    %v6710 = vunpack.c.l.bf16 %v459
    %v6711 = vunpack.c.l.bf16 %v460
    %v6712 = vunpack.c.l.bf16 %v461
    %v6713 = vunpack.c.l.bf16 %v462
    %v6714 = vunpack.c.l.bf16 %v463
    %v6715 = vunpack.c.l.bf16 %v464
    %v6716 = vunpack.c.l.bf16 %v465
    %v6717 = vunpack.c.l.bf16 %v466
    %v6718 = vunpack.c.l.bf16 %v467
    %v6719 = vunpack.c.l.bf16 %v468
    %v6720 = vunpack.c.l.bf16 %v469
    %v6721 = vunpack.c.l.bf16 %v470
    %v6722 = vunpack.c.l.bf16 %v471
    %v6723 = vunpack.c.l.bf16 %v472
    %v6724 = vunpack.c.l.bf16 %v473
    %v6725 = vunpack.c.l.bf16 %v474
    %v6726 = vunpack.c.l.bf16 %v475
    %v6727 = vunpack.c.l.bf16 %v476
    %v6728 = vunpack.c.l.bf16 %v477
    %v6729 = vunpack.c.l.bf16 %v478
    %v6730 = vunpack.c.l.bf16 %v479
    %v6731 = vunpack.c.l.bf16 %v480
    %v6732 = vadd.f32 %v6220, %v6221
    %v6733 = vadd.f32 %v6732, %v6222
    %v6734 = vadd.f32 %v6733, %v6223
    %v6735 = vadd.f32 %v6734, %v6224
    %v6736 = vadd.f32 %v6735, %v6225
    %v6737 = vadd.f32 %v6736, %v6226
    %v6738 = vadd.f32 %v6737, %v6227
    %v6739 = vadd.f32 %v6738, %v6228
    %v6740 = vadd.f32 %v6739, %v6229
    %v6741 = vadd.f32 %v6740, %v6230
    %v6742 = vadd.f32 %v6741, %v6231
    %v6743 = vadd.f32 %v6742, %v6232
    %v6744 = vadd.f32 %v6743, %v6233
    %v6745 = vadd.f32 %v6744, %v6234
    %v6746 = vadd.f32 %v6745, %v6235
    %v6747 = vadd.f32 %v6746, %v6236
    %v6748 = vadd.f32 %v6747, %v6237
    %v6749 = vadd.f32 %v6748, %v6238
    %v6750 = vadd.f32 %v6749, %v6239
    %v6751 = vadd.f32 %v6750, %v6240
    %v6752 = vadd.f32 %v6751, %v6241
    %v6753 = vadd.f32 %v6752, %v6242
    %v6754 = vadd.f32 %v6753, %v6243
    %v6755 = vadd.f32 %v6754, %v6244
    %v6756 = vadd.f32 %v6755, %v6245
    %v6757 = vadd.f32 %v6756, %v6246
    %v6758 = vadd.f32 %v6757, %v6247
    %v6759 = vadd.f32 %v6758, %v6248
    %v6760 = vadd.f32 %v6759, %v6249
    %v6761 = vadd.f32 %v6760, %v6250
    %v6762 = vadd.f32 %v6761, %v6251
    %v6763 = vadd.f32 %v6762, %v6252
    %v6764 = vadd.f32 %v6763, %v6253
    %v6765 = vadd.f32 %v6764, %v6254
    %v6766 = vadd.f32 %v6765, %v6255
    %v6767 = vadd.f32 %v6766, %v6256
    %v6768 = vadd.f32 %v6767, %v6257
    %v6769 = vadd.f32 %v6768, %v6258
    %v6770 = vadd.f32 %v6769, %v6259
    %v6771 = vadd.f32 %v6770, %v6260
    %v6772 = vadd.f32 %v6771, %v6261
    %v6773 = vadd.f32 %v6772, %v6262
    %v6774 = vadd.f32 %v6773, %v6263
    %v6775 = vadd.f32 %v6774, %v6264
    %v6776 = vadd.f32 %v6775, %v6265
    %v6777 = vadd.f32 %v6776, %v6266
    %v6778 = vadd.f32 %v6777, %v6267
    %v6779 = vadd.f32 %v6778, %v6268
    %v6780 = vadd.f32 %v6779, %v6269
    %v6781 = vadd.f32 %v6780, %v6270
    %v6782 = vadd.f32 %v6781, %v6271
    %v6783 = vadd.f32 %v6782, %v6272
    %v6784 = vadd.f32 %v6783, %v6273
    %v6785 = vadd.f32 %v6784, %v6274
    %v6786 = vadd.f32 %v6785, %v6275
    %v6787 = vadd.f32 %v6786, %v6276
    %v6788 = vadd.f32 %v6787, %v6277
    %v6789 = vadd.f32 %v6788, %v6278
    %v6790 = vadd.f32 %v6789, %v6279
    %v6791 = vadd.f32 %v6790, %v6280
    %v6792 = vadd.f32 %v6791, %v6281
    %v6793 = vadd.f32 %v6792, %v6282
    %v6794 = vadd.f32 %v6793, %v6283
    %v6795 = vadd.f32 %v6794, %v6284
    %v6796 = vadd.f32 %v6795, %v6285
    %v6797 = vadd.f32 %v6796, %v6286
    %v6798 = vadd.f32 %v6797, %v6287
    %v6799 = vadd.f32 %v6798, %v6288
    %v6800 = vadd.f32 %v6799, %v6289
    %v6801 = vadd.f32 %v6800, %v6290
    %v6802 = vadd.f32 %v6801, %v6291
    %v6803 = vadd.f32 %v6802, %v6292
    %v6804 = vadd.f32 %v6803, %v6293
    %v6805 = vadd.f32 %v6804, %v6294
    %v6806 = vadd.f32 %v6805, %v6295
    %v6807 = vadd.f32 %v6806, %v6296
    %v6808 = vadd.f32 %v6807, %v6297
    %v6809 = vadd.f32 %v6808, %v6298
    %v6810 = vadd.f32 %v6809, %v6299
    %v6811 = vadd.f32 %v6810, %v6300
    %v6812 = vadd.f32 %v6811, %v6301
    %v6813 = vadd.f32 %v6812, %v6302
    %v6814 = vadd.f32 %v6813, %v6303
    %v6815 = vadd.f32 %v6814, %v6304
    %v6816 = vadd.f32 %v6815, %v6305
    %v6817 = vadd.f32 %v6816, %v6306
    %v6818 = vadd.f32 %v6817, %v6307
    %v6819 = vadd.f32 %v6818, %v6308
    %v6820 = vadd.f32 %v6819, %v6309
    %v6821 = vadd.f32 %v6820, %v6310
    %v6822 = vadd.f32 %v6821, %v6311
    %v6823 = vadd.f32 %v6822, %v6312
    %v6824 = vadd.f32 %v6823, %v6313
    %v6825 = vadd.f32 %v6824, %v6314
    %v6826 = vadd.f32 %v6825, %v6315
    %v6827 = vadd.f32 %v6826, %v6316
    %v6828 = vadd.f32 %v6827, %v6317
    %v6829 = vadd.f32 %v6828, %v6318
    %v6830 = vadd.f32 %v6829, %v6319
    %v6831 = vadd.f32 %v6830, %v6320
    %v6832 = vadd.f32 %v6831, %v6321
    %v6833 = vadd.f32 %v6832, %v6322
    %v6834 = vadd.f32 %v6833, %v6323
    %v6835 = vadd.f32 %v6834, %v6324
    %v6836 = vadd.f32 %v6835, %v6325
    %v6837 = vadd.f32 %v6836, %v6326
    %v6838 = vadd.f32 %v6837, %v6327
    %v6839 = vadd.f32 %v6838, %v6328
    %v6840 = vadd.f32 %v6839, %v6329
    %v6841 = vadd.f32 %v6840, %v6330
    %v6842 = vadd.f32 %v6841, %v6331
    %v6843 = vadd.f32 %v6842, %v6332
    %v6844 = vadd.f32 %v6843, %v6333
    %v6845 = vadd.f32 %v6844, %v6334
    %v6846 = vadd.f32 %v6845, %v6335
    %v6847 = vadd.f32 %v6846, %v6336
    %v6848 = vadd.f32 %v6847, %v6337
    %v6849 = vadd.f32 %v6848, %v6338
    %v6850 = vadd.f32 %v6849, %v6339
    %v6851 = vadd.f32 %v6850, %v6340
    %v6852 = vadd.f32 %v6851, %v6341
    %v6853 = vadd.f32 %v6852, %v6342
    %v6854 = vadd.f32 %v6853, %v6343
    %v6855 = vadd.f32 %v6854, %v6344
    %v6856 = vadd.f32 %v6855, %v6345
    %v6857 = vadd.f32 %v6856, %v6346
    %v6858 = vadd.f32 %v6857, %v6347
    %v6859 = vadd.f32 %v6858, %v6348
    %v6860 = vadd.f32 %v6859, %v6349
    %v6861 = vadd.f32 %v6860, %v6350
    %v6862 = vadd.f32 %v6861, %v6351
    %v6863 = vadd.f32 %v6862, %v6352
    %v6864 = vadd.f32 %v6863, %v6353
    %v6865 = vadd.f32 %v6864, %v6354
    %v6866 = vadd.f32 %v6865, %v6355
    %v6867 = vadd.f32 %v6866, %v6356
    %v6868 = vadd.f32 %v6867, %v6357
    %v6869 = vadd.f32 %v6868, %v6358
    %v6870 = vadd.f32 %v6869, %v6359
    %v6871 = vadd.f32 %v6870, %v6360
    %v6872 = vadd.f32 %v6871, %v6361
    %v6873 = vadd.f32 %v6872, %v6362
    %v6874 = vadd.f32 %v6873, %v6363
    %v6875 = vadd.f32 %v6874, %v6364
    %v6876 = vadd.f32 %v6875, %v6365
    %v6877 = vadd.f32 %v6876, %v6366
    %v6878 = vadd.f32 %v6877, %v6367
    %v6879 = vadd.f32 %v6878, %v6368
    %v6880 = vadd.f32 %v6879, %v6369
    %v6881 = vadd.f32 %v6880, %v6370
    %v6882 = vadd.f32 %v6881, %v6371
    %v6883 = vadd.f32 %v6882, %v6372
    %v6884 = vadd.f32 %v6883, %v6373
    %v6885 = vadd.f32 %v6884, %v6374
    %v6886 = vadd.f32 %v6885, %v6375
    %v6887 = vadd.f32 %v6886, %v6376
    %v6888 = vadd.f32 %v6887, %v6377
    %v6889 = vadd.f32 %v6888, %v6378
    %v6890 = vadd.f32 %v6889, %v6379
    %v6891 = vadd.f32 %v6890, %v6380
    %v6892 = vadd.f32 %v6891, %v6381
    %v6893 = vadd.f32 %v6892, %v6382
    %v6894 = vadd.f32 %v6893, %v6383
    %v6895 = vadd.f32 %v6894, %v6384
    %v6896 = vadd.f32 %v6895, %v6385
    %v6897 = vadd.f32 %v6896, %v6386
    %v6898 = vadd.f32 %v6897, %v6387
    %v6899 = vadd.f32 %v6898, %v6388
    %v6900 = vadd.f32 %v6899, %v6389
    %v6901 = vadd.f32 %v6900, %v6390
    %v6902 = vadd.f32 %v6901, %v6391
    %v6903 = vadd.f32 %v6902, %v6392
    %v6904 = vadd.f32 %v6903, %v6393
    %v6905 = vadd.f32 %v6904, %v6394
    %v6906 = vadd.f32 %v6905, %v6395
    %v6907 = vadd.f32 %v6906, %v6396
    %v6908 = vadd.f32 %v6907, %v6397
    %v6909 = vadd.f32 %v6908, %v6398
    %v6910 = vadd.f32 %v6909, %v6399
    %v6911 = vadd.f32 %v6910, %v6400
    %v6912 = vadd.f32 %v6911, %v6401
    %v6913 = vadd.f32 %v6912, %v6402
    %v6914 = vadd.f32 %v6913, %v6403
    %v6915 = vadd.f32 %v6914, %v6404
    %v6916 = vadd.f32 %v6915, %v6405
    %v6917 = vadd.f32 %v6916, %v6406
    %v6918 = vadd.f32 %v6917, %v6407
    %v6919 = vadd.f32 %v6918, %v6408
    %v6920 = vadd.f32 %v6919, %v6409
    %v6921 = vadd.f32 %v6920, %v6410
    %v6922 = vadd.f32 %v6921, %v6411
    %v6923 = vadd.f32 %v6922, %v6412
    %v6924 = vadd.f32 %v6923, %v6413
    %v6925 = vadd.f32 %v6924, %v6414
    %v6926 = vadd.f32 %v6925, %v6415
    %v6927 = vadd.f32 %v6926, %v6416
    %v6928 = vadd.f32 %v6927, %v6417
    %v6929 = vadd.f32 %v6928, %v6418
    %v6930 = vadd.f32 %v6929, %v6419
    %v6931 = vadd.f32 %v6930, %v6420
    %v6932 = vadd.f32 %v6931, %v6421
    %v6933 = vadd.f32 %v6932, %v6422
    %v6934 = vadd.f32 %v6933, %v6423
    %v6935 = vadd.f32 %v6934, %v6424
    %v6936 = vadd.f32 %v6935, %v6425
    %v6937 = vadd.f32 %v6936, %v6426
    %v6938 = vadd.f32 %v6937, %v6427
    %v6939 = vadd.f32 %v6938, %v6428
    %v6940 = vadd.f32 %v6939, %v6429
    %v6941 = vadd.f32 %v6940, %v6430
    %v6942 = vadd.f32 %v6941, %v6431
    %v6943 = vadd.f32 %v6942, %v6432
    %v6944 = vadd.f32 %v6943, %v6433
    %v6945 = vadd.f32 %v6944, %v6434
    %v6946 = vadd.f32 %v6945, %v6435
    %v6947 = vadd.f32 %v6946, %v6436
    %v6948 = vadd.f32 %v6947, %v6437
    %v6949 = vadd.f32 %v6948, %v6438
    %v6950 = vadd.f32 %v6949, %v6439
    %v6951 = vadd.f32 %v6950, %v6440
    %v6952 = vadd.f32 %v6951, %v6441
    %v6953 = vadd.f32 %v6952, %v6442
    %v6954 = vadd.f32 %v6953, %v6443
    %v6955 = vadd.f32 %v6954, %v6444
    %v6956 = vadd.f32 %v6955, %v6445
    %v6957 = vadd.f32 %v6956, %v6446
    %v6958 = vadd.f32 %v6957, %v6447
    %v6959 = vadd.f32 %v6958, %v6448
    %v6960 = vadd.f32 %v6959, %v6449
    %v6961 = vadd.f32 %v6960, %v6450
    %v6962 = vadd.f32 %v6961, %v6451
    %v6963 = vadd.f32 %v6962, %v6452
    %v6964 = vadd.f32 %v6963, %v6453
    %v6965 = vadd.f32 %v6964, %v6454
    %v6966 = vadd.f32 %v6965, %v6455
    %v6967 = vadd.f32 %v6966, %v6456
    %v6968 = vadd.f32 %v6967, %v6457
    %v6969 = vadd.f32 %v6968, %v6458
    %v6970 = vadd.f32 %v6969, %v6459
    %v6971 = vadd.f32 %v6970, %v6460
    %v6972 = vadd.f32 %v6971, %v6461
    %v6973 = vadd.f32 %v6972, %v6462
    %v6974 = vadd.f32 %v6973, %v6463
    %v6975 = vadd.f32 %v6974, %v6464
    %v6976 = vadd.f32 %v6975, %v6465
    %v6977 = vadd.f32 %v6976, %v6466
    %v6978 = vadd.f32 %v6977, %v6467
    %v6979 = vadd.f32 %v6978, %v6468
    %v6980 = vadd.f32 %v6979, %v6469
    %v6981 = vadd.f32 %v6980, %v6470
    %v6982 = vadd.f32 %v6981, %v6471
    %v6983 = vadd.f32 %v6982, %v6472
    %v6984 = vadd.f32 %v6983, %v6473
    %v6985 = vadd.f32 %v6984, %v6474
    %v6986 = vadd.f32 %v6985, %v6475
    %v6987 = vrot.slane %v6986, 4
    %v6988 = vadd.f32 %v6986, %v6987
    %v6989 = vrot.slane %v6988, 2
    %v6990 = vadd.f32 %v6988, %v6989
    %v6991 = vrot.slane %v6990, 1
    %v6992 = vadd.f32 %v6990, %v6991
    %v6993 = vld [vmem:[#allocation2] sm:$0xff]
    %v6994 = vld [vmem:[#allocation2 + $0x8] sm:$0xff]
    %v6995 = vld [vmem:[#allocation2 + $0x10] sm:$0xff]
    %v6996 = vld [vmem:[#allocation2 + $0x18] sm:$0xff]
    %v6997 = vld [vmem:[#allocation2 + $0x20] sm:$0xff]
    %v6998 = vld [vmem:[#allocation2 + $0x28] sm:$0xff]
    %v6999 = vld [vmem:[#allocation2 + $0x30] sm:$0xff]
    %v7000 = vld [vmem:[#allocation2 + $0x38] sm:$0xff]
    %v7001 = vld [vmem:[#allocation2 + $0x40] sm:$0xff]
    %v7002 = vld [vmem:[#allocation2 + $0x48] sm:$0xff]
    %v7003 = vld [vmem:[#allocation2 + $0x50] sm:$0xff]
    %v7004 = vld [vmem:[#allocation2 + $0x58] sm:$0xff]
    %v7005 = vld [vmem:[#allocation2 + $0x60] sm:$0xff]
    %v7006 = vld [vmem:[#allocation2 + $0x68] sm:$0xff]
    %v7007 = vld [vmem:[#allocation2 + $0x70] sm:$0xff]
    %v7008 = vld [vmem:[#allocation2 + $0x78] sm:$0xff]
    %v7009 = vmul.f32 %v6993, 0.9
    %v7010 = vmul.f32 %v6994, 0.9
    %v7011 = vmul.f32 %v6995, 0.9
    %v7012 = vmul.f32 %v6996, 0.9
    %v7013 = vmul.f32 %v6997, 0.9
    %v7014 = vmul.f32 %v6998, 0.9
    %v7015 = vmul.f32 %v6999, 0.9
    %v7016 = vmul.f32 %v7000, 0.9
    %v7017 = vmul.f32 %v7001, 0.9
    %v7018 = vmul.f32 %v7002, 0.9
    %v7019 = vmul.f32 %v7003, 0.9
    %v7020 = vmul.f32 %v7004, 0.9
    %v7021 = vmul.f32 %v7005, 0.9
    %v7022 = vmul.f32 %v7006, 0.9
    %v7023 = vmul.f32 %v7007, 0.9
    %v7024 = vmul.f32 %v7008, 0.9
    %v7025 = vmul.f32 %v484, 0.0005
    %v7026 = vmul.f32 %v485, 0.0005
    %v7027 = vmul.f32 %v486, 0.0005
    %v7028 = vmul.f32 %v487, 0.0005
    %v7029 = vmul.f32 %v488, 0.0005
    %v7030 = vmul.f32 %v489, 0.0005
    %v7031 = vmul.f32 %v490, 0.0005
    %v7032 = vmul.f32 %v491, 0.0005
    %v7033 = vmul.f32 %v492, 0.0005
    %v7034 = vmul.f32 %v493, 0.0005
    %v7035 = vmul.f32 %v494, 0.0005
    %v7036 = vmul.f32 %v495, 0.0005
    %v7037 = vmul.f32 %v496, 0.0005
    %v7038 = vmul.f32 %v497, 0.0005
    %v7039 = vmul.f32 %v498, 0.0005
    %v7040 = vmul.f32 %v499, 0.0005
    %7041 = vxpose.xlu0.b32.start [1/16] %v6476, 128
    %7042 = vxpose.xlu0.b32.cont [2/16] %v6477, 128
    %7043 = vxpose.xlu0.b32.cont [3/16] %v6478, 128
    %7044 = vxpose.xlu0.b32.cont [4/16] %v6479, 128
    %7045 = vxpose.xlu0.b32.cont [5/16] %v6480, 128
    %7046 = vxpose.xlu0.b32.cont [6/16] %v6481, 128
    %7047 = vxpose.xlu0.b32.cont [7/16] %v6482, 128
    %7048 = vxpose.xlu0.b32.cont [8/16] %v6483, 128
    %7049 = vxpose.xlu0.b32.cont [9/16] %v6484, 128
    %7050 = vxpose.xlu0.b32.cont [10/16] %v6485, 128
    %7051 = vxpose.xlu0.b32.cont [11/16] %v6486, 128
    %7052 = vxpose.xlu0.b32.cont [12/16] %v6487, 128
    %7053 = vxpose.xlu0.b32.cont [13/16] %v6488, 128
    %7054 = vxpose.xlu0.b32.cont [14/16] %v6489, 128
    %7055 = vxpose.xlu0.b32.cont [15/16] %v6490, 128
    %7056 = vxpose.xlu0.b32.end [16/16] %v6491, 128
    %v7057 = vpop.trf.xlu0
    %v7058 = vpop.trf.xlu0
    %v7059 = vpop.trf.xlu0
    %v7060 = vpop.trf.xlu0
    %v7061 = vpop.trf.xlu0
    %v7062 = vpop.trf.xlu0
    %v7063 = vpop.trf.xlu0
    %v7064 = vpop.trf.xlu0
    %v7065 = vpop.trf.xlu0
    %v7066 = vpop.trf.xlu0
    %v7067 = vpop.trf.xlu0
    %v7068 = vpop.trf.xlu0
    %v7069 = vpop.trf.xlu0
    %v7070 = vpop.trf.xlu0
    %v7071 = vpop.trf.xlu0
    %v7072 = vpop.trf.xlu0
    %7073 = vxpose.xlu0.b32.start [1/16] %v6492, 128
    %7074 = vxpose.xlu0.b32.cont [2/16] %v6493, 128
    %7075 = vxpose.xlu0.b32.cont [3/16] %v6494, 128
    %7076 = vxpose.xlu0.b32.cont [4/16] %v6495, 128
    %7077 = vxpose.xlu0.b32.cont [5/16] %v6496, 128
    %7078 = vxpose.xlu0.b32.cont [6/16] %v6497, 128
    %7079 = vxpose.xlu0.b32.cont [7/16] %v6498, 128
    %7080 = vxpose.xlu0.b32.cont [8/16] %v6499, 128
    %7081 = vxpose.xlu0.b32.cont [9/16] %v6500, 128
    %7082 = vxpose.xlu0.b32.cont [10/16] %v6501, 128
    %7083 = vxpose.xlu0.b32.cont [11/16] %v6502, 128
    %7084 = vxpose.xlu0.b32.cont [12/16] %v6503, 128
    %7085 = vxpose.xlu0.b32.cont [13/16] %v6504, 128
    %7086 = vxpose.xlu0.b32.cont [14/16] %v6505, 128
    %7087 = vxpose.xlu0.b32.cont [15/16] %v6506, 128
    %7088 = vxpose.xlu0.b32.end [16/16] %v6507, 128
    %v7089 = vpop.trf.xlu0
    %v7090 = vpop.trf.xlu0
    %v7091 = vpop.trf.xlu0
    %v7092 = vpop.trf.xlu0
    %v7093 = vpop.trf.xlu0
    %v7094 = vpop.trf.xlu0
    %v7095 = vpop.trf.xlu0
    %v7096 = vpop.trf.xlu0
    %v7097 = vpop.trf.xlu0
    %v7098 = vpop.trf.xlu0
    %v7099 = vpop.trf.xlu0
    %v7100 = vpop.trf.xlu0
    %v7101 = vpop.trf.xlu0
    %v7102 = vpop.trf.xlu0
    %v7103 = vpop.trf.xlu0
    %v7104 = vpop.trf.xlu0
    %7105 = vxpose.xlu0.b32.start [1/16] %v6508, 128
    %7106 = vxpose.xlu0.b32.cont [2/16] %v6509, 128
    %7107 = vxpose.xlu0.b32.cont [3/16] %v6510, 128
    %7108 = vxpose.xlu0.b32.cont [4/16] %v6511, 128
    %7109 = vxpose.xlu0.b32.cont [5/16] %v6512, 128
    %7110 = vxpose.xlu0.b32.cont [6/16] %v6513, 128
    %7111 = vxpose.xlu0.b32.cont [7/16] %v6514, 128
    %7112 = vxpose.xlu0.b32.cont [8/16] %v6515, 128
    %7113 = vxpose.xlu0.b32.cont [9/16] %v6516, 128
    %7114 = vxpose.xlu0.b32.cont [10/16] %v6517, 128
    %7115 = vxpose.xlu0.b32.cont [11/16] %v6518, 128
    %7116 = vxpose.xlu0.b32.cont [12/16] %v6519, 128
    %7117 = vxpose.xlu0.b32.cont [13/16] %v6520, 128
    %7118 = vxpose.xlu0.b32.cont [14/16] %v6521, 128
    %7119 = vxpose.xlu0.b32.cont [15/16] %v6522, 128
    %7120 = vxpose.xlu0.b32.end [16/16] %v6523, 128
    %v7121 = vpop.trf.xlu0
    %v7122 = vpop.trf.xlu0
    %v7123 = vpop.trf.xlu0
    %v7124 = vpop.trf.xlu0
    %v7125 = vpop.trf.xlu0
    %v7126 = vpop.trf.xlu0
    %v7127 = vpop.trf.xlu0
    %v7128 = vpop.trf.xlu0
    %v7129 = vpop.trf.xlu0
    %v7130 = vpop.trf.xlu0
    %v7131 = vpop.trf.xlu0
    %v7132 = vpop.trf.xlu0
    %v7133 = vpop.trf.xlu0
    %v7134 = vpop.trf.xlu0
    %v7135 = vpop.trf.xlu0
    %v7136 = vpop.trf.xlu0
    %7137 = vxpose.xlu0.b32.start [1/16] %v6524, 128
    %7138 = vxpose.xlu0.b32.cont [2/16] %v6525, 128
    %7139 = vxpose.xlu0.b32.cont [3/16] %v6526, 128
    %7140 = vxpose.xlu0.b32.cont [4/16] %v6527, 128
    %7141 = vxpose.xlu0.b32.cont [5/16] %v6528, 128
    %7142 = vxpose.xlu0.b32.cont [6/16] %v6529, 128
    %7143 = vxpose.xlu0.b32.cont [7/16] %v6530, 128
    %7144 = vxpose.xlu0.b32.cont [8/16] %v6531, 128
    %7145 = vxpose.xlu0.b32.cont [9/16] %v6532, 128
    %7146 = vxpose.xlu0.b32.cont [10/16] %v6533, 128
    %7147 = vxpose.xlu0.b32.cont [11/16] %v6534, 128
    %7148 = vxpose.xlu0.b32.cont [12/16] %v6535, 128
    %7149 = vxpose.xlu0.b32.cont [13/16] %v6536, 128
    %7150 = vxpose.xlu0.b32.cont [14/16] %v6537, 128
    %7151 = vxpose.xlu0.b32.cont [15/16] %v6538, 128
    %7152 = vxpose.xlu0.b32.end [16/16] %v6539, 128
    %v7153 = vpop.trf.xlu0
    %v7154 = vpop.trf.xlu0
    %v7155 = vpop.trf.xlu0
    %v7156 = vpop.trf.xlu0
    %v7157 = vpop.trf.xlu0
    %v7158 = vpop.trf.xlu0
    %v7159 = vpop.trf.xlu0
    %v7160 = vpop.trf.xlu0
    %v7161 = vpop.trf.xlu0
    %v7162 = vpop.trf.xlu0
    %v7163 = vpop.trf.xlu0
    %v7164 = vpop.trf.xlu0
    %v7165 = vpop.trf.xlu0
    %v7166 = vpop.trf.xlu0
    %v7167 = vpop.trf.xlu0
    %v7168 = vpop.trf.xlu0
    %7169 = vxpose.xlu0.b32.start [1/16] %v6540, 128
    %7170 = vxpose.xlu0.b32.cont [2/16] %v6541, 128
    %7171 = vxpose.xlu0.b32.cont [3/16] %v6542, 128
    %7172 = vxpose.xlu0.b32.cont [4/16] %v6543, 128
    %7173 = vxpose.xlu0.b32.cont [5/16] %v6544, 128
    %7174 = vxpose.xlu0.b32.cont [6/16] %v6545, 128
    %7175 = vxpose.xlu0.b32.cont [7/16] %v6546, 128
    %7176 = vxpose.xlu0.b32.cont [8/16] %v6547, 128
    %7177 = vxpose.xlu0.b32.cont [9/16] %v6548, 128
    %7178 = vxpose.xlu0.b32.cont [10/16] %v6549, 128
    %7179 = vxpose.xlu0.b32.cont [11/16] %v6550, 128
    %7180 = vxpose.xlu0.b32.cont [12/16] %v6551, 128
    %7181 = vxpose.xlu0.b32.cont [13/16] %v6552, 128
    %7182 = vxpose.xlu0.b32.cont [14/16] %v6553, 128
    %7183 = vxpose.xlu0.b32.cont [15/16] %v6554, 128
    %7184 = vxpose.xlu0.b32.end [16/16] %v6555, 128
    %v7185 = vpop.trf.xlu0
    %v7186 = vpop.trf.xlu0
    %v7187 = vpop.trf.xlu0
    %v7188 = vpop.trf.xlu0
    %v7189 = vpop.trf.xlu0
    %v7190 = vpop.trf.xlu0
    %v7191 = vpop.trf.xlu0
    %v7192 = vpop.trf.xlu0
    %v7193 = vpop.trf.xlu0
    %v7194 = vpop.trf.xlu0
    %v7195 = vpop.trf.xlu0
    %v7196 = vpop.trf.xlu0
    %v7197 = vpop.trf.xlu0
    %v7198 = vpop.trf.xlu0
    %v7199 = vpop.trf.xlu0
    %v7200 = vpop.trf.xlu0
    %7201 = vxpose.xlu0.b32.start [1/16] %v6556, 128
    %7202 = vxpose.xlu0.b32.cont [2/16] %v6557, 128
    %7203 = vxpose.xlu0.b32.cont [3/16] %v6558, 128
    %7204 = vxpose.xlu0.b32.cont [4/16] %v6559, 128
    %7205 = vxpose.xlu0.b32.cont [5/16] %v6560, 128
    %7206 = vxpose.xlu0.b32.cont [6/16] %v6561, 128
    %7207 = vxpose.xlu0.b32.cont [7/16] %v6562, 128
    %7208 = vxpose.xlu0.b32.cont [8/16] %v6563, 128
    %7209 = vxpose.xlu0.b32.cont [9/16] %v6564, 128
    %7210 = vxpose.xlu0.b32.cont [10/16] %v6565, 128
    %7211 = vxpose.xlu0.b32.cont [11/16] %v6566, 128
    %7212 = vxpose.xlu0.b32.cont [12/16] %v6567, 128
    %7213 = vxpose.xlu0.b32.cont [13/16] %v6568, 128
    %7214 = vxpose.xlu0.b32.cont [14/16] %v6569, 128
    %7215 = vxpose.xlu0.b32.cont [15/16] %v6570, 128
    %7216 = vxpose.xlu0.b32.end [16/16] %v6571, 128
    %v7217 = vpop.trf.xlu0
    %v7218 = vpop.trf.xlu0
    %v7219 = vpop.trf.xlu0
    %v7220 = vpop.trf.xlu0
    %v7221 = vpop.trf.xlu0
    %v7222 = vpop.trf.xlu0
    %v7223 = vpop.trf.xlu0
    %v7224 = vpop.trf.xlu0
    %v7225 = vpop.trf.xlu0
    %v7226 = vpop.trf.xlu0
    %v7227 = vpop.trf.xlu0
    %v7228 = vpop.trf.xlu0
    %v7229 = vpop.trf.xlu0
    %v7230 = vpop.trf.xlu0
    %v7231 = vpop.trf.xlu0
    %v7232 = vpop.trf.xlu0
    %7233 = vxpose.xlu0.b32.start [1/16] %v6572, 128
    %7234 = vxpose.xlu0.b32.cont [2/16] %v6573, 128
    %7235 = vxpose.xlu0.b32.cont [3/16] %v6574, 128
    %7236 = vxpose.xlu0.b32.cont [4/16] %v6575, 128
    %7237 = vxpose.xlu0.b32.cont [5/16] %v6576, 128
    %7238 = vxpose.xlu0.b32.cont [6/16] %v6577, 128
    %7239 = vxpose.xlu0.b32.cont [7/16] %v6578, 128
    %7240 = vxpose.xlu0.b32.cont [8/16] %v6579, 128
    %7241 = vxpose.xlu0.b32.cont [9/16] %v6580, 128
    %7242 = vxpose.xlu0.b32.cont [10/16] %v6581, 128
    %7243 = vxpose.xlu0.b32.cont [11/16] %v6582, 128
    %7244 = vxpose.xlu0.b32.cont [12/16] %v6583, 128
    %7245 = vxpose.xlu0.b32.cont [13/16] %v6584, 128
    %7246 = vxpose.xlu0.b32.cont [14/16] %v6585, 128
    %7247 = vxpose.xlu0.b32.cont [15/16] %v6586, 128
    %7248 = vxpose.xlu0.b32.end [16/16] %v6587, 128
    %v7249 = vpop.trf.xlu0
    %v7250 = vpop.trf.xlu0
    %v7251 = vpop.trf.xlu0
    %v7252 = vpop.trf.xlu0
    %v7253 = vpop.trf.xlu0
    %v7254 = vpop.trf.xlu0
    %v7255 = vpop.trf.xlu0
    %v7256 = vpop.trf.xlu0
    %v7257 = vpop.trf.xlu0
    %v7258 = vpop.trf.xlu0
    %v7259 = vpop.trf.xlu0
    %v7260 = vpop.trf.xlu0
    %v7261 = vpop.trf.xlu0
    %v7262 = vpop.trf.xlu0
    %v7263 = vpop.trf.xlu0
    %v7264 = vpop.trf.xlu0
    %7265 = vxpose.xlu0.b32.start [1/16] %v6588, 128
    %7266 = vxpose.xlu0.b32.cont [2/16] %v6589, 128
    %7267 = vxpose.xlu0.b32.cont [3/16] %v6590, 128
    %7268 = vxpose.xlu0.b32.cont [4/16] %v6591, 128
    %7269 = vxpose.xlu0.b32.cont [5/16] %v6592, 128
    %7270 = vxpose.xlu0.b32.cont [6/16] %v6593, 128
    %7271 = vxpose.xlu0.b32.cont [7/16] %v6594, 128
    %7272 = vxpose.xlu0.b32.cont [8/16] %v6595, 128
    %7273 = vxpose.xlu0.b32.cont [9/16] %v6596, 128
    %7274 = vxpose.xlu0.b32.cont [10/16] %v6597, 128
    %7275 = vxpose.xlu0.b32.cont [11/16] %v6598, 128
    %7276 = vxpose.xlu0.b32.cont [12/16] %v6599, 128
    %7277 = vxpose.xlu0.b32.cont [13/16] %v6600, 128
    %7278 = vxpose.xlu0.b32.cont [14/16] %v6601, 128
    %7279 = vxpose.xlu0.b32.cont [15/16] %v6602, 128
    %7280 = vxpose.xlu0.b32.end [16/16] %v6603, 128
    %v7281 = vpop.trf.xlu0
    %v7282 = vpop.trf.xlu0
    %v7283 = vpop.trf.xlu0
    %v7284 = vpop.trf.xlu0
    %v7285 = vpop.trf.xlu0
    %v7286 = vpop.trf.xlu0
    %v7287 = vpop.trf.xlu0
    %v7288 = vpop.trf.xlu0
    %v7289 = vpop.trf.xlu0
    %v7290 = vpop.trf.xlu0
    %v7291 = vpop.trf.xlu0
    %v7292 = vpop.trf.xlu0
    %v7293 = vpop.trf.xlu0
    %v7294 = vpop.trf.xlu0
    %v7295 = vpop.trf.xlu0
    %v7296 = vpop.trf.xlu0
    %7297 = vxpose.xlu0.b32.start [1/16] %v6604, 128
    %7298 = vxpose.xlu0.b32.cont [2/16] %v6605, 128
    %7299 = vxpose.xlu0.b32.cont [3/16] %v6606, 128
    %7300 = vxpose.xlu0.b32.cont [4/16] %v6607, 128
    %7301 = vxpose.xlu0.b32.cont [5/16] %v6608, 128
    %7302 = vxpose.xlu0.b32.cont [6/16] %v6609, 128
    %7303 = vxpose.xlu0.b32.cont [7/16] %v6610, 128
    %7304 = vxpose.xlu0.b32.cont [8/16] %v6611, 128
    %7305 = vxpose.xlu0.b32.cont [9/16] %v6612, 128
    %7306 = vxpose.xlu0.b32.cont [10/16] %v6613, 128
    %7307 = vxpose.xlu0.b32.cont [11/16] %v6614, 128
    %7308 = vxpose.xlu0.b32.cont [12/16] %v6615, 128
    %7309 = vxpose.xlu0.b32.cont [13/16] %v6616, 128
    %7310 = vxpose.xlu0.b32.cont [14/16] %v6617, 128
    %7311 = vxpose.xlu0.b32.cont [15/16] %v6618, 128
    %7312 = vxpose.xlu0.b32.end [16/16] %v6619, 128
    %v7313 = vpop.trf.xlu0
    %v7314 = vpop.trf.xlu0
    %v7315 = vpop.trf.xlu0
    %v7316 = vpop.trf.xlu0
    %v7317 = vpop.trf.xlu0
    %v7318 = vpop.trf.xlu0
    %v7319 = vpop.trf.xlu0
    %v7320 = vpop.trf.xlu0
    %v7321 = vpop.trf.xlu0
    %v7322 = vpop.trf.xlu0
    %v7323 = vpop.trf.xlu0
    %v7324 = vpop.trf.xlu0
    %v7325 = vpop.trf.xlu0
    %v7326 = vpop.trf.xlu0
    %v7327 = vpop.trf.xlu0
    %v7328 = vpop.trf.xlu0
    %7329 = vxpose.xlu0.b32.start [1/16] %v6620, 128
    %7330 = vxpose.xlu0.b32.cont [2/16] %v6621, 128
    %7331 = vxpose.xlu0.b32.cont [3/16] %v6622, 128
    %7332 = vxpose.xlu0.b32.cont [4/16] %v6623, 128
    %7333 = vxpose.xlu0.b32.cont [5/16] %v6624, 128
    %7334 = vxpose.xlu0.b32.cont [6/16] %v6625, 128
    %7335 = vxpose.xlu0.b32.cont [7/16] %v6626, 128
    %7336 = vxpose.xlu0.b32.cont [8/16] %v6627, 128
    %7337 = vxpose.xlu0.b32.cont [9/16] %v6628, 128
    %7338 = vxpose.xlu0.b32.cont [10/16] %v6629, 128
    %7339 = vxpose.xlu0.b32.cont [11/16] %v6630, 128
    %7340 = vxpose.xlu0.b32.cont [12/16] %v6631, 128
    %7341 = vxpose.xlu0.b32.cont [13/16] %v6632, 128
    %7342 = vxpose.xlu0.b32.cont [14/16] %v6633, 128
    %7343 = vxpose.xlu0.b32.cont [15/16] %v6634, 128
    %7344 = vxpose.xlu0.b32.end [16/16] %v6635, 128
    %v7345 = vpop.trf.xlu0
    %v7346 = vpop.trf.xlu0
    %v7347 = vpop.trf.xlu0
    %v7348 = vpop.trf.xlu0
    %v7349 = vpop.trf.xlu0
    %v7350 = vpop.trf.xlu0
    %v7351 = vpop.trf.xlu0
    %v7352 = vpop.trf.xlu0
    %v7353 = vpop.trf.xlu0
    %v7354 = vpop.trf.xlu0
    %v7355 = vpop.trf.xlu0
    %v7356 = vpop.trf.xlu0
    %v7357 = vpop.trf.xlu0
    %v7358 = vpop.trf.xlu0
    %v7359 = vpop.trf.xlu0
    %v7360 = vpop.trf.xlu0
    %7361 = vxpose.xlu0.b32.start [1/16] %v6636, 128
    %7362 = vxpose.xlu0.b32.cont [2/16] %v6637, 128
    %7363 = vxpose.xlu0.b32.cont [3/16] %v6638, 128
    %7364 = vxpose.xlu0.b32.cont [4/16] %v6639, 128
    %7365 = vxpose.xlu0.b32.cont [5/16] %v6640, 128
    %7366 = vxpose.xlu0.b32.cont [6/16] %v6641, 128
    %7367 = vxpose.xlu0.b32.cont [7/16] %v6642, 128
    %7368 = vxpose.xlu0.b32.cont [8/16] %v6643, 128
    %7369 = vxpose.xlu0.b32.cont [9/16] %v6644, 128
    %7370 = vxpose.xlu0.b32.cont [10/16] %v6645, 128
    %7371 = vxpose.xlu0.b32.cont [11/16] %v6646, 128
    %7372 = vxpose.xlu0.b32.cont [12/16] %v6647, 128
    %7373 = vxpose.xlu0.b32.cont [13/16] %v6648, 128
    %7374 = vxpose.xlu0.b32.cont [14/16] %v6649, 128
    %7375 = vxpose.xlu0.b32.cont [15/16] %v6650, 128
    %7376 = vxpose.xlu0.b32.end [16/16] %v6651, 128
    %v7377 = vpop.trf.xlu0
    %v7378 = vpop.trf.xlu0
    %v7379 = vpop.trf.xlu0
    %v7380 = vpop.trf.xlu0
    %v7381 = vpop.trf.xlu0
    %v7382 = vpop.trf.xlu0
    %v7383 = vpop.trf.xlu0
    %v7384 = vpop.trf.xlu0
    %v7385 = vpop.trf.xlu0
    %v7386 = vpop.trf.xlu0
    %v7387 = vpop.trf.xlu0
    %v7388 = vpop.trf.xlu0
    %v7389 = vpop.trf.xlu0
    %v7390 = vpop.trf.xlu0
    %v7391 = vpop.trf.xlu0
    %v7392 = vpop.trf.xlu0
    %7393 = vxpose.xlu0.b32.start [1/16] %v6652, 128
    %7394 = vxpose.xlu0.b32.cont [2/16] %v6653, 128
    %7395 = vxpose.xlu0.b32.cont [3/16] %v6654, 128
    %7396 = vxpose.xlu0.b32.cont [4/16] %v6655, 128
    %7397 = vxpose.xlu0.b32.cont [5/16] %v6656, 128
    %7398 = vxpose.xlu0.b32.cont [6/16] %v6657, 128
    %7399 = vxpose.xlu0.b32.cont [7/16] %v6658, 128
    %7400 = vxpose.xlu0.b32.cont [8/16] %v6659, 128
    %7401 = vxpose.xlu0.b32.cont [9/16] %v6660, 128
    %7402 = vxpose.xlu0.b32.cont [10/16] %v6661, 128
    %7403 = vxpose.xlu0.b32.cont [11/16] %v6662, 128
    %7404 = vxpose.xlu0.b32.cont [12/16] %v6663, 128
    %7405 = vxpose.xlu0.b32.cont [13/16] %v6664, 128
    %7406 = vxpose.xlu0.b32.cont [14/16] %v6665, 128
    %7407 = vxpose.xlu0.b32.cont [15/16] %v6666, 128
    %7408 = vxpose.xlu0.b32.end [16/16] %v6667, 128
    %v7409 = vpop.trf.xlu0
    %v7410 = vpop.trf.xlu0
    %v7411 = vpop.trf.xlu0
    %v7412 = vpop.trf.xlu0
    %v7413 = vpop.trf.xlu0
    %v7414 = vpop.trf.xlu0
    %v7415 = vpop.trf.xlu0
    %v7416 = vpop.trf.xlu0
    %v7417 = vpop.trf.xlu0
    %v7418 = vpop.trf.xlu0
    %v7419 = vpop.trf.xlu0
    %v7420 = vpop.trf.xlu0
    %v7421 = vpop.trf.xlu0
    %v7422 = vpop.trf.xlu0
    %v7423 = vpop.trf.xlu0
    %v7424 = vpop.trf.xlu0
    %7425 = vxpose.xlu0.b32.start [1/16] %v6668, 128
    %7426 = vxpose.xlu0.b32.cont [2/16] %v6669, 128
    %7427 = vxpose.xlu0.b32.cont [3/16] %v6670, 128
    %7428 = vxpose.xlu0.b32.cont [4/16] %v6671, 128
    %7429 = vxpose.xlu0.b32.cont [5/16] %v6672, 128
    %7430 = vxpose.xlu0.b32.cont [6/16] %v6673, 128
    %7431 = vxpose.xlu0.b32.cont [7/16] %v6674, 128
    %7432 = vxpose.xlu0.b32.cont [8/16] %v6675, 128
    %7433 = vxpose.xlu0.b32.cont [9/16] %v6676, 128
    %7434 = vxpose.xlu0.b32.cont [10/16] %v6677, 128
    %7435 = vxpose.xlu0.b32.cont [11/16] %v6678, 128
    %7436 = vxpose.xlu0.b32.cont [12/16] %v6679, 128
    %7437 = vxpose.xlu0.b32.cont [13/16] %v6680, 128
    %7438 = vxpose.xlu0.b32.cont [14/16] %v6681, 128
    %7439 = vxpose.xlu0.b32.cont [15/16] %v6682, 128
    %7440 = vxpose.xlu0.b32.end [16/16] %v6683, 128
    %v7441 = vpop.trf.xlu0
    %v7442 = vpop.trf.xlu0
    %v7443 = vpop.trf.xlu0
    %v7444 = vpop.trf.xlu0
    %v7445 = vpop.trf.xlu0
    %v7446 = vpop.trf.xlu0
    %v7447 = vpop.trf.xlu0
    %v7448 = vpop.trf.xlu0
    %v7449 = vpop.trf.xlu0
    %v7450 = vpop.trf.xlu0
    %v7451 = vpop.trf.xlu0
    %v7452 = vpop.trf.xlu0
    %v7453 = vpop.trf.xlu0
    %v7454 = vpop.trf.xlu0
    %v7455 = vpop.trf.xlu0
    %v7456 = vpop.trf.xlu0
    %7457 = vxpose.xlu0.b32.start [1/16] %v6684, 128
    %7458 = vxpose.xlu0.b32.cont [2/16] %v6685, 128
    %7459 = vxpose.xlu0.b32.cont [3/16] %v6686, 128
    %7460 = vxpose.xlu0.b32.cont [4/16] %v6687, 128
    %7461 = vxpose.xlu0.b32.cont [5/16] %v6688, 128
    %7462 = vxpose.xlu0.b32.cont [6/16] %v6689, 128
    %7463 = vxpose.xlu0.b32.cont [7/16] %v6690, 128
    %7464 = vxpose.xlu0.b32.cont [8/16] %v6691, 128
    %7465 = vxpose.xlu0.b32.cont [9/16] %v6692, 128
    %7466 = vxpose.xlu0.b32.cont [10/16] %v6693, 128
    %7467 = vxpose.xlu0.b32.cont [11/16] %v6694, 128
    %7468 = vxpose.xlu0.b32.cont [12/16] %v6695, 128
    %7469 = vxpose.xlu0.b32.cont [13/16] %v6696, 128
    %7470 = vxpose.xlu0.b32.cont [14/16] %v6697, 128
    %7471 = vxpose.xlu0.b32.cont [15/16] %v6698, 128
    %7472 = vxpose.xlu0.b32.end [16/16] %v6699, 128
    %v7473 = vpop.trf.xlu0
    %v7474 = vpop.trf.xlu0
    %v7475 = vpop.trf.xlu0
    %v7476 = vpop.trf.xlu0
    %v7477 = vpop.trf.xlu0
    %v7478 = vpop.trf.xlu0
    %v7479 = vpop.trf.xlu0
    %v7480 = vpop.trf.xlu0
    %v7481 = vpop.trf.xlu0
    %v7482 = vpop.trf.xlu0
    %v7483 = vpop.trf.xlu0
    %v7484 = vpop.trf.xlu0
    %v7485 = vpop.trf.xlu0
    %v7486 = vpop.trf.xlu0
    %v7487 = vpop.trf.xlu0
    %v7488 = vpop.trf.xlu0
    %7489 = vxpose.xlu0.b32.start [1/16] %v6700, 128
    %7490 = vxpose.xlu0.b32.cont [2/16] %v6701, 128
    %7491 = vxpose.xlu0.b32.cont [3/16] %v6702, 128
    %7492 = vxpose.xlu0.b32.cont [4/16] %v6703, 128
    %7493 = vxpose.xlu0.b32.cont [5/16] %v6704, 128
    %7494 = vxpose.xlu0.b32.cont [6/16] %v6705, 128
    %7495 = vxpose.xlu0.b32.cont [7/16] %v6706, 128
    %7496 = vxpose.xlu0.b32.cont [8/16] %v6707, 128
    %7497 = vxpose.xlu0.b32.cont [9/16] %v6708, 128
    %7498 = vxpose.xlu0.b32.cont [10/16] %v6709, 128
    %7499 = vxpose.xlu0.b32.cont [11/16] %v6710, 128
    %7500 = vxpose.xlu0.b32.cont [12/16] %v6711, 128
    %7501 = vxpose.xlu0.b32.cont [13/16] %v6712, 128
    %7502 = vxpose.xlu0.b32.cont [14/16] %v6713, 128
    %7503 = vxpose.xlu0.b32.cont [15/16] %v6714, 128
    %7504 = vxpose.xlu0.b32.end [16/16] %v6715, 128
    %v7505 = vpop.trf.xlu0
    %v7506 = vpop.trf.xlu0
    %v7507 = vpop.trf.xlu0
    %v7508 = vpop.trf.xlu0
    %v7509 = vpop.trf.xlu0
    %v7510 = vpop.trf.xlu0
    %v7511 = vpop.trf.xlu0
    %v7512 = vpop.trf.xlu0
    %v7513 = vpop.trf.xlu0
    %v7514 = vpop.trf.xlu0
    %v7515 = vpop.trf.xlu0
    %v7516 = vpop.trf.xlu0
    %v7517 = vpop.trf.xlu0
    %v7518 = vpop.trf.xlu0
    %v7519 = vpop.trf.xlu0
    %v7520 = vpop.trf.xlu0
    %7521 = vxpose.xlu0.b32.start [1/16] %v6716, 128
    %7522 = vxpose.xlu0.b32.cont [2/16] %v6717, 128
    %7523 = vxpose.xlu0.b32.cont [3/16] %v6718, 128
    %7524 = vxpose.xlu0.b32.cont [4/16] %v6719, 128
    %7525 = vxpose.xlu0.b32.cont [5/16] %v6720, 128
    %7526 = vxpose.xlu0.b32.cont [6/16] %v6721, 128
    %7527 = vxpose.xlu0.b32.cont [7/16] %v6722, 128
    %7528 = vxpose.xlu0.b32.cont [8/16] %v6723, 128
    %7529 = vxpose.xlu0.b32.cont [9/16] %v6724, 128
    %7530 = vxpose.xlu0.b32.cont [10/16] %v6725, 128
    %7531 = vxpose.xlu0.b32.cont [11/16] %v6726, 128
    %7532 = vxpose.xlu0.b32.cont [12/16] %v6727, 128
    %7533 = vxpose.xlu0.b32.cont [13/16] %v6728, 128
    %7534 = vxpose.xlu0.b32.cont [14/16] %v6729, 128
    %7535 = vxpose.xlu0.b32.cont [15/16] %v6730, 128
    %7536 = vxpose.xlu0.b32.end [16/16] %v6731, 128
    %v7537 = vpop.trf.xlu0
    %v7538 = vpop.trf.xlu0
    %v7539 = vpop.trf.xlu0
    %v7540 = vpop.trf.xlu0
    %v7541 = vpop.trf.xlu0
    %v7542 = vpop.trf.xlu0
    %v7543 = vpop.trf.xlu0
    %v7544 = vpop.trf.xlu0
    %v7545 = vpop.trf.xlu0
    %v7546 = vpop.trf.xlu0
    %v7547 = vpop.trf.xlu0
    %v7548 = vpop.trf.xlu0
    %v7549 = vpop.trf.xlu0
    %v7550 = vpop.trf.xlu0
    %v7551 = vpop.trf.xlu0
    %v7552 = vpop.trf.xlu0
    %7553 = vmatprep.subr.mxu0 0.0
    %7554 = vmatpush1.msra.mxu0 %v6220
    %7555 = vmatprep.subr.mxu0 0.0
    %7556 = vmatpush1.msra.mxu0 %v6221
    %7557 = vmatprep.subr.mxu0 0.0
    %7558 = vmatpush1.msra.mxu0 %v6222
    %7559 = vmatprep.subr.mxu0 0.0
    %7560 = vmatpush1.msra.mxu0 %v6223
    %7561 = vmatprep.subr.mxu0 0.0
    %7562 = vmatpush1.msra.mxu0 %v6224
    %7563 = vmatprep.subr.mxu0 0.0
    %7564 = vmatpush1.msra.mxu0 %v6225
    %7565 = vmatprep.subr.mxu0 0.0
    %7566 = vmatpush1.msra.mxu0 %v6226
    %7567 = vmatprep.subr.mxu0 0.0
    %7568 = vmatpush1.msra.mxu0 %v6227
    %7569 = vmatprep.subr.mxu0 0.0
    %7570 = vmatpush1.msra.mxu0 %v6228
    %7571 = vmatprep.subr.mxu0 0.0
    %7572 = vmatpush1.msra.mxu0 %v6229
    %7573 = vmatprep.subr.mxu0 0.0
    %7574 = vmatpush1.msra.mxu0 %v6230
    %7575 = vmatprep.subr.mxu0 0.0
    %7576 = vmatpush1.msra.mxu0 %v6231
    %7577 = vmatprep.subr.mxu0 0.0
    %7578 = vmatpush1.msra.mxu0 %v6232
    %7579 = vmatprep.subr.mxu0 0.0
    %7580 = vmatpush1.msra.mxu0 %v6233
    %7581 = vmatprep.subr.mxu0 0.0
    %7582 = vmatpush1.msra.mxu0 %v6234
    %7583 = vmatprep.subr.mxu0 0.0
    %7584 = vmatpush1.msra.mxu0 %v6235
    %7585 = vmatprep.subr.mxu0 0.0
    %7586 = vmatpush1.msra.mxu0 %v6236
    %7587 = vmatprep.subr.mxu0 0.0
    %7588 = vmatpush1.msra.mxu0 %v6237
    %7589 = vmatprep.subr.mxu0 0.0
    %7590 = vmatpush1.msra.mxu0 %v6238
    %7591 = vmatprep.subr.mxu0 0.0
    %7592 = vmatpush1.msra.mxu0 %v6239
    %7593 = vmatprep.subr.mxu0 0.0
    %7594 = vmatpush1.msra.mxu0 %v6240
    %7595 = vmatprep.subr.mxu0 0.0
    %7596 = vmatpush1.msra.mxu0 %v6241
    %7597 = vmatprep.subr.mxu0 0.0
    %7598 = vmatpush1.msra.mxu0 %v6242
    %7599 = vmatprep.subr.mxu0 0.0
    %7600 = vmatpush1.msra.mxu0 %v6243
    %7601 = vmatprep.subr.mxu0 0.0
    %7602 = vmatpush1.msra.mxu0 %v6244
    %7603 = vmatprep.subr.mxu0 0.0
    %7604 = vmatpush1.msra.mxu0 %v6245
    %7605 = vmatprep.subr.mxu0 0.0
    %7606 = vmatpush1.msra.mxu0 %v6246
    %7607 = vmatprep.subr.mxu0 0.0
    %7608 = vmatpush1.msra.mxu0 %v6247
    %7609 = vmatprep.subr.mxu0 0.0
    %7610 = vmatpush1.msra.mxu0 %v6248
    %7611 = vmatprep.subr.mxu0 0.0
    %7612 = vmatpush1.msra.mxu0 %v6249
    %7613 = vmatprep.subr.mxu0 0.0
    %7614 = vmatpush1.msra.mxu0 %v6250
    %7615 = vmatprep.subr.mxu0 0.0
    %7616 = vmatpush1.msra.mxu0 %v6251
    %7617 = vmatprep.mubr.f32.mxu0 %v7089
    %7618 = vmatmul.mubr.f32.gmra.mrb[0].mxu0 %v7057
    %v7619 = vpop.f32.mrb[0].mxu0
    %v7620 = vadd.f32 %v7025, %v7619
    %v7621 = vpop.f32.mrb[0].mxu0
    %7622 = vmatprep.mubr.f32.mxu0 %v7090
    %7623 = vmatmul.mubr.f32.gmra.mrb[0].mxu0 %v7058
    %v7624 = vpop.f32.mrb[0].mxu0
    %v7625 = vadd.f32 %v7026, %v7624
    %v7626 = vpop.f32.mrb[0].mxu0
    %7627 = vmatprep.mubr.f32.mxu0 %v7091
    %7628 = vmatmul.mubr.f32.gmra.mrb[0].mxu0 %v7059
    %v7629 = vpop.f32.mrb[0].mxu0
    %v7630 = vadd.f32 %v7027, %v7629
    %v7631 = vpop.f32.mrb[0].mxu0
    %7632 = vmatprep.mubr.f32.mxu0 %v7092
    %7633 = vmatmul.mubr.f32.gmra.mrb[0].mxu0 %v7060
    %v7634 = vpop.f32.mrb[0].mxu0
    %v7635 = vadd.f32 %v7028, %v7634
    %v7636 = vpop.f32.mrb[0].mxu0
    %7637 = vmatprep.mubr.f32.mxu0 %v7093
    %7638 = vmatmul.mubr.f32.gmra.mrb[0].mxu0 %v7061
    %v7639 = vpop.f32.mrb[0].mxu0
    %v7640 = vadd.f32 %v7029, %v7639
    %v7641 = vpop.f32.mrb[0].mxu0
    %7642 = vmatprep.mubr.f32.mxu0 %v7094
    %7643 = vmatmul.mubr.f32.gmra.mrb[0].mxu0 %v7062
    %v7644 = vpop.f32.mrb[0].mxu0
    %v7645 = vadd.f32 %v7030, %v7644
    %v7646 = vpop.f32.mrb[0].mxu0
    %7647 = vmatprep.mubr.f32.mxu0 %v7095
    %7648 = vmatmul.mubr.f32.gmra.mrb[0].mxu0 %v7063
    %v7649 = vpop.f32.mrb[0].mxu0
    %v7650 = vadd.f32 %v7031, %v7649
    %v7651 = vpop.f32.mrb[0].mxu0
    %7652 = vmatprep.mubr.f32.mxu0 %v7096
    %7653 = vmatmul.mubr.f32.gmra.mrb[0].mxu0 %v7064
    %v7654 = vpop.f32.mrb[0].mxu0
    %v7655 = vadd.f32 %v7032, %v7654
    %v7656 = vpop.f32.mrb[0].mxu0
    %7657 = vmatprep.mubr.f32.mxu0 %v7097
    %7658 = vmatmul.mubr.f32.gmra.mrb[0].mxu0 %v7065
    %v7659 = vpop.f32.mrb[0].mxu0
    %v7660 = vadd.f32 %v7033, %v7659
    %v7661 = vpop.f32.mrb[0].mxu0
    %7662 = vmatprep.mubr.f32.mxu0 %v7098
    %7663 = vmatmul.mubr.f32.gmra.mrb[0].mxu0 %v7066
    %v7664 = vpop.f32.mrb[0].mxu0
    %v7665 = vadd.f32 %v7034, %v7664
    %v7666 = vpop.f32.mrb[0].mxu0
    %7667 = vmatprep.mubr.f32.mxu0 %v7099
    %7668 = vmatmul.mubr.f32.gmra.mrb[0].mxu0 %v7067
    %v7669 = vpop.f32.mrb[0].mxu0
    %v7670 = vadd.f32 %v7035, %v7669
    %v7671 = vpop.f32.mrb[0].mxu0
    %7672 = vmatprep.mubr.f32.mxu0 %v7100
    %7673 = vmatmul.mubr.f32.gmra.mrb[0].mxu0 %v7068
    %v7674 = vpop.f32.mrb[0].mxu0
    %v7675 = vadd.f32 %v7036, %v7674
    %v7676 = vpop.f32.mrb[0].mxu0
    %7677 = vmatprep.mubr.f32.mxu0 %v7101
    %7678 = vmatmul.mubr.f32.gmra.mrb[0].mxu0 %v7069
    %v7679 = vpop.f32.mrb[0].mxu0
    %v7680 = vadd.f32 %v7037, %v7679
    %v7681 = vpop.f32.mrb[0].mxu0
    %7682 = vmatprep.mubr.f32.mxu0 %v7102
    %7683 = vmatmul.mubr.f32.gmra.mrb[0].mxu0 %v7070
    %v7684 = vpop.f32.mrb[0].mxu0
    %v7685 = vadd.f32 %v7038, %v7684
    %v7686 = vpop.f32.mrb[0].mxu0
    %7687 = vmatprep.mubr.f32.mxu0 %v7103
    %7688 = vmatmul.mubr.f32.gmra.mrb[0].mxu0 %v7071
    %v7689 = vpop.f32.mrb[0].mxu0
    %v7690 = vadd.f32 %v7039, %v7689
    %v7691 = vpop.f32.mrb[0].mxu0
    %7692 = vmatprep.mubr.f32.mxu0 %v7104
    %7693 = vmatmul.mubr.f32.gmra.mrb[0].mxu0 %v7072
    %v7694 = vpop.f32.mrb[0].mxu0
    %v7695 = vadd.f32 %v7040, %v7694
    %v7696 = vpop.f32.mrb[0].mxu0
    %7697 = vdwg.mxu0
    %7698 = vmatprep.subr.mxu0 0.0
    %7699 = vmatpush1.msra.mxu0 %v6252
    %7700 = vmatprep.subr.mxu0 0.0
    %7701 = vmatpush1.msra.mxu0 %v6253
    %7702 = vmatprep.subr.mxu0 0.0
    %7703 = vmatpush1.msra.mxu0 %v6254
    %7704 = vmatprep.subr.mxu0 0.0
    %7705 = vmatpush1.msra.mxu0 %v6255
    %7706 = vmatprep.subr.mxu0 0.0
    %7707 = vmatpush1.msra.mxu0 %v6256
    %7708 = vmatprep.subr.mxu0 0.0
    %7709 = vmatpush1.msra.mxu0 %v6257
    %7710 = vmatprep.subr.mxu0 0.0
    %7711 = vmatpush1.msra.mxu0 %v6258
    %7712 = vmatprep.subr.mxu0 0.0
    %7713 = vmatpush1.msra.mxu0 %v6259
    %7714 = vmatprep.subr.mxu0 0.0
    %7715 = vmatpush1.msra.mxu0 %v6260
    %7716 = vmatprep.subr.mxu0 0.0
    %7717 = vmatpush1.msra.mxu0 %v6261
    %7718 = vmatprep.subr.mxu0 0.0
    %7719 = vmatpush1.msra.mxu0 %v6262
    %7720 = vmatprep.subr.mxu0 0.0
    %7721 = vmatpush1.msra.mxu0 %v6263
    %7722 = vmatprep.subr.mxu0 0.0
    %7723 = vmatpush1.msra.mxu0 %v6264
    %7724 = vmatprep.subr.mxu0 0.0
    %7725 = vmatpush1.msra.mxu0 %v6265
    %7726 = vmatprep.subr.mxu0 0.0
    %7727 = vmatpush1.msra.mxu0 %v6266
    %7728 = vmatprep.subr.mxu0 0.0
    %7729 = vmatpush1.msra.mxu0 %v6267
    %7730 = vmatprep.subr.mxu0 0.0
    %7731 = vmatpush1.msra.mxu0 %v6268
    %7732 = vmatprep.subr.mxu0 0.0
    %7733 = vmatpush1.msra.mxu0 %v6269
    %7734 = vmatprep.subr.mxu0 0.0
    %7735 = vmatpush1.msra.mxu0 %v6270
    %7736 = vmatprep.subr.mxu0 0.0
    %7737 = vmatpush1.msra.mxu0 %v6271
    %7738 = vmatprep.subr.mxu0 0.0
    %7739 = vmatpush1.msra.mxu0 %v6272
    %7740 = vmatprep.subr.mxu0 0.0
    %7741 = vmatpush1.msra.mxu0 %v6273
    %7742 = vmatprep.subr.mxu0 0.0
    %7743 = vmatpush1.msra.mxu0 %v6274
    %7744 = vmatprep.subr.mxu0 0.0
    %7745 = vmatpush1.msra.mxu0 %v6275
    %7746 = vmatprep.subr.mxu0 0.0
    %7747 = vmatpush1.msra.mxu0 %v6276
    %7748 = vmatprep.subr.mxu0 0.0
    %7749 = vmatpush1.msra.mxu0 %v6277
    %7750 = vmatprep.subr.mxu0 0.0
    %7751 = vmatpush1.msra.mxu0 %v6278
    %7752 = vmatprep.subr.mxu0 0.0
    %7753 = vmatpush1.msra.mxu0 %v6279
    %7754 = vmatprep.subr.mxu0 0.0
    %7755 = vmatpush1.msra.mxu0 %v6280
    %7756 = vmatprep.subr.mxu0 0.0
    %7757 = vmatpush1.msra.mxu0 %v6281
    %7758 = vmatprep.subr.mxu0 0.0
    %7759 = vmatpush1.msra.mxu0 %v6282
    %7760 = vmatprep.subr.mxu0 0.0
    %7761 = vmatpush1.msra.mxu0 %v6283
    %7762 = vmatprep.mubr.f32.mxu0 %v7153
    %7763 = vmatmul.mubr.f32.gmra.mrb[0].mxu0 %v7121
    %v7764 = vpop.f32.mrb[0].mxu0
    %v7765 = vadd.f32 %v7620, %v7764
    %v7766 = vpop.f32.mrb[0].mxu0
    %7767 = vmatprep.mubr.f32.mxu0 %v7154
    %7768 = vmatmul.mubr.f32.gmra.mrb[0].mxu0 %v7122
    %v7769 = vpop.f32.mrb[0].mxu0
    %v7770 = vadd.f32 %v7625, %v7769
    %v7771 = vpop.f32.mrb[0].mxu0
    %7772 = vmatprep.mubr.f32.mxu0 %v7155
    %7773 = vmatmul.mubr.f32.gmra.mrb[0].mxu0 %v7123
    %v7774 = vpop.f32.mrb[0].mxu0
    %v7775 = vadd.f32 %v7630, %v7774
    %v7776 = vpop.f32.mrb[0].mxu0
    %7777 = vmatprep.mubr.f32.mxu0 %v7156
    %7778 = vmatmul.mubr.f32.gmra.mrb[0].mxu0 %v7124
    %v7779 = vpop.f32.mrb[0].mxu0
    %v7780 = vadd.f32 %v7635, %v7779
    %v7781 = vpop.f32.mrb[0].mxu0
    %7782 = vmatprep.mubr.f32.mxu0 %v7157
    %7783 = vmatmul.mubr.f32.gmra.mrb[0].mxu0 %v7125
    %v7784 = vpop.f32.mrb[0].mxu0
    %v7785 = vadd.f32 %v7640, %v7784
    %v7786 = vpop.f32.mrb[0].mxu0
    %7787 = vmatprep.mubr.f32.mxu0 %v7158
    %7788 = vmatmul.mubr.f32.gmra.mrb[0].mxu0 %v7126
    %v7789 = vpop.f32.mrb[0].mxu0
    %v7790 = vadd.f32 %v7645, %v7789
    %v7791 = vpop.f32.mrb[0].mxu0
    %7792 = vmatprep.mubr.f32.mxu0 %v7159
    %7793 = vmatmul.mubr.f32.gmra.mrb[0].mxu0 %v7127
    %v7794 = vpop.f32.mrb[0].mxu0
    %v7795 = vadd.f32 %v7650, %v7794
    %v7796 = vpop.f32.mrb[0].mxu0
    %7797 = vmatprep.mubr.f32.mxu0 %v7160
    %7798 = vmatmul.mubr.f32.gmra.mrb[0].mxu0 %v7128
    %v7799 = vpop.f32.mrb[0].mxu0
    %v7800 = vadd.f32 %v7655, %v7799
    %v7801 = vpop.f32.mrb[0].mxu0
    %7802 = vmatprep.mubr.f32.mxu0 %v7161
    %7803 = vmatmul.mubr.f32.gmra.mrb[0].mxu0 %v7129
    %v7804 = vpop.f32.mrb[0].mxu0
    %v7805 = vadd.f32 %v7660, %v7804
    %v7806 = vpop.f32.mrb[0].mxu0
    %7807 = vmatprep.mubr.f32.mxu0 %v7162
    %7808 = vmatmul.mubr.f32.gmra.mrb[0].mxu0 %v7130
    %v7809 = vpop.f32.mrb[0].mxu0
    %v7810 = vadd.f32 %v7665, %v7809
    %v7811 = vpop.f32.mrb[0].mxu0
    %7812 = vmatprep.mubr.f32.mxu0 %v7163
    %7813 = vmatmul.mubr.f32.gmra.mrb[0].mxu0 %v7131
    %v7814 = vpop.f32.mrb[0].mxu0
    %v7815 = vadd.f32 %v7670, %v7814
    %v7816 = vpop.f32.mrb[0].mxu0
    %7817 = vmatprep.mubr.f32.mxu0 %v7164
    %7818 = vmatmul.mubr.f32.gmra.mrb[0].mxu0 %v7132
    %v7819 = vpop.f32.mrb[0].mxu0
    %v7820 = vadd.f32 %v7675, %v7819
    %v7821 = vpop.f32.mrb[0].mxu0
    %7822 = vmatprep.mubr.f32.mxu0 %v7165
    %7823 = vmatmul.mubr.f32.gmra.mrb[0].mxu0 %v7133
    %v7824 = vpop.f32.mrb[0].mxu0
    %v7825 = vadd.f32 %v7680, %v7824
    %v7826 = vpop.f32.mrb[0].mxu0
    %7827 = vmatprep.mubr.f32.mxu0 %v7166
    %7828 = vmatmul.mubr.f32.gmra.mrb[0].mxu0 %v7134
    %v7829 = vpop.f32.mrb[0].mxu0
    %v7830 = vadd.f32 %v7685, %v7829
    %v7831 = vpop.f32.mrb[0].mxu0
    %7832 = vmatprep.mubr.f32.mxu0 %v7167
    %7833 = vmatmul.mubr.f32.gmra.mrb[0].mxu0 %v7135
    %v7834 = vpop.f32.mrb[0].mxu0
    %v7835 = vadd.f32 %v7690, %v7834
    %v7836 = vpop.f32.mrb[0].mxu0
    %7837 = vmatprep.mubr.f32.mxu0 %v7168
    %7838 = vmatmul.mubr.f32.gmra.mrb[0].mxu0 %v7136
    %v7839 = vpop.f32.mrb[0].mxu0
    %v7840 = vadd.f32 %v7695, %v7839
    %v7841 = vpop.f32.mrb[0].mxu0
    %7842 = vdwg.mxu0
    %7843 = vmatprep.subr.mxu0 0.0
    %7844 = vmatpush1.msra.mxu0 %v6284
    %7845 = vmatprep.subr.mxu0 0.0
    %7846 = vmatpush1.msra.mxu0 %v6285
    %7847 = vmatprep.subr.mxu0 0.0
    %7848 = vmatpush1.msra.mxu0 %v6286
    %7849 = vmatprep.subr.mxu0 0.0
    %7850 = vmatpush1.msra.mxu0 %v6287
    %7851 = vmatprep.subr.mxu0 0.0
    %7852 = vmatpush1.msra.mxu0 %v6288
    %7853 = vmatprep.subr.mxu0 0.0
    %7854 = vmatpush1.msra.mxu0 %v6289
    %7855 = vmatprep.subr.mxu0 0.0
    %7856 = vmatpush1.msra.mxu0 %v6290
    %7857 = vmatprep.subr.mxu0 0.0
    %7858 = vmatpush1.msra.mxu0 %v6291
    %7859 = vmatprep.subr.mxu0 0.0
    %7860 = vmatpush1.msra.mxu0 %v6292
    %7861 = vmatprep.subr.mxu0 0.0
    %7862 = vmatpush1.msra.mxu0 %v6293
    %7863 = vmatprep.subr.mxu0 0.0
    %7864 = vmatpush1.msra.mxu0 %v6294
    %7865 = vmatprep.subr.mxu0 0.0
    %7866 = vmatpush1.msra.mxu0 %v6295
    %7867 = vmatprep.subr.mxu0 0.0
    %7868 = vmatpush1.msra.mxu0 %v6296
    %7869 = vmatprep.subr.mxu0 0.0
    %7870 = vmatpush1.msra.mxu0 %v6297
    %7871 = vmatprep.subr.mxu0 0.0
    %7872 = vmatpush1.msra.mxu0 %v6298
    %7873 = vmatprep.subr.mxu0 0.0
    %7874 = vmatpush1.msra.mxu0 %v6299
    %7875 = vmatprep.subr.mxu0 0.0
    %7876 = vmatpush1.msra.mxu0 %v6300
    %7877 = vmatprep.subr.mxu0 0.0
    %7878 = vmatpush1.msra.mxu0 %v6301
    %7879 = vmatprep.subr.mxu0 0.0
    %7880 = vmatpush1.msra.mxu0 %v6302
    %7881 = vmatprep.subr.mxu0 0.0
    %7882 = vmatpush1.msra.mxu0 %v6303
    %7883 = vmatprep.subr.mxu0 0.0
    %7884 = vmatpush1.msra.mxu0 %v6304
    %7885 = vmatprep.subr.mxu0 0.0
    %7886 = vmatpush1.msra.mxu0 %v6305
    %7887 = vmatprep.subr.mxu0 0.0
    %7888 = vmatpush1.msra.mxu0 %v6306
    %7889 = vmatprep.subr.mxu0 0.0
    %7890 = vmatpush1.msra.mxu0 %v6307
    %7891 = vmatprep.subr.mxu0 0.0
    %7892 = vmatpush1.msra.mxu0 %v6308
    %7893 = vmatprep.subr.mxu0 0.0
    %7894 = vmatpush1.msra.mxu0 %v6309
    %7895 = vmatprep.subr.mxu0 0.0
    %7896 = vmatpush1.msra.mxu0 %v6310
    %7897 = vmatprep.subr.mxu0 0.0
    %7898 = vmatpush1.msra.mxu0 %v6311
    %7899 = vmatprep.subr.mxu0 0.0
    %7900 = vmatpush1.msra.mxu0 %v6312
    %7901 = vmatprep.subr.mxu0 0.0
    %7902 = vmatpush1.msra.mxu0 %v6313
    %7903 = vmatprep.subr.mxu0 0.0
    %7904 = vmatpush1.msra.mxu0 %v6314
    %7905 = vmatprep.subr.mxu0 0.0
    %7906 = vmatpush1.msra.mxu0 %v6315
    %7907 = vmatprep.mubr.f32.mxu0 %v7217
    %7908 = vmatmul.mubr.f32.gmra.mrb[0].mxu0 %v7185
    %v7909 = vpop.f32.mrb[0].mxu0
    %v7910 = vadd.f32 %v7765, %v7909
    %v7911 = vpop.f32.mrb[0].mxu0
    %7912 = vmatprep.mubr.f32.mxu0 %v7218
    %7913 = vmatmul.mubr.f32.gmra.mrb[0].mxu0 %v7186
    %v7914 = vpop.f32.mrb[0].mxu0
    %v7915 = vadd.f32 %v7770, %v7914
    %v7916 = vpop.f32.mrb[0].mxu0
    %7917 = vmatprep.mubr.f32.mxu0 %v7219
    %7918 = vmatmul.mubr.f32.gmra.mrb[0].mxu0 %v7187
    %v7919 = vpop.f32.mrb[0].mxu0
    %v7920 = vadd.f32 %v7775, %v7919
    %v7921 = vpop.f32.mrb[0].mxu0
    %7922 = vmatprep.mubr.f32.mxu0 %v7220
    %7923 = vmatmul.mubr.f32.gmra.mrb[0].mxu0 %v7188
    %v7924 = vpop.f32.mrb[0].mxu0
    %v7925 = vadd.f32 %v7780, %v7924
    %v7926 = vpop.f32.mrb[0].mxu0
    %7927 = vmatprep.mubr.f32.mxu0 %v7221
    %7928 = vmatmul.mubr.f32.gmra.mrb[0].mxu0 %v7189
    %v7929 = vpop.f32.mrb[0].mxu0
    %v7930 = vadd.f32 %v7785, %v7929
    %v7931 = vpop.f32.mrb[0].mxu0
    %7932 = vmatprep.mubr.f32.mxu0 %v7222
    %7933 = vmatmul.mubr.f32.gmra.mrb[0].mxu0 %v7190
    %v7934 = vpop.f32.mrb[0].mxu0
    %v7935 = vadd.f32 %v7790, %v7934
    %v7936 = vpop.f32.mrb[0].mxu0
    %7937 = vmatprep.mubr.f32.mxu0 %v7223
    %7938 = vmatmul.mubr.f32.gmra.mrb[0].mxu0 %v7191
    %v7939 = vpop.f32.mrb[0].mxu0
    %v7940 = vadd.f32 %v7795, %v7939
    %v7941 = vpop.f32.mrb[0].mxu0
    %7942 = vmatprep.mubr.f32.mxu0 %v7224
    %7943 = vmatmul.mubr.f32.gmra.mrb[0].mxu0 %v7192
    %v7944 = vpop.f32.mrb[0].mxu0
    %v7945 = vadd.f32 %v7800, %v7944
    %v7946 = vpop.f32.mrb[0].mxu0
    %7947 = vmatprep.mubr.f32.mxu0 %v7225
    %7948 = vmatmul.mubr.f32.gmra.mrb[0].mxu0 %v7193
    %v7949 = vpop.f32.mrb[0].mxu0
    %v7950 = vadd.f32 %v7805, %v7949
    %v7951 = vpop.f32.mrb[0].mxu0
    %7952 = vmatprep.mubr.f32.mxu0 %v7226
    %7953 = vmatmul.mubr.f32.gmra.mrb[0].mxu0 %v7194
    %v7954 = vpop.f32.mrb[0].mxu0
    %v7955 = vadd.f32 %v7810, %v7954
    %v7956 = vpop.f32.mrb[0].mxu0
    %7957 = vmatprep.mubr.f32.mxu0 %v7227
    %7958 = vmatmul.mubr.f32.gmra.mrb[0].mxu0 %v7195
    %v7959 = vpop.f32.mrb[0].mxu0
    %v7960 = vadd.f32 %v7815, %v7959
    %v7961 = vpop.f32.mrb[0].mxu0
    %7962 = vmatprep.mubr.f32.mxu0 %v7228
    %7963 = vmatmul.mubr.f32.gmra.mrb[0].mxu0 %v7196
    %v7964 = vpop.f32.mrb[0].mxu0
    %v7965 = vadd.f32 %v7820, %v7964
    %v7966 = vpop.f32.mrb[0].mxu0
    %7967 = vmatprep.mubr.f32.mxu0 %v7229
    %7968 = vmatmul.mubr.f32.gmra.mrb[0].mxu0 %v7197
    %v7969 = vpop.f32.mrb[0].mxu0
    %v7970 = vadd.f32 %v7825, %v7969
    %v7971 = vpop.f32.mrb[0].mxu0
    %7972 = vmatprep.mubr.f32.mxu0 %v7230
    %7973 = vmatmul.mubr.f32.gmra.mrb[0].mxu0 %v7198
    %v7974 = vpop.f32.mrb[0].mxu0
    %v7975 = vadd.f32 %v7830, %v7974
    %v7976 = vpop.f32.mrb[0].mxu0
    %7977 = vmatprep.mubr.f32.mxu0 %v7231
    %7978 = vmatmul.mubr.f32.gmra.mrb[0].mxu0 %v7199
    %v7979 = vpop.f32.mrb[0].mxu0
    %v7980 = vadd.f32 %v7835, %v7979
    %v7981 = vpop.f32.mrb[0].mxu0
    %7982 = vmatprep.mubr.f32.mxu0 %v7232
    %7983 = vmatmul.mubr.f32.gmra.mrb[0].mxu0 %v7200
    %v7984 = vpop.f32.mrb[0].mxu0
    %v7985 = vadd.f32 %v7840, %v7984
    %v7986 = vpop.f32.mrb[0].mxu0
    %7987 = vdwg.mxu0
    %7988 = vmatprep.subr.mxu0 0.0
    %7989 = vmatpush1.msra.mxu0 %v6316
    %7990 = vmatprep.subr.mxu0 0.0
    %7991 = vmatpush1.msra.mxu0 %v6317
    %7992 = vmatprep.subr.mxu0 0.0
    %7993 = vmatpush1.msra.mxu0 %v6318
    %7994 = vmatprep.subr.mxu0 0.0
    %7995 = vmatpush1.msra.mxu0 %v6319
    %7996 = vmatprep.subr.mxu0 0.0
    %7997 = vmatpush1.msra.mxu0 %v6320
    %7998 = vmatprep.subr.mxu0 0.0
    %7999 = vmatpush1.msra.mxu0 %v6321
    %8000 = vmatprep.subr.mxu0 0.0
    %8001 = vmatpush1.msra.mxu0 %v6322
    %8002 = vmatprep.subr.mxu0 0.0
    %8003 = vmatpush1.msra.mxu0 %v6323
    %8004 = vmatprep.subr.mxu0 0.0
    %8005 = vmatpush1.msra.mxu0 %v6324
    %8006 = vmatprep.subr.mxu0 0.0
    %8007 = vmatpush1.msra.mxu0 %v6325
    %8008 = vmatprep.subr.mxu0 0.0
    %8009 = vmatpush1.msra.mxu0 %v6326
    %8010 = vmatprep.subr.mxu0 0.0
    %8011 = vmatpush1.msra.mxu0 %v6327
    %8012 = vmatprep.subr.mxu0 0.0
    %8013 = vmatpush1.msra.mxu0 %v6328
    %8014 = vmatprep.subr.mxu0 0.0
    %8015 = vmatpush1.msra.mxu0 %v6329
    %8016 = vmatprep.subr.mxu0 0.0
    %8017 = vmatpush1.msra.mxu0 %v6330
    %8018 = vmatprep.subr.mxu0 0.0
    %8019 = vmatpush1.msra.mxu0 %v6331
    %8020 = vmatprep.subr.mxu0 0.0
    %8021 = vmatpush1.msra.mxu0 %v6332
    %8022 = vmatprep.subr.mxu0 0.0
    %8023 = vmatpush1.msra.mxu0 %v6333
    %8024 = vmatprep.subr.mxu0 0.0
    %8025 = vmatpush1.msra.mxu0 %v6334
    %8026 = vmatprep.subr.mxu0 0.0
    %8027 = vmatpush1.msra.mxu0 %v6335
    %8028 = vmatprep.subr.mxu0 0.0
    %8029 = vmatpush1.msra.mxu0 %v6336
    %8030 = vmatprep.subr.mxu0 0.0
    %8031 = vmatpush1.msra.mxu0 %v6337
    %8032 = vmatprep.subr.mxu0 0.0
    %8033 = vmatpush1.msra.mxu0 %v6338
    %8034 = vmatprep.subr.mxu0 0.0
    %8035 = vmatpush1.msra.mxu0 %v6339
    %8036 = vmatprep.subr.mxu0 0.0
    %8037 = vmatpush1.msra.mxu0 %v6340
    %8038 = vmatprep.subr.mxu0 0.0
    %8039 = vmatpush1.msra.mxu0 %v6341
    %8040 = vmatprep.subr.mxu0 0.0
    %8041 = vmatpush1.msra.mxu0 %v6342
    %8042 = vmatprep.subr.mxu0 0.0
    %8043 = vmatpush1.msra.mxu0 %v6343
    %8044 = vmatprep.subr.mxu0 0.0
    %8045 = vmatpush1.msra.mxu0 %v6344
    %8046 = vmatprep.subr.mxu0 0.0
    %8047 = vmatpush1.msra.mxu0 %v6345
    %8048 = vmatprep.subr.mxu0 0.0
    %8049 = vmatpush1.msra.mxu0 %v6346
    %8050 = vmatprep.subr.mxu0 0.0
    %8051 = vmatpush1.msra.mxu0 %v6347
    %8052 = vmatprep.mubr.f32.mxu0 %v7281
    %8053 = vmatmul.mubr.f32.gmra.mrb[0].mxu0 %v7249
    %v8054 = vpop.f32.mrb[0].mxu0
    %v8055 = vadd.f32 %v7910, %v8054
    %v8056 = vpop.f32.mrb[0].mxu0
    %8057 = vmatprep.mubr.f32.mxu0 %v7282
    %8058 = vmatmul.mubr.f32.gmra.mrb[0].mxu0 %v7250
    %v8059 = vpop.f32.mrb[0].mxu0
    %v8060 = vadd.f32 %v7915, %v8059
    %v8061 = vpop.f32.mrb[0].mxu0
    %8062 = vmatprep.mubr.f32.mxu0 %v7283
    %8063 = vmatmul.mubr.f32.gmra.mrb[0].mxu0 %v7251
    %v8064 = vpop.f32.mrb[0].mxu0
    %v8065 = vadd.f32 %v7920, %v8064
    %v8066 = vpop.f32.mrb[0].mxu0
    %8067 = vmatprep.mubr.f32.mxu0 %v7284
    %8068 = vmatmul.mubr.f32.gmra.mrb[0].mxu0 %v7252
    %v8069 = vpop.f32.mrb[0].mxu0
    %v8070 = vadd.f32 %v7925, %v8069
    %v8071 = vpop.f32.mrb[0].mxu0
    %8072 = vmatprep.mubr.f32.mxu0 %v7285
    %8073 = vmatmul.mubr.f32.gmra.mrb[0].mxu0 %v7253
    %v8074 = vpop.f32.mrb[0].mxu0
    %v8075 = vadd.f32 %v7930, %v8074
    %v8076 = vpop.f32.mrb[0].mxu0
    %8077 = vmatprep.mubr.f32.mxu0 %v7286
    %8078 = vmatmul.mubr.f32.gmra.mrb[0].mxu0 %v7254
    %v8079 = vpop.f32.mrb[0].mxu0
    %v8080 = vadd.f32 %v7935, %v8079
    %v8081 = vpop.f32.mrb[0].mxu0
    %8082 = vmatprep.mubr.f32.mxu0 %v7287
    %8083 = vmatmul.mubr.f32.gmra.mrb[0].mxu0 %v7255
    %v8084 = vpop.f32.mrb[0].mxu0
    %v8085 = vadd.f32 %v7940, %v8084
    %v8086 = vpop.f32.mrb[0].mxu0
    %8087 = vmatprep.mubr.f32.mxu0 %v7288
    %8088 = vmatmul.mubr.f32.gmra.mrb[0].mxu0 %v7256
    %v8089 = vpop.f32.mrb[0].mxu0
    %v8090 = vadd.f32 %v7945, %v8089
    %v8091 = vpop.f32.mrb[0].mxu0
    %8092 = vmatprep.mubr.f32.mxu0 %v7289
    %8093 = vmatmul.mubr.f32.gmra.mrb[0].mxu0 %v7257
    %v8094 = vpop.f32.mrb[0].mxu0
    %v8095 = vadd.f32 %v7950, %v8094
    %v8096 = vpop.f32.mrb[0].mxu0
    %8097 = vmatprep.mubr.f32.mxu0 %v7290
    %8098 = vmatmul.mubr.f32.gmra.mrb[0].mxu0 %v7258
    %v8099 = vpop.f32.mrb[0].mxu0
    %v8100 = vadd.f32 %v7955, %v8099
    %v8101 = vpop.f32.mrb[0].mxu0
    %8102 = vmatprep.mubr.f32.mxu0 %v7291
    %8103 = vmatmul.mubr.f32.gmra.mrb[0].mxu0 %v7259
    %v8104 = vpop.f32.mrb[0].mxu0
    %v8105 = vadd.f32 %v7960, %v8104
    %v8106 = vpop.f32.mrb[0].mxu0
    %8107 = vmatprep.mubr.f32.mxu0 %v7292
    %8108 = vmatmul.mubr.f32.gmra.mrb[0].mxu0 %v7260
    %v8109 = vpop.f32.mrb[0].mxu0
    %v8110 = vadd.f32 %v7965, %v8109
    %v8111 = vpop.f32.mrb[0].mxu0
    %8112 = vmatprep.mubr.f32.mxu0 %v7293
    %8113 = vmatmul.mubr.f32.gmra.mrb[0].mxu0 %v7261
    %v8114 = vpop.f32.mrb[0].mxu0
    %v8115 = vadd.f32 %v7970, %v8114
    %v8116 = vpop.f32.mrb[0].mxu0
    %8117 = vmatprep.mubr.f32.mxu0 %v7294
    %8118 = vmatmul.mubr.f32.gmra.mrb[0].mxu0 %v7262
    %v8119 = vpop.f32.mrb[0].mxu0
    %v8120 = vadd.f32 %v7975, %v8119
    %v8121 = vpop.f32.mrb[0].mxu0
    %8122 = vmatprep.mubr.f32.mxu0 %v7295
    %8123 = vmatmul.mubr.f32.gmra.mrb[0].mxu0 %v7263
    %v8124 = vpop.f32.mrb[0].mxu0
    %v8125 = vadd.f32 %v7980, %v8124
    %v8126 = vpop.f32.mrb[0].mxu0
    %8127 = vmatprep.mubr.f32.mxu0 %v7296
    %8128 = vmatmul.mubr.f32.gmra.mrb[0].mxu0 %v7264
    %v8129 = vpop.f32.mrb[0].mxu0
    %v8130 = vadd.f32 %v7985, %v8129
    %v8131 = vpop.f32.mrb[0].mxu0
    %8132 = vdwg.mxu0
    %8133 = vmatprep.subr.mxu0 0.0
    %8134 = vmatpush1.msra.mxu0 %v6348
    %8135 = vmatprep.subr.mxu0 0.0
    %8136 = vmatpush1.msra.mxu0 %v6349
    %8137 = vmatprep.subr.mxu0 0.0
    %8138 = vmatpush1.msra.mxu0 %v6350
    %8139 = vmatprep.subr.mxu0 0.0
    %8140 = vmatpush1.msra.mxu0 %v6351
    %8141 = vmatprep.subr.mxu0 0.0
    %8142 = vmatpush1.msra.mxu0 %v6352
    %8143 = vmatprep.subr.mxu0 0.0
    %8144 = vmatpush1.msra.mxu0 %v6353
    %8145 = vmatprep.subr.mxu0 0.0
    %8146 = vmatpush1.msra.mxu0 %v6354
    %8147 = vmatprep.subr.mxu0 0.0
    %8148 = vmatpush1.msra.mxu0 %v6355
    %8149 = vmatprep.subr.mxu0 0.0
    %8150 = vmatpush1.msra.mxu0 %v6356
    %8151 = vmatprep.subr.mxu0 0.0
    %8152 = vmatpush1.msra.mxu0 %v6357
    %8153 = vmatprep.subr.mxu0 0.0
    %8154 = vmatpush1.msra.mxu0 %v6358
    %8155 = vmatprep.subr.mxu0 0.0
    %8156 = vmatpush1.msra.mxu0 %v6359
    %8157 = vmatprep.subr.mxu0 0.0
    %8158 = vmatpush1.msra.mxu0 %v6360
    %8159 = vmatprep.subr.mxu0 0.0
    %8160 = vmatpush1.msra.mxu0 %v6361
    %8161 = vmatprep.subr.mxu0 0.0
    %8162 = vmatpush1.msra.mxu0 %v6362
    %8163 = vmatprep.subr.mxu0 0.0
    %8164 = vmatpush1.msra.mxu0 %v6363
    %8165 = vmatprep.subr.mxu0 0.0
    %8166 = vmatpush1.msra.mxu0 %v6364
    %8167 = vmatprep.subr.mxu0 0.0
    %8168 = vmatpush1.msra.mxu0 %v6365
    %8169 = vmatprep.subr.mxu0 0.0
    %8170 = vmatpush1.msra.mxu0 %v6366
    %8171 = vmatprep.subr.mxu0 0.0
    %8172 = vmatpush1.msra.mxu0 %v6367
    %8173 = vmatprep.subr.mxu0 0.0
    %8174 = vmatpush1.msra.mxu0 %v6368
    %8175 = vmatprep.subr.mxu0 0.0
    %8176 = vmatpush1.msra.mxu0 %v6369
    %8177 = vmatprep.subr.mxu0 0.0
    %8178 = vmatpush1.msra.mxu0 %v6370
    %8179 = vmatprep.subr.mxu0 0.0
    %8180 = vmatpush1.msra.mxu0 %v6371
    %8181 = vmatprep.subr.mxu0 0.0
    %8182 = vmatpush1.msra.mxu0 %v6372
    %8183 = vmatprep.subr.mxu0 0.0
    %8184 = vmatpush1.msra.mxu0 %v6373
    %8185 = vmatprep.subr.mxu0 0.0
    %8186 = vmatpush1.msra.mxu0 %v6374
    %8187 = vmatprep.subr.mxu0 0.0
    %8188 = vmatpush1.msra.mxu0 %v6375
    %8189 = vmatprep.subr.mxu0 0.0
    %8190 = vmatpush1.msra.mxu0 %v6376
    %8191 = vmatprep.subr.mxu0 0.0
    %8192 = vmatpush1.msra.mxu0 %v6377
    %8193 = vmatprep.subr.mxu0 0.0
    %8194 = vmatpush1.msra.mxu0 %v6378
    %8195 = vmatprep.subr.mxu0 0.0
    %8196 = vmatpush1.msra.mxu0 %v6379
    %8197 = vmatprep.mubr.f32.mxu0 %v7345
    %8198 = vmatmul.mubr.f32.gmra.mrb[0].mxu0 %v7313
    %v8199 = vpop.f32.mrb[0].mxu0
    %v8200 = vadd.f32 %v8055, %v8199
    %v8201 = vpop.f32.mrb[0].mxu0
    %8202 = vmatprep.mubr.f32.mxu0 %v7346
    %8203 = vmatmul.mubr.f32.gmra.mrb[0].mxu0 %v7314
    %v8204 = vpop.f32.mrb[0].mxu0
    %v8205 = vadd.f32 %v8060, %v8204
    %v8206 = vpop.f32.mrb[0].mxu0
    %8207 = vmatprep.mubr.f32.mxu0 %v7347
    %8208 = vmatmul.mubr.f32.gmra.mrb[0].mxu0 %v7315
    %v8209 = vpop.f32.mrb[0].mxu0
    %v8210 = vadd.f32 %v8065, %v8209
    %v8211 = vpop.f32.mrb[0].mxu0
    %8212 = vmatprep.mubr.f32.mxu0 %v7348
    %8213 = vmatmul.mubr.f32.gmra.mrb[0].mxu0 %v7316
    %v8214 = vpop.f32.mrb[0].mxu0
    %v8215 = vadd.f32 %v8070, %v8214
    %v8216 = vpop.f32.mrb[0].mxu0
    %8217 = vmatprep.mubr.f32.mxu0 %v7349
    %8218 = vmatmul.mubr.f32.gmra.mrb[0].mxu0 %v7317
    %v8219 = vpop.f32.mrb[0].mxu0
    %v8220 = vadd.f32 %v8075, %v8219
    %v8221 = vpop.f32.mrb[0].mxu0
    %8222 = vmatprep.mubr.f32.mxu0 %v7350
    %8223 = vmatmul.mubr.f32.gmra.mrb[0].mxu0 %v7318
    %v8224 = vpop.f32.mrb[0].mxu0
    %v8225 = vadd.f32 %v8080, %v8224
    %v8226 = vpop.f32.mrb[0].mxu0
    %8227 = vmatprep.mubr.f32.mxu0 %v7351
    %8228 = vmatmul.mubr.f32.gmra.mrb[0].mxu0 %v7319
    %v8229 = vpop.f32.mrb[0].mxu0
    %v8230 = vadd.f32 %v8085, %v8229
    %v8231 = vpop.f32.mrb[0].mxu0
    %8232 = vmatprep.mubr.f32.mxu0 %v7352
    %8233 = vmatmul.mubr.f32.gmra.mrb[0].mxu0 %v7320
    %v8234 = vpop.f32.mrb[0].mxu0
    %v8235 = vadd.f32 %v8090, %v8234
    %v8236 = vpop.f32.mrb[0].mxu0
    %8237 = vmatprep.mubr.f32.mxu0 %v7353
    %8238 = vmatmul.mubr.f32.gmra.mrb[0].mxu0 %v7321
    %v8239 = vpop.f32.mrb[0].mxu0
    %v8240 = vadd.f32 %v8095, %v8239
    %v8241 = vpop.f32.mrb[0].mxu0
    %8242 = vmatprep.mubr.f32.mxu0 %v7354
    %8243 = vmatmul.mubr.f32.gmra.mrb[0].mxu0 %v7322
    %v8244 = vpop.f32.mrb[0].mxu0
    %v8245 = vadd.f32 %v8100, %v8244
    %v8246 = vpop.f32.mrb[0].mxu0
    %8247 = vmatprep.mubr.f32.mxu0 %v7355
    %8248 = vmatmul.mubr.f32.gmra.mrb[0].mxu0 %v7323
    %v8249 = vpop.f32.mrb[0].mxu0
    %v8250 = vadd.f32 %v8105, %v8249
    %v8251 = vpop.f32.mrb[0].mxu0
    %8252 = vmatprep.mubr.f32.mxu0 %v7356
    %8253 = vmatmul.mubr.f32.gmra.mrb[0].mxu0 %v7324
    %v8254 = vpop.f32.mrb[0].mxu0
    %v8255 = vadd.f32 %v8110, %v8254
    %v8256 = vpop.f32.mrb[0].mxu0
    %8257 = vmatprep.mubr.f32.mxu0 %v7357
    %8258 = vmatmul.mubr.f32.gmra.mrb[0].mxu0 %v7325
    %v8259 = vpop.f32.mrb[0].mxu0
    %v8260 = vadd.f32 %v8115, %v8259
    %v8261 = vpop.f32.mrb[0].mxu0
    %8262 = vmatprep.mubr.f32.mxu0 %v7358
    %8263 = vmatmul.mubr.f32.gmra.mrb[0].mxu0 %v7326
    %v8264 = vpop.f32.mrb[0].mxu0
    %v8265 = vadd.f32 %v8120, %v8264
    %v8266 = vpop.f32.mrb[0].mxu0
    %8267 = vmatprep.mubr.f32.mxu0 %v7359
    %8268 = vmatmul.mubr.f32.gmra.mrb[0].mxu0 %v7327
    %v8269 = vpop.f32.mrb[0].mxu0
    %v8270 = vadd.f32 %v8125, %v8269
    %v8271 = vpop.f32.mrb[0].mxu0
    %8272 = vmatprep.mubr.f32.mxu0 %v7360
    %8273 = vmatmul.mubr.f32.gmra.mrb[0].mxu0 %v7328
    %v8274 = vpop.f32.mrb[0].mxu0
    %v8275 = vadd.f32 %v8130, %v8274
    %v8276 = vpop.f32.mrb[0].mxu0
    %8277 = vdwg.mxu0
    %8278 = vmatprep.subr.mxu0 0.0
    %8279 = vmatpush1.msra.mxu0 %v6380
    %8280 = vmatprep.subr.mxu0 0.0
    %8281 = vmatpush1.msra.mxu0 %v6381
    %8282 = vmatprep.subr.mxu0 0.0
    %8283 = vmatpush1.msra.mxu0 %v6382
    %8284 = vmatprep.subr.mxu0 0.0
    %8285 = vmatpush1.msra.mxu0 %v6383
    %8286 = vmatprep.subr.mxu0 0.0
    %8287 = vmatpush1.msra.mxu0 %v6384
    %8288 = vmatprep.subr.mxu0 0.0
    %8289 = vmatpush1.msra.mxu0 %v6385
    %8290 = vmatprep.subr.mxu0 0.0
    %8291 = vmatpush1.msra.mxu0 %v6386
    %8292 = vmatprep.subr.mxu0 0.0
    %8293 = vmatpush1.msra.mxu0 %v6387
    %8294 = vmatprep.subr.mxu0 0.0
    %8295 = vmatpush1.msra.mxu0 %v6388
    %8296 = vmatprep.subr.mxu0 0.0
    %8297 = vmatpush1.msra.mxu0 %v6389
    %8298 = vmatprep.subr.mxu0 0.0
    %8299 = vmatpush1.msra.mxu0 %v6390
    %8300 = vmatprep.subr.mxu0 0.0
    %8301 = vmatpush1.msra.mxu0 %v6391
    %8302 = vmatprep.subr.mxu0 0.0
    %8303 = vmatpush1.msra.mxu0 %v6392
    %8304 = vmatprep.subr.mxu0 0.0
    %8305 = vmatpush1.msra.mxu0 %v6393
    %8306 = vmatprep.subr.mxu0 0.0
    %8307 = vmatpush1.msra.mxu0 %v6394
    %8308 = vmatprep.subr.mxu0 0.0
    %8309 = vmatpush1.msra.mxu0 %v6395
    %8310 = vmatprep.subr.mxu0 0.0
    %8311 = vmatpush1.msra.mxu0 %v6396
    %8312 = vmatprep.subr.mxu0 0.0
    %8313 = vmatpush1.msra.mxu0 %v6397
    %8314 = vmatprep.subr.mxu0 0.0
    %8315 = vmatpush1.msra.mxu0 %v6398
    %8316 = vmatprep.subr.mxu0 0.0
    %8317 = vmatpush1.msra.mxu0 %v6399
    %8318 = vmatprep.subr.mxu0 0.0
    %8319 = vmatpush1.msra.mxu0 %v6400
    %8320 = vmatprep.subr.mxu0 0.0
    %8321 = vmatpush1.msra.mxu0 %v6401
    %8322 = vmatprep.subr.mxu0 0.0
    %8323 = vmatpush1.msra.mxu0 %v6402
    %8324 = vmatprep.subr.mxu0 0.0
    %8325 = vmatpush1.msra.mxu0 %v6403
    %8326 = vmatprep.subr.mxu0 0.0
    %8327 = vmatpush1.msra.mxu0 %v6404
    %8328 = vmatprep.subr.mxu0 0.0
    %8329 = vmatpush1.msra.mxu0 %v6405
    %8330 = vmatprep.subr.mxu0 0.0
    %8331 = vmatpush1.msra.mxu0 %v6406
    %8332 = vmatprep.subr.mxu0 0.0
    %8333 = vmatpush1.msra.mxu0 %v6407
    %8334 = vmatprep.subr.mxu0 0.0
    %8335 = vmatpush1.msra.mxu0 %v6408
    %8336 = vmatprep.subr.mxu0 0.0
    %8337 = vmatpush1.msra.mxu0 %v6409
    %8338 = vmatprep.subr.mxu0 0.0
    %8339 = vmatpush1.msra.mxu0 %v6410
    %8340 = vmatprep.subr.mxu0 0.0
    %8341 = vmatpush1.msra.mxu0 %v6411
    %8342 = vmatprep.mubr.f32.mxu0 %v7409
    %8343 = vmatmul.mubr.f32.gmra.mrb[0].mxu0 %v7377
    %v8344 = vpop.f32.mrb[0].mxu0
    %v8345 = vadd.f32 %v8200, %v8344
    %v8346 = vpop.f32.mrb[0].mxu0
    %8347 = vmatprep.mubr.f32.mxu0 %v7410
    %8348 = vmatmul.mubr.f32.gmra.mrb[0].mxu0 %v7378
    %v8349 = vpop.f32.mrb[0].mxu0
    %v8350 = vadd.f32 %v8205, %v8349
    %v8351 = vpop.f32.mrb[0].mxu0
    %8352 = vmatprep.mubr.f32.mxu0 %v7411
    %8353 = vmatmul.mubr.f32.gmra.mrb[0].mxu0 %v7379
    %v8354 = vpop.f32.mrb[0].mxu0
    %v8355 = vadd.f32 %v8210, %v8354
    %v8356 = vpop.f32.mrb[0].mxu0
    %8357 = vmatprep.mubr.f32.mxu0 %v7412
    %8358 = vmatmul.mubr.f32.gmra.mrb[0].mxu0 %v7380
    %v8359 = vpop.f32.mrb[0].mxu0
    %v8360 = vadd.f32 %v8215, %v8359
    %v8361 = vpop.f32.mrb[0].mxu0
    %8362 = vmatprep.mubr.f32.mxu0 %v7413
    %8363 = vmatmul.mubr.f32.gmra.mrb[0].mxu0 %v7381
    %v8364 = vpop.f32.mrb[0].mxu0
    %v8365 = vadd.f32 %v8220, %v8364
    %v8366 = vpop.f32.mrb[0].mxu0
    %8367 = vmatprep.mubr.f32.mxu0 %v7414
    %8368 = vmatmul.mubr.f32.gmra.mrb[0].mxu0 %v7382
    %v8369 = vpop.f32.mrb[0].mxu0
    %v8370 = vadd.f32 %v8225, %v8369
    %v8371 = vpop.f32.mrb[0].mxu0
    %8372 = vmatprep.mubr.f32.mxu0 %v7415
    %8373 = vmatmul.mubr.f32.gmra.mrb[0].mxu0 %v7383
    %v8374 = vpop.f32.mrb[0].mxu0
    %v8375 = vadd.f32 %v8230, %v8374
    %v8376 = vpop.f32.mrb[0].mxu0
    %8377 = vmatprep.mubr.f32.mxu0 %v7416
    %8378 = vmatmul.mubr.f32.gmra.mrb[0].mxu0 %v7384
    %v8379 = vpop.f32.mrb[0].mxu0
    %v8380 = vadd.f32 %v8235, %v8379
    %v8381 = vpop.f32.mrb[0].mxu0
    %8382 = vmatprep.mubr.f32.mxu0 %v7417
    %8383 = vmatmul.mubr.f32.gmra.mrb[0].mxu0 %v7385
    %v8384 = vpop.f32.mrb[0].mxu0
    %v8385 = vadd.f32 %v8240, %v8384
    %v8386 = vpop.f32.mrb[0].mxu0
    %8387 = vmatprep.mubr.f32.mxu0 %v7418
    %8388 = vmatmul.mubr.f32.gmra.mrb[0].mxu0 %v7386
    %v8389 = vpop.f32.mrb[0].mxu0
    %v8390 = vadd.f32 %v8245, %v8389
    %v8391 = vpop.f32.mrb[0].mxu0
    %8392 = vmatprep.mubr.f32.mxu0 %v7419
    %8393 = vmatmul.mubr.f32.gmra.mrb[0].mxu0 %v7387
    %v8394 = vpop.f32.mrb[0].mxu0
    %v8395 = vadd.f32 %v8250, %v8394
    %v8396 = vpop.f32.mrb[0].mxu0
    %8397 = vmatprep.mubr.f32.mxu0 %v7420
    %8398 = vmatmul.mubr.f32.gmra.mrb[0].mxu0 %v7388
    %v8399 = vpop.f32.mrb[0].mxu0
    %v8400 = vadd.f32 %v8255, %v8399
    %v8401 = vpop.f32.mrb[0].mxu0
    %8402 = vmatprep.mubr.f32.mxu0 %v7421
    %8403 = vmatmul.mubr.f32.gmra.mrb[0].mxu0 %v7389
    %v8404 = vpop.f32.mrb[0].mxu0
    %v8405 = vadd.f32 %v8260, %v8404
    %v8406 = vpop.f32.mrb[0].mxu0
    %8407 = vmatprep.mubr.f32.mxu0 %v7422
    %8408 = vmatmul.mubr.f32.gmra.mrb[0].mxu0 %v7390
    %v8409 = vpop.f32.mrb[0].mxu0
    %v8410 = vadd.f32 %v8265, %v8409
    %v8411 = vpop.f32.mrb[0].mxu0
    %8412 = vmatprep.mubr.f32.mxu0 %v7423
    %8413 = vmatmul.mubr.f32.gmra.mrb[0].mxu0 %v7391
    %v8414 = vpop.f32.mrb[0].mxu0
    %v8415 = vadd.f32 %v8270, %v8414
    %v8416 = vpop.f32.mrb[0].mxu0
    %8417 = vmatprep.mubr.f32.mxu0 %v7424
    %8418 = vmatmul.mubr.f32.gmra.mrb[0].mxu0 %v7392
    %v8419 = vpop.f32.mrb[0].mxu0
    %v8420 = vadd.f32 %v8275, %v8419
    %v8421 = vpop.f32.mrb[0].mxu0
    %8422 = vdwg.mxu0
    %8423 = vmatprep.subr.mxu0 0.0
    %8424 = vmatpush1.msra.mxu0 %v6412
    %8425 = vmatprep.subr.mxu0 0.0
    %8426 = vmatpush1.msra.mxu0 %v6413
    %8427 = vmatprep.subr.mxu0 0.0
    %8428 = vmatpush1.msra.mxu0 %v6414
    %8429 = vmatprep.subr.mxu0 0.0
    %8430 = vmatpush1.msra.mxu0 %v6415
    %8431 = vmatprep.subr.mxu0 0.0
    %8432 = vmatpush1.msra.mxu0 %v6416
    %8433 = vmatprep.subr.mxu0 0.0
    %8434 = vmatpush1.msra.mxu0 %v6417
    %8435 = vmatprep.subr.mxu0 0.0
    %8436 = vmatpush1.msra.mxu0 %v6418
    %8437 = vmatprep.subr.mxu0 0.0
    %8438 = vmatpush1.msra.mxu0 %v6419
    %8439 = vmatprep.subr.mxu0 0.0
    %8440 = vmatpush1.msra.mxu0 %v6420
    %8441 = vmatprep.subr.mxu0 0.0
    %8442 = vmatpush1.msra.mxu0 %v6421
    %8443 = vmatprep.subr.mxu0 0.0
    %8444 = vmatpush1.msra.mxu0 %v6422
    %8445 = vmatprep.subr.mxu0 0.0
    %8446 = vmatpush1.msra.mxu0 %v6423
    %8447 = vmatprep.subr.mxu0 0.0
    %8448 = vmatpush1.msra.mxu0 %v6424
    %8449 = vmatprep.subr.mxu0 0.0
    %8450 = vmatpush1.msra.mxu0 %v6425
    %8451 = vmatprep.subr.mxu0 0.0
    %8452 = vmatpush1.msra.mxu0 %v6426
    %8453 = vmatprep.subr.mxu0 0.0
    %8454 = vmatpush1.msra.mxu0 %v6427
    %8455 = vmatprep.subr.mxu0 0.0
    %8456 = vmatpush1.msra.mxu0 %v6428
    %8457 = vmatprep.subr.mxu0 0.0
    %8458 = vmatpush1.msra.mxu0 %v6429
    %8459 = vmatprep.subr.mxu0 0.0
    %8460 = vmatpush1.msra.mxu0 %v6430
    %8461 = vmatprep.subr.mxu0 0.0
    %8462 = vmatpush1.msra.mxu0 %v6431
    %8463 = vmatprep.subr.mxu0 0.0
    %8464 = vmatpush1.msra.mxu0 %v6432
    %8465 = vmatprep.subr.mxu0 0.0
    %8466 = vmatpush1.msra.mxu0 %v6433
    %8467 = vmatprep.subr.mxu0 0.0
    %8468 = vmatpush1.msra.mxu0 %v6434
    %8469 = vmatprep.subr.mxu0 0.0
    %8470 = vmatpush1.msra.mxu0 %v6435
    %8471 = vmatprep.subr.mxu0 0.0
    %8472 = vmatpush1.msra.mxu0 %v6436
    %8473 = vmatprep.subr.mxu0 0.0
    %8474 = vmatpush1.msra.mxu0 %v6437
    %8475 = vmatprep.subr.mxu0 0.0
    %8476 = vmatpush1.msra.mxu0 %v6438
    %8477 = vmatprep.subr.mxu0 0.0
    %8478 = vmatpush1.msra.mxu0 %v6439
    %8479 = vmatprep.subr.mxu0 0.0
    %8480 = vmatpush1.msra.mxu0 %v6440
    %8481 = vmatprep.subr.mxu0 0.0
    %8482 = vmatpush1.msra.mxu0 %v6441
    %8483 = vmatprep.subr.mxu0 0.0
    %8484 = vmatpush1.msra.mxu0 %v6442
    %8485 = vmatprep.subr.mxu0 0.0
    %8486 = vmatpush1.msra.mxu0 %v6443
    %8487 = vmatprep.mubr.f32.mxu0 %v7473
    %8488 = vmatmul.mubr.f32.gmra.mrb[0].mxu0 %v7441
    %v8489 = vpop.f32.mrb[0].mxu0
    %v8490 = vadd.f32 %v8345, %v8489
    %v8491 = vpop.f32.mrb[0].mxu0
    %8492 = vmatprep.mubr.f32.mxu0 %v7474
    %8493 = vmatmul.mubr.f32.gmra.mrb[0].mxu0 %v7442
    %v8494 = vpop.f32.mrb[0].mxu0
    %v8495 = vadd.f32 %v8350, %v8494
    %v8496 = vpop.f32.mrb[0].mxu0
    %8497 = vmatprep.mubr.f32.mxu0 %v7475
    %8498 = vmatmul.mubr.f32.gmra.mrb[0].mxu0 %v7443
    %v8499 = vpop.f32.mrb[0].mxu0
    %v8500 = vadd.f32 %v8355, %v8499
    %v8501 = vpop.f32.mrb[0].mxu0
    %8502 = vmatprep.mubr.f32.mxu0 %v7476
    %8503 = vmatmul.mubr.f32.gmra.mrb[0].mxu0 %v7444
    %v8504 = vpop.f32.mrb[0].mxu0
    %v8505 = vadd.f32 %v8360, %v8504
    %v8506 = vpop.f32.mrb[0].mxu0
    %8507 = vmatprep.mubr.f32.mxu0 %v7477
    %8508 = vmatmul.mubr.f32.gmra.mrb[0].mxu0 %v7445
    %v8509 = vpop.f32.mrb[0].mxu0
    %v8510 = vadd.f32 %v8365, %v8509
    %v8511 = vpop.f32.mrb[0].mxu0
    %8512 = vmatprep.mubr.f32.mxu0 %v7478
    %8513 = vmatmul.mubr.f32.gmra.mrb[0].mxu0 %v7446
    %v8514 = vpop.f32.mrb[0].mxu0
    %v8515 = vadd.f32 %v8370, %v8514
    %v8516 = vpop.f32.mrb[0].mxu0
    %8517 = vmatprep.mubr.f32.mxu0 %v7479
    %8518 = vmatmul.mubr.f32.gmra.mrb[0].mxu0 %v7447
    %v8519 = vpop.f32.mrb[0].mxu0
    %v8520 = vadd.f32 %v8375, %v8519
    %v8521 = vpop.f32.mrb[0].mxu0
    %8522 = vmatprep.mubr.f32.mxu0 %v7480
    %8523 = vmatmul.mubr.f32.gmra.mrb[0].mxu0 %v7448
    %v8524 = vpop.f32.mrb[0].mxu0
    %v8525 = vadd.f32 %v8380, %v8524
    %v8526 = vpop.f32.mrb[0].mxu0
    %8527 = vmatprep.mubr.f32.mxu0 %v7481
    %8528 = vmatmul.mubr.f32.gmra.mrb[0].mxu0 %v7449
    %v8529 = vpop.f32.mrb[0].mxu0
    %v8530 = vadd.f32 %v8385, %v8529
    %v8531 = vpop.f32.mrb[0].mxu0
    %8532 = vmatprep.mubr.f32.mxu0 %v7482
    %8533 = vmatmul.mubr.f32.gmra.mrb[0].mxu0 %v7450
    %v8534 = vpop.f32.mrb[0].mxu0
    %v8535 = vadd.f32 %v8390, %v8534
    %v8536 = vpop.f32.mrb[0].mxu0
    %8537 = vmatprep.mubr.f32.mxu0 %v7483
    %8538 = vmatmul.mubr.f32.gmra.mrb[0].mxu0 %v7451
    %v8539 = vpop.f32.mrb[0].mxu0
    %v8540 = vadd.f32 %v8395, %v8539
    %v8541 = vpop.f32.mrb[0].mxu0
    %8542 = vmatprep.mubr.f32.mxu0 %v7484
    %8543 = vmatmul.mubr.f32.gmra.mrb[0].mxu0 %v7452
    %v8544 = vpop.f32.mrb[0].mxu0
    %v8545 = vadd.f32 %v8400, %v8544
    %v8546 = vpop.f32.mrb[0].mxu0
    %8547 = vmatprep.mubr.f32.mxu0 %v7485
    %8548 = vmatmul.mubr.f32.gmra.mrb[0].mxu0 %v7453
    %v8549 = vpop.f32.mrb[0].mxu0
    %v8550 = vadd.f32 %v8405, %v8549
    %v8551 = vpop.f32.mrb[0].mxu0
    %8552 = vmatprep.mubr.f32.mxu0 %v7486
    %8553 = vmatmul.mubr.f32.gmra.mrb[0].mxu0 %v7454
    %v8554 = vpop.f32.mrb[0].mxu0
    %v8555 = vadd.f32 %v8410, %v8554
    %v8556 = vpop.f32.mrb[0].mxu0
    %8557 = vmatprep.mubr.f32.mxu0 %v7487
    %8558 = vmatmul.mubr.f32.gmra.mrb[0].mxu0 %v7455
    %v8559 = vpop.f32.mrb[0].mxu0
    %v8560 = vadd.f32 %v8415, %v8559
    %v8561 = vpop.f32.mrb[0].mxu0
    %8562 = vmatprep.mubr.f32.mxu0 %v7488
    %8563 = vmatmul.mubr.f32.gmra.mrb[0].mxu0 %v7456
    %v8564 = vpop.f32.mrb[0].mxu0
    %v8565 = vadd.f32 %v8420, %v8564
    %v8566 = vpop.f32.mrb[0].mxu0
    %8567 = vdwg.mxu0
    %8568 = vmatprep.subr.mxu0 0.0
    %8569 = vmatpush1.msra.mxu0 %v6444
    %8570 = vmatprep.subr.mxu0 0.0
    %8571 = vmatpush1.msra.mxu0 %v6445
    %8572 = vmatprep.subr.mxu0 0.0
    %8573 = vmatpush1.msra.mxu0 %v6446
    %8574 = vmatprep.subr.mxu0 0.0
    %8575 = vmatpush1.msra.mxu0 %v6447
    %8576 = vmatprep.subr.mxu0 0.0
    %8577 = vmatpush1.msra.mxu0 %v6448
    %8578 = vmatprep.subr.mxu0 0.0
    %8579 = vmatpush1.msra.mxu0 %v6449
    %8580 = vmatprep.subr.mxu0 0.0
    %8581 = vmatpush1.msra.mxu0 %v6450
    %8582 = vmatprep.subr.mxu0 0.0
    %8583 = vmatpush1.msra.mxu0 %v6451
    %8584 = vmatprep.subr.mxu0 0.0
    %8585 = vmatpush1.msra.mxu0 %v6452
    %8586 = vmatprep.subr.mxu0 0.0
    %8587 = vmatpush1.msra.mxu0 %v6453
    %8588 = vmatprep.subr.mxu0 0.0
    %8589 = vmatpush1.msra.mxu0 %v6454
    %8590 = vmatprep.subr.mxu0 0.0
    %8591 = vmatpush1.msra.mxu0 %v6455
    %8592 = vmatprep.subr.mxu0 0.0
    %8593 = vmatpush1.msra.mxu0 %v6456
    %8594 = vmatprep.subr.mxu0 0.0
    %8595 = vmatpush1.msra.mxu0 %v6457
    %8596 = vmatprep.subr.mxu0 0.0
    %8597 = vmatpush1.msra.mxu0 %v6458
    %8598 = vmatprep.subr.mxu0 0.0
    %8599 = vmatpush1.msra.mxu0 %v6459
    %8600 = vmatprep.subr.mxu0 0.0
    %8601 = vmatpush1.msra.mxu0 %v6460
    %8602 = vmatprep.subr.mxu0 0.0
    %8603 = vmatpush1.msra.mxu0 %v6461
    %8604 = vmatprep.subr.mxu0 0.0
    %8605 = vmatpush1.msra.mxu0 %v6462
    %8606 = vmatprep.subr.mxu0 0.0
    %8607 = vmatpush1.msra.mxu0 %v6463
    %8608 = vmatprep.subr.mxu0 0.0
    %8609 = vmatpush1.msra.mxu0 %v6464
    %8610 = vmatprep.subr.mxu0 0.0
    %8611 = vmatpush1.msra.mxu0 %v6465
    %8612 = vmatprep.subr.mxu0 0.0
    %8613 = vmatpush1.msra.mxu0 %v6466
    %8614 = vmatprep.subr.mxu0 0.0
    %8615 = vmatpush1.msra.mxu0 %v6467
    %8616 = vmatprep.subr.mxu0 0.0
    %8617 = vmatpush1.msra.mxu0 %v6468
    %8618 = vmatprep.subr.mxu0 0.0
    %8619 = vmatpush1.msra.mxu0 %v6469
    %8620 = vmatprep.subr.mxu0 0.0
    %8621 = vmatpush1.msra.mxu0 %v6470
    %8622 = vmatprep.subr.mxu0 0.0
    %8623 = vmatpush1.msra.mxu0 %v6471
    %8624 = vmatprep.subr.mxu0 0.0
    %8625 = vmatpush1.msra.mxu0 %v6472
    %8626 = vmatprep.subr.mxu0 0.0
    %8627 = vmatpush1.msra.mxu0 %v6473
    %8628 = vmatprep.subr.mxu0 0.0
    %8629 = vmatpush1.msra.mxu0 %v6474
    %8630 = vmatprep.subr.mxu0 0.0
    %8631 = vmatpush1.msra.mxu0 %v6475
    %8632 = vmatprep.mubr.f32.mxu0 %v7537
    %8633 = vmatmul.mubr.f32.gmra.mrb[0].mxu0 %v7505
    %v8634 = vpop.f32.mrb[0].mxu0
    %v8635 = vadd.f32 %v8490, %v8634
    %v8636 = vpop.f32.mrb[0].mxu0
    %8637 = vmatprep.mubr.f32.mxu0 %v7538
    %8638 = vmatmul.mubr.f32.gmra.mrb[0].mxu0 %v7506
    %v8639 = vpop.f32.mrb[0].mxu0
    %v8640 = vadd.f32 %v8495, %v8639
    %v8641 = vpop.f32.mrb[0].mxu0
    %8642 = vmatprep.mubr.f32.mxu0 %v7539
    %8643 = vmatmul.mubr.f32.gmra.mrb[0].mxu0 %v7507
    %v8644 = vpop.f32.mrb[0].mxu0
    %v8645 = vadd.f32 %v8500, %v8644
    %v8646 = vpop.f32.mrb[0].mxu0
    %8647 = vmatprep.mubr.f32.mxu0 %v7540
    %8648 = vmatmul.mubr.f32.gmra.mrb[0].mxu0 %v7508
    %v8649 = vpop.f32.mrb[0].mxu0
    %v8650 = vadd.f32 %v8505, %v8649
    %v8651 = vpop.f32.mrb[0].mxu0
    %8652 = vmatprep.mubr.f32.mxu0 %v7541
    %8653 = vmatmul.mubr.f32.gmra.mrb[0].mxu0 %v7509
    %v8654 = vpop.f32.mrb[0].mxu0
    %v8655 = vadd.f32 %v8510, %v8654
    %v8656 = vpop.f32.mrb[0].mxu0
    %8657 = vmatprep.mubr.f32.mxu0 %v7542
    %8658 = vmatmul.mubr.f32.gmra.mrb[0].mxu0 %v7510
    %v8659 = vpop.f32.mrb[0].mxu0
    %v8660 = vadd.f32 %v8515, %v8659
    %v8661 = vpop.f32.mrb[0].mxu0
    %8662 = vmatprep.mubr.f32.mxu0 %v7543
    %8663 = vmatmul.mubr.f32.gmra.mrb[0].mxu0 %v7511
    %v8664 = vpop.f32.mrb[0].mxu0
    %v8665 = vadd.f32 %v8520, %v8664
    %v8666 = vpop.f32.mrb[0].mxu0
    %8667 = vmatprep.mubr.f32.mxu0 %v7544
    %8668 = vmatmul.mubr.f32.gmra.mrb[0].mxu0 %v7512
    %v8669 = vpop.f32.mrb[0].mxu0
    %v8670 = vadd.f32 %v8525, %v8669
    %v8671 = vpop.f32.mrb[0].mxu0
    %8672 = vmatprep.mubr.f32.mxu0 %v7545
    %8673 = vmatmul.mubr.f32.gmra.mrb[0].mxu0 %v7513
    %v8674 = vpop.f32.mrb[0].mxu0
    %v8675 = vadd.f32 %v8530, %v8674
    %v8676 = vpop.f32.mrb[0].mxu0
    %8677 = vmatprep.mubr.f32.mxu0 %v7546
    %8678 = vmatmul.mubr.f32.gmra.mrb[0].mxu0 %v7514
    %v8679 = vpop.f32.mrb[0].mxu0
    %v8680 = vadd.f32 %v8535, %v8679
    %v8681 = vpop.f32.mrb[0].mxu0
    %8682 = vmatprep.mubr.f32.mxu0 %v7547
    %8683 = vmatmul.mubr.f32.gmra.mrb[0].mxu0 %v7515
    %v8684 = vpop.f32.mrb[0].mxu0
    %v8685 = vadd.f32 %v8540, %v8684
    %v8686 = vpop.f32.mrb[0].mxu0
    %8687 = vmatprep.mubr.f32.mxu0 %v7548
    %8688 = vmatmul.mubr.f32.gmra.mrb[0].mxu0 %v7516
    %v8689 = vpop.f32.mrb[0].mxu0
    %v8690 = vadd.f32 %v8545, %v8689
    %v8691 = vpop.f32.mrb[0].mxu0
    %8692 = vmatprep.mubr.f32.mxu0 %v7549
    %8693 = vmatmul.mubr.f32.gmra.mrb[0].mxu0 %v7517
    %v8694 = vpop.f32.mrb[0].mxu0
    %v8695 = vadd.f32 %v8550, %v8694
    %v8696 = vpop.f32.mrb[0].mxu0
    %8697 = vmatprep.mubr.f32.mxu0 %v7550
    %8698 = vmatmul.mubr.f32.gmra.mrb[0].mxu0 %v7518
    %v8699 = vpop.f32.mrb[0].mxu0
    %v8700 = vadd.f32 %v8555, %v8699
    %v8701 = vpop.f32.mrb[0].mxu0
    %8702 = vmatprep.mubr.f32.mxu0 %v7551
    %8703 = vmatmul.mubr.f32.gmra.mrb[0].mxu0 %v7519
    %v8704 = vpop.f32.mrb[0].mxu0
    %v8705 = vadd.f32 %v8560, %v8704
    %v8706 = vpop.f32.mrb[0].mxu0
    %8707 = vmatprep.mubr.f32.mxu0 %v7552
    %8708 = vmatmul.mubr.f32.gmra.mrb[0].mxu0 %v7520
    %v8709 = vpop.f32.mrb[0].mxu0
    %v8710 = vadd.f32 %v8565, %v8709
    %v8711 = vpop.f32.mrb[0].mxu0
    %8712 = vdwg.mxu0
    %v8713 = vadd.f32 %v7009, %v8635
    %v8714 = vadd.f32 %v7010, %v8640
    %v8715 = vadd.f32 %v7011, %v8645
    %v8716 = vadd.f32 %v7012, %v8650
    %v8717 = vadd.f32 %v7013, %v8655
    %v8718 = vadd.f32 %v7014, %v8660
    %v8719 = vadd.f32 %v7015, %v8665
    %v8720 = vadd.f32 %v7016, %v8670
    %v8721 = vadd.f32 %v7017, %v8675
    %v8722 = vadd.f32 %v7018, %v8680
    %v8723 = vadd.f32 %v7019, %v8685
    %v8724 = vadd.f32 %v7020, %v8690
    %v8725 = vadd.f32 %v7021, %v8695
    %v8726 = vadd.f32 %v7022, %v8700
    %v8727 = vadd.f32 %v7023, %v8705
    %v8728 = vadd.f32 %v7024, %v8710
    %8729 = vst [vmem:[#allocation2] sm:$0xff] %v8713
    %8730 = vst [vmem:[#allocation2 + $0x8] sm:$0xff] %v8714
    %8731 = vst [vmem:[#allocation2 + $0x10] sm:$0xff] %v8715
    %8732 = vst [vmem:[#allocation2 + $0x18] sm:$0xff] %v8716
    %8733 = vst [vmem:[#allocation2 + $0x20] sm:$0xff] %v8717
    %8734 = vst [vmem:[#allocation2 + $0x28] sm:$0xff] %v8718
    %8735 = vst [vmem:[#allocation2 + $0x30] sm:$0xff] %v8719
    %8736 = vst [vmem:[#allocation2 + $0x38] sm:$0xff] %v8720
    %8737 = vst [vmem:[#allocation2 + $0x40] sm:$0xff] %v8721
    %8738 = vst [vmem:[#allocation2 + $0x48] sm:$0xff] %v8722
    %8739 = vst [vmem:[#allocation2 + $0x50] sm:$0xff] %v8723
    %8740 = vst [vmem:[#allocation2 + $0x58] sm:$0xff] %v8724
    %8741 = vst [vmem:[#allocation2 + $0x60] sm:$0xff] %v8725
    %8742 = vst [vmem:[#allocation2 + $0x68] sm:$0xff] %v8726
    %8743 = vst [vmem:[#allocation2 + $0x70] sm:$0xff] %v8727
    %8744 = vst [vmem:[#allocation2 + $0x78] sm:$0xff] %v8728
    %v8745 = vmul.f32 %v8713, 0.01
    %v8746 = vmul.f32 %v8714, 0.01
    %v8747 = vmul.f32 %v8715, 0.01
    %v8748 = vmul.f32 %v8716, 0.01
    %v8749 = vmul.f32 %v8717, 0.01
    %v8750 = vmul.f32 %v8718, 0.01
    %v8751 = vmul.f32 %v8719, 0.01
    %v8752 = vmul.f32 %v8720, 0.01
    %v8753 = vmul.f32 %v8721, 0.01
    %v8754 = vmul.f32 %v8722, 0.01
    %v8755 = vmul.f32 %v8723, 0.01
    %v8756 = vmul.f32 %v8724, 0.01
    %v8757 = vmul.f32 %v8725, 0.01
    %v8758 = vmul.f32 %v8726, 0.01
    %v8759 = vmul.f32 %v8727, 0.01
    %v8760 = vmul.f32 %v8728, 0.01
    %v8761 = vsub.f32 %v484, %v8745
    %v8762 = vsub.f32 %v485, %v8746
    %v8763 = vsub.f32 %v486, %v8747
    %v8764 = vsub.f32 %v487, %v8748
    %v8765 = vsub.f32 %v488, %v8749
    %v8766 = vsub.f32 %v489, %v8750
    %v8767 = vsub.f32 %v490, %v8751
    %v8768 = vsub.f32 %v491, %v8752
    %v8769 = vsub.f32 %v492, %v8753
    %v8770 = vsub.f32 %v493, %v8754
    %v8771 = vsub.f32 %v494, %v8755
    %v8772 = vsub.f32 %v495, %v8756
    %v8773 = vsub.f32 %v496, %v8757
    %v8774 = vsub.f32 %v497, %v8758
    %v8775 = vsub.f32 %v498, %v8759
    %v8776 = vsub.f32 %v499, %v8760
    %8777 = vst [vmem:[%s6] sm:$0xff] %v8761
    %8778 = vst [vmem:[%s6 + $0x8] sm:$0xff] %v8762
    %8779 = vst [vmem:[%s6 + $0x10] sm:$0xff] %v8763
    %8780 = vst [vmem:[%s6 + $0x18] sm:$0xff] %v8764
    %8781 = vst [vmem:[%s6 + $0x20] sm:$0xff] %v8765
    %8782 = vst [vmem:[%s6 + $0x28] sm:$0xff] %v8766
    %8783 = vst [vmem:[%s6 + $0x30] sm:$0xff] %v8767
    %8784 = vst [vmem:[%s6 + $0x38] sm:$0xff] %v8768
    %8785 = vst [vmem:[%s6 + $0x40] sm:$0xff] %v8769
    %8786 = vst [vmem:[%s6 + $0x48] sm:$0xff] %v8770
    %8787 = vst [vmem:[%s6 + $0x50] sm:$0xff] %v8771
    %8788 = vst [vmem:[%s6 + $0x58] sm:$0xff] %v8772
    %8789 = vst [vmem:[%s6 + $0x60] sm:$0xff] %v8773
    %8790 = vst [vmem:[%s6 + $0x68] sm:$0xff] %v8774
    %8791 = vst [vmem:[%s6 + $0x70] sm:$0xff] %v8775
    %8792 = vst [vmem:[%s6 + $0x78] sm:$0xff] %v8776
    %v8793 = vld [vmem:[%s7] sm:$0x1]
    %v8794 = vld [vmem:[#allocation3] sm:$0x1]
    %v8795 = vmul.f32 %v8794, 0.9
    %v8796 = vmul.f32 %v8793, 0.0005
    %v8797 = vadd.f32 %v6992, %v8796
    %v8798 = vadd.f32 %v8795, %v8797
    %8799 = vst [vmem:[#allocation3] sm:$0x1] %v8798
    %v8800 = vmul.f32 %v8798, 0.01
    %v8801 = vsub.f32 %v8793, %v8800
    %8802 = vst [vmem:[%s7] sm:$0x1] %v8801
    %v8803 = vld [vmem:[%s8] sm:$0xff]
    %v8804 = vld [vmem:[%s8 + $0x8] sm:$0xff]
    %v8805 = vld [vmem:[%s8 + $0x10] sm:$0xff]
    %v8806 = vld [vmem:[%s8 + $0x18] sm:$0xff]
    %v8807 = vld [vmem:[%s8 + $0x20] sm:$0xff]
    %v8808 = vld [vmem:[%s8 + $0x28] sm:$0xff]
    %v8809 = vld [vmem:[%s8 + $0x30] sm:$0xff]
    %v8810 = vld [vmem:[%s8 + $0x38] sm:$0xff]
    %v8811 = vld [vmem:[%s8 + $0x40] sm:$0xff]
    %v8812 = vld [vmem:[%s8 + $0x48] sm:$0xff]
    %v8813 = vld [vmem:[%s8 + $0x50] sm:$0xff]
    %v8814 = vld [vmem:[%s8 + $0x58] sm:$0xff]
    %v8815 = vld [vmem:[%s8 + $0x60] sm:$0xff]
    %v8816 = vld [vmem:[%s8 + $0x68] sm:$0xff]
    %v8817 = vld [vmem:[%s8 + $0x70] sm:$0xff]
    %v8818 = vld [vmem:[%s8 + $0x78] sm:$0xff]
    %v8819 = vld [vmem:[#allocation4] sm:$0xff]
    %v8820 = vld [vmem:[#allocation4 + $0x8] sm:$0xff]
    %v8821 = vld [vmem:[#allocation4 + $0x10] sm:$0xff]
    %v8822 = vld [vmem:[#allocation4 + $0x18] sm:$0xff]
    %v8823 = vld [vmem:[#allocation4 + $0x20] sm:$0xff]
    %v8824 = vld [vmem:[#allocation4 + $0x28] sm:$0xff]
    %v8825 = vld [vmem:[#allocation4 + $0x30] sm:$0xff]
    %v8826 = vld [vmem:[#allocation4 + $0x38] sm:$0xff]
    %v8827 = vld [vmem:[#allocation4 + $0x40] sm:$0xff]
    %v8828 = vld [vmem:[#allocation4 + $0x48] sm:$0xff]
    %v8829 = vld [vmem:[#allocation4 + $0x50] sm:$0xff]
    %v8830 = vld [vmem:[#allocation4 + $0x58] sm:$0xff]
    %v8831 = vld [vmem:[#allocation4 + $0x60] sm:$0xff]
    %v8832 = vld [vmem:[#allocation4 + $0x68] sm:$0xff]
    %v8833 = vld [vmem:[#allocation4 + $0x70] sm:$0xff]
    %v8834 = vld [vmem:[#allocation4 + $0x78] sm:$0xff]
    %v8835 = vmul.f32 %v8819, 0.9
    %v8836 = vmul.f32 %v8820, 0.9
    %v8837 = vmul.f32 %v8821, 0.9
    %v8838 = vmul.f32 %v8822, 0.9
    %v8839 = vmul.f32 %v8823, 0.9
    %v8840 = vmul.f32 %v8824, 0.9
    %v8841 = vmul.f32 %v8825, 0.9
    %v8842 = vmul.f32 %v8826, 0.9
    %v8843 = vmul.f32 %v8827, 0.9
    %v8844 = vmul.f32 %v8828, 0.9
    %v8845 = vmul.f32 %v8829, 0.9
    %v8846 = vmul.f32 %v8830, 0.9
    %v8847 = vmul.f32 %v8831, 0.9
    %v8848 = vmul.f32 %v8832, 0.9
    %v8849 = vmul.f32 %v8833, 0.9
    %v8850 = vmul.f32 %v8834, 0.9
    %v8851 = vmul.f32 %v8803, 0.0005
    %v8852 = vmul.f32 %v8804, 0.0005
    %v8853 = vmul.f32 %v8805, 0.0005
    %v8854 = vmul.f32 %v8806, 0.0005
    %v8855 = vmul.f32 %v8807, 0.0005
    %v8856 = vmul.f32 %v8808, 0.0005
    %v8857 = vmul.f32 %v8809, 0.0005
    %v8858 = vmul.f32 %v8810, 0.0005
    %v8859 = vmul.f32 %v8811, 0.0005
    %v8860 = vmul.f32 %v8812, 0.0005
    %v8861 = vmul.f32 %v8813, 0.0005
    %v8862 = vmul.f32 %v8814, 0.0005
    %v8863 = vmul.f32 %v8815, 0.0005
    %v8864 = vmul.f32 %v8816, 0.0005
    %v8865 = vmul.f32 %v8817, 0.0005
    %v8866 = vmul.f32 %v8818, 0.0005
    %8867 = vxpose.xlu0.b32.start [1/16] %v3169, 128
    %8868 = vxpose.xlu0.b32.cont [2/16] 0.0, 128
    %8869 = vxpose.xlu0.b32.cont [3/16] 0.0, 128
    %8870 = vxpose.xlu0.b32.cont [4/16] 0.0, 128
    %8871 = vxpose.xlu0.b32.cont [5/16] 0.0, 128
    %8872 = vxpose.xlu0.b32.cont [6/16] 0.0, 128
    %8873 = vxpose.xlu0.b32.cont [7/16] 0.0, 128
    %8874 = vxpose.xlu0.b32.cont [8/16] 0.0, 128
    %8875 = vxpose.xlu0.b32.cont [9/16] 0.0, 128
    %8876 = vxpose.xlu0.b32.cont [10/16] 0.0, 128
    %8877 = vxpose.xlu0.b32.cont [11/16] 0.0, 128
    %8878 = vxpose.xlu0.b32.cont [12/16] 0.0, 128
    %8879 = vxpose.xlu0.b32.cont [13/16] 0.0, 128
    %8880 = vxpose.xlu0.b32.cont [14/16] 0.0, 128
    %8881 = vxpose.xlu0.b32.cont [15/16] 0.0, 128
    %8882 = vxpose.xlu0.b32.end [16/16] 0.0, 128
    %v8883 = vpop.trf.xlu0
    %v8884 = vpop.trf.xlu0
    %v8885 = vpop.trf.xlu0
    %v8886 = vpop.trf.xlu0
    %v8887 = vpop.trf.xlu0
    %v8888 = vpop.trf.xlu0
    %v8889 = vpop.trf.xlu0
    %v8890 = vpop.trf.xlu0
    %v8891 = vpop.trf.xlu0
    %v8892 = vpop.trf.xlu0
    %v8893 = vpop.trf.xlu0
    %v8894 = vpop.trf.xlu0
    %v8895 = vpop.trf.xlu0
    %v8896 = vpop.trf.xlu0
    %v8897 = vpop.trf.xlu0
    %v8898 = vpop.trf.xlu0
    %v8900 = vsel %vm3850, %v8883, 0
    %v8903 = vsel %vm3850, %v8884, 0
    %v8906 = vsel %vm3850, %v8885, 0
    %v8909 = vsel %vm3850, %v8886, 0
    %v8912 = vsel %vm3850, %v8887, 0
    %v8915 = vsel %vm3850, %v8888, 0
    %v8918 = vsel %vm3850, %v8889, 0
    %v8921 = vsel %vm3850, %v8890, 0
    %v8924 = vsel %vm3850, %v8891, 0
    %v8927 = vsel %vm3850, %v8892, 0
    %v8930 = vsel %vm3850, %v8893, 0
    %v8933 = vsel %vm3850, %v8894, 0
    %v8936 = vsel %vm3850, %v8895, 0
    %v8939 = vsel %vm3850, %v8896, 0
    %v8942 = vsel %vm3850, %v8897, 0
    %v8945 = vsel %vm3850, %v8898, 0
    %8947 = vmatprep.subr.mxu0 0.0
    %8948 = vmatpush1.msra.mxu0 %v3261
    %8949 = vmatprep.subr.mxu0 0.0
    %8950 = vmatpush1.msra.mxu0 0.0
    %8951 = vmatprep.subr.mxu0 0.0
    %8952 = vmatpush1.msra.mxu0 0.0
    %8953 = vmatprep.subr.mxu0 0.0
    %8954 = vmatpush1.msra.mxu0 0.0
    %8955 = vmatprep.subr.mxu0 0.0
    %8956 = vmatpush1.msra.mxu0 0.0
    %8957 = vmatprep.subr.mxu0 0.0
    %8958 = vmatpush1.msra.mxu0 0.0
    %8959 = vmatprep.subr.mxu0 0.0
    %8960 = vmatpush1.msra.mxu0 0.0
    %8961 = vmatprep.subr.mxu0 0.0
    %8962 = vmatpush1.msra.mxu0 0.0
    %8963 = vmatprep.subr.mxu0 0.0
    %8964 = vmatpush1.msra.mxu0 0.0
    %8965 = vmatprep.subr.mxu0 0.0
    %8966 = vmatpush1.msra.mxu0 0.0
    %8967 = vmatprep.subr.mxu0 0.0
    %8968 = vmatpush1.msra.mxu0 0.0
    %8969 = vmatprep.subr.mxu0 0.0
    %8970 = vmatpush1.msra.mxu0 0.0
    %8971 = vmatprep.subr.mxu0 0.0
    %8972 = vmatpush1.msra.mxu0 0.0
    %8973 = vmatprep.subr.mxu0 0.0
    %8974 = vmatpush1.msra.mxu0 0.0
    %8975 = vmatprep.subr.mxu0 0.0
    %8976 = vmatpush1.msra.mxu0 0.0
    %8977 = vmatprep.subr.mxu0 0.0
    %8978 = vmatpush1.msra.mxu0 0.0
    %8979 = vmatprep.subr.mxu0 0.0
    %8980 = vmatpush1.msra.mxu0 0.0
    %8981 = vmatprep.subr.mxu0 0.0
    %8982 = vmatpush1.msra.mxu0 0.0
    %8983 = vmatprep.subr.mxu0 0.0
    %8984 = vmatpush1.msra.mxu0 0.0
    %8985 = vmatprep.subr.mxu0 0.0
    %8986 = vmatpush1.msra.mxu0 0.0
    %8987 = vmatprep.subr.mxu0 0.0
    %8988 = vmatpush1.msra.mxu0 0.0
    %8989 = vmatprep.subr.mxu0 0.0
    %8990 = vmatpush1.msra.mxu0 0.0
    %8991 = vmatprep.subr.mxu0 0.0
    %8992 = vmatpush1.msra.mxu0 0.0
    %8993 = vmatprep.subr.mxu0 0.0
    %8994 = vmatpush1.msra.mxu0 0.0
    %8995 = vmatprep.subr.mxu0 0.0
    %8996 = vmatpush1.msra.mxu0 0.0
    %8997 = vmatprep.subr.mxu0 0.0
    %8998 = vmatpush1.msra.mxu0 0.0
    %8999 = vmatprep.subr.mxu0 0.0
    %9000 = vmatpush1.msra.mxu0 0.0
    %9001 = vmatprep.subr.mxu0 0.0
    %9002 = vmatpush1.msra.mxu0 0.0
    %9003 = vmatprep.subr.mxu0 0.0
    %9004 = vmatpush1.msra.mxu0 0.0
    %9005 = vmatprep.subr.mxu0 0.0
    %9006 = vmatpush1.msra.mxu0 0.0
    %9007 = vmatprep.subr.mxu0 0.0
    %9008 = vmatpush1.msra.mxu0 0.0
    %9009 = vmatprep.subr.mxu0 0.0
    %9010 = vmatpush1.msra.mxu0 0.0
    %9011 = vmatprep.mubr.f32.mxu0 0.0
    %9012 = vmatmul.mubr.f32.gmra.mrb[0].mxu0 %v8900
    %v9013 = vpop.f32.mrb[0].mxu0
    %v9014 = vadd.f32 %v8851, %v9013
    %v9015 = vpop.f32.mrb[0].mxu0
    %9016 = vmatprep.mubr.f32.mxu0 0.0
    %9017 = vmatmul.mubr.f32.gmra.mrb[0].mxu0 %v8903
    %v9018 = vpop.f32.mrb[0].mxu0
    %v9019 = vadd.f32 %v8852, %v9018
    %v9020 = vpop.f32.mrb[0].mxu0
    %9021 = vmatprep.mubr.f32.mxu0 0.0
    %9022 = vmatmul.mubr.f32.gmra.mrb[0].mxu0 %v8906
    %v9023 = vpop.f32.mrb[0].mxu0
    %v9024 = vadd.f32 %v8853, %v9023
    %v9025 = vpop.f32.mrb[0].mxu0
    %9026 = vmatprep.mubr.f32.mxu0 0.0
    %9027 = vmatmul.mubr.f32.gmra.mrb[0].mxu0 %v8909
    %v9028 = vpop.f32.mrb[0].mxu0
    %v9029 = vadd.f32 %v8854, %v9028
    %v9030 = vpop.f32.mrb[0].mxu0
    %9031 = vmatprep.mubr.f32.mxu0 0.0
    %9032 = vmatmul.mubr.f32.gmra.mrb[0].mxu0 %v8912
    %v9033 = vpop.f32.mrb[0].mxu0
    %v9034 = vadd.f32 %v8855, %v9033
    %v9035 = vpop.f32.mrb[0].mxu0
    %9036 = vmatprep.mubr.f32.mxu0 0.0
    %9037 = vmatmul.mubr.f32.gmra.mrb[0].mxu0 %v8915
    %v9038 = vpop.f32.mrb[0].mxu0
    %v9039 = vadd.f32 %v8856, %v9038
    %v9040 = vpop.f32.mrb[0].mxu0
    %9041 = vmatprep.mubr.f32.mxu0 0.0
    %9042 = vmatmul.mubr.f32.gmra.mrb[0].mxu0 %v8918
    %v9043 = vpop.f32.mrb[0].mxu0
    %v9044 = vadd.f32 %v8857, %v9043
    %v9045 = vpop.f32.mrb[0].mxu0
    %9046 = vmatprep.mubr.f32.mxu0 0.0
    %9047 = vmatmul.mubr.f32.gmra.mrb[0].mxu0 %v8921
    %v9048 = vpop.f32.mrb[0].mxu0
    %v9049 = vadd.f32 %v8858, %v9048
    %v9050 = vpop.f32.mrb[0].mxu0
    %9051 = vmatprep.mubr.f32.mxu0 0.0
    %9052 = vmatmul.mubr.f32.gmra.mrb[0].mxu0 %v8924
    %v9053 = vpop.f32.mrb[0].mxu0
    %v9054 = vadd.f32 %v8859, %v9053
    %v9055 = vpop.f32.mrb[0].mxu0
    %9056 = vmatprep.mubr.f32.mxu0 0.0
    %9057 = vmatmul.mubr.f32.gmra.mrb[0].mxu0 %v8927
    %v9058 = vpop.f32.mrb[0].mxu0
    %v9059 = vadd.f32 %v8860, %v9058
    %v9060 = vpop.f32.mrb[0].mxu0
    %9061 = vmatprep.mubr.f32.mxu0 0.0
    %9062 = vmatmul.mubr.f32.gmra.mrb[0].mxu0 %v8930
    %v9063 = vpop.f32.mrb[0].mxu0
    %v9064 = vadd.f32 %v8861, %v9063
    %v9065 = vpop.f32.mrb[0].mxu0
    %9066 = vmatprep.mubr.f32.mxu0 0.0
    %9067 = vmatmul.mubr.f32.gmra.mrb[0].mxu0 %v8933
    %v9068 = vpop.f32.mrb[0].mxu0
    %v9069 = vadd.f32 %v8862, %v9068
    %v9070 = vpop.f32.mrb[0].mxu0
    %9071 = vmatprep.mubr.f32.mxu0 0.0
    %9072 = vmatmul.mubr.f32.gmra.mrb[0].mxu0 %v8936
    %v9073 = vpop.f32.mrb[0].mxu0
    %v9074 = vadd.f32 %v8863, %v9073
    %v9075 = vpop.f32.mrb[0].mxu0
    %9076 = vmatprep.mubr.f32.mxu0 0.0
    %9077 = vmatmul.mubr.f32.gmra.mrb[0].mxu0 %v8939
    %v9078 = vpop.f32.mrb[0].mxu0
    %v9079 = vadd.f32 %v8864, %v9078
    %v9080 = vpop.f32.mrb[0].mxu0
    %9081 = vmatprep.mubr.f32.mxu0 0.0
    %9082 = vmatmul.mubr.f32.gmra.mrb[0].mxu0 %v8942
    %v9083 = vpop.f32.mrb[0].mxu0
    %v9084 = vadd.f32 %v8865, %v9083
    %v9085 = vpop.f32.mrb[0].mxu0
    %9086 = vmatprep.mubr.f32.mxu0 0.0
    %9087 = vmatmul.mubr.f32.gmra.mrb[0].mxu0 %v8945
    %v9088 = vpop.f32.mrb[0].mxu0
    %v9089 = vadd.f32 %v8866, %v9088
    %v9090 = vpop.f32.mrb[0].mxu0
    %9091 = vdwg.mxu0
    %v9092 = vadd.f32 %v8835, %v9014
    %v9093 = vadd.f32 %v8836, %v9019
    %v9094 = vadd.f32 %v8837, %v9024
    %v9095 = vadd.f32 %v8838, %v9029
    %v9096 = vadd.f32 %v8839, %v9034
    %v9097 = vadd.f32 %v8840, %v9039
    %v9098 = vadd.f32 %v8841, %v9044
    %v9099 = vadd.f32 %v8842, %v9049
    %v9100 = vadd.f32 %v8843, %v9054
    %v9101 = vadd.f32 %v8844, %v9059
    %v9102 = vadd.f32 %v8845, %v9064
    %v9103 = vadd.f32 %v8846, %v9069
    %v9104 = vadd.f32 %v8847, %v9074
    %v9105 = vadd.f32 %v8848, %v9079
    %v9106 = vadd.f32 %v8849, %v9084
    %v9107 = vadd.f32 %v8850, %v9089
    %9108 = vst [vmem:[#allocation4] sm:$0xff] %v9092
    %9109 = vst [vmem:[#allocation4 + $0x8] sm:$0xff] %v9093
    %9110 = vst [vmem:[#allocation4 + $0x10] sm:$0xff] %v9094
    %9111 = vst [vmem:[#allocation4 + $0x18] sm:$0xff] %v9095
    %9112 = vst [vmem:[#allocation4 + $0x20] sm:$0xff] %v9096
    %9113 = vst [vmem:[#allocation4 + $0x28] sm:$0xff] %v9097
    %9114 = vst [vmem:[#allocation4 + $0x30] sm:$0xff] %v9098
    %9115 = vst [vmem:[#allocation4 + $0x38] sm:$0xff] %v9099
    %9116 = vst [vmem:[#allocation4 + $0x40] sm:$0xff] %v9100
    %9117 = vst [vmem:[#allocation4 + $0x48] sm:$0xff] %v9101
    %9118 = vst [vmem:[#allocation4 + $0x50] sm:$0xff] %v9102
    %9119 = vst [vmem:[#allocation4 + $0x58] sm:$0xff] %v9103
    %9120 = vst [vmem:[#allocation4 + $0x60] sm:$0xff] %v9104
    %9121 = vst [vmem:[#allocation4 + $0x68] sm:$0xff] %v9105
    %9122 = vst [vmem:[#allocation4 + $0x70] sm:$0xff] %v9106
    %9123 = vst [vmem:[#allocation4 + $0x78] sm:$0xff] %v9107
    %v9124 = vmul.f32 %v9092, 0.01
    %v9125 = vmul.f32 %v9093, 0.01
    %v9126 = vmul.f32 %v9094, 0.01
    %v9127 = vmul.f32 %v9095, 0.01
    %v9128 = vmul.f32 %v9096, 0.01
    %v9129 = vmul.f32 %v9097, 0.01
    %v9130 = vmul.f32 %v9098, 0.01
    %v9131 = vmul.f32 %v9099, 0.01
    %v9132 = vmul.f32 %v9100, 0.01
    %v9133 = vmul.f32 %v9101, 0.01
    %v9134 = vmul.f32 %v9102, 0.01
    %v9135 = vmul.f32 %v9103, 0.01
    %v9136 = vmul.f32 %v9104, 0.01
    %v9137 = vmul.f32 %v9105, 0.01
    %v9138 = vmul.f32 %v9106, 0.01
    %v9139 = vmul.f32 %v9107, 0.01
    %v9140 = vsub.f32 %v8803, %v9124
    %v9141 = vsub.f32 %v8804, %v9125
    %v9142 = vsub.f32 %v8805, %v9126
    %v9143 = vsub.f32 %v8806, %v9127
    %v9144 = vsub.f32 %v8807, %v9128
    %v9145 = vsub.f32 %v8808, %v9129
    %v9146 = vsub.f32 %v8809, %v9130
    %v9147 = vsub.f32 %v8810, %v9131
    %v9148 = vsub.f32 %v8811, %v9132
    %v9149 = vsub.f32 %v8812, %v9133
    %v9150 = vsub.f32 %v8813, %v9134
    %v9151 = vsub.f32 %v8814, %v9135
    %v9152 = vsub.f32 %v8815, %v9136
    %v9153 = vsub.f32 %v8816, %v9137
    %v9154 = vsub.f32 %v8817, %v9138
    %v9155 = vsub.f32 %v8818, %v9139
    %9156 = vst [vmem:[%s8] sm:$0xff] %v9140
    %9157 = vst [vmem:[%s8 + $0x8] sm:$0xff] %v9141
    %9158 = vst [vmem:[%s8 + $0x10] sm:$0xff] %v9142
    %9159 = vst [vmem:[%s8 + $0x18] sm:$0xff] %v9143
    %9160 = vst [vmem:[%s8 + $0x20] sm:$0xff] %v9144
    %9161 = vst [vmem:[%s8 + $0x28] sm:$0xff] %v9145
    %9162 = vst [vmem:[%s8 + $0x30] sm:$0xff] %v9146
    %9163 = vst [vmem:[%s8 + $0x38] sm:$0xff] %v9147
    %9164 = vst [vmem:[%s8 + $0x40] sm:$0xff] %v9148
    %9165 = vst [vmem:[%s8 + $0x48] sm:$0xff] %v9149
    %9166 = vst [vmem:[%s8 + $0x50] sm:$0xff] %v9150
    %9167 = vst [vmem:[%s8 + $0x58] sm:$0xff] %v9151
    %9168 = vst [vmem:[%s8 + $0x60] sm:$0xff] %v9152
    %9169 = vst [vmem:[%s8 + $0x68] sm:$0xff] %v9153
    %9170 = vst [vmem:[%s8 + $0x70] sm:$0xff] %v9154
    %9171 = vst [vmem:[%s8 + $0x78] sm:$0xff] %v9155
    %v9172 = vld [vmem:[%s9] sm:$0x1]
    %v9173 = vld [vmem:[#allocation5] sm:$0x1]
    %v9174 = vmul.f32 %v9173, 0.9
    %v9175 = vmul.f32 %v9172, 0.0005
    %v9176 = vadd.f32 %v3267, %v9175
    %v9177 = vadd.f32 %v9174, %v9176
    %9178 = vst [vmem:[#allocation5] sm:$0x1] %v9177
    %v9179 = vmul.f32 %v9177, 0.01
    %v9180 = vsub.f32 %v9172, %v9179
    %9181 = vst [vmem:[%s9] sm:$0x1] %v9180
  $region30: #{podd_forward.2} parent=0 // loop_footer
    %s221 = sadd.s32 1, %s217
  $region31: #{podd_forward.2} parent=0 // loop_footer_branch
    %216 = sbr.rel target = $region27
  $region32: #{podd_forward.2} parent=0 // loop_exit
    _
  // Predicated region
  $region33: #{podd_forward.2} parent=0 // pred_check
    _
  $region34: #{podd_forward.2} parent=0 // pred_check_branch
    %9183 = sbr.rel (0) target = $region36
  $region35: #{podd_forward.2} parent=0 // pred_region
    _
  $region36: #{podd_forward.2} parent=0 // pred_fallthru
    _
  // Predicated region
  $region37: #{podd_forward.2} parent=0 // pred_check
    _
  $region38: #{podd_forward.2} parent=0 // pred_check_branch
    %9185 = sbr.rel (0) target = $region40
  $region39: #{podd_forward.2} parent=0 // pred_region
    _
  $region40: #{podd_forward.2} parent=0 // pred_fallthru
    _
  // Predicated region
  $region41: #{podd_forward.2} parent=0 // pred_check
    _
  $region42: #{podd_forward.2} parent=0 // pred_check_branch
    %9187 = sbr.rel (0) target = $region44
  $region43: #{podd_forward.2} parent=0 // pred_region
    _
  $region44: #{podd_forward.2} parent=0 // pred_fallthru
    _
  // Predicated region
  $region45: #{podd_forward.2} parent=0 // pred_check
    _
  $region46: #{podd_forward.2} parent=0 // pred_check_branch
    %9189 = sbr.rel (0) target = $region48
  $region47: #{podd_forward.2} parent=0 // pred_region
    _
  $region48: #{podd_forward.2} parent=0 // pred_fallthru
    _
  // Predicated region
  $region49: #{podd_forward.2} parent=0 // pred_check
    _
  $region50: #{podd_forward.2} parent=0 // pred_check_branch
    %9191 = sbr.rel (0) target = $region52
  $region51: #{podd_forward.2} parent=0 // pred_region
    _
  $region52: #{podd_forward.2} parent=0 // pred_fallthru
    _
  // Predicated region
  $region53: #{podd_forward.2} parent=0 // pred_check
    _
  $region54: #{podd_forward.2} parent=0 // pred_check_branch
    %9193 = sbr.rel (0) target = $region56
  $region55: #{podd_forward.2} parent=0 // pred_region
    _
  $region56: #{podd_forward.2} parent=0 // pred_fallthru
    _
  // Predicated region
  $region57: #{podd_forward.2} parent=0 // pred_check
    _
  $region58: #{podd_forward.2} parent=0 // pred_check_branch
    %9195 = sbr.rel (0) target = $region60
  $region59: #{podd_forward.2} parent=0 // pred_region
    _
  $region60: #{podd_forward.2} parent=0 // pred_fallthru
    _
  // Predicated region
  $region61: #{podd_forward.2} parent=0 // pred_check
    _
  $region62: #{podd_forward.2} parent=0 // pred_check_branch
    %9197 = sbr.rel (0) target = $region64
  $region63: #{podd_forward.2} parent=0 // pred_region
    _
  $region64: #{podd_forward.2} parent=0 // pred_fallthru
    _

</llo_original>
